<compile_context>
chip_gen: v5e
topology: v5e:2x2
jax: 0.10.0
libtpu: 0.0.40
codegen_flags: <defaults>
</compile_context>

<pallas_src>
import functools

import jax
import jax.numpy as jnp
from jax.experimental import pallas as pl
from jax.experimental.pallas import tpu as pltpu

OUT_CHANNELS = 256
BN_EPS = 1e-5


def _pick_vmem_limit():
    """~Half of physical VMEM: 64 MiB on v5e/v6e (128 MiB), 32 MiB on v7x (64 MiB)."""
    try:
        cap = pltpu.get_tpu_info().vmem_capacity_bytes
        return int(min(100 * 1024 * 1024, max(32 * 1024 * 1024, cap // 2)))
    except Exception:  # conservative fallback for any query failure
        return 32 * 1024 * 1024


_VMEM_LIMIT_BYTES = _pick_vmem_limit()


def _choose_row_tile(H, W, target_rows=1024):
    """Row-tile height giving ~target_rows rows of the flattened (th*W, Cin)
    matmul, with at least two row tiles when possible (pipelining + megacore)."""
    th = max(1, min(H, target_rows // max(W, 1)))
    if H > 1 and -(-H // th) < 2:
        th = (H + 1) // 2
    return th


# ---------------------------------------------------------------------------
# Fused ASPP kernel: one (batch n, row-tile j) grid step computes all four
# spatial branches + the concat/projection 1x1 conv + BN(folded) + ReLU for
# `th` output rows.
# ---------------------------------------------------------------------------
def _aspp_fused_kernel(x_ref, pc_ref, w0_ref, b0_ref,
                       w1_ref, bb1_ref, w2_ref, bb2_ref, w3_ref, bb3_ref,
                       wp_ref, bp_ref, o_ref, *, dilations, dmax, th, W):
    j = pl.program_id(1)
    row0 = pl.multiple_of(j * th, th)            # first padded row of this tile
    slab = x_ref[pl.ds(row0, th + 2 * dmax)]     # (th+2*dmax, W+2*dmax, Cin) bf16

    Cin = slab.shape[-1]
    C = o_ref.shape[-1]
    M = th * W

    def tap(dy, dx):
        # (th, W, Cin) shifted window of the padded image, flattened for the MXU.
        return slab[dy:dy + th, dx:dx + W, :].reshape(M, Cin)

    # ---- branch 0: 1x1 conv (+ folded BN) + ReLU, projected immediately ----
    y0 = jnp.dot(tap(dmax, dmax), w0_ref[...], preferred_element_type=jnp.float32)
    y0 = jnp.maximum(y0 + b0_ref[...], 0.0)
    proj = jnp.dot(y0.astype(jnp.bfloat16), wp_ref[0],
                   preferred_element_type=jnp.float32)

    # ---- branches 1..3: dilated 3x3 conv = 9 shifted 1x1 matmuls (f32 acc) ----
    for bi, (d, w_ref, b_ref) in enumerate(
            zip(dilations, (w1_ref, w2_ref, w3_ref),
                (bb1_ref, bb2_ref, bb3_ref))):
        acc = None
        for ky in range(3):
            for kx in range(3):
                t = jnp.dot(tap(dmax - d + ky * d, dmax - d + kx * d),
                            w_ref[3 * ky + kx],
                            preferred_element_type=jnp.float32)
                acc = t if acc is None else acc + t
        yb = jnp.maximum(acc + b_ref[...], 0.0)
        proj = proj + jnp.dot(yb.astype(jnp.bfloat16), wp_ref[bi + 1],
                              preferred_element_type=jnp.float32)

    # ---- pooled-branch contribution (spatially constant) + proj bias + ReLU ----
    out = jnp.maximum(proj + pc_ref[...] + bp_ref[...], 0.0)
    o_ref[...] = out.reshape(th, W, C).astype(o_ref.dtype)


def _aspp_fused_pallas(xp, pool_contrib, params, dilations, th, H_pad, W):
    N, Hp, Wp, Cin = xp.shape
    C = OUT_CHANNELS
    dmax = max(dilations)
    grid = (N, H_pad // th)

    kernel = functools.partial(_aspp_fused_kernel, dilations=dilations,
                               dmax=dmax, th=th, W=W)

    def const2(n, j):
        return (0, 0)

    def const3(n, j):
        return (0, 0, 0)

    in_specs = [
        # Full padded image per batch element.  The block index depends only
        # on n, so the DMA happens once per image and is re-used across all
        # row tiles (no per-tile re-streaming of x).
        pl.BlockSpec((None, Hp, Wp, Cin), lambda n, j: (n, 0, 0, 0)),
        # Per-batch pooled-branch projection contribution.
        pl.BlockSpec((None, 1, C), lambda n, j: (n, 0, 0)),
        # Weights / biases: constant index_map -> VMEM-resident, DMA'd once.
        pl.BlockSpec((Cin, C), const2),           # w0 (1x1 branch)
        pl.BlockSpec((1, C), const2),             # b0
        pl.BlockSpec((9, Cin, C), const3),        # wd[0]
        pl.BlockSpec((1, C), const2),             # bd[0]
        pl.BlockSpec((9, Cin, C), const3),        # wd[1]
        pl.BlockSpec((1, C), const2),             # bd[1]
        pl.BlockSpec((9, Cin, C), const3),        # wd[2]
        pl.BlockSpec((1, C), const2),             # bd[2]
        pl.BlockSpec((4, C, C), const3),          # projection blocks 0..3
        pl.BlockSpec((1, C), const2),             # projection bias
    ]
    out_spec = pl.BlockSpec((None, th, W, C), lambda n, j: (n, j, 0, 0))

    return pl.pallas_call(
        kernel,
        out_shape=jax.ShapeDtypeStruct((N, H_pad, W, C), jnp.float32),
        grid=grid,
        in_specs=in_specs,
        out_specs=out_spec,
        compiler_params=pltpu.CompilerParams(
            dimension_semantics=("parallel", "parallel"),
            vmem_limit_bytes=_VMEM_LIMIT_BYTES,
        ),
    )(xp, pool_contrib,
      params['w0'], params['b0'],
      params['wd'][0], params['bd'][0],
      params['wd'][1], params['bd'][1],
      params['wd'][2], params['bd'][2],
      params['wp'], params['bp'])


# ---------------------------------------------------------------------------
# Parameter initialization (deterministic, synthetic).
# BN (eval-mode) scale is folded into the conv weights; weights stored bf16.
# ---------------------------------------------------------------------------
def init_params(key, in_channels, atrous_rates):
    C = OUT_CHANNELS
    assert len(atrous_rates) == 3
    keys = jax.random.split(key, 12)

    def bn_fold(k):
        k1, k2, k3, k4 = jax.random.split(k, 4)
        gamma = 1.0 + 0.1 * jax.random.normal(k1, (C,), jnp.float32)
        beta = 0.1 * jax.random.normal(k2, (C,), jnp.float32)
        rmean = 0.1 * jax.random.normal(k3, (C,), jnp.float32)
        rvar = jnp.abs(1.0 + 0.1 * jax.random.normal(k4, (C,), jnp.float32))
        scale = gamma / jnp.sqrt(rvar + BN_EPS)
        bias = beta - rmean * scale
        return scale, bias

    # Branch 0: 1x1 conv
    w0 = 0.1 * jax.random.normal(keys[0], (C, in_channels, 1, 1), jnp.float32)
    s0, b0 = bn_fold(keys[1])
    w0_2d = (jnp.transpose(w0[:, :, 0, 0], (1, 0)) * s0[None, :]).astype(jnp.bfloat16)

    # Branches 1..3: dilated 3x3 convs -> (9, Cin, C) tap-major weights
    wd, bd = [], []
    for i in range(3):
        wk = 0.1 * jax.random.normal(keys[2 + 2 * i],
                                     (C, in_channels, 3, 3), jnp.float32)
        sk, bk = bn_fold(keys[3 + 2 * i])
        w9 = (jnp.transpose(wk, (2, 3, 1, 0)).reshape(9, in_channels, C)
              * sk[None, None, :])
        wd.append(w9.astype(jnp.bfloat16))
        bd.append(bk.reshape(1, C))

    # Pooling branch: 1x1 conv (tiny matmul, stays in plain JAX / f32)
    wpk = 0.1 * jax.random.normal(keys[8], (C, in_channels, 1, 1), jnp.float32)
    sp, bpool = bn_fold(keys[9])
    wpool = jnp.transpose(wpk[:, :, 0, 0], (1, 0)) * sp[None, :]

    # Projection: 1x1 conv over 5*C channels, split into 5 (C, C) row-blocks
    wpr = 0.05 * jax.random.normal(keys[10], (C, 5 * C, 1, 1), jnp.float32)
    spr, bpr = bn_fold(keys[11])
    wpr2d = jnp.transpose(wpr[:, :, 0, 0], (1, 0)) * spr[None, :]   # (5C, C)
    wp_blocks = wpr2d.reshape(5, C, C)

    return dict(
        w0=w0_2d, b0=b0.reshape(1, C),
        wd=tuple(wd), bd=tuple(bd),
        wpool=wpool, bpool=bpool,
        wp=wp_blocks[:4].astype(jnp.bfloat16),   # spatial-branch proj blocks
        wp_pool=wp_blocks[4],                    # pool-branch proj block (f32)
        bp=bpr.reshape(1, C),
    )


# ---------------------------------------------------------------------------
# ASPP forward
# ---------------------------------------------------------------------------
@functools.partial(jax.jit, static_argnums=(2,))
def aspp_forward(x_nchw, params, atrous_rates):
    N, Cin, H, W = x_nchw.shape
    C = OUT_CHANNELS
    dilations = tuple(int(d) for d in atrous_rates)
    assert len(dilations) == 3
    dmax = max(dilations)

    # Single NCHW->NHWC transpose at the model boundary.
    x_nhwc = jnp.transpose(x_nchw, (0, 2, 3, 1))

    # Global-average-pool branch (tiny (N, Cin) matmul -> plain JAX).
    # Bilinear upsample from 1x1 is a constant broadcast, so this branch's
    # projection contribution is just a per-batch (1, C) additive term.
    pooled = jnp.mean(x_nhwc.astype(jnp.float32), axis=(1, 2))
    yp = jnp.maximum(pooled @ params['wpool'] + params['bpool'], 0.0)
    pool_contrib = (yp @ params['wp_pool']).reshape(N, 1, C)

    # Row tiling; pad H up to a multiple of the tile (handles odd sizes).
    th = _choose_row_tile(H, W)
    H_pad = pl.cdiv(H, th) * th

    # The ONLY bf16 HBM activation: x padded by dmax (conv zero padding) plus
    # the H-tail padding, cast exactly once (fused with the pad by XLA).
    xp = jnp.pad(x_nhwc.astype(jnp.bfloat16),
                 ((0, 0), (dmax, dmax + H_pad - H), (dmax, dmax), (0, 0)))

    out = _aspp_fused_pallas(xp, pool_contrib, params, dilations, th, H_pad, W)
    out = out[:, :H]                          # drop padded tail rows
    return jnp.transpose(out, (0, 3, 1, 2))   # back to NCHW


# ---------------------------------------------------------------------------
# Pure-JAX f32 reference (same folded weights) for a tolerance check.
# ---------------------------------------------------------------------------
def _aspp_reference(x_nchw, params, atrous_rates):
    f32 = jnp.float32
    x = jnp.transpose(x_nchw, (0, 2, 3, 1)).astype(f32)
    N, H, W, _ = x.shape
    C = OUT_CHANNELS

    def pw(x4, w2d):  # pointwise (1x1) conv
        return jnp.einsum('nhwc,cd->nhwd', x4, w2d.astype(f32))

    ys = [jnp.maximum(pw(x, params['w0']) + params['b0'].reshape(1, 1, 1, C), 0.0)]
    for i, d in enumerate(atrous_rates):
        w9 = params['wd'][i].astype(f32)
        xpad = jnp.pad(x, ((0, 0), (d, d), (d, d), (0, 0)))
        acc = jnp.zeros((N, H, W, C), f32)
        for ky in range(3):
            for kx in range(3):
                acc = acc + pw(xpad[:, ky * d:ky * d + H, kx * d:kx * d + W, :],
                               w9[3 * ky + kx])
        ys.append(jnp.maximum(acc + params['bd'][i].reshape(1, 1, 1, C), 0.0))

    pooled = jnp.mean(x, axis=(1, 2))
    yp = jnp.maximum(pooled @ params['wpool'] + params['bpool'], 0.0)
    y_pool = jnp.broadcast_to(yp[:, None, None, :], (N, H, W, C))

    proj = pw(ys[0], params['wp'][0])
    for i in range(1, 4):
        proj = proj + pw(ys[i], params['wp'][i])
    proj = proj + pw(y_pool, params['wp_pool'])
    out = jnp.maximum(proj + params['bp'].reshape(1, 1, 1, C), 0.0)
    return jnp.transpose(out, (0, 3, 1, 2))


# ---------------------------------------------------------------------------
if __name__ == "__main__":
    key = jax.random.PRNGKey(0)
    k_x, k_p = jax.random.split(key)

    N, Cin, H, W = 2, 4, 16, 16
    atrous_rates = (1, 2, 3)  # small rates consistent with 16x16 spatial

    x = jax.random.normal(k_x, (N, Cin, H, W), jnp.float32)
    params = init_params(k_p, Cin, atrous_rates)

    out = jax.block_until_ready(aspp_forward(x, params, atrous_rates))

    assert out.shape == (N, OUT_CHANNELS, H, W), out.shape
    assert bool(jnp.all(jnp.isfinite(out)))

    # Correctness check vs. pure-JAX f32 reference (kernel streams bf16
    # activations -> loose tolerance).
    ref = _aspp_reference(x, params, atrous_rates)
    err = float(jnp.max(jnp.abs(out - ref)) / (jnp.max(jnp.abs(ref)) + 1e-6))
    assert err < 0.08, f"normalized max error too large: {err}"

    print("KERNEL_OK")
</pallas_src>

<mosaic_0001>
module attributes {stable_mosaic.version = 11 : i64} {
  func.func @_aspp_fused_kernel(%arg0: i32, %arg1: i32, %arg2: memref<1x22x22x4xbf16, #tpu.memory_space<vmem>>, %arg3: memref<1x1x256xf32, #tpu.memory_space<vmem>>, %arg4: memref<4x256xbf16, #tpu.memory_space<vmem>>, %arg5: memref<1x256xf32, #tpu.memory_space<vmem>>, %arg6: memref<9x4x256xbf16, #tpu.memory_space<vmem>>, %arg7: memref<1x256xf32, #tpu.memory_space<vmem>>, %arg8: memref<9x4x256xbf16, #tpu.memory_space<vmem>>, %arg9: memref<1x256xf32, #tpu.memory_space<vmem>>, %arg10: memref<9x4x256xbf16, #tpu.memory_space<vmem>>, %arg11: memref<1x256xf32, #tpu.memory_space<vmem>>, %arg12: memref<4x256x256xbf16, #tpu.memory_space<vmem>>, %arg13: memref<1x256xf32, #tpu.memory_space<vmem>>, %arg14: memref<1x8x16x256xf32, #tpu.memory_space<vmem>>) attributes {dimension_semantics = [#tpu.dimension_semantics<parallel>, #tpu.dimension_semantics<parallel>], iteration_bounds = array<i64: 2, 2>, scalar_prefetch = 0 : i64, scratch_operands = 0 : i64, tpu.core_type = #tpu.core_type<tc>, window_params = [{transform_indices = @transform_0, window_bounds = array<i64: 1, 22, 22, 4>}, {transform_indices = @transform_1, window_bounds = array<i64: 1, 1, 256>}, {pipeline_mode = #tpu.pipeline_mode<synchronous>, transform_indices = @transform_2, window_bounds = array<i64: 4, 256>}, {pipeline_mode = #tpu.pipeline_mode<synchronous>, transform_indices = @transform_3, window_bounds = array<i64: 1, 256>}, {pipeline_mode = #tpu.pipeline_mode<synchronous>, transform_indices = @transform_4, window_bounds = array<i64: 9, 4, 256>}, {pipeline_mode = #tpu.pipeline_mode<synchronous>, transform_indices = @transform_5, window_bounds = array<i64: 1, 256>}, {pipeline_mode = #tpu.pipeline_mode<synchronous>, transform_indices = @transform_6, window_bounds = array<i64: 9, 4, 256>}, {pipeline_mode = #tpu.pipeline_mode<synchronous>, transform_indices = @transform_7, window_bounds = array<i64: 1, 256>}, {pipeline_mode = #tpu.pipeline_mode<synchronous>, transform_indices = @transform_8, window_bounds = array<i64: 9, 4, 256>}, {pipeline_mode = #tpu.pipeline_mode<synchronous>, transform_indices = @transform_9, window_bounds = array<i64: 1, 256>}, {pipeline_mode = #tpu.pipeline_mode<synchronous>, transform_indices = @transform_10, window_bounds = array<i64: 4, 256, 256>}, {pipeline_mode = #tpu.pipeline_mode<synchronous>, transform_indices = @transform_11, window_bounds = array<i64: 1, 256>}, {transform_indices = @transform_12, window_bounds = array<i64: 1, 8, 16, 256>}]} {
    %c8_i32 = arith.constant 8 : i32
    %0 = arith.muli %arg1, %c8_i32 : i32
    %1 = tpu.assume_multiple %0, 8 : i32
    %c0 = arith.constant 0 : index
    %2 = arith.index_cast %1 : i32 to index
    %c0_0 = arith.constant 0 : index
    %c0_1 = arith.constant 0 : index
    %3 = vector.load %arg2[%c0, %2, %c0_0, %c0_1] : memref<1x22x22x4xbf16, #tpu.memory_space<vmem>>, vector<1x14x22x4xbf16>
    %4 = vector.shape_cast %3 : vector<1x14x22x4xbf16> to vector<14x22x4xbf16>
    %5 = vector.extract_strided_slice %4 {offsets = [3, 3, 0], sizes = [8, 16, 4], strides = [1, 1, 1]} : vector<14x22x4xbf16> to vector<8x16x4xbf16>
    %6 = vector.shape_cast %5 : vector<8x16x4xbf16> to vector<128x4xbf16>
    %c0_2 = arith.constant 0 : index
    %c0_3 = arith.constant 0 : index
    %7 = vector.load %arg4[%c0_2, %c0_3] : memref<4x256xbf16, #tpu.memory_space<vmem>>, vector<4x256xbf16>
    %cst = arith.constant dense<0.000000e+00> : vector<128x256xf32>
    %8 = tpu.matmul %6, %7, %cst {dimension_numbers = #tpu.dot_dimension_numbers<[1], [0], [0], [1], [0, 0, 1, 1], [], []>} : vector<128x4xbf16>, vector<4x256xbf16>, vector<128x256xf32> -> vector<128x256xf32>
    %c0_4 = arith.constant 0 : index
    %c0_5 = arith.constant 0 : index
    %9 = vector.load %arg5[%c0_4, %c0_5] : memref<1x256xf32, #tpu.memory_space<vmem>>, vector<1x256xf32>
    %10 = vector.broadcast %9 : vector<1x256xf32> to vector<128x256xf32>
    %11 = arith.addf %8, %10 : vector<128x256xf32>
    %cst_6 = arith.constant 0.000000e+00 : f32
    %12 = vector.broadcast %cst_6 : f32 to vector<128x256xf32>
    %13 = arith.maximumf %11, %12 : vector<128x256xf32>
    %14 = arith.truncf %13 : vector<128x256xf32> to vector<128x256xbf16>
    %c0_7 = arith.constant 0 : index
    %c0_8 = arith.constant 0 : index
    %c0_9 = arith.constant 0 : index
    %15 = vector.load %arg12[%c0_7, %c0_8, %c0_9] : memref<4x256x256xbf16, #tpu.memory_space<vmem>>, vector<1x256x256xbf16>
    %16 = vector.shape_cast %15 : vector<1x256x256xbf16> to vector<256x256xbf16>
    %cst_10 = arith.constant dense<0.000000e+00> : vector<128x256xf32>
    %17 = tpu.matmul %14, %16, %cst_10 {dimension_numbers = #tpu.dot_dimension_numbers<[1], [0], [0], [1], [0, 0, 1, 1], [], []>} : vector<128x256xbf16>, vector<256x256xbf16>, vector<128x256xf32> -> vector<128x256xf32>
    %18 = vector.extract_strided_slice %4 {offsets = [2, 2, 0], sizes = [8, 16, 4], strides = [1, 1, 1]} : vector<14x22x4xbf16> to vector<8x16x4xbf16>
    %19 = vector.shape_cast %18 : vector<8x16x4xbf16> to vector<128x4xbf16>
    %c0_11 = arith.constant 0 : index
    %c0_12 = arith.constant 0 : index
    %c0_13 = arith.constant 0 : index
    %20 = vector.load %arg6[%c0_11, %c0_12, %c0_13] : memref<9x4x256xbf16, #tpu.memory_space<vmem>>, vector<1x4x256xbf16>
    %21 = vector.shape_cast %20 : vector<1x4x256xbf16> to vector<4x256xbf16>
    %cst_14 = arith.constant dense<0.000000e+00> : vector<128x256xf32>
    %22 = tpu.matmul %19, %21, %cst_14 {dimension_numbers = #tpu.dot_dimension_numbers<[1], [0], [0], [1], [0, 0, 1, 1], [], []>} : vector<128x4xbf16>, vector<4x256xbf16>, vector<128x256xf32> -> vector<128x256xf32>
    %23 = vector.extract_strided_slice %4 {offsets = [2, 3, 0], sizes = [8, 16, 4], strides = [1, 1, 1]} : vector<14x22x4xbf16> to vector<8x16x4xbf16>
    %24 = vector.shape_cast %23 : vector<8x16x4xbf16> to vector<128x4xbf16>
    %c1 = arith.constant 1 : index
    %c0_15 = arith.constant 0 : index
    %c0_16 = arith.constant 0 : index
    %25 = vector.load %arg6[%c1, %c0_15, %c0_16] : memref<9x4x256xbf16, #tpu.memory_space<vmem>>, vector<1x4x256xbf16>
    %26 = vector.shape_cast %25 : vector<1x4x256xbf16> to vector<4x256xbf16>
    %cst_17 = arith.constant dense<0.000000e+00> : vector<128x256xf32>
    %27 = tpu.matmul %24, %26, %cst_17 {dimension_numbers = #tpu.dot_dimension_numbers<[1], [0], [0], [1], [0, 0, 1, 1], [], []>} : vector<128x4xbf16>, vector<4x256xbf16>, vector<128x256xf32> -> vector<128x256xf32>
    %28 = arith.addf %22, %27 : vector<128x256xf32>
    %29 = vector.extract_strided_slice %4 {offsets = [2, 4, 0], sizes = [8, 16, 4], strides = [1, 1, 1]} : vector<14x22x4xbf16> to vector<8x16x4xbf16>
    %30 = vector.shape_cast %29 : vector<8x16x4xbf16> to vector<128x4xbf16>
    %c2 = arith.constant 2 : index
    %c0_18 = arith.constant 0 : index
    %c0_19 = arith.constant 0 : index
    %31 = vector.load %arg6[%c2, %c0_18, %c0_19] : memref<9x4x256xbf16, #tpu.memory_space<vmem>>, vector<1x4x256xbf16>
    %32 = vector.shape_cast %31 : vector<1x4x256xbf16> to vector<4x256xbf16>
    %cst_20 = arith.constant dense<0.000000e+00> : vector<128x256xf32>
    %33 = tpu.matmul %30, %32, %cst_20 {dimension_numbers = #tpu.dot_dimension_numbers<[1], [0], [0], [1], [0, 0, 1, 1], [], []>} : vector<128x4xbf16>, vector<4x256xbf16>, vector<128x256xf32> -> vector<128x256xf32>
    %34 = arith.addf %28, %33 : vector<128x256xf32>
    %35 = vector.extract_strided_slice %4 {offsets = [3, 2, 0], sizes = [8, 16, 4], strides = [1, 1, 1]} : vector<14x22x4xbf16> to vector<8x16x4xbf16>
    %36 = vector.shape_cast %35 : vector<8x16x4xbf16> to vector<128x4xbf16>
    %c3 = arith.constant 3 : index
    %c0_21 = arith.constant 0 : index
    %c0_22 = arith.constant 0 : index
    %37 = vector.load %arg6[%c3, %c0_21, %c0_22] : memref<9x4x256xbf16, #tpu.memory_space<vmem>>, vector<1x4x256xbf16>
    %38 = vector.shape_cast %37 : vector<1x4x256xbf16> to vector<4x256xbf16>
    %cst_23 = arith.constant dense<0.000000e+00> : vector<128x256xf32>
    %39 = tpu.matmul %36, %38, %cst_23 {dimension_numbers = #tpu.dot_dimension_numbers<[1], [0], [0], [1], [0, 0, 1, 1], [], []>} : vector<128x4xbf16>, vector<4x256xbf16>, vector<128x256xf32> -> vector<128x256xf32>
    %40 = arith.addf %34, %39 : vector<128x256xf32>
    %41 = vector.extract_strided_slice %4 {offsets = [3, 3, 0], sizes = [8, 16, 4], strides = [1, 1, 1]} : vector<14x22x4xbf16> to vector<8x16x4xbf16>
    %42 = vector.shape_cast %41 : vector<8x16x4xbf16> to vector<128x4xbf16>
    %c4 = arith.constant 4 : index
    %c0_24 = arith.constant 0 : index
    %c0_25 = arith.constant 0 : index
    %43 = vector.load %arg6[%c4, %c0_24, %c0_25] : memref<9x4x256xbf16, #tpu.memory_space<vmem>>, vector<1x4x256xbf16>
    %44 = vector.shape_cast %43 : vector<1x4x256xbf16> to vector<4x256xbf16>
    %cst_26 = arith.constant dense<0.000000e+00> : vector<128x256xf32>
    %45 = tpu.matmul %42, %44, %cst_26 {dimension_numbers = #tpu.dot_dimension_numbers<[1], [0], [0], [1], [0, 0, 1, 1], [], []>} : vector<128x4xbf16>, vector<4x256xbf16>, vector<128x256xf32> -> vector<128x256xf32>
    %46 = arith.addf %40, %45 : vector<128x256xf32>
    %47 = vector.extract_strided_slice %4 {offsets = [3, 4, 0], sizes = [8, 16, 4], strides = [1, 1, 1]} : vector<14x22x4xbf16> to vector<8x16x4xbf16>
    %48 = vector.shape_cast %47 : vector<8x16x4xbf16> to vector<128x4xbf16>
    %c5 = arith.constant 5 : index
    %c0_27 = arith.constant 0 : index
    %c0_28 = arith.constant 0 : index
    %49 = vector.load %arg6[%c5, %c0_27, %c0_28] : memref<9x4x256xbf16, #tpu.memory_space<vmem>>, vector<1x4x256xbf16>
    %50 = vector.shape_cast %49 : vector<1x4x256xbf16> to vector<4x256xbf16>
    %cst_29 = arith.constant dense<0.000000e+00> : vector<128x256xf32>
    %51 = tpu.matmul %48, %50, %cst_29 {dimension_numbers = #tpu.dot_dimension_numbers<[1], [0], [0], [1], [0, 0, 1, 1], [], []>} : vector<128x4xbf16>, vector<4x256xbf16>, vector<128x256xf32> -> vector<128x256xf32>
    %52 = arith.addf %46, %51 : vector<128x256xf32>
    %53 = vector.extract_strided_slice %4 {offsets = [4, 2, 0], sizes = [8, 16, 4], strides = [1, 1, 1]} : vector<14x22x4xbf16> to vector<8x16x4xbf16>
    %54 = vector.shape_cast %53 : vector<8x16x4xbf16> to vector<128x4xbf16>
    %c6 = arith.constant 6 : index
    %c0_30 = arith.constant 0 : index
    %c0_31 = arith.constant 0 : index
    %55 = vector.load %arg6[%c6, %c0_30, %c0_31] : memref<9x4x256xbf16, #tpu.memory_space<vmem>>, vector<1x4x256xbf16>
    %56 = vector.shape_cast %55 : vector<1x4x256xbf16> to vector<4x256xbf16>
    %cst_32 = arith.constant dense<0.000000e+00> : vector<128x256xf32>
    %57 = tpu.matmul %54, %56, %cst_32 {dimension_numbers = #tpu.dot_dimension_numbers<[1], [0], [0], [1], [0, 0, 1, 1], [], []>} : vector<128x4xbf16>, vector<4x256xbf16>, vector<128x256xf32> -> vector<128x256xf32>
    %58 = arith.addf %52, %57 : vector<128x256xf32>
    %59 = vector.extract_strided_slice %4 {offsets = [4, 3, 0], sizes = [8, 16, 4], strides = [1, 1, 1]} : vector<14x22x4xbf16> to vector<8x16x4xbf16>
    %60 = vector.shape_cast %59 : vector<8x16x4xbf16> to vector<128x4xbf16>
    %c7 = arith.constant 7 : index
    %c0_33 = arith.constant 0 : index
    %c0_34 = arith.constant 0 : index
    %61 = vector.load %arg6[%c7, %c0_33, %c0_34] : memref<9x4x256xbf16, #tpu.memory_space<vmem>>, vector<1x4x256xbf16>
    %62 = vector.shape_cast %61 : vector<1x4x256xbf16> to vector<4x256xbf16>
    %cst_35 = arith.constant dense<0.000000e+00> : vector<128x256xf32>
    %63 = tpu.matmul %60, %62, %cst_35 {dimension_numbers = #tpu.dot_dimension_numbers<[1], [0], [0], [1], [0, 0, 1, 1], [], []>} : vector<128x4xbf16>, vector<4x256xbf16>, vector<128x256xf32> -> vector<128x256xf32>
    %64 = arith.addf %58, %63 : vector<128x256xf32>
    %65 = vector.extract_strided_slice %4 {offsets = [4, 4, 0], sizes = [8, 16, 4], strides = [1, 1, 1]} : vector<14x22x4xbf16> to vector<8x16x4xbf16>
    %66 = vector.shape_cast %65 : vector<8x16x4xbf16> to vector<128x4xbf16>
    %c8 = arith.constant 8 : index
    %c0_36 = arith.constant 0 : index
    %c0_37 = arith.constant 0 : index
    %67 = vector.load %arg6[%c8, %c0_36, %c0_37] : memref<9x4x256xbf16, #tpu.memory_space<vmem>>, vector<1x4x256xbf16>
    %68 = vector.shape_cast %67 : vector<1x4x256xbf16> to vector<4x256xbf16>
    %cst_38 = arith.constant dense<0.000000e+00> : vector<128x256xf32>
    %69 = tpu.matmul %66, %68, %cst_38 {dimension_numbers = #tpu.dot_dimension_numbers<[1], [0], [0], [1], [0, 0, 1, 1], [], []>} : vector<128x4xbf16>, vector<4x256xbf16>, vector<128x256xf32> -> vector<128x256xf32>
    %70 = arith.addf %64, %69 : vector<128x256xf32>
    %c0_39 = arith.constant 0 : index
    %c0_40 = arith.constant 0 : index
    %71 = vector.load %arg7[%c0_39, %c0_40] : memref<1x256xf32, #tpu.memory_space<vmem>>, vector<1x256xf32>
    %72 = vector.broadcast %71 : vector<1x256xf32> to vector<128x256xf32>
    %73 = arith.addf %70, %72 : vector<128x256xf32>
    %cst_41 = arith.constant 0.000000e+00 : f32
    %74 = vector.broadcast %cst_41 : f32 to vector<128x256xf32>
    %75 = arith.maximumf %73, %74 : vector<128x256xf32>
    %76 = arith.truncf %75 : vector<128x256xf32> to vector<128x256xbf16>
    %c1_42 = arith.constant 1 : index
    %c0_43 = arith.constant 0 : index
    %c0_44 = arith.constant 0 : index
    %77 = vector.load %arg12[%c1_42, %c0_43, %c0_44] : memref<4x256x256xbf16, #tpu.memory_space<vmem>>, vector<1x256x256xbf16>
    %78 = vector.shape_cast %77 : vector<1x256x256xbf16> to vector<256x256xbf16>
    %cst_45 = arith.constant dense<0.000000e+00> : vector<128x256xf32>
    %79 = tpu.matmul %76, %78, %cst_45 {dimension_numbers = #tpu.dot_dimension_numbers<[1], [0], [0], [1], [0, 0, 1, 1], [], []>} : vector<128x256xbf16>, vector<256x256xbf16>, vector<128x256xf32> -> vector<128x256xf32>
    %80 = arith.addf %17, %79 : vector<128x256xf32>
    %81 = vector.extract_strided_slice %4 {offsets = [1, 1, 0], sizes = [8, 16, 4], strides = [1, 1, 1]} : vector<14x22x4xbf16> to vector<8x16x4xbf16>
    %82 = vector.shape_cast %81 : vector<8x16x4xbf16> to vector<128x4xbf16>
    %c0_46 = arith.constant 0 : index
    %c0_47 = arith.constant 0 : index
    %c0_48 = arith.constant 0 : index
    %83 = vector.load %arg8[%c0_46, %c0_47, %c0_48] : memref<9x4x256xbf16, #tpu.memory_space<vmem>>, vector<1x4x256xbf16>
    %84 = vector.shape_cast %83 : vector<1x4x256xbf16> to vector<4x256xbf16>
    %cst_49 = arith.constant dense<0.000000e+00> : vector<128x256xf32>
    %85 = tpu.matmul %82, %84, %cst_49 {dimension_numbers = #tpu.dot_dimension_numbers<[1], [0], [0], [1], [0, 0, 1, 1], [], []>} : vector<128x4xbf16>, vector<4x256xbf16>, vector<128x256xf32> -> vector<128x256xf32>
    %86 = vector.extract_strided_slice %4 {offsets = [1, 3, 0], sizes = [8, 16, 4], strides = [1, 1, 1]} : vector<14x22x4xbf16> to vector<8x16x4xbf16>
    %87 = vector.shape_cast %86 : vector<8x16x4xbf16> to vector<128x4xbf16>
    %c1_50 = arith.constant 1 : index
    %c0_51 = arith.constant 0 : index
    %c0_52 = arith.constant 0 : index
    %88 = vector.load %arg8[%c1_50, %c0_51, %c0_52] : memref<9x4x256xbf16, #tpu.memory_space<vmem>>, vector<1x4x256xbf16>
    %89 = vector.shape_cast %88 : vector<1x4x256xbf16> to vector<4x256xbf16>
    %cst_53 = arith.constant dense<0.000000e+00> : vector<128x256xf32>
    %90 = tpu.matmul %87, %89, %cst_53 {dimension_numbers = #tpu.dot_dimension_numbers<[1], [0], [0], [1], [0, 0, 1, 1], [], []>} : vector<128x4xbf16>, vector<4x256xbf16>, vector<128x256xf32> -> vector<128x256xf32>
    %91 = arith.addf %85, %90 : vector<128x256xf32>
    %92 = vector.extract_strided_slice %4 {offsets = [1, 5, 0], sizes = [8, 16, 4], strides = [1, 1, 1]} : vector<14x22x4xbf16> to vector<8x16x4xbf16>
    %93 = vector.shape_cast %92 : vector<8x16x4xbf16> to vector<128x4xbf16>
    %c2_54 = arith.constant 2 : index
    %c0_55 = arith.constant 0 : index
    %c0_56 = arith.constant 0 : index
    %94 = vector.load %arg8[%c2_54, %c0_55, %c0_56] : memref<9x4x256xbf16, #tpu.memory_space<vmem>>, vector<1x4x256xbf16>
    %95 = vector.shape_cast %94 : vector<1x4x256xbf16> to vector<4x256xbf16>
    %cst_57 = arith.constant dense<0.000000e+00> : vector<128x256xf32>
    %96 = tpu.matmul %93, %95, %cst_57 {dimension_numbers = #tpu.dot_dimension_numbers<[1], [0], [0], [1], [0, 0, 1, 1], [], []>} : vector<128x4xbf16>, vector<4x256xbf16>, vector<128x256xf32> -> vector<128x256xf32>
    %97 = arith.addf %91, %96 : vector<128x256xf32>
    %98 = vector.extract_strided_slice %4 {offsets = [3, 1, 0], sizes = [8, 16, 4], strides = [1, 1, 1]} : vector<14x22x4xbf16> to vector<8x16x4xbf16>
    %99 = vector.shape_cast %98 : vector<8x16x4xbf16> to vector<128x4xbf16>
    %c3_58 = arith.constant 3 : index
    %c0_59 = arith.constant 0 : index
    %c0_60 = arith.constant 0 : index
    %100 = vector.load %arg8[%c3_58, %c0_59, %c0_60] : memref<9x4x256xbf16, #tpu.memory_space<vmem>>, vector<1x4x256xbf16>
    %101 = vector.shape_cast %100 : vector<1x4x256xbf16> to vector<4x256xbf16>
    %cst_61 = arith.constant dense<0.000000e+00> : vector<128x256xf32>
    %102 = tpu.matmul %99, %101, %cst_61 {dimension_numbers = #tpu.dot_dimension_numbers<[1], [0], [0], [1], [0, 0, 1, 1], [], []>} : vector<128x4xbf16>, vector<4x256xbf16>, vector<128x256xf32> -> vector<128x256xf32>
    %103 = arith.addf %97, %102 : vector<128x256xf32>
    %104 = vector.extract_strided_slice %4 {offsets = [3, 3, 0], sizes = [8, 16, 4], strides = [1, 1, 1]} : vector<14x22x4xbf16> to vector<8x16x4xbf16>
    %105 = vector.shape_cast %104 : vector<8x16x4xbf16> to vector<128x4xbf16>
    %c4_62 = arith.constant 4 : index
    %c0_63 = arith.constant 0 : index
    %c0_64 = arith.constant 0 : index
    %106 = vector.load %arg8[%c4_62, %c0_63, %c0_64] : memref<9x4x256xbf16, #tpu.memory_space<vmem>>, vector<1x4x256xbf16>
    %107 = vector.shape_cast %106 : vector<1x4x256xbf16> to vector<4x256xbf16>
    %cst_65 = arith.constant dense<0.000000e+00> : vector<128x256xf32>
    %108 = tpu.matmul %105, %107, %cst_65 {dimension_numbers = #tpu.dot_dimension_numbers<[1], [0], [0], [1], [0, 0, 1, 1], [], []>} : vector<128x4xbf16>, vector<4x256xbf16>, vector<128x256xf32> -> vector<128x256xf32>
    %109 = arith.addf %103, %108 : vector<128x256xf32>
    %110 = vector.extract_strided_slice %4 {offsets = [3, 5, 0], sizes = [8, 16, 4], strides = [1, 1, 1]} : vector<14x22x4xbf16> to vector<8x16x4xbf16>
    %111 = vector.shape_cast %110 : vector<8x16x4xbf16> to vector<128x4xbf16>
    %c5_66 = arith.constant 5 : index
    %c0_67 = arith.constant 0 : index
    %c0_68 = arith.constant 0 : index
    %112 = vector.load %arg8[%c5_66, %c0_67, %c0_68] : memref<9x4x256xbf16, #tpu.memory_space<vmem>>, vector<1x4x256xbf16>
    %113 = vector.shape_cast %112 : vector<1x4x256xbf16> to vector<4x256xbf16>
    %cst_69 = arith.constant dense<0.000000e+00> : vector<128x256xf32>
    %114 = tpu.matmul %111, %113, %cst_69 {dimension_numbers = #tpu.dot_dimension_numbers<[1], [0], [0], [1], [0, 0, 1, 1], [], []>} : vector<128x4xbf16>, vector<4x256xbf16>, vector<128x256xf32> -> vector<128x256xf32>
    %115 = arith.addf %109, %114 : vector<128x256xf32>
    %116 = vector.extract_strided_slice %4 {offsets = [5, 1, 0], sizes = [8, 16, 4], strides = [1, 1, 1]} : vector<14x22x4xbf16> to vector<8x16x4xbf16>
    %117 = vector.shape_cast %116 : vector<8x16x4xbf16> to vector<128x4xbf16>
    %c6_70 = arith.constant 6 : index
    %c0_71 = arith.constant 0 : index
    %c0_72 = arith.constant 0 : index
    %118 = vector.load %arg8[%c6_70, %c0_71, %c0_72] : memref<9x4x256xbf16, #tpu.memory_space<vmem>>, vector<1x4x256xbf16>
    %119 = vector.shape_cast %118 : vector<1x4x256xbf16> to vector<4x256xbf16>
    %cst_73 = arith.constant dense<0.000000e+00> : vector<128x256xf32>
    %120 = tpu.matmul %117, %119, %cst_73 {dimension_numbers = #tpu.dot_dimension_numbers<[1], [0], [0], [1], [0, 0, 1, 1], [], []>} : vector<128x4xbf16>, vector<4x256xbf16>, vector<128x256xf32> -> vector<128x256xf32>
    %121 = arith.addf %115, %120 : vector<128x256xf32>
    %122 = vector.extract_strided_slice %4 {offsets = [5, 3, 0], sizes = [8, 16, 4], strides = [1, 1, 1]} : vector<14x22x4xbf16> to vector<8x16x4xbf16>
    %123 = vector.shape_cast %122 : vector<8x16x4xbf16> to vector<128x4xbf16>
    %c7_74 = arith.constant 7 : index
    %c0_75 = arith.constant 0 : index
    %c0_76 = arith.constant 0 : index
    %124 = vector.load %arg8[%c7_74, %c0_75, %c0_76] : memref<9x4x256xbf16, #tpu.memory_space<vmem>>, vector<1x4x256xbf16>
    %125 = vector.shape_cast %124 : vector<1x4x256xbf16> to vector<4x256xbf16>
    %cst_77 = arith.constant dense<0.000000e+00> : vector<128x256xf32>
    %126 = tpu.matmul %123, %125, %cst_77 {dimension_numbers = #tpu.dot_dimension_numbers<[1], [0], [0], [1], [0, 0, 1, 1], [], []>} : vector<128x4xbf16>, vector<4x256xbf16>, vector<128x256xf32> -> vector<128x256xf32>
    %127 = arith.addf %121, %126 : vector<128x256xf32>
    %128 = vector.extract_strided_slice %4 {offsets = [5, 5, 0], sizes = [8, 16, 4], strides = [1, 1, 1]} : vector<14x22x4xbf16> to vector<8x16x4xbf16>
    %129 = vector.shape_cast %128 : vector<8x16x4xbf16> to vector<128x4xbf16>
    %c8_78 = arith.constant 8 : index
    %c0_79 = arith.constant 0 : index
    %c0_80 = arith.constant 0 : index
    %130 = vector.load %arg8[%c8_78, %c0_79, %c0_80] : memref<9x4x256xbf16, #tpu.memory_space<vmem>>, vector<1x4x256xbf16>
    %131 = vector.shape_cast %130 : vector<1x4x256xbf16> to vector<4x256xbf16>
    %cst_81 = arith.constant dense<0.000000e+00> : vector<128x256xf32>
    %132 = tpu.matmul %129, %131, %cst_81 {dimension_numbers = #tpu.dot_dimension_numbers<[1], [0], [0], [1], [0, 0, 1, 1], [], []>} : vector<128x4xbf16>, vector<4x256xbf16>, vector<128x256xf32> -> vector<128x256xf32>
    %133 = arith.addf %127, %132 : vector<128x256xf32>
    %c0_82 = arith.constant 0 : index
    %c0_83 = arith.constant 0 : index
    %134 = vector.load %arg9[%c0_82, %c0_83] : memref<1x256xf32, #tpu.memory_space<vmem>>, vector<1x256xf32>
    %135 = vector.broadcast %134 : vector<1x256xf32> to vector<128x256xf32>
    %136 = arith.addf %133, %135 : vector<128x256xf32>
    %cst_84 = arith.constant 0.000000e+00 : f32
    %137 = vector.broadcast %cst_84 : f32 to vector<128x256xf32>
    %138 = arith.maximumf %136, %137 : vector<128x256xf32>
    %139 = arith.truncf %138 : vector<128x256xf32> to vector<128x256xbf16>
    %c2_85 = arith.constant 2 : index
    %c0_86 = arith.constant 0 : index
    %c0_87 = arith.constant 0 : index
    %140 = vector.load %arg12[%c2_85, %c0_86, %c0_87] : memref<4x256x256xbf16, #tpu.memory_space<vmem>>, vector<1x256x256xbf16>
    %141 = vector.shape_cast %140 : vector<1x256x256xbf16> to vector<256x256xbf16>
    %cst_88 = arith.constant dense<0.000000e+00> : vector<128x256xf32>
    %142 = tpu.matmul %139, %141, %cst_88 {dimension_numbers = #tpu.dot_dimension_numbers<[1], [0], [0], [1], [0, 0, 1, 1], [], []>} : vector<128x256xbf16>, vector<256x256xbf16>, vector<128x256xf32> -> vector<128x256xf32>
    %143 = arith.addf %80, %142 : vector<128x256xf32>
    %144 = vector.extract_strided_slice %4 {offsets = [0, 0, 0], sizes = [8, 16, 4], strides = [1, 1, 1]} : vector<14x22x4xbf16> to vector<8x16x4xbf16>
    %145 = vector.shape_cast %144 : vector<8x16x4xbf16> to vector<128x4xbf16>
    %c0_89 = arith.constant 0 : index
    %c0_90 = arith.constant 0 : index
    %c0_91 = arith.constant 0 : index
    %146 = vector.load %arg10[%c0_89, %c0_90, %c0_91] : memref<9x4x256xbf16, #tpu.memory_space<vmem>>, vector<1x4x256xbf16>
    %147 = vector.shape_cast %146 : vector<1x4x256xbf16> to vector<4x256xbf16>
    %cst_92 = arith.constant dense<0.000000e+00> : vector<128x256xf32>
    %148 = tpu.matmul %145, %147, %cst_92 {dimension_numbers = #tpu.dot_dimension_numbers<[1], [0], [0], [1], [0, 0, 1, 1], [], []>} : vector<128x4xbf16>, vector<4x256xbf16>, vector<128x256xf32> -> vector<128x256xf32>
    %149 = vector.extract_strided_slice %4 {offsets = [0, 3, 0], sizes = [8, 16, 4], strides = [1, 1, 1]} : vector<14x22x4xbf16> to vector<8x16x4xbf16>
    %150 = vector.shape_cast %149 : vector<8x16x4xbf16> to vector<128x4xbf16>
    %c1_93 = arith.constant 1 : index
    %c0_94 = arith.constant 0 : index
    %c0_95 = arith.constant 0 : index
    %151 = vector.load %arg10[%c1_93, %c0_94, %c0_95] : memref<9x4x256xbf16, #tpu.memory_space<vmem>>, vector<1x4x256xbf16>
    %152 = vector.shape_cast %151 : vector<1x4x256xbf16> to vector<4x256xbf16>
    %cst_96 = arith.constant dense<0.000000e+00> : vector<128x256xf32>
    %153 = tpu.matmul %150, %152, %cst_96 {dimension_numbers = #tpu.dot_dimension_numbers<[1], [0], [0], [1], [0, 0, 1, 1], [], []>} : vector<128x4xbf16>, vector<4x256xbf16>, vector<128x256xf32> -> vector<128x256xf32>
    %154 = arith.addf %148, %153 : vector<128x256xf32>
    %155 = vector.extract_strided_slice %4 {offsets = [0, 6, 0], sizes = [8, 16, 4], strides = [1, 1, 1]} : vector<14x22x4xbf16> to vector<8x16x4xbf16>
    %156 = vector.shape_cast %155 : vector<8x16x4xbf16> to vector<128x4xbf16>
    %c2_97 = arith.constant 2 : index
    %c0_98 = arith.constant 0 : index
    %c0_99 = arith.constant 0 : index
    %157 = vector.load %arg10[%c2_97, %c0_98, %c0_99] : memref<9x4x256xbf16, #tpu.memory_space<vmem>>, vector<1x4x256xbf16>
    %158 = vector.shape_cast %157 : vector<1x4x256xbf16> to vector<4x256xbf16>
    %cst_100 = arith.constant dense<0.000000e+00> : vector<128x256xf32>
    %159 = tpu.matmul %156, %158, %cst_100 {dimension_numbers = #tpu.dot_dimension_numbers<[1], [0], [0], [1], [0, 0, 1, 1], [], []>} : vector<128x4xbf16>, vector<4x256xbf16>, vector<128x256xf32> -> vector<128x256xf32>
    %160 = arith.addf %154, %159 : vector<128x256xf32>
    %161 = vector.extract_strided_slice %4 {offsets = [3, 0, 0], sizes = [8, 16, 4], strides = [1, 1, 1]} : vector<14x22x4xbf16> to vector<8x16x4xbf16>
    %162 = vector.shape_cast %161 : vector<8x16x4xbf16> to vector<128x4xbf16>
    %c3_101 = arith.constant 3 : index
    %c0_102 = arith.constant 0 : index
    %c0_103 = arith.constant 0 : index
    %163 = vector.load %arg10[%c3_101, %c0_102, %c0_103] : memref<9x4x256xbf16, #tpu.memory_space<vmem>>, vector<1x4x256xbf16>
    %164 = vector.shape_cast %163 : vector<1x4x256xbf16> to vector<4x256xbf16>
    %cst_104 = arith.constant dense<0.000000e+00> : vector<128x256xf32>
    %165 = tpu.matmul %162, %164, %cst_104 {dimension_numbers = #tpu.dot_dimension_numbers<[1], [0], [0], [1], [0, 0, 1, 1], [], []>} : vector<128x4xbf16>, vector<4x256xbf16>, vector<128x256xf32> -> vector<128x256xf32>
    %166 = arith.addf %160, %165 : vector<128x256xf32>
    %167 = vector.extract_strided_slice %4 {offsets = [3, 3, 0], sizes = [8, 16, 4], strides = [1, 1, 1]} : vector<14x22x4xbf16> to vector<8x16x4xbf16>
    %168 = vector.shape_cast %167 : vector<8x16x4xbf16> to vector<128x4xbf16>
    %c4_105 = arith.constant 4 : index
    %c0_106 = arith.constant 0 : index
    %c0_107 = arith.constant 0 : index
    %169 = vector.load %arg10[%c4_105, %c0_106, %c0_107] : memref<9x4x256xbf16, #tpu.memory_space<vmem>>, vector<1x4x256xbf16>
    %170 = vector.shape_cast %169 : vector<1x4x256xbf16> to vector<4x256xbf16>
    %cst_108 = arith.constant dense<0.000000e+00> : vector<128x256xf32>
    %171 = tpu.matmul %168, %170, %cst_108 {dimension_numbers = #tpu.dot_dimension_numbers<[1], [0], [0], [1], [0, 0, 1, 1], [], []>} : vector<128x4xbf16>, vector<4x256xbf16>, vector<128x256xf32> -> vector<128x256xf32>
    %172 = arith.addf %166, %171 : vector<128x256xf32>
    %173 = vector.extract_strided_slice %4 {offsets = [3, 6, 0], sizes = [8, 16, 4], strides = [1, 1, 1]} : vector<14x22x4xbf16> to vector<8x16x4xbf16>
    %174 = vector.shape_cast %173 : vector<8x16x4xbf16> to vector<128x4xbf16>
    %c5_109 = arith.constant 5 : index
    %c0_110 = arith.constant 0 : index
    %c0_111 = arith.constant 0 : index
    %175 = vector.load %arg10[%c5_109, %c0_110, %c0_111] : memref<9x4x256xbf16, #tpu.memory_space<vmem>>, vector<1x4x256xbf16>
    %176 = vector.shape_cast %175 : vector<1x4x256xbf16> to vector<4x256xbf16>
    %cst_112 = arith.constant dense<0.000000e+00> : vector<128x256xf32>
    %177 = tpu.matmul %174, %176, %cst_112 {dimension_numbers = #tpu.dot_dimension_numbers<[1], [0], [0], [1], [0, 0, 1, 1], [], []>} : vector<128x4xbf16>, vector<4x256xbf16>, vector<128x256xf32> -> vector<128x256xf32>
    %178 = arith.addf %172, %177 : vector<128x256xf32>
    %179 = vector.extract_strided_slice %4 {offsets = [6, 0, 0], sizes = [8, 16, 4], strides = [1, 1, 1]} : vector<14x22x4xbf16> to vector<8x16x4xbf16>
    %180 = vector.shape_cast %179 : vector<8x16x4xbf16> to vector<128x4xbf16>
    %c6_113 = arith.constant 6 : index
    %c0_114 = arith.constant 0 : index
    %c0_115 = arith.constant 0 : index
    %181 = vector.load %arg10[%c6_113, %c0_114, %c0_115] : memref<9x4x256xbf16, #tpu.memory_space<vmem>>, vector<1x4x256xbf16>
    %182 = vector.shape_cast %181 : vector<1x4x256xbf16> to vector<4x256xbf16>
    %cst_116 = arith.constant dense<0.000000e+00> : vector<128x256xf32>
    %183 = tpu.matmul %180, %182, %cst_116 {dimension_numbers = #tpu.dot_dimension_numbers<[1], [0], [0], [1], [0, 0, 1, 1], [], []>} : vector<128x4xbf16>, vector<4x256xbf16>, vector<128x256xf32> -> vector<128x256xf32>
    %184 = arith.addf %178, %183 : vector<128x256xf32>
    %185 = vector.extract_strided_slice %4 {offsets = [6, 3, 0], sizes = [8, 16, 4], strides = [1, 1, 1]} : vector<14x22x4xbf16> to vector<8x16x4xbf16>
    %186 = vector.shape_cast %185 : vector<8x16x4xbf16> to vector<128x4xbf16>
    %c7_117 = arith.constant 7 : index
    %c0_118 = arith.constant 0 : index
    %c0_119 = arith.constant 0 : index
    %187 = vector.load %arg10[%c7_117, %c0_118, %c0_119] : memref<9x4x256xbf16, #tpu.memory_space<vmem>>, vector<1x4x256xbf16>
    %188 = vector.shape_cast %187 : vector<1x4x256xbf16> to vector<4x256xbf16>
    %cst_120 = arith.constant dense<0.000000e+00> : vector<128x256xf32>
    %189 = tpu.matmul %186, %188, %cst_120 {dimension_numbers = #tpu.dot_dimension_numbers<[1], [0], [0], [1], [0, 0, 1, 1], [], []>} : vector<128x4xbf16>, vector<4x256xbf16>, vector<128x256xf32> -> vector<128x256xf32>
    %190 = arith.addf %184, %189 : vector<128x256xf32>
    %191 = vector.extract_strided_slice %4 {offsets = [6, 6, 0], sizes = [8, 16, 4], strides = [1, 1, 1]} : vector<14x22x4xbf16> to vector<8x16x4xbf16>
    %192 = vector.shape_cast %191 : vector<8x16x4xbf16> to vector<128x4xbf16>
    %c8_121 = arith.constant 8 : index
    %c0_122 = arith.constant 0 : index
    %c0_123 = arith.constant 0 : index
    %193 = vector.load %arg10[%c8_121, %c0_122, %c0_123] : memref<9x4x256xbf16, #tpu.memory_space<vmem>>, vector<1x4x256xbf16>
    %194 = vector.shape_cast %193 : vector<1x4x256xbf16> to vector<4x256xbf16>
    %cst_124 = arith.constant dense<0.000000e+00> : vector<128x256xf32>
    %195 = tpu.matmul %192, %194, %cst_124 {dimension_numbers = #tpu.dot_dimension_numbers<[1], [0], [0], [1], [0, 0, 1, 1], [], []>} : vector<128x4xbf16>, vector<4x256xbf16>, vector<128x256xf32> -> vector<128x256xf32>
    %196 = arith.addf %190, %195 : vector<128x256xf32>
    %c0_125 = arith.constant 0 : index
    %c0_126 = arith.constant 0 : index
    %197 = vector.load %arg11[%c0_125, %c0_126] : memref<1x256xf32, #tpu.memory_space<vmem>>, vector<1x256xf32>
    %198 = vector.broadcast %197 : vector<1x256xf32> to vector<128x256xf32>
    %199 = arith.addf %196, %198 : vector<128x256xf32>
    %cst_127 = arith.constant 0.000000e+00 : f32
    %200 = vector.broadcast %cst_127 : f32 to vector<128x256xf32>
    %201 = arith.maximumf %199, %200 : vector<128x256xf32>
    %202 = arith.truncf %201 : vector<128x256xf32> to vector<128x256xbf16>
    %c3_128 = arith.constant 3 : index
    %c0_129 = arith.constant 0 : index
    %c0_130 = arith.constant 0 : index
    %203 = vector.load %arg12[%c3_128, %c0_129, %c0_130] : memref<4x256x256xbf16, #tpu.memory_space<vmem>>, vector<1x256x256xbf16>
    %204 = vector.shape_cast %203 : vector<1x256x256xbf16> to vector<256x256xbf16>
    %cst_131 = arith.constant dense<0.000000e+00> : vector<128x256xf32>
    %205 = tpu.matmul %202, %204, %cst_131 {dimension_numbers = #tpu.dot_dimension_numbers<[1], [0], [0], [1], [0, 0, 1, 1], [], []>} : vector<128x256xbf16>, vector<256x256xbf16>, vector<128x256xf32> -> vector<128x256xf32>
    %206 = arith.addf %143, %205 : vector<128x256xf32>
    %c0_132 = arith.constant 0 : index
    %c0_133 = arith.constant 0 : index
    %c0_134 = arith.constant 0 : index
    %207 = vector.load %arg3[%c0_132, %c0_133, %c0_134] : memref<1x1x256xf32, #tpu.memory_space<vmem>>, vector<1x1x256xf32>
    %208 = vector.shape_cast %207 : vector<1x1x256xf32> to vector<1x256xf32>
    %209 = vector.broadcast %208 : vector<1x256xf32> to vector<128x256xf32>
    %210 = arith.addf %206, %209 : vector<128x256xf32>
    %c0_135 = arith.constant 0 : index
    %c0_136 = arith.constant 0 : index
    %211 = vector.load %arg13[%c0_135, %c0_136] : memref<1x256xf32, #tpu.memory_space<vmem>>, vector<1x256xf32>
    %212 = vector.broadcast %211 : vector<1x256xf32> to vector<128x256xf32>
    %213 = arith.addf %210, %212 : vector<128x256xf32>
    %cst_137 = arith.constant 0.000000e+00 : f32
    %214 = vector.broadcast %cst_137 : f32 to vector<128x256xf32>
    %215 = arith.maximumf %213, %214 : vector<128x256xf32>
    %216 = vector.shape_cast %215 : vector<128x256xf32> to vector<8x16x256xf32>
    %c0_138 = arith.constant 0 : index
    %c0_139 = arith.constant 0 : index
    %c0_140 = arith.constant 0 : index
    %c0_141 = arith.constant 0 : index
    %217 = vector.load %arg14[%c0_138, %c0_139, %c0_140, %c0_141] : memref<1x8x16x256xf32, #tpu.memory_space<vmem>>, vector<1x8x16x256xf32>
    %218 = vector.shape_cast %217 : vector<1x8x16x256xf32> to vector<8x16x256xf32>
    %219 = vector.shape_cast %216 : vector<8x16x256xf32> to vector<1x8x16x256xf32>
    tpu.vector_store %arg14[%c0_138, %c0_139, %c0_140, %c0_141], %219 {strides = array<i32>} : memref<1x8x16x256xf32, #tpu.memory_space<vmem>>, vector<1x8x16x256xf32>,
    return
  }
  func.func @transform_0(%arg0: i32, %arg1: i32) -> (i32, i32, i32, i32) {
    %c0_i32 = arith.constant 0 : i32
    %c0_i32_0 = arith.constant 0 : i32
    %c0_i32_1 = arith.constant 0 : i32
    %c0_i32_2 = arith.constant 0 : i32
    return %arg0, %c0_i32, %c0_i32_0, %c0_i32_1 : i32, i32, i32, i32
  }
  func.func @transform_1(%arg0: i32, %arg1: i32) -> (i32, i32, i32) {
    %c0_i32 = arith.constant 0 : i32
    %c0_i32_0 = arith.constant 0 : i32
    %c0_i32_1 = arith.constant 0 : i32
    return %arg0, %c0_i32, %c0_i32_0 : i32, i32, i32
  }
  func.func @transform_2(%arg0: i32, %arg1: i32) -> (i32, i32) {
    %c0_i32 = arith.constant 0 : i32
    %c0_i32_0 = arith.constant 0 : i32
    %c0_i32_1 = arith.constant 0 : i32
    return %c0_i32, %c0_i32_0 : i32, i32
  }
  func.func @transform_3(%arg0: i32, %arg1: i32) -> (i32, i32) {
    %c0_i32 = arith.constant 0 : i32
    %c0_i32_0 = arith.constant 0 : i32
    %c0_i32_1 = arith.constant 0 : i32
    return %c0_i32, %c0_i32_0 : i32, i32
  }
  func.func @transform_4(%arg0: i32, %arg1: i32) -> (i32, i32, i32) {
    %c0_i32 = arith.constant 0 : i32
    %c0_i32_0 = arith.constant 0 : i32
    %c0_i32_1 = arith.constant 0 : i32
    %c0_i32_2 = arith.constant 0 : i32
    return %c0_i32, %c0_i32_0, %c0_i32_1 : i32, i32, i32
  }
  func.func @transform_5(%arg0: i32, %arg1: i32) -> (i32, i32) {
    %c0_i32 = arith.constant 0 : i32
    %c0_i32_0 = arith.constant 0 : i32
    %c0_i32_1 = arith.constant 0 : i32
    return %c0_i32, %c0_i32_0 : i32, i32
  }
  func.func @transform_6(%arg0: i32, %arg1: i32) -> (i32, i32, i32) {
    %c0_i32 = arith.constant 0 : i32
    %c0_i32_0 = arith.constant 0 : i32
    %c0_i32_1 = arith.constant 0 : i32
    %c0_i32_2 = arith.constant 0 : i32
    return %c0_i32, %c0_i32_0, %c0_i32_1 : i32, i32, i32
  }
  func.func @transform_7(%arg0: i32, %arg1: i32) -> (i32, i32) {
    %c0_i32 = arith.constant 0 : i32
    %c0_i32_0 = arith.constant 0 : i32
    %c0_i32_1 = arith.constant 0 : i32
    return %c0_i32, %c0_i32_0 : i32, i32
  }
  func.func @transform_8(%arg0: i32, %arg1: i32) -> (i32, i32, i32) {
    %c0_i32 = arith.constant 0 : i32
    %c0_i32_0 = arith.constant 0 : i32
    %c0_i32_1 = arith.constant 0 : i32
    %c0_i32_2 = arith.constant 0 : i32
    return %c0_i32, %c0_i32_0, %c0_i32_1 : i32, i32, i32
  }
  func.func @transform_9(%arg0: i32, %arg1: i32) -> (i32, i32) {
    %c0_i32 = arith.constant 0 : i32
    %c0_i32_0 = arith.constant 0 : i32
    %c0_i32_1 = arith.constant 0 : i32
    return %c0_i32, %c0_i32_0 : i32, i32
  }
  func.func @transform_10(%arg0: i32, %arg1: i32) -> (i32, i32, i32) {
    %c0_i32 = arith.constant 0 : i32
    %c0_i32_0 = arith.constant 0 : i32
    %c0_i32_1 = arith.constant 0 : i32
    %c0_i32_2 = arith.constant 0 : i32
    return %c0_i32, %c0_i32_0, %c0_i32_1 : i32, i32, i32
  }
  func.func @transform_11(%arg0: i32, %arg1: i32) -> (i32, i32) {
    %c0_i32 = arith.constant 0 : i32
    %c0_i32_0 = arith.constant 0 : i32
    %c0_i32_1 = arith.constant 0 : i32
    return %c0_i32, %c0_i32_0 : i32, i32
  }
  func.func @transform_12(%arg0: i32, %arg1: i32) -> (i32, i32, i32, i32) {
    %c0_i32 = arith.constant 0 : i32
    %c0_i32_0 = arith.constant 0 : i32
    %c0_i32_1 = arith.constant 0 : i32
    return %arg0, %arg1, %c0_i32, %c0_i32_0 : i32, i32, i32, i32
  }
}

</mosaic_0001>

<llo_original>
// kernel: aspp_forward.1
$region0: #{aspp_forward.1}
  #allocation0 [shape = 'u32[]', space=smem, size = 0x4, offset = 0x4, fixed_abs, tag = 'smem constant byte address 0x4 - core index']
  #allocation1 [shape = 'u32[72,128]{1,0:T(1,128)}', space=vmem, size = 0x9000, scoped, tag = 'internal scratch']
  %s0 = inlined_call_operand.vmem [shape: bf16[2,22,22,4], index: 0, kind: input, shape index: {}]
  %s1 = inlined_call_operand.vmem [shape: f32[2,1,256], index: 1, kind: input, shape index: {}]
  %s2 = inlined_call_operand.vmem [shape: bf16[4,256], index: 2, kind: input, shape index: {}]
  %s3 = inlined_call_operand.vmem [shape: f32[1,256], index: 3, kind: input, shape index: {}]
  %s4 = inlined_call_operand.vmem [shape: bf16[9,4,256], index: 4, kind: input, shape index: {}]
  %s5 = inlined_call_operand.vmem [shape: f32[1,256], index: 5, kind: input, shape index: {}]
  %s6 = inlined_call_operand.vmem [shape: bf16[9,4,256], index: 6, kind: input, shape index: {}]
  %s7 = inlined_call_operand.vmem [shape: f32[1,256], index: 7, kind: input, shape index: {}]
  %s8 = inlined_call_operand.vmem [shape: bf16[9,4,256], index: 8, kind: input, shape index: {}]
  %s9 = inlined_call_operand.vmem [shape: f32[1,256], index: 9, kind: input, shape index: {}]
  %s10 = inlined_call_operand.vmem [shape: bf16[4,256,256], index: 10, kind: input, shape index: {}]
  %s11 = inlined_call_operand.vmem [shape: f32[1,256], index: 11, kind: input, shape index: {}]
  %s12 = inlined_call_operand.hbm [shape: f32[2,16,16,256], index: 12, kind: output, shape index: {}]
  %s13 = sld [smem:[#allocation0]]
  $region81: #{aspp_forward.1} parent=0
    _
  %s15 = ssub.s32 1, %s13
  %s16 = scalar_select 0, %s15, %s13
  $region1: #{aspp_forward.1} parent=0
    #allocation2 [shape = 'u8[262144]{0}', space=vmem, size = 0x40000, scoped, tag = 'output window, operand 0']
    #allocation3 [shape = 's32[2]{0}', space=sflag, size = 0x8, scoped, tag = 'scoped memory for aspp_forward.1']
    %17 = vsyncpa [#allocation3], 0
    %s18 = scalar_lea.sflag [#allocation3], 1
    %19 = vsyncpa %s18, 0
    loop: start=0, step=1, limit=6
    $region2: #{aspp_forward.1} parent=1 // loop_pre_header
      _
    $region3: #{aspp_forward.1} parent=1 // loop_header
      %s21 = sphi 0, %s25
      %p22 = scmp.ge.s32.totalorder %s21, 6
      %s28 = sphi 0, %s40
      %s29 = sphi 0, %s36
      %s30 = sphi 0, %s28
      %s31 = sphi 0, %s29
      %s32 = sphi 0, %s30
      %s33 = sphi 0, %s31
      %s43 = sphi 0, %s45
      %s46 = sphi 0, %s43
      %s47 = sphi 0, %s46
      %s63 = sphi 0, %s47
      %s69 = sphi 0, %s71
      %s72 = sphi 0, %s69
      %s73 = sphi 0, %s72
      %s89 = sphi 0, %s73
      %s93 = sphi 0, %s93
      %s95 = sphi 0, %s93
      %s96 = sphi 0, %s95
      %s110 = sphi 0, %s96
      %s114 = sphi 0, %s114
      %s116 = sphi 0, %s114
      %s117 = sphi 0, %s116
      %s131 = sphi 0, %s117
      %s135 = sphi 0, %s135
      %s137 = sphi 0, %s135
      %s138 = sphi 0, %s137
      %s152 = sphi 0, %s138
      %s156 = sphi 0, %s156
      %s158 = sphi 0, %s156
      %s159 = sphi 0, %s158
      %s173 = sphi 0, %s159
      %s177 = sphi 0, %s177
      %s179 = sphi 0, %s177
      %s180 = sphi 0, %s179
      %s194 = sphi 0, %s180
      %s198 = sphi 0, %s198
      %s200 = sphi 0, %s198
      %s201 = sphi 0, %s200
      %s215 = sphi 0, %s201
      %s219 = sphi 0, %s219
      %s221 = sphi 0, %s219
      %s222 = sphi 0, %s221
      %s236 = sphi 0, %s222
      %s240 = sphi 0, %s240
      %s242 = sphi 0, %s240
      %s243 = sphi 0, %s242
      %s257 = sphi 0, %s243
      %s261 = sphi 0, %s261
      %s263 = sphi 0, %s261
      %s264 = sphi 0, %s263
      %s278 = sphi 0, %s264
      %s282 = sphi 0, %s282
      %s284 = sphi 0, %s282
      %s285 = sphi 0, %s284
      %s299 = sphi 0, %s285
      %s307 = sphi 0, %s309
      %s310 = sphi 0, %s307
      %s311 = sphi 0, %s310
      %s327 = sphi 0, %s311
    $region4: #{aspp_forward.1} parent=1 // loop_header_branch
      %24 = sbr.rel (%p22) target = $region8
    $region5: #{aspp_forward.1} parent=1 // loop_body
      %s26 = ssub.s32 %s21, 1
      %s27 = ssub.s32 %s21, 2
      %s34 = sadd.s32 1, %s29
      %p35 = scmp.ge.s32.totalorder %s34, 2
      %s36 = scalar_select %p35, 0, %s34
      %s37 = sadd.s32 1, %s28
      %s38 = scalar_select %p35, %s37, %s28
      %p39 = scmp.ge.s32.totalorder %s38, 2
      %s40 = scalar_select %p39, 0, %s38
      %s41 = ssub.s32 %s28, %s40
      %p42 = scmp.eq.s32.totalorder %s41, 0
      %s44 = sadd.s32 %s43, 1
      %s45 = scalar_select %p42, %s43, %s44
      %p48 = pneg %p42
      %p49 = scmp.eq.s32.totalorder %s21, 3
      %p50 = por %p48, %p49
      %p51 = scmp.ne.s32.totalorder %s43, %s46
      %p52 = scmp.eq.s32.totalorder %s21, 0
      %p53 = por %p51, %p52
      %p54 = scmp.ne.s32.totalorder %s43, %s46
      %p55 = scmp.eq.s32.totalorder %s26, 3
      %p56 = por %p54, %p55
      %p57 = scmp.ne.s32.totalorder %s46, %s47
      %p58 = scmp.eq.s32.totalorder %s26, 0
      %p59 = por %p57, %p58
      %p60 = scmp.ne.s32.totalorder %s46, %s47
      %p61 = scmp.eq.s32.totalorder %s27, 3
      %p62 = por %p60, %p61
      %p64 = scmp.ne.s32.totalorder %s47, %s63
      %p65 = scmp.eq.s32.totalorder %s27, 0
      %p66 = por %p64, %p65
      %s67 = ssub.s32 %s28, %s40
      %p68 = scmp.eq.s32.totalorder %s67, 0
      %s70 = sadd.s32 %s69, 1
      %s71 = scalar_select %p68, %s69, %s70
      %p74 = pneg %p68
      %p75 = scmp.eq.s32.totalorder %s21, 3
      %p76 = por %p74, %p75
      %p77 = scmp.ne.s32.totalorder %s69, %s72
      %p78 = scmp.eq.s32.totalorder %s21, 0
      %p79 = por %p77, %p78
      %p80 = scmp.ne.s32.totalorder %s69, %s72
      %p81 = scmp.eq.s32.totalorder %s26, 3
      %p82 = por %p80, %p81
      %p83 = scmp.ne.s32.totalorder %s72, %s73
      %p84 = scmp.eq.s32.totalorder %s26, 0
      %p85 = por %p83, %p84
      %p86 = scmp.ne.s32.totalorder %s72, %s73
      %p87 = scmp.eq.s32.totalorder %s27, 3
      %p88 = por %p86, %p87
      %p90 = scmp.ne.s32.totalorder %s73, %s89
      %p91 = scmp.eq.s32.totalorder %s27, 0
      %p92 = por %p90, %p91
      %s94 = sadd.s32 %s93, 1
      %p97 = scmp.eq.s32.totalorder %s21, 3
      %p98 = scmp.ne.s32.totalorder %s93, %s95
      %p99 = scmp.eq.s32.totalorder %s21, 0
      %p100 = por %p98, %p99
      %p101 = scmp.ne.s32.totalorder %s93, %s95
      %p102 = scmp.eq.s32.totalorder %s26, 3
      %p103 = por %p101, %p102
      %p104 = scmp.ne.s32.totalorder %s95, %s96
      %p105 = scmp.eq.s32.totalorder %s26, 0
      %p106 = por %p104, %p105
      %p107 = scmp.ne.s32.totalorder %s95, %s96
      %p108 = scmp.eq.s32.totalorder %s27, 3
      %p109 = por %p107, %p108
      %p111 = scmp.ne.s32.totalorder %s96, %s110
      %p112 = scmp.eq.s32.totalorder %s27, 0
      %p113 = por %p111, %p112
      %s115 = sadd.s32 %s114, 1
      %p118 = scmp.eq.s32.totalorder %s21, 3
      %p119 = scmp.ne.s32.totalorder %s114, %s116
      %p120 = scmp.eq.s32.totalorder %s21, 0
      %p121 = por %p119, %p120
      %p122 = scmp.ne.s32.totalorder %s114, %s116
      %p123 = scmp.eq.s32.totalorder %s26, 3
      %p124 = por %p122, %p123
      %p125 = scmp.ne.s32.totalorder %s116, %s117
      %p126 = scmp.eq.s32.totalorder %s26, 0
      %p127 = por %p125, %p126
      %p128 = scmp.ne.s32.totalorder %s116, %s117
      %p129 = scmp.eq.s32.totalorder %s27, 3
      %p130 = por %p128, %p129
      %p132 = scmp.ne.s32.totalorder %s117, %s131
      %p133 = scmp.eq.s32.totalorder %s27, 0
      %p134 = por %p132, %p133
      %s136 = sadd.s32 %s135, 1
      %p139 = scmp.eq.s32.totalorder %s21, 3
      %p140 = scmp.ne.s32.totalorder %s135, %s137
      %p141 = scmp.eq.s32.totalorder %s21, 0
      %p142 = por %p140, %p141
      %p143 = scmp.ne.s32.totalorder %s135, %s137
      %p144 = scmp.eq.s32.totalorder %s26, 3
      %p145 = por %p143, %p144
      %p146 = scmp.ne.s32.totalorder %s137, %s138
      %p147 = scmp.eq.s32.totalorder %s26, 0
      %p148 = por %p146, %p147
      %p149 = scmp.ne.s32.totalorder %s137, %s138
      %p150 = scmp.eq.s32.totalorder %s27, 3
      %p151 = por %p149, %p150
      %p153 = scmp.ne.s32.totalorder %s138, %s152
      %p154 = scmp.eq.s32.totalorder %s27, 0
      %p155 = por %p153, %p154
      %s157 = sadd.s32 %s156, 1
      %p160 = scmp.eq.s32.totalorder %s21, 3
      %p161 = scmp.ne.s32.totalorder %s156, %s158
      %p162 = scmp.eq.s32.totalorder %s21, 0
      %p163 = por %p161, %p162
      %p164 = scmp.ne.s32.totalorder %s156, %s158
      %p165 = scmp.eq.s32.totalorder %s26, 3
      %p166 = por %p164, %p165
      %p167 = scmp.ne.s32.totalorder %s158, %s159
      %p168 = scmp.eq.s32.totalorder %s26, 0
      %p169 = por %p167, %p168
      %p170 = scmp.ne.s32.totalorder %s158, %s159
      %p171 = scmp.eq.s32.totalorder %s27, 3
      %p172 = por %p170, %p171
      %p174 = scmp.ne.s32.totalorder %s159, %s173
      %p175 = scmp.eq.s32.totalorder %s27, 0
      %p176 = por %p174, %p175
      %s178 = sadd.s32 %s177, 1
      %p181 = scmp.eq.s32.totalorder %s21, 3
      %p182 = scmp.ne.s32.totalorder %s177, %s179
      %p183 = scmp.eq.s32.totalorder %s21, 0
      %p184 = por %p182, %p183
      %p185 = scmp.ne.s32.totalorder %s177, %s179
      %p186 = scmp.eq.s32.totalorder %s26, 3
      %p187 = por %p185, %p186
      %p188 = scmp.ne.s32.totalorder %s179, %s180
      %p189 = scmp.eq.s32.totalorder %s26, 0
      %p190 = por %p188, %p189
      %p191 = scmp.ne.s32.totalorder %s179, %s180
      %p192 = scmp.eq.s32.totalorder %s27, 3
      %p193 = por %p191, %p192
      %p195 = scmp.ne.s32.totalorder %s180, %s194
      %p196 = scmp.eq.s32.totalorder %s27, 0
      %p197 = por %p195, %p196
      %s199 = sadd.s32 %s198, 1
      %p202 = scmp.eq.s32.totalorder %s21, 3
      %p203 = scmp.ne.s32.totalorder %s198, %s200
      %p204 = scmp.eq.s32.totalorder %s21, 0
      %p205 = por %p203, %p204
      %p206 = scmp.ne.s32.totalorder %s198, %s200
      %p207 = scmp.eq.s32.totalorder %s26, 3
      %p208 = por %p206, %p207
      %p209 = scmp.ne.s32.totalorder %s200, %s201
      %p210 = scmp.eq.s32.totalorder %s26, 0
      %p211 = por %p209, %p210
      %p212 = scmp.ne.s32.totalorder %s200, %s201
      %p213 = scmp.eq.s32.totalorder %s27, 3
      %p214 = por %p212, %p213
      %p216 = scmp.ne.s32.totalorder %s201, %s215
      %p217 = scmp.eq.s32.totalorder %s27, 0
      %p218 = por %p216, %p217
      %s220 = sadd.s32 %s219, 1
      %p223 = scmp.eq.s32.totalorder %s21, 3
      %p224 = scmp.ne.s32.totalorder %s219, %s221
      %p225 = scmp.eq.s32.totalorder %s21, 0
      %p226 = por %p224, %p225
      %p227 = scmp.ne.s32.totalorder %s219, %s221
      %p228 = scmp.eq.s32.totalorder %s26, 3
      %p229 = por %p227, %p228
      %p230 = scmp.ne.s32.totalorder %s221, %s222
      %p231 = scmp.eq.s32.totalorder %s26, 0
      %p232 = por %p230, %p231
      %p233 = scmp.ne.s32.totalorder %s221, %s222
      %p234 = scmp.eq.s32.totalorder %s27, 3
      %p235 = por %p233, %p234
      %p237 = scmp.ne.s32.totalorder %s222, %s236
      %p238 = scmp.eq.s32.totalorder %s27, 0
      %p239 = por %p237, %p238
      %s241 = sadd.s32 %s240, 1
      %p244 = scmp.eq.s32.totalorder %s21, 3
      %p245 = scmp.ne.s32.totalorder %s240, %s242
      %p246 = scmp.eq.s32.totalorder %s21, 0
      %p247 = por %p245, %p246
      %p248 = scmp.ne.s32.totalorder %s240, %s242
      %p249 = scmp.eq.s32.totalorder %s26, 3
      %p250 = por %p248, %p249
      %p251 = scmp.ne.s32.totalorder %s242, %s243
      %p252 = scmp.eq.s32.totalorder %s26, 0
      %p253 = por %p251, %p252
      %p254 = scmp.ne.s32.totalorder %s242, %s243
      %p255 = scmp.eq.s32.totalorder %s27, 3
      %p256 = por %p254, %p255
      %p258 = scmp.ne.s32.totalorder %s243, %s257
      %p259 = scmp.eq.s32.totalorder %s27, 0
      %p260 = por %p258, %p259
      %s262 = sadd.s32 %s261, 1
      %p265 = scmp.eq.s32.totalorder %s21, 3
      %p266 = scmp.ne.s32.totalorder %s261, %s263
      %p267 = scmp.eq.s32.totalorder %s21, 0
      %p268 = por %p266, %p267
      %p269 = scmp.ne.s32.totalorder %s261, %s263
      %p270 = scmp.eq.s32.totalorder %s26, 3
      %p271 = por %p269, %p270
      %p272 = scmp.ne.s32.totalorder %s263, %s264
      %p273 = scmp.eq.s32.totalorder %s26, 0
      %p274 = por %p272, %p273
      %p275 = scmp.ne.s32.totalorder %s263, %s264
      %p276 = scmp.eq.s32.totalorder %s27, 3
      %p277 = por %p275, %p276
      %p279 = scmp.ne.s32.totalorder %s264, %s278
      %p280 = scmp.eq.s32.totalorder %s27, 0
      %p281 = por %p279, %p280
      %s283 = sadd.s32 %s282, 1
      %p286 = scmp.eq.s32.totalorder %s21, 3
      %p287 = scmp.ne.s32.totalorder %s282, %s284
      %p288 = scmp.eq.s32.totalorder %s21, 0
      %p289 = por %p287, %p288
      %p290 = scmp.ne.s32.totalorder %s282, %s284
      %p291 = scmp.eq.s32.totalorder %s26, 3
      %p292 = por %p290, %p291
      %p293 = scmp.ne.s32.totalorder %s284, %s285
      %p294 = scmp.eq.s32.totalorder %s26, 0
      %p295 = por %p293, %p294
      %p296 = scmp.ne.s32.totalorder %s284, %s285
      %p297 = scmp.eq.s32.totalorder %s27, 3
      %p298 = por %p296, %p297
      %p300 = scmp.ne.s32.totalorder %s285, %s299
      %p301 = scmp.eq.s32.totalorder %s27, 0
      %p302 = por %p300, %p301
      %s303 = ssub.s32 %s28, %s40
      %s304 = ssub.s32 %s29, %s36
      %s305 = sor.u32 %s303, %s304
      %p306 = scmp.eq.s32.totalorder %s305, 0
      %s308 = sadd.s32 %s307, 1
      %s309 = scalar_select %p306, %s307, %s308
      %p312 = pneg %p306
      %p313 = scmp.eq.s32.totalorder %s21, 3
      %p314 = por %p312, %p313
      %p315 = scmp.ne.s32.totalorder %s307, %s310
      %p316 = scmp.eq.s32.totalorder %s21, 0
      %p317 = por %p315, %p316
      %p318 = scmp.ne.s32.totalorder %s307, %s310
      %p319 = scmp.eq.s32.totalorder %s26, 3
      %p320 = por %p318, %p319
      %p321 = scmp.ne.s32.totalorder %s310, %s311
      %p322 = scmp.eq.s32.totalorder %s26, 0
      %p323 = por %p321, %p322
      %p324 = scmp.ne.s32.totalorder %s310, %s311
      %p325 = scmp.eq.s32.totalorder %s27, 3
      %p326 = por %p324, %p325
      %p328 = scmp.ne.s32.totalorder %s311, %s327
      %p329 = scmp.eq.s32.totalorder %s27, 0
      %p330 = por %p328, %p329
      %p331 = scmp.le.s32.totalorder 1, %s21
      %p332 = scmp.lt.s32.totalorder %s21, 5
      %p333 = pnand %p331, %p332
      %p334 = pneg %p333
      // Predicated region
      $region9: #{aspp_forward.1} parent=5 // pred_check
        _
      $region10: #{aspp_forward.1} parent=5 // pred_check_branch
        %336 = sbr.rel (%p333) target = $region12
      $region11: #{aspp_forward.1} parent=5 // pred_region
        %s337 = ssub.s32 %s21, 1
        // Predicated region
        $region13: #{aspp_forward.1} parent=11 // pred_check
          %p338 = pneg %p106
        $region14: #{aspp_forward.1} parent=11 // pred_check_branch
          %340 = sbr.rel (%p338) target = $region16
        $region15: #{aspp_forward.1} parent=11 // pred_region
          _
        $region16: #{aspp_forward.1} parent=11 // pred_fallthru
          _
        // Predicated region
        $region17: #{aspp_forward.1} parent=11 // pred_check
          %p341 = pneg %p127
        $region18: #{aspp_forward.1} parent=11 // pred_check_branch
          %343 = sbr.rel (%p341) target = $region20
        $region19: #{aspp_forward.1} parent=11 // pred_region
          _
        $region20: #{aspp_forward.1} parent=11 // pred_fallthru
          _
        // Predicated region
        $region21: #{aspp_forward.1} parent=11 // pred_check
          %p344 = pneg %p148
        $region22: #{aspp_forward.1} parent=11 // pred_check_branch
          %346 = sbr.rel (%p344) target = $region24
        $region23: #{aspp_forward.1} parent=11 // pred_region
          _
        $region24: #{aspp_forward.1} parent=11 // pred_fallthru
          _
        // Predicated region
        $region25: #{aspp_forward.1} parent=11 // pred_check
          %p347 = pneg %p169
        $region26: #{aspp_forward.1} parent=11 // pred_check_branch
          %349 = sbr.rel (%p347) target = $region28
        $region27: #{aspp_forward.1} parent=11 // pred_region
          _
        $region28: #{aspp_forward.1} parent=11 // pred_fallthru
          _
        // Predicated region
        $region29: #{aspp_forward.1} parent=11 // pred_check
          %p350 = pneg %p190
        $region30: #{aspp_forward.1} parent=11 // pred_check_branch
          %352 = sbr.rel (%p350) target = $region32
        $region31: #{aspp_forward.1} parent=11 // pred_region
          _
        $region32: #{aspp_forward.1} parent=11 // pred_fallthru
          _
        // Predicated region
        $region33: #{aspp_forward.1} parent=11 // pred_check
          %p353 = pneg %p211
        $region34: #{aspp_forward.1} parent=11 // pred_check_branch
          %355 = sbr.rel (%p353) target = $region36
        $region35: #{aspp_forward.1} parent=11 // pred_region
          _
        $region36: #{aspp_forward.1} parent=11 // pred_fallthru
          _
        // Predicated region
        $region37: #{aspp_forward.1} parent=11 // pred_check
          %p356 = pneg %p232
        $region38: #{aspp_forward.1} parent=11 // pred_check_branch
          %358 = sbr.rel (%p356) target = $region40
        $region39: #{aspp_forward.1} parent=11 // pred_region
          _
        $region40: #{aspp_forward.1} parent=11 // pred_fallthru
          _
        // Predicated region
        $region41: #{aspp_forward.1} parent=11 // pred_check
          %p359 = pneg %p253
        $region42: #{aspp_forward.1} parent=11 // pred_check_branch
          %361 = sbr.rel (%p359) target = $region44
        $region43: #{aspp_forward.1} parent=11 // pred_region
          _
        $region44: #{aspp_forward.1} parent=11 // pred_fallthru
          _
        // Predicated region
        $region45: #{aspp_forward.1} parent=11 // pred_check
          %p362 = pneg %p274
        $region46: #{aspp_forward.1} parent=11 // pred_check_branch
          %364 = sbr.rel (%p362) target = $region48
        $region47: #{aspp_forward.1} parent=11 // pred_region
          _
        $region48: #{aspp_forward.1} parent=11 // pred_fallthru
          _
        // Predicated region
        $region49: #{aspp_forward.1} parent=11 // pred_check
          %p365 = pneg %p295
        $region50: #{aspp_forward.1} parent=11 // pred_check_branch
          %367 = sbr.rel (%p365) target = $region52
        $region51: #{aspp_forward.1} parent=11 // pred_region
          _
        $region52: #{aspp_forward.1} parent=11 // pred_fallthru
          _
      $region12: #{aspp_forward.1} parent=5 // pred_fallthru
        _
      %p368 = scmp.lt.s32.totalorder %s21, 4
      // Predicated region
      $region53: #{aspp_forward.1} parent=5 // pred_check
        %p369 = pneg %p368
      $region54: #{aspp_forward.1} parent=5 // pred_check_branch
        %371 = sbr.rel (%p369) target = $region56
      $region55: #{aspp_forward.1} parent=5 // pred_region
        // Predicated region
        $region57: #{aspp_forward.1} parent=55 // pred_check
          %p372 = pneg %p53
        $region58: #{aspp_forward.1} parent=55 // pred_check_branch
          %374 = sbr.rel (%p372) target = $region60
        $region59: #{aspp_forward.1} parent=55 // pred_region
          %p375 = scmp.lt.s32.totalorder %s28, 1
          %s376 = scalar_select %p375, %s28, 1
          %s377 = smul.addr %s376, 66
          %s378 = smul.addr %s377, 4
          %s379 = scalar_lea.vmem %s0, %s378
        $region60: #{aspp_forward.1} parent=55 // pred_fallthru
          _
        // Predicated region
        $region61: #{aspp_forward.1} parent=55 // pred_check
          %p380 = pneg %p79
        $region62: #{aspp_forward.1} parent=55 // pred_check_branch
          %382 = sbr.rel (%p380) target = $region64
        $region63: #{aspp_forward.1} parent=55 // pred_region
          %p383 = scmp.lt.s32.totalorder %s28, 1
          %s384 = scalar_select %p383, %s28, 1
          %s385 = smul.addr %s384, 2
          %s386 = scalar_lea.vmem %s1, %s385
        $region64: #{aspp_forward.1} parent=55 // pred_fallthru
          _
      $region56: #{aspp_forward.1} parent=5 // pred_fallthru
        _
      %p387 = scmp.le.s32.totalorder 1, %s21
      %p388 = scmp.lt.s32.totalorder %s21, 5
      %p389 = pnand %p387, %p388
      %p390 = pneg %p389
      // Predicated region
      $region65: #{aspp_forward.1} parent=5 // pred_check
        _
      $region66: #{aspp_forward.1} parent=5 // pred_check_branch
        %392 = sbr.rel (%p389) target = $region68
      $region67: #{aspp_forward.1} parent=5 // pred_region
        %s393 = ssub.s32 %s21, 1
        %p394 = scmp.lt.s32.totalorder %s30, 1
        %s395 = scalar_select %p394, %s30, 1
        %s396 = smul.addr %s395, 66
        %s397 = smul.addr %s396, 4
        %s398 = scalar_lea.vmem %s0, %s397
        %p399 = pneg %p59
        %p400 = pneg %p56
        %p401 = scmp.lt.s32.totalorder %s30, 1
        %s402 = scalar_select %p401, %s30, 1
        %s403 = smul.addr %s402, 2
        %s404 = scalar_lea.vmem %s1, %s403
        %p405 = pneg %p85
        %p406 = pneg %p82
        %p407 = pneg %p106
        %p408 = pneg %p103
        %p409 = pneg %p127
        %p410 = pneg %p124
        %p411 = pneg %p148
        %p412 = pneg %p145
        %p413 = pneg %p169
        %p414 = pneg %p166
        %p415 = pneg %p190
        %p416 = pneg %p187
        %p417 = pneg %p211
        %p418 = pneg %p208
        %p419 = pneg %p232
        %p420 = pneg %p229
        %p421 = pneg %p253
        %p422 = pneg %p250
        %p423 = pneg %p274
        %p424 = pneg %p271
        %p425 = pneg %p295
        %p426 = pneg %p292
        %p427 = pneg %p323
        %p428 = pneg %p320
        %s429 = sand.u32 %s310, 1
        %s430 = scalar_lea.sflag [#allocation3], %s429
        %s431 = sand.u32 %s310, 1
        %s432 = smul.addr %s431, 256
        %s433 = scalar_lea.vmem [#allocation2], %s432
        %p434 = scmp.lt.s32.totalorder %s30, 1
        %s435 = scalar_select %p434, %s30, 1
        %s436 = smul.addr %s435, 66
        %s437 = smul.addr %s436, 4
        %s438 = scalar_lea.vmem %s0, %s437
        %p439 = scmp.lt.s32.totalorder %s30, 1
        %s440 = scalar_select %p439, %s30, 1
        %s441 = smul.addr %s440, 2
        %s442 = scalar_lea.vmem %s1, %s441
        %s443 = smul.u32 8, %s31
        %s445 = smul.u32 %s31, 8
        %s446 = smul.u32 %s445, 3
        %s447 = smul.addr %s446, 4
        %s448 = scalar_lea.vmem %s438, %s447
        %v449 = vld [vmem:[%s448] sm:$0xf]
        %v450 = vld [vmem:[%s448 + $0x4] sm:$0xf]
        %v451 = vld [vmem:[%s448 + $0x8] sm:$0x7]
        %v452 = vld [vmem:[%s448 + $0xc] sm:$0xf]
        %v453 = vld [vmem:[%s448 + $0x10] sm:$0xf]
        %v454 = vld [vmem:[%s448 + $0x14] sm:$0x7]
        %v455 = vld [vmem:[%s448 + $0x18] sm:$0xf]
        %v456 = vld [vmem:[%s448 + $0x1c] sm:$0xf]
        %v457 = vld [vmem:[%s448 + $0x20] sm:$0x7]
        %v458 = vld [vmem:[%s448 + $0x24] sm:$0xf]
        %v459 = vld [vmem:[%s448 + $0x28] sm:$0xf]
        %v460 = vld [vmem:[%s448 + $0x2c] sm:$0x7]
        %v461 = vld [vmem:[%s448 + $0x30] sm:$0xf]
        %v462 = vld [vmem:[%s448 + $0x34] sm:$0xf]
        %v463 = vld [vmem:[%s448 + $0x38] sm:$0x7]
        %v464 = vld [vmem:[%s448 + $0x3c] sm:$0xf]
        %v465 = vld [vmem:[%s448 + $0x40] sm:$0xf]
        %v466 = vld [vmem:[%s448 + $0x44] sm:$0x7]
        %v467 = vld [vmem:[%s448 + $0x48] sm:$0xf]
        %v468 = vld [vmem:[%s448 + $0x4c] sm:$0xf]
        %v469 = vld [vmem:[%s448 + $0x50] sm:$0x7]
        %v470 = vld [vmem:[%s448 + $0x54] sm:$0xf]
        %v471 = vld [vmem:[%s448 + $0x58] sm:$0xf]
        %v472 = vld [vmem:[%s448 + $0x5c] sm:$0x7]
        %v473 = vld [vmem:[%s448 + $0x60] sm:$0xf]
        %v474 = vld [vmem:[%s448 + $0x64] sm:$0xf]
        %v475 = vld [vmem:[%s448 + $0x68] sm:$0x7]
        %v476 = vld [vmem:[%s448 + $0x6c] sm:$0xf]
        %v477 = vld [vmem:[%s448 + $0x70] sm:$0xf]
        %v478 = vld [vmem:[%s448 + $0x74] sm:$0x7]
        %v479 = vld [vmem:[%s448 + $0x78] sm:$0xf]
        %v480 = vld [vmem:[%s448 + $0x7c] sm:$0xf]
        %v481 = vld [vmem:[%s448 + $0x80] sm:$0x7]
        %v482 = vld [vmem:[%s448 + $0x84] sm:$0xf]
        %v483 = vld [vmem:[%s448 + $0x88] sm:$0xf]
        %v484 = vld [vmem:[%s448 + $0x8c] sm:$0x7]
        %v485 = vld [vmem:[%s448 + $0x90] sm:$0xf]
        %v486 = vld [vmem:[%s448 + $0x94] sm:$0xf]
        %v487 = vld [vmem:[%s448 + $0x98] sm:$0x7]
        %v488 = vld [vmem:[%s448 + $0x9c] sm:$0xf]
        %v489 = vld [vmem:[%s448 + $0xa0] sm:$0xf]
        %v490 = vld [vmem:[%s448 + $0xa4] sm:$0x7]
        %vm491 = vsmask.f32 2304
        %vm492 = vsmask.f32 6416
        %vm493 = vmor %vm491, %vm492
        %v495 = vshrl.u32 %v458, 16
        %v497 = vrot.slane %v495, 5
        %v498 = vshll.u32 %v458, 16
        %v500 = vrot.slane %v498, 6
        %v501 = vor.u32 %v497, %v500
        %v502 = vrot.slane %v501, 4
        %v504 = vshrl.u32 %v459, 16
        %v506 = vrot.slane %v504, 5
        %v507 = vshll.u32 %v459, 16
        %v509 = vrot.slane %v507, 6
        %v510 = vor.u32 %v506, %v509
        %v511 = vsel %vm493, %v502, %v510
        %v512 = vrot.slane %v510, 4
        %v514 = vshrl.u32 %v460, 16
        %v516 = vrot.slane %v514, 5
        %v517 = vshll.u32 %v460, 16
        %v519 = vrot.slane %v517, 6
        %v520 = vor.u32 %v516, %v519
        %v521 = vsel %vm493, %v512, %v520
        %v523 = vshrl.u32 %v461, 16
        %v525 = vrot.slane %v523, 5
        %v526 = vshll.u32 %v461, 16
        %v528 = vrot.slane %v526, 6
        %v529 = vor.u32 %v525, %v528
        %v530 = vrot.slane %v529, 4
        %v532 = vshrl.u32 %v462, 16
        %v534 = vrot.slane %v532, 5
        %v535 = vshll.u32 %v462, 16
        %v537 = vrot.slane %v535, 6
        %v538 = vor.u32 %v534, %v537
        %v539 = vsel %vm493, %v530, %v538
        %v540 = vrot.slane %v538, 4
        %v542 = vshrl.u32 %v463, 16
        %v544 = vrot.slane %v542, 5
        %v545 = vshll.u32 %v463, 16
        %v547 = vrot.slane %v545, 6
        %v548 = vor.u32 %v544, %v547
        %v549 = vsel %vm493, %v540, %v548
        %v551 = vshrl.u32 %v464, 16
        %v553 = vrot.slane %v551, 5
        %v554 = vshll.u32 %v464, 16
        %v556 = vrot.slane %v554, 6
        %v557 = vor.u32 %v553, %v556
        %v558 = vrot.slane %v557, 4
        %v560 = vshrl.u32 %v465, 16
        %v562 = vrot.slane %v560, 5
        %v563 = vshll.u32 %v465, 16
        %v565 = vrot.slane %v563, 6
        %v566 = vor.u32 %v562, %v565
        %v567 = vsel %vm493, %v558, %v566
        %v568 = vrot.slane %v566, 4
        %v570 = vshrl.u32 %v466, 16
        %v572 = vrot.slane %v570, 5
        %v573 = vshll.u32 %v466, 16
        %v575 = vrot.slane %v573, 6
        %v576 = vor.u32 %v572, %v575
        %v577 = vsel %vm493, %v568, %v576
        %v579 = vshrl.u32 %v467, 16
        %v581 = vrot.slane %v579, 5
        %v582 = vshll.u32 %v467, 16
        %v584 = vrot.slane %v582, 6
        %v585 = vor.u32 %v581, %v584
        %v586 = vrot.slane %v585, 4
        %v588 = vshrl.u32 %v468, 16
        %v590 = vrot.slane %v588, 5
        %v591 = vshll.u32 %v468, 16
        %v593 = vrot.slane %v591, 6
        %v594 = vor.u32 %v590, %v593
        %v595 = vsel %vm493, %v586, %v594
        %v596 = vrot.slane %v594, 4
        %v598 = vshrl.u32 %v469, 16
        %v600 = vrot.slane %v598, 5
        %v601 = vshll.u32 %v469, 16
        %v603 = vrot.slane %v601, 6
        %v604 = vor.u32 %v600, %v603
        %v605 = vsel %vm493, %v596, %v604
        %v607 = vshrl.u32 %v470, 16
        %v609 = vrot.slane %v607, 5
        %v610 = vshll.u32 %v470, 16
        %v612 = vrot.slane %v610, 6
        %v613 = vor.u32 %v609, %v612
        %v614 = vrot.slane %v613, 4
        %v616 = vshrl.u32 %v471, 16
        %v618 = vrot.slane %v616, 5
        %v619 = vshll.u32 %v471, 16
        %v621 = vrot.slane %v619, 6
        %v622 = vor.u32 %v618, %v621
        %v623 = vsel %vm493, %v614, %v622
        %v624 = vrot.slane %v622, 4
        %v626 = vshrl.u32 %v472, 16
        %v628 = vrot.slane %v626, 5
        %v629 = vshll.u32 %v472, 16
        %v631 = vrot.slane %v629, 6
        %v632 = vor.u32 %v628, %v631
        %v633 = vsel %vm493, %v624, %v632
        %v635 = vshrl.u32 %v473, 16
        %v637 = vrot.slane %v635, 5
        %v638 = vshll.u32 %v473, 16
        %v640 = vrot.slane %v638, 6
        %v641 = vor.u32 %v637, %v640
        %v642 = vrot.slane %v641, 4
        %v644 = vshrl.u32 %v474, 16
        %v646 = vrot.slane %v644, 5
        %v647 = vshll.u32 %v474, 16
        %v649 = vrot.slane %v647, 6
        %v650 = vor.u32 %v646, %v649
        %v651 = vsel %vm493, %v642, %v650
        %v652 = vrot.slane %v650, 4
        %v654 = vshrl.u32 %v475, 16
        %v656 = vrot.slane %v654, 5
        %v657 = vshll.u32 %v475, 16
        %v659 = vrot.slane %v657, 6
        %v660 = vor.u32 %v656, %v659
        %v661 = vsel %vm493, %v652, %v660
        %v663 = vshrl.u32 %v476, 16
        %v665 = vrot.slane %v663, 5
        %v666 = vshll.u32 %v476, 16
        %v668 = vrot.slane %v666, 6
        %v669 = vor.u32 %v665, %v668
        %v670 = vrot.slane %v669, 4
        %v672 = vshrl.u32 %v477, 16
        %v674 = vrot.slane %v672, 5
        %v675 = vshll.u32 %v477, 16
        %v677 = vrot.slane %v675, 6
        %v678 = vor.u32 %v674, %v677
        %v679 = vsel %vm493, %v670, %v678
        %v680 = vrot.slane %v678, 4
        %v682 = vshrl.u32 %v478, 16
        %v684 = vrot.slane %v682, 5
        %v685 = vshll.u32 %v478, 16
        %v687 = vrot.slane %v685, 6
        %v688 = vor.u32 %v684, %v687
        %v689 = vsel %vm493, %v680, %v688
        %v691 = vshrl.u32 %v479, 16
        %v693 = vrot.slane %v691, 5
        %v694 = vshll.u32 %v479, 16
        %v696 = vrot.slane %v694, 6
        %v697 = vor.u32 %v693, %v696
        %v698 = vrot.slane %v697, 4
        %v700 = vshrl.u32 %v480, 16
        %v702 = vrot.slane %v700, 5
        %v703 = vshll.u32 %v480, 16
        %v705 = vrot.slane %v703, 6
        %v706 = vor.u32 %v702, %v705
        %v707 = vsel %vm493, %v698, %v706
        %v708 = vrot.slane %v706, 4
        %v710 = vshrl.u32 %v481, 16
        %v712 = vrot.slane %v710, 5
        %v713 = vshll.u32 %v481, 16
        %v715 = vrot.slane %v713, 6
        %v716 = vor.u32 %v712, %v715
        %v717 = vsel %vm493, %v708, %v716
        %v718 = vld [vmem:[%s2] sm:$0xf]
        %v719 = vld [vmem:[%s3] sm:$0x3]
        %v721 = vperm.slane %v719, 0
        %v722 = vperm.slane %v719, 1
        %v725 = vunpack.c.l.b16 %v511
        %v726 = vunpack.c.l.b16 %v521
        %v727 = vunpack.c.l.b16 %v539
        %v728 = vunpack.c.l.b16 %v549
        %v729 = vunpack.c.l.b16 %v567
        %v730 = vunpack.c.l.b16 %v577
        %v731 = vunpack.c.l.b16 %v595
        %v732 = vunpack.c.l.b16 %v605
        %v733 = vunpack.c.l.b16 %v623
        %v734 = vunpack.c.l.b16 %v633
        %v735 = vunpack.c.l.b16 %v651
        %v736 = vunpack.c.l.b16 %v661
        %v737 = vunpack.c.l.b16 %v679
        %v738 = vunpack.c.l.b16 %v689
        %v739 = vunpack.c.l.b16 %v707
        %v740 = vunpack.c.l.b16 %v717
        %v741 = vpack.c.b16 %v726, %v725
        %v742 = vpack.c.b16 %v728, %v727
        %v743 = vpack.c.b16 %v730, %v729
        %v744 = vpack.c.b16 %v732, %v731
        %v745 = vpack.c.b16 %v734, %v733
        %v746 = vpack.c.b16 %v736, %v735
        %v747 = vpack.c.b16 %v738, %v737
        %v748 = vpack.c.b16 %v740, %v739
        %750 = vst [vmem:[#allocation1] ss:$4 sm:$0xff] %v718
        %v751 = vld.sshfl [vmem:[#allocation1] sm:$0xff pattern:$0x73625140]
        %v752 = vld.sshfl [vmem:[#allocation1 + $0x8] sm:$0xff pattern:$0x73625140]
        %vm753 = vcmask 31744
        %v755 = vsel %vm753, %v741, 0
        %v758 = vsel %vm753, %v742, 0
        %v761 = vsel %vm753, %v743, 0
        %v764 = vsel %vm753, %v744, 0
        %v767 = vsel %vm753, %v745, 0
        %v770 = vsel %vm753, %v746, 0
        %v773 = vsel %vm753, %v747, 0
        %v776 = vsel %vm753, %v748, 0
        %vm778 = vcmask 1041408
        %v779 = vsel %vm778, %v751, 0
        %v781 = vsel %vm778, %v752, 0
        %783 = vmatpush.bf16.msra.mxu0 0
        %784 = vmatpush.bf16.msra.mxu0 0
        %785 = vmatpush.bf16.msra.mxu0 0
        %786 = vmatpush.bf16.msra.mxu0 0
        %787 = vmatpush.bf16.msra.mxu0 0
        %788 = vmatpush.bf16.msra.mxu0 0
        %789 = vmatpush.bf16.msra.mxu0 0
        %790 = vmatpush.bf16.msra.mxu0 %v779
        %791 = vmatmul.bf16.gmra.mxu0 %v755
        %v792 = vpop.f32.mrf.mxu0
        %v793 = vadd.f32 %v721, %v792
        %v794 = vpop.f32.mrf.mxu0
        %v795 = vadd.f32 %v721, %v794
        %796 = vmatmul.bf16.gmra.mxu0 %v758
        %v797 = vpop.f32.mrf.mxu0
        %v798 = vadd.f32 %v721, %v797
        %v799 = vpop.f32.mrf.mxu0
        %v800 = vadd.f32 %v721, %v799
        %801 = vmatmul.bf16.gmra.mxu0 %v761
        %v802 = vpop.f32.mrf.mxu0
        %v803 = vadd.f32 %v721, %v802
        %v804 = vpop.f32.mrf.mxu0
        %v805 = vadd.f32 %v721, %v804
        %806 = vmatmul.bf16.gmra.mxu0 %v764
        %v807 = vpop.f32.mrf.mxu0
        %v808 = vadd.f32 %v721, %v807
        %v809 = vpop.f32.mrf.mxu0
        %v810 = vadd.f32 %v721, %v809
        %811 = vmatmul.bf16.gmra.mxu0 %v767
        %v812 = vpop.f32.mrf.mxu0
        %v813 = vadd.f32 %v721, %v812
        %v814 = vpop.f32.mrf.mxu0
        %v815 = vadd.f32 %v721, %v814
        %816 = vmatmul.bf16.gmra.mxu0 %v770
        %v817 = vpop.f32.mrf.mxu0
        %v818 = vadd.f32 %v721, %v817
        %v819 = vpop.f32.mrf.mxu0
        %v820 = vadd.f32 %v721, %v819
        %821 = vmatmul.bf16.gmra.mxu0 %v773
        %v822 = vpop.f32.mrf.mxu0
        %v823 = vadd.f32 %v721, %v822
        %v824 = vpop.f32.mrf.mxu0
        %v825 = vadd.f32 %v721, %v824
        %826 = vmatmul.bf16.gmra.mxu0 %v776
        %v827 = vpop.f32.mrf.mxu0
        %v828 = vadd.f32 %v721, %v827
        %v829 = vpop.f32.mrf.mxu0
        %v830 = vadd.f32 %v721, %v829
        %831 = vdwg.mxu0
        %832 = vmatpush.bf16.msra.mxu0 0
        %833 = vmatpush.bf16.msra.mxu0 0
        %834 = vmatpush.bf16.msra.mxu0 0
        %835 = vmatpush.bf16.msra.mxu0 0
        %836 = vmatpush.bf16.msra.mxu0 0
        %837 = vmatpush.bf16.msra.mxu0 0
        %838 = vmatpush.bf16.msra.mxu0 0
        %839 = vmatpush.bf16.msra.mxu0 %v781
        %840 = vmatmul.bf16.gmra.mxu0 %v755
        %v841 = vpop.f32.mrf.mxu0
        %v842 = vadd.f32 %v722, %v841
        %v843 = vpop.f32.mrf.mxu0
        %v844 = vadd.f32 %v722, %v843
        %845 = vmatmul.bf16.gmra.mxu0 %v758
        %v846 = vpop.f32.mrf.mxu0
        %v847 = vadd.f32 %v722, %v846
        %v848 = vpop.f32.mrf.mxu0
        %v849 = vadd.f32 %v722, %v848
        %850 = vmatmul.bf16.gmra.mxu0 %v761
        %v851 = vpop.f32.mrf.mxu0
        %v852 = vadd.f32 %v722, %v851
        %v853 = vpop.f32.mrf.mxu0
        %v854 = vadd.f32 %v722, %v853
        %855 = vmatmul.bf16.gmra.mxu0 %v764
        %v856 = vpop.f32.mrf.mxu0
        %v857 = vadd.f32 %v722, %v856
        %v858 = vpop.f32.mrf.mxu0
        %v859 = vadd.f32 %v722, %v858
        %860 = vmatmul.bf16.gmra.mxu0 %v767
        %v861 = vpop.f32.mrf.mxu0
        %v862 = vadd.f32 %v722, %v861
        %v863 = vpop.f32.mrf.mxu0
        %v864 = vadd.f32 %v722, %v863
        %865 = vmatmul.bf16.gmra.mxu0 %v770
        %v866 = vpop.f32.mrf.mxu0
        %v867 = vadd.f32 %v722, %v866
        %v868 = vpop.f32.mrf.mxu0
        %v869 = vadd.f32 %v722, %v868
        %870 = vmatmul.bf16.gmra.mxu0 %v773
        %v871 = vpop.f32.mrf.mxu0
        %v872 = vadd.f32 %v722, %v871
        %v873 = vpop.f32.mrf.mxu0
        %v874 = vadd.f32 %v722, %v873
        %875 = vmatmul.bf16.gmra.mxu0 %v776
        %v876 = vpop.f32.mrf.mxu0
        %v877 = vadd.f32 %v722, %v876
        %v878 = vpop.f32.mrf.mxu0
        %v879 = vadd.f32 %v722, %v878
        %880 = vdwg.mxu0
        %v881 = vmax.f32 %v793, 0.0
        %v882 = vmax.f32 %v842, 0.0
        %v883 = vmax.f32 %v795, 0.0
        %v884 = vmax.f32 %v844, 0.0
        %v885 = vmax.f32 %v798, 0.0
        %v886 = vmax.f32 %v847, 0.0
        %v887 = vmax.f32 %v800, 0.0
        %v888 = vmax.f32 %v849, 0.0
        %v889 = vmax.f32 %v803, 0.0
        %v890 = vmax.f32 %v852, 0.0
        %v891 = vmax.f32 %v805, 0.0
        %v892 = vmax.f32 %v854, 0.0
        %v893 = vmax.f32 %v808, 0.0
        %v894 = vmax.f32 %v857, 0.0
        %v895 = vmax.f32 %v810, 0.0
        %v896 = vmax.f32 %v859, 0.0
        %v897 = vmax.f32 %v813, 0.0
        %v898 = vmax.f32 %v862, 0.0
        %v899 = vmax.f32 %v815, 0.0
        %v900 = vmax.f32 %v864, 0.0
        %v901 = vmax.f32 %v818, 0.0
        %v902 = vmax.f32 %v867, 0.0
        %v903 = vmax.f32 %v820, 0.0
        %v904 = vmax.f32 %v869, 0.0
        %v905 = vmax.f32 %v823, 0.0
        %v906 = vmax.f32 %v872, 0.0
        %v907 = vmax.f32 %v825, 0.0
        %v908 = vmax.f32 %v874, 0.0
        %v909 = vmax.f32 %v828, 0.0
        %v910 = vmax.f32 %v877, 0.0
        %v911 = vmax.f32 %v830, 0.0
        %v912 = vmax.f32 %v879, 0.0
        %v913 = vpack.c.bf16 %v883, %v881
        %v914 = vpack.c.bf16 %v884, %v882
        %v915 = vpack.c.bf16 %v887, %v885
        %v916 = vpack.c.bf16 %v888, %v886
        %v917 = vpack.c.bf16 %v891, %v889
        %v918 = vpack.c.bf16 %v892, %v890
        %v919 = vpack.c.bf16 %v895, %v893
        %v920 = vpack.c.bf16 %v896, %v894
        %v921 = vpack.c.bf16 %v899, %v897
        %v922 = vpack.c.bf16 %v900, %v898
        %v923 = vpack.c.bf16 %v903, %v901
        %v924 = vpack.c.bf16 %v904, %v902
        %v925 = vpack.c.bf16 %v907, %v905
        %v926 = vpack.c.bf16 %v908, %v906
        %v927 = vpack.c.bf16 %v911, %v909
        %v928 = vpack.c.bf16 %v912, %v910
        %v929 = vld [vmem:[%s10] sm:$0xff]
        %v930 = vld [vmem:[%s10 + $0x8] sm:$0xff]
        %v931 = vld [vmem:[%s10 + $0x10] sm:$0xff]
        %v932 = vld [vmem:[%s10 + $0x18] sm:$0xff]
        %v933 = vld [vmem:[%s10 + $0x20] sm:$0xff]
        %v934 = vld [vmem:[%s10 + $0x28] sm:$0xff]
        %v935 = vld [vmem:[%s10 + $0x30] sm:$0xff]
        %v936 = vld [vmem:[%s10 + $0x38] sm:$0xff]
        %v937 = vld [vmem:[%s10 + $0x40] sm:$0xff]
        %v938 = vld [vmem:[%s10 + $0x48] sm:$0xff]
        %v939 = vld [vmem:[%s10 + $0x50] sm:$0xff]
        %v940 = vld [vmem:[%s10 + $0x58] sm:$0xff]
        %v941 = vld [vmem:[%s10 + $0x60] sm:$0xff]
        %v942 = vld [vmem:[%s10 + $0x68] sm:$0xff]
        %v943 = vld [vmem:[%s10 + $0x70] sm:$0xff]
        %v944 = vld [vmem:[%s10 + $0x78] sm:$0xff]
        %v945 = vld [vmem:[%s10 + $0x80] sm:$0xff]
        %v946 = vld [vmem:[%s10 + $0x88] sm:$0xff]
        %v947 = vld [vmem:[%s10 + $0x90] sm:$0xff]
        %v948 = vld [vmem:[%s10 + $0x98] sm:$0xff]
        %v949 = vld [vmem:[%s10 + $0xa0] sm:$0xff]
        %v950 = vld [vmem:[%s10 + $0xa8] sm:$0xff]
        %v951 = vld [vmem:[%s10 + $0xb0] sm:$0xff]
        %v952 = vld [vmem:[%s10 + $0xb8] sm:$0xff]
        %v953 = vld [vmem:[%s10 + $0xc0] sm:$0xff]
        %v954 = vld [vmem:[%s10 + $0xc8] sm:$0xff]
        %v955 = vld [vmem:[%s10 + $0xd0] sm:$0xff]
        %v956 = vld [vmem:[%s10 + $0xd8] sm:$0xff]
        %v957 = vld [vmem:[%s10 + $0xe0] sm:$0xff]
        %v958 = vld [vmem:[%s10 + $0xe8] sm:$0xff]
        %v959 = vld [vmem:[%s10 + $0xf0] sm:$0xff]
        %v960 = vld [vmem:[%s10 + $0xf8] sm:$0xff]
        %vm985 = vcmask 1042432
        %vm986 = vcmask 1046532
        %vm987 = vmor %vm985, %vm986
        %v988 = vrot.slane %v455, 5
        %v989 = vrot.slane %v988, 4
        %v990 = vrot.slane %v456, 5
        %v991 = vsel %vm987, %v989, %v990
        %v992 = vrot.slane %v990, 4
        %v993 = vrot.slane %v457, 5
        %v994 = vsel %vm987, %v992, %v993
        %v995 = vrot.slane %v458, 5
        %v996 = vrot.slane %v995, 4
        %v997 = vrot.slane %v459, 5
        %v998 = vsel %vm987, %v996, %v997
        %v999 = vrot.slane %v997, 4
        %v1000 = vrot.slane %v460, 5
        %v1001 = vsel %vm987, %v999, %v1000
        %v1002 = vrot.slane %v461, 5
        %v1003 = vrot.slane %v1002, 4
        %v1004 = vrot.slane %v462, 5
        %v1005 = vsel %vm987, %v1003, %v1004
        %v1006 = vrot.slane %v1004, 4
        %v1007 = vrot.slane %v463, 5
        %v1008 = vsel %vm987, %v1006, %v1007
        %v1009 = vrot.slane %v464, 5
        %v1010 = vrot.slane %v1009, 4
        %v1011 = vrot.slane %v465, 5
        %v1012 = vsel %vm987, %v1010, %v1011
        %v1013 = vrot.slane %v1011, 4
        %v1014 = vrot.slane %v466, 5
        %v1015 = vsel %vm987, %v1013, %v1014
        %v1016 = vrot.slane %v467, 5
        %v1017 = vrot.slane %v1016, 4
        %v1018 = vrot.slane %v468, 5
        %v1019 = vsel %vm987, %v1017, %v1018
        %v1020 = vrot.slane %v1018, 4
        %v1021 = vrot.slane %v469, 5
        %v1022 = vsel %vm987, %v1020, %v1021
        %v1023 = vrot.slane %v470, 5
        %v1024 = vrot.slane %v1023, 4
        %v1025 = vrot.slane %v471, 5
        %v1026 = vsel %vm987, %v1024, %v1025
        %v1027 = vrot.slane %v1025, 4
        %v1028 = vrot.slane %v472, 5
        %v1029 = vsel %vm987, %v1027, %v1028
        %v1030 = vrot.slane %v473, 5
        %v1031 = vrot.slane %v1030, 4
        %v1032 = vrot.slane %v474, 5
        %v1033 = vsel %vm987, %v1031, %v1032
        %v1034 = vrot.slane %v1032, 4
        %v1035 = vrot.slane %v475, 5
        %v1036 = vsel %vm987, %v1034, %v1035
        %v1037 = vrot.slane %v476, 5
        %v1038 = vrot.slane %v1037, 4
        %v1039 = vrot.slane %v477, 5
        %v1040 = vsel %vm987, %v1038, %v1039
        %v1041 = vrot.slane %v1039, 4
        %v1042 = vrot.slane %v478, 5
        %v1043 = vsel %vm987, %v1041, %v1042
        %v1044 = vld [vmem:[%s4] sm:$0xf]
        %v1046 = vshrl.u32 %v455, 16
        %v1048 = vrot.slane %v1046, 5
        %v1049 = vshll.u32 %v455, 16
        %v1051 = vrot.slane %v1049, 6
        %v1052 = vor.u32 %v1048, %v1051
        %v1053 = vrot.slane %v1052, 4
        %v1055 = vshrl.u32 %v456, 16
        %v1057 = vrot.slane %v1055, 5
        %v1058 = vshll.u32 %v456, 16
        %v1060 = vrot.slane %v1058, 6
        %v1061 = vor.u32 %v1057, %v1060
        %v1062 = vsel %vm493, %v1053, %v1061
        %v1063 = vrot.slane %v1061, 4
        %v1065 = vshrl.u32 %v457, 16
        %v1067 = vrot.slane %v1065, 5
        %v1068 = vshll.u32 %v457, 16
        %v1070 = vrot.slane %v1068, 6
        %v1071 = vor.u32 %v1067, %v1070
        %v1072 = vsel %vm493, %v1063, %v1071
        %s1073 = scalar_lea.vmem %s4, 4
        %v1074 = vld [vmem:[%s1073] sm:$0xf]
        %v1075 = vunpack.c.l.b16 %v1062
        %v1076 = vunpack.c.l.b16 %v1072
        %v1077 = vpack.c.b16 %v1076, %v1075
        %1079 = vst [vmem:[#allocation1] ss:$4 sm:$0xff] %v1074
        %v1080 = vld.sshfl [vmem:[#allocation1] sm:$0xff pattern:$0x73625140]
        %v1081 = vld.sshfl [vmem:[#allocation1 + $0x8] sm:$0xff pattern:$0x73625140]
        %v1083 = vsel %vm753, %v1077, 0
        %v1085 = vsel %vm778, %v1080, 0
        %v1087 = vsel %vm778, %v1081, 0
        %1089 = vmatpush.bf16.msra.mxu0 0
        %1090 = vmatpush.bf16.msra.mxu0 0
        %1091 = vmatpush.bf16.msra.mxu0 0
        %1092 = vmatpush.bf16.msra.mxu0 0
        %1093 = vmatpush.bf16.msra.mxu0 0
        %1094 = vmatpush.bf16.msra.mxu0 0
        %1095 = vmatpush.bf16.msra.mxu0 0
        %1096 = vmatpush.bf16.msra.mxu0 %v1085
        %1097 = vmatmul.bf16.gmra.mxu0 %v1083
        %v1098 = vpop.f32.mrf.mxu0
        %v1099 = vadd.f32 0.0, %v1098
        %v1100 = vpop.f32.mrf.mxu0
        %v1101 = vadd.f32 0.0, %v1100
        %1102 = vmatmul.bf16.gmra.mxu0 %v755
        %v1103 = vpop.f32.mrf.mxu0
        %v1104 = vadd.f32 0.0, %v1103
        %v1105 = vpop.f32.mrf.mxu0
        %v1106 = vadd.f32 0.0, %v1105
        %1107 = vmatmul.bf16.gmra.mxu0 %v758
        %v1108 = vpop.f32.mrf.mxu0
        %v1109 = vadd.f32 0.0, %v1108
        %v1110 = vpop.f32.mrf.mxu0
        %v1111 = vadd.f32 0.0, %v1110
        %1112 = vmatmul.bf16.gmra.mxu0 %v761
        %v1113 = vpop.f32.mrf.mxu0
        %v1114 = vadd.f32 0.0, %v1113
        %v1115 = vpop.f32.mrf.mxu0
        %v1116 = vadd.f32 0.0, %v1115
        %1117 = vmatmul.bf16.gmra.mxu0 %v764
        %v1118 = vpop.f32.mrf.mxu0
        %v1119 = vadd.f32 0.0, %v1118
        %v1120 = vpop.f32.mrf.mxu0
        %v1121 = vadd.f32 0.0, %v1120
        %1122 = vmatmul.bf16.gmra.mxu0 %v767
        %v1123 = vpop.f32.mrf.mxu0
        %v1124 = vadd.f32 0.0, %v1123
        %v1125 = vpop.f32.mrf.mxu0
        %v1126 = vadd.f32 0.0, %v1125
        %1127 = vmatmul.bf16.gmra.mxu0 %v770
        %v1128 = vpop.f32.mrf.mxu0
        %v1129 = vadd.f32 0.0, %v1128
        %v1130 = vpop.f32.mrf.mxu0
        %v1131 = vadd.f32 0.0, %v1130
        %1132 = vmatmul.bf16.gmra.mxu0 %v773
        %v1133 = vpop.f32.mrf.mxu0
        %v1134 = vadd.f32 0.0, %v1133
        %v1135 = vpop.f32.mrf.mxu0
        %v1136 = vadd.f32 0.0, %v1135
        %1137 = vdwg.mxu0
        %1138 = vmatpush.bf16.msra.mxu0 0
        %1139 = vmatpush.bf16.msra.mxu0 0
        %1140 = vmatpush.bf16.msra.mxu0 0
        %1141 = vmatpush.bf16.msra.mxu0 0
        %1142 = vmatpush.bf16.msra.mxu0 0
        %1143 = vmatpush.bf16.msra.mxu0 0
        %1144 = vmatpush.bf16.msra.mxu0 0
        %1145 = vmatpush.bf16.msra.mxu0 %v1087
        %1146 = vmatmul.bf16.gmra.mxu0 %v1083
        %v1147 = vpop.f32.mrf.mxu0
        %v1148 = vadd.f32 0.0, %v1147
        %v1149 = vpop.f32.mrf.mxu0
        %v1150 = vadd.f32 0.0, %v1149
        %1151 = vmatmul.bf16.gmra.mxu0 %v755
        %v1152 = vpop.f32.mrf.mxu0
        %v1153 = vadd.f32 0.0, %v1152
        %v1154 = vpop.f32.mrf.mxu0
        %v1155 = vadd.f32 0.0, %v1154
        %1156 = vmatmul.bf16.gmra.mxu0 %v758
        %v1157 = vpop.f32.mrf.mxu0
        %v1158 = vadd.f32 0.0, %v1157
        %v1159 = vpop.f32.mrf.mxu0
        %v1160 = vadd.f32 0.0, %v1159
        %1161 = vmatmul.bf16.gmra.mxu0 %v761
        %v1162 = vpop.f32.mrf.mxu0
        %v1163 = vadd.f32 0.0, %v1162
        %v1164 = vpop.f32.mrf.mxu0
        %v1165 = vadd.f32 0.0, %v1164
        %1166 = vmatmul.bf16.gmra.mxu0 %v764
        %v1167 = vpop.f32.mrf.mxu0
        %v1168 = vadd.f32 0.0, %v1167
        %v1169 = vpop.f32.mrf.mxu0
        %v1170 = vadd.f32 0.0, %v1169
        %1171 = vmatmul.bf16.gmra.mxu0 %v767
        %v1172 = vpop.f32.mrf.mxu0
        %v1173 = vadd.f32 0.0, %v1172
        %v1174 = vpop.f32.mrf.mxu0
        %v1175 = vadd.f32 0.0, %v1174
        %1176 = vmatmul.bf16.gmra.mxu0 %v770
        %v1177 = vpop.f32.mrf.mxu0
        %v1178 = vadd.f32 0.0, %v1177
        %v1179 = vpop.f32.mrf.mxu0
        %v1180 = vadd.f32 0.0, %v1179
        %1181 = vmatmul.bf16.gmra.mxu0 %v773
        %v1182 = vpop.f32.mrf.mxu0
        %v1183 = vadd.f32 0.0, %v1182
        %v1184 = vpop.f32.mrf.mxu0
        %v1185 = vadd.f32 0.0, %v1184
        %1186 = vdwg.mxu0
        %v1187 = vunpack.c.l.b16 %v991
        %v1188 = vunpack.c.l.b16 %v994
        %v1189 = vunpack.c.l.b16 %v998
        %v1190 = vunpack.c.l.b16 %v1001
        %v1191 = vunpack.c.l.b16 %v1005
        %v1192 = vunpack.c.l.b16 %v1008
        %v1193 = vunpack.c.l.b16 %v1012
        %v1194 = vunpack.c.l.b16 %v1015
        %v1195 = vunpack.c.l.b16 %v1019
        %v1196 = vunpack.c.l.b16 %v1022
        %v1197 = vunpack.c.l.b16 %v1026
        %v1198 = vunpack.c.l.b16 %v1029
        %v1199 = vunpack.c.l.b16 %v1033
        %v1200 = vunpack.c.l.b16 %v1036
        %v1201 = vunpack.c.l.b16 %v1040
        %v1202 = vunpack.c.l.b16 %v1043
        %v1203 = vpack.c.b16 %v1188, %v1187
        %v1204 = vpack.c.b16 %v1190, %v1189
        %v1205 = vpack.c.b16 %v1192, %v1191
        %v1206 = vpack.c.b16 %v1194, %v1193
        %v1207 = vpack.c.b16 %v1196, %v1195
        %v1208 = vpack.c.b16 %v1198, %v1197
        %v1209 = vpack.c.b16 %v1200, %v1199
        %v1210 = vpack.c.b16 %v1202, %v1201
        %1212 = vst [vmem:[#allocation1] ss:$4 sm:$0xff] %v1044
        %v1213 = vld.sshfl [vmem:[#allocation1] sm:$0xff pattern:$0x73625140]
        %v1214 = vld.sshfl [vmem:[#allocation1 + $0x8] sm:$0xff pattern:$0x73625140]
        %v1216 = vsel %vm753, %v1203, 0
        %v1219 = vsel %vm753, %v1204, 0
        %v1222 = vsel %vm753, %v1205, 0
        %v1225 = vsel %vm753, %v1206, 0
        %v1228 = vsel %vm753, %v1207, 0
        %v1231 = vsel %vm753, %v1208, 0
        %v1234 = vsel %vm753, %v1209, 0
        %v1237 = vsel %vm753, %v1210, 0
        %v1239 = vsel %vm778, %v1213, 0
        %v1241 = vsel %vm778, %v1214, 0
        %1243 = vmatpush.bf16.msra.mxu0 0
        %1244 = vmatpush.bf16.msra.mxu0 0
        %1245 = vmatpush.bf16.msra.mxu0 0
        %1246 = vmatpush.bf16.msra.mxu0 0
        %1247 = vmatpush.bf16.msra.mxu0 0
        %1248 = vmatpush.bf16.msra.mxu0 0
        %1249 = vmatpush.bf16.msra.mxu0 0
        %1250 = vmatpush.bf16.msra.mxu0 %v1239
        %1251 = vmatmul.bf16.gmra.mxu0 %v1216
        %v1252 = vpop.f32.mrf.mxu0
        %v1253 = vadd.f32 %v1099, %v1252
        %v1254 = vpop.f32.mrf.mxu0
        %v1255 = vadd.f32 %v1101, %v1254
        %1256 = vmatmul.bf16.gmra.mxu0 %v1219
        %v1257 = vpop.f32.mrf.mxu0
        %v1258 = vadd.f32 %v1104, %v1257
        %v1259 = vpop.f32.mrf.mxu0
        %v1260 = vadd.f32 %v1106, %v1259
        %1261 = vmatmul.bf16.gmra.mxu0 %v1222
        %v1262 = vpop.f32.mrf.mxu0
        %v1263 = vadd.f32 %v1109, %v1262
        %v1264 = vpop.f32.mrf.mxu0
        %v1265 = vadd.f32 %v1111, %v1264
        %1266 = vmatmul.bf16.gmra.mxu0 %v1225
        %v1267 = vpop.f32.mrf.mxu0
        %v1268 = vadd.f32 %v1114, %v1267
        %v1269 = vpop.f32.mrf.mxu0
        %v1270 = vadd.f32 %v1116, %v1269
        %1271 = vmatmul.bf16.gmra.mxu0 %v1228
        %v1272 = vpop.f32.mrf.mxu0
        %v1273 = vadd.f32 %v1119, %v1272
        %v1274 = vpop.f32.mrf.mxu0
        %v1275 = vadd.f32 %v1121, %v1274
        %1276 = vmatmul.bf16.gmra.mxu0 %v1231
        %v1277 = vpop.f32.mrf.mxu0
        %v1278 = vadd.f32 %v1124, %v1277
        %v1279 = vpop.f32.mrf.mxu0
        %v1280 = vadd.f32 %v1126, %v1279
        %1281 = vmatmul.bf16.gmra.mxu0 %v1234
        %v1282 = vpop.f32.mrf.mxu0
        %v1283 = vadd.f32 %v1129, %v1282
        %v1284 = vpop.f32.mrf.mxu0
        %v1285 = vadd.f32 %v1131, %v1284
        %1286 = vmatmul.bf16.gmra.mxu0 %v1237
        %v1287 = vpop.f32.mrf.mxu0
        %v1288 = vadd.f32 %v1134, %v1287
        %v1289 = vpop.f32.mrf.mxu0
        %v1290 = vadd.f32 %v1136, %v1289
        %1291 = vdwg.mxu0
        %1292 = vmatpush.bf16.msra.mxu0 0
        %1293 = vmatpush.bf16.msra.mxu0 0
        %1294 = vmatpush.bf16.msra.mxu0 0
        %1295 = vmatpush.bf16.msra.mxu0 0
        %1296 = vmatpush.bf16.msra.mxu0 0
        %1297 = vmatpush.bf16.msra.mxu0 0
        %1298 = vmatpush.bf16.msra.mxu0 0
        %1299 = vmatpush.bf16.msra.mxu0 %v1241
        %1300 = vmatmul.bf16.gmra.mxu0 %v1216
        %v1301 = vpop.f32.mrf.mxu0
        %v1302 = vadd.f32 %v1148, %v1301
        %v1303 = vpop.f32.mrf.mxu0
        %v1304 = vadd.f32 %v1150, %v1303
        %1305 = vmatmul.bf16.gmra.mxu0 %v1219
        %v1306 = vpop.f32.mrf.mxu0
        %v1307 = vadd.f32 %v1153, %v1306
        %v1308 = vpop.f32.mrf.mxu0
        %v1309 = vadd.f32 %v1155, %v1308
        %1310 = vmatmul.bf16.gmra.mxu0 %v1222
        %v1311 = vpop.f32.mrf.mxu0
        %v1312 = vadd.f32 %v1158, %v1311
        %v1313 = vpop.f32.mrf.mxu0
        %v1314 = vadd.f32 %v1160, %v1313
        %1315 = vmatmul.bf16.gmra.mxu0 %v1225
        %v1316 = vpop.f32.mrf.mxu0
        %v1317 = vadd.f32 %v1163, %v1316
        %v1318 = vpop.f32.mrf.mxu0
        %v1319 = vadd.f32 %v1165, %v1318
        %1320 = vmatmul.bf16.gmra.mxu0 %v1228
        %v1321 = vpop.f32.mrf.mxu0
        %v1322 = vadd.f32 %v1168, %v1321
        %v1323 = vpop.f32.mrf.mxu0
        %v1324 = vadd.f32 %v1170, %v1323
        %1325 = vmatmul.bf16.gmra.mxu0 %v1231
        %v1326 = vpop.f32.mrf.mxu0
        %v1327 = vadd.f32 %v1173, %v1326
        %v1328 = vpop.f32.mrf.mxu0
        %v1329 = vadd.f32 %v1175, %v1328
        %1330 = vmatmul.bf16.gmra.mxu0 %v1234
        %v1331 = vpop.f32.mrf.mxu0
        %v1332 = vadd.f32 %v1178, %v1331
        %v1333 = vpop.f32.mrf.mxu0
        %v1334 = vadd.f32 %v1180, %v1333
        %1335 = vmatmul.bf16.gmra.mxu0 %v1237
        %v1336 = vpop.f32.mrf.mxu0
        %v1337 = vadd.f32 %v1183, %v1336
        %v1338 = vpop.f32.mrf.mxu0
        %v1339 = vadd.f32 %v1185, %v1338
        %1340 = vdwg.mxu0
        %vm1341 = vcmask 1041408
        %vm1342 = vcmask 1045508
        %vm1343 = vmor %vm1341, %vm1342
        %v1344 = vrot.slane %v455, 6
        %v1345 = vrot.slane %v1344, 4
        %v1346 = vrot.slane %v456, 6
        %v1347 = vsel %vm1343, %v1345, %v1346
        %v1348 = vrot.slane %v1346, 4
        %v1349 = vrot.slane %v457, 6
        %v1350 = vsel %vm1343, %v1348, %v1349
        %v1351 = vrot.slane %v458, 6
        %v1352 = vrot.slane %v1351, 4
        %v1353 = vrot.slane %v459, 6
        %v1354 = vsel %vm1343, %v1352, %v1353
        %v1355 = vrot.slane %v1353, 4
        %v1356 = vrot.slane %v460, 6
        %v1357 = vsel %vm1343, %v1355, %v1356
        %v1358 = vrot.slane %v461, 6
        %v1359 = vrot.slane %v1358, 4
        %v1360 = vrot.slane %v462, 6
        %v1361 = vsel %vm1343, %v1359, %v1360
        %v1362 = vrot.slane %v1360, 4
        %v1363 = vrot.slane %v463, 6
        %v1364 = vsel %vm1343, %v1362, %v1363
        %v1365 = vrot.slane %v464, 6
        %v1366 = vrot.slane %v1365, 4
        %v1367 = vrot.slane %v465, 6
        %v1368 = vsel %vm1343, %v1366, %v1367
        %v1369 = vrot.slane %v1367, 4
        %v1370 = vrot.slane %v466, 6
        %v1371 = vsel %vm1343, %v1369, %v1370
        %v1372 = vrot.slane %v467, 6
        %v1373 = vrot.slane %v1372, 4
        %v1374 = vrot.slane %v468, 6
        %v1375 = vsel %vm1343, %v1373, %v1374
        %v1376 = vrot.slane %v1374, 4
        %v1377 = vrot.slane %v469, 6
        %v1378 = vsel %vm1343, %v1376, %v1377
        %v1379 = vrot.slane %v470, 6
        %v1380 = vrot.slane %v1379, 4
        %v1381 = vrot.slane %v471, 6
        %v1382 = vsel %vm1343, %v1380, %v1381
        %v1383 = vrot.slane %v1381, 4
        %v1384 = vrot.slane %v472, 6
        %v1385 = vsel %vm1343, %v1383, %v1384
        %v1386 = vrot.slane %v473, 6
        %v1387 = vrot.slane %v1386, 4
        %v1388 = vrot.slane %v474, 6
        %v1389 = vsel %vm1343, %v1387, %v1388
        %v1390 = vrot.slane %v1388, 4
        %v1391 = vrot.slane %v475, 6
        %v1392 = vsel %vm1343, %v1390, %v1391
        %v1393 = vrot.slane %v476, 6
        %v1394 = vrot.slane %v1393, 4
        %v1395 = vrot.slane %v477, 6
        %v1396 = vsel %vm1343, %v1394, %v1395
        %v1397 = vrot.slane %v1395, 4
        %v1398 = vrot.slane %v478, 6
        %v1399 = vsel %vm1343, %v1397, %v1398
        %s1400 = scalar_lea.vmem %s4, 8
        %v1401 = vld [vmem:[%s1400] sm:$0xf]
        %v1402 = vunpack.c.l.b16 %v1347
        %v1403 = vunpack.c.l.b16 %v1350
        %v1404 = vunpack.c.l.b16 %v1354
        %v1405 = vunpack.c.l.b16 %v1357
        %v1406 = vunpack.c.l.b16 %v1361
        %v1407 = vunpack.c.l.b16 %v1364
        %v1408 = vunpack.c.l.b16 %v1368
        %v1409 = vunpack.c.l.b16 %v1371
        %v1410 = vunpack.c.l.b16 %v1375
        %v1411 = vunpack.c.l.b16 %v1378
        %v1412 = vunpack.c.l.b16 %v1382
        %v1413 = vunpack.c.l.b16 %v1385
        %v1414 = vunpack.c.l.b16 %v1389
        %v1415 = vunpack.c.l.b16 %v1392
        %v1416 = vunpack.c.l.b16 %v1396
        %v1417 = vunpack.c.l.b16 %v1399
        %v1418 = vpack.c.b16 %v1403, %v1402
        %v1419 = vpack.c.b16 %v1405, %v1404
        %v1420 = vpack.c.b16 %v1407, %v1406
        %v1421 = vpack.c.b16 %v1409, %v1408
        %v1422 = vpack.c.b16 %v1411, %v1410
        %v1423 = vpack.c.b16 %v1413, %v1412
        %v1424 = vpack.c.b16 %v1415, %v1414
        %v1425 = vpack.c.b16 %v1417, %v1416
        %1427 = vst [vmem:[#allocation1] ss:$4 sm:$0xff] %v1401
        %v1428 = vld.sshfl [vmem:[#allocation1] sm:$0xff pattern:$0x73625140]
        %v1429 = vld.sshfl [vmem:[#allocation1 + $0x8] sm:$0xff pattern:$0x73625140]
        %v1431 = vsel %vm753, %v1418, 0
        %v1434 = vsel %vm753, %v1419, 0
        %v1437 = vsel %vm753, %v1420, 0
        %v1440 = vsel %vm753, %v1421, 0
        %v1443 = vsel %vm753, %v1422, 0
        %v1446 = vsel %vm753, %v1423, 0
        %v1449 = vsel %vm753, %v1424, 0
        %v1452 = vsel %vm753, %v1425, 0
        %v1454 = vsel %vm778, %v1428, 0
        %v1456 = vsel %vm778, %v1429, 0
        %1458 = vmatpush.bf16.msra.mxu0 0
        %1459 = vmatpush.bf16.msra.mxu0 0
        %1460 = vmatpush.bf16.msra.mxu0 0
        %1461 = vmatpush.bf16.msra.mxu0 0
        %1462 = vmatpush.bf16.msra.mxu0 0
        %1463 = vmatpush.bf16.msra.mxu0 0
        %1464 = vmatpush.bf16.msra.mxu0 0
        %1465 = vmatpush.bf16.msra.mxu0 %v1454
        %1466 = vmatmul.bf16.gmra.mxu0 %v1431
        %v1467 = vpop.f32.mrf.mxu0
        %v1468 = vadd.f32 0.0, %v1467
        %v1469 = vpop.f32.mrf.mxu0
        %v1470 = vadd.f32 0.0, %v1469
        %1471 = vmatmul.bf16.gmra.mxu0 %v1434
        %v1472 = vpop.f32.mrf.mxu0
        %v1473 = vadd.f32 0.0, %v1472
        %v1474 = vpop.f32.mrf.mxu0
        %v1475 = vadd.f32 0.0, %v1474
        %1476 = vmatmul.bf16.gmra.mxu0 %v1437
        %v1477 = vpop.f32.mrf.mxu0
        %v1478 = vadd.f32 0.0, %v1477
        %v1479 = vpop.f32.mrf.mxu0
        %v1480 = vadd.f32 0.0, %v1479
        %1481 = vmatmul.bf16.gmra.mxu0 %v1440
        %v1482 = vpop.f32.mrf.mxu0
        %v1483 = vadd.f32 0.0, %v1482
        %v1484 = vpop.f32.mrf.mxu0
        %v1485 = vadd.f32 0.0, %v1484
        %1486 = vmatmul.bf16.gmra.mxu0 %v1443
        %v1487 = vpop.f32.mrf.mxu0
        %v1488 = vadd.f32 0.0, %v1487
        %v1489 = vpop.f32.mrf.mxu0
        %v1490 = vadd.f32 0.0, %v1489
        %1491 = vmatmul.bf16.gmra.mxu0 %v1446
        %v1492 = vpop.f32.mrf.mxu0
        %v1493 = vadd.f32 0.0, %v1492
        %v1494 = vpop.f32.mrf.mxu0
        %v1495 = vadd.f32 0.0, %v1494
        %1496 = vmatmul.bf16.gmra.mxu0 %v1449
        %v1497 = vpop.f32.mrf.mxu0
        %v1498 = vadd.f32 0.0, %v1497
        %v1499 = vpop.f32.mrf.mxu0
        %v1500 = vadd.f32 0.0, %v1499
        %1501 = vmatmul.bf16.gmra.mxu0 %v1452
        %v1502 = vpop.f32.mrf.mxu0
        %v1503 = vadd.f32 0.0, %v1502
        %v1504 = vpop.f32.mrf.mxu0
        %v1505 = vadd.f32 0.0, %v1504
        %1506 = vdwg.mxu0
        %1507 = vmatpush.bf16.msra.mxu0 0
        %1508 = vmatpush.bf16.msra.mxu0 0
        %1509 = vmatpush.bf16.msra.mxu0 0
        %1510 = vmatpush.bf16.msra.mxu0 0
        %1511 = vmatpush.bf16.msra.mxu0 0
        %1512 = vmatpush.bf16.msra.mxu0 0
        %1513 = vmatpush.bf16.msra.mxu0 0
        %1514 = vmatpush.bf16.msra.mxu0 %v1456
        %1515 = vmatmul.bf16.gmra.mxu0 %v1431
        %v1516 = vpop.f32.mrf.mxu0
        %v1517 = vadd.f32 0.0, %v1516
        %v1518 = vpop.f32.mrf.mxu0
        %v1519 = vadd.f32 0.0, %v1518
        %1520 = vmatmul.bf16.gmra.mxu0 %v1434
        %v1521 = vpop.f32.mrf.mxu0
        %v1522 = vadd.f32 0.0, %v1521
        %v1523 = vpop.f32.mrf.mxu0
        %v1524 = vadd.f32 0.0, %v1523
        %1525 = vmatmul.bf16.gmra.mxu0 %v1437
        %v1526 = vpop.f32.mrf.mxu0
        %v1527 = vadd.f32 0.0, %v1526
        %v1528 = vpop.f32.mrf.mxu0
        %v1529 = vadd.f32 0.0, %v1528
        %1530 = vmatmul.bf16.gmra.mxu0 %v1440
        %v1531 = vpop.f32.mrf.mxu0
        %v1532 = vadd.f32 0.0, %v1531
        %v1533 = vpop.f32.mrf.mxu0
        %v1534 = vadd.f32 0.0, %v1533
        %1535 = vmatmul.bf16.gmra.mxu0 %v1443
        %v1536 = vpop.f32.mrf.mxu0
        %v1537 = vadd.f32 0.0, %v1536
        %v1538 = vpop.f32.mrf.mxu0
        %v1539 = vadd.f32 0.0, %v1538
        %1540 = vmatmul.bf16.gmra.mxu0 %v1446
        %v1541 = vpop.f32.mrf.mxu0
        %v1542 = vadd.f32 0.0, %v1541
        %v1543 = vpop.f32.mrf.mxu0
        %v1544 = vadd.f32 0.0, %v1543
        %1545 = vmatmul.bf16.gmra.mxu0 %v1449
        %v1546 = vpop.f32.mrf.mxu0
        %v1547 = vadd.f32 0.0, %v1546
        %v1548 = vpop.f32.mrf.mxu0
        %v1549 = vadd.f32 0.0, %v1548
        %1550 = vmatmul.bf16.gmra.mxu0 %v1452
        %v1551 = vpop.f32.mrf.mxu0
        %v1552 = vadd.f32 0.0, %v1551
        %v1553 = vpop.f32.mrf.mxu0
        %v1554 = vadd.f32 0.0, %v1553
        %1555 = vdwg.mxu0
        %v1556 = vadd.f32 %v1253, %v1468
        %v1557 = vadd.f32 %v1302, %v1517
        %v1558 = vadd.f32 %v1255, %v1470
        %v1559 = vadd.f32 %v1304, %v1519
        %v1560 = vadd.f32 %v1258, %v1473
        %v1561 = vadd.f32 %v1307, %v1522
        %v1562 = vadd.f32 %v1260, %v1475
        %v1563 = vadd.f32 %v1309, %v1524
        %v1564 = vadd.f32 %v1263, %v1478
        %v1565 = vadd.f32 %v1312, %v1527
        %v1566 = vadd.f32 %v1265, %v1480
        %v1567 = vadd.f32 %v1314, %v1529
        %v1568 = vadd.f32 %v1268, %v1483
        %v1569 = vadd.f32 %v1317, %v1532
        %v1570 = vadd.f32 %v1270, %v1485
        %v1571 = vadd.f32 %v1319, %v1534
        %v1572 = vadd.f32 %v1273, %v1488
        %v1573 = vadd.f32 %v1322, %v1537
        %v1574 = vadd.f32 %v1275, %v1490
        %v1575 = vadd.f32 %v1324, %v1539
        %v1576 = vadd.f32 %v1278, %v1493
        %v1577 = vadd.f32 %v1327, %v1542
        %v1578 = vadd.f32 %v1280, %v1495
        %v1579 = vadd.f32 %v1329, %v1544
        %v1580 = vadd.f32 %v1283, %v1498
        %v1581 = vadd.f32 %v1332, %v1547
        %v1582 = vadd.f32 %v1285, %v1500
        %v1583 = vadd.f32 %v1334, %v1549
        %v1584 = vadd.f32 %v1288, %v1503
        %v1585 = vadd.f32 %v1337, %v1552
        %v1586 = vadd.f32 %v1290, %v1505
        %v1587 = vadd.f32 %v1339, %v1554
        %v1591 = vrot.slane %v479, 5
        %v1592 = vrot.slane %v1591, 4
        %v1593 = vrot.slane %v480, 5
        %v1594 = vsel %vm987, %v1592, %v1593
        %v1595 = vrot.slane %v1593, 4
        %v1596 = vrot.slane %v481, 5
        %v1597 = vsel %vm987, %v1595, %v1596
        %s1598 = scalar_lea.vmem %s4, 12
        %v1599 = vld [vmem:[%s1598] sm:$0xf]
        %v1600 = vunpack.c.l.b16 %v1594
        %v1601 = vunpack.c.l.b16 %v1597
        %v1602 = vpack.c.b16 %v1601, %v1600
        %1604 = vst [vmem:[#allocation1] ss:$4 sm:$0xff] %v1599
        %v1605 = vld.sshfl [vmem:[#allocation1] sm:$0xff pattern:$0x73625140]
        %v1606 = vld.sshfl [vmem:[#allocation1 + $0x8] sm:$0xff pattern:$0x73625140]
        %v1608 = vsel %vm753, %v1602, 0
        %v1610 = vsel %vm778, %v1605, 0
        %v1612 = vsel %vm778, %v1606, 0
        %1614 = vmatpush.bf16.msra.mxu0 0
        %1615 = vmatpush.bf16.msra.mxu0 0
        %1616 = vmatpush.bf16.msra.mxu0 0
        %1617 = vmatpush.bf16.msra.mxu0 0
        %1618 = vmatpush.bf16.msra.mxu0 0
        %1619 = vmatpush.bf16.msra.mxu0 0
        %1620 = vmatpush.bf16.msra.mxu0 0
        %1621 = vmatpush.bf16.msra.mxu0 %v1610
        %1622 = vmatmul.bf16.gmra.mxu0 %v1219
        %v1623 = vpop.f32.mrf.mxu0
        %v1624 = vadd.f32 0.0, %v1623
        %v1625 = vpop.f32.mrf.mxu0
        %v1626 = vadd.f32 0.0, %v1625
        %1627 = vmatmul.bf16.gmra.mxu0 %v1222
        %v1628 = vpop.f32.mrf.mxu0
        %v1629 = vadd.f32 0.0, %v1628
        %v1630 = vpop.f32.mrf.mxu0
        %v1631 = vadd.f32 0.0, %v1630
        %1632 = vmatmul.bf16.gmra.mxu0 %v1225
        %v1633 = vpop.f32.mrf.mxu0
        %v1634 = vadd.f32 0.0, %v1633
        %v1635 = vpop.f32.mrf.mxu0
        %v1636 = vadd.f32 0.0, %v1635
        %1637 = vmatmul.bf16.gmra.mxu0 %v1228
        %v1638 = vpop.f32.mrf.mxu0
        %v1639 = vadd.f32 0.0, %v1638
        %v1640 = vpop.f32.mrf.mxu0
        %v1641 = vadd.f32 0.0, %v1640
        %1642 = vmatmul.bf16.gmra.mxu0 %v1231
        %v1643 = vpop.f32.mrf.mxu0
        %v1644 = vadd.f32 0.0, %v1643
        %v1645 = vpop.f32.mrf.mxu0
        %v1646 = vadd.f32 0.0, %v1645
        %1647 = vmatmul.bf16.gmra.mxu0 %v1234
        %v1648 = vpop.f32.mrf.mxu0
        %v1649 = vadd.f32 0.0, %v1648
        %v1650 = vpop.f32.mrf.mxu0
        %v1651 = vadd.f32 0.0, %v1650
        %1652 = vmatmul.bf16.gmra.mxu0 %v1237
        %v1653 = vpop.f32.mrf.mxu0
        %v1654 = vadd.f32 0.0, %v1653
        %v1655 = vpop.f32.mrf.mxu0
        %v1656 = vadd.f32 0.0, %v1655
        %1657 = vmatmul.bf16.gmra.mxu0 %v1608
        %v1658 = vpop.f32.mrf.mxu0
        %v1659 = vadd.f32 0.0, %v1658
        %v1660 = vpop.f32.mrf.mxu0
        %v1661 = vadd.f32 0.0, %v1660
        %1662 = vdwg.mxu0
        %1663 = vmatpush.bf16.msra.mxu0 0
        %1664 = vmatpush.bf16.msra.mxu0 0
        %1665 = vmatpush.bf16.msra.mxu0 0
        %1666 = vmatpush.bf16.msra.mxu0 0
        %1667 = vmatpush.bf16.msra.mxu0 0
        %1668 = vmatpush.bf16.msra.mxu0 0
        %1669 = vmatpush.bf16.msra.mxu0 0
        %1670 = vmatpush.bf16.msra.mxu0 %v1612
        %1671 = vmatmul.bf16.gmra.mxu0 %v1219
        %v1672 = vpop.f32.mrf.mxu0
        %v1673 = vadd.f32 0.0, %v1672
        %v1674 = vpop.f32.mrf.mxu0
        %v1675 = vadd.f32 0.0, %v1674
        %1676 = vmatmul.bf16.gmra.mxu0 %v1222
        %v1677 = vpop.f32.mrf.mxu0
        %v1678 = vadd.f32 0.0, %v1677
        %v1679 = vpop.f32.mrf.mxu0
        %v1680 = vadd.f32 0.0, %v1679
        %1681 = vmatmul.bf16.gmra.mxu0 %v1225
        %v1682 = vpop.f32.mrf.mxu0
        %v1683 = vadd.f32 0.0, %v1682
        %v1684 = vpop.f32.mrf.mxu0
        %v1685 = vadd.f32 0.0, %v1684
        %1686 = vmatmul.bf16.gmra.mxu0 %v1228
        %v1687 = vpop.f32.mrf.mxu0
        %v1688 = vadd.f32 0.0, %v1687
        %v1689 = vpop.f32.mrf.mxu0
        %v1690 = vadd.f32 0.0, %v1689
        %1691 = vmatmul.bf16.gmra.mxu0 %v1231
        %v1692 = vpop.f32.mrf.mxu0
        %v1693 = vadd.f32 0.0, %v1692
        %v1694 = vpop.f32.mrf.mxu0
        %v1695 = vadd.f32 0.0, %v1694
        %1696 = vmatmul.bf16.gmra.mxu0 %v1234
        %v1697 = vpop.f32.mrf.mxu0
        %v1698 = vadd.f32 0.0, %v1697
        %v1699 = vpop.f32.mrf.mxu0
        %v1700 = vadd.f32 0.0, %v1699
        %1701 = vmatmul.bf16.gmra.mxu0 %v1237
        %v1702 = vpop.f32.mrf.mxu0
        %v1703 = vadd.f32 0.0, %v1702
        %v1704 = vpop.f32.mrf.mxu0
        %v1705 = vadd.f32 0.0, %v1704
        %1706 = vmatmul.bf16.gmra.mxu0 %v1608
        %v1707 = vpop.f32.mrf.mxu0
        %v1708 = vadd.f32 0.0, %v1707
        %v1709 = vpop.f32.mrf.mxu0
        %v1710 = vadd.f32 0.0, %v1709
        %1711 = vdwg.mxu0
        %v1712 = vadd.f32 %v1556, %v1624
        %v1713 = vadd.f32 %v1557, %v1673
        %v1714 = vadd.f32 %v1558, %v1626
        %v1715 = vadd.f32 %v1559, %v1675
        %v1716 = vadd.f32 %v1560, %v1629
        %v1717 = vadd.f32 %v1561, %v1678
        %v1718 = vadd.f32 %v1562, %v1631
        %v1719 = vadd.f32 %v1563, %v1680
        %v1720 = vadd.f32 %v1564, %v1634
        %v1721 = vadd.f32 %v1565, %v1683
        %v1722 = vadd.f32 %v1566, %v1636
        %v1723 = vadd.f32 %v1567, %v1685
        %v1724 = vadd.f32 %v1568, %v1639
        %v1725 = vadd.f32 %v1569, %v1688
        %v1726 = vadd.f32 %v1570, %v1641
        %v1727 = vadd.f32 %v1571, %v1690
        %v1728 = vadd.f32 %v1572, %v1644
        %v1729 = vadd.f32 %v1573, %v1693
        %v1730 = vadd.f32 %v1574, %v1646
        %v1731 = vadd.f32 %v1575, %v1695
        %v1732 = vadd.f32 %v1576, %v1649
        %v1733 = vadd.f32 %v1577, %v1698
        %v1734 = vadd.f32 %v1578, %v1651
        %v1735 = vadd.f32 %v1579, %v1700
        %v1736 = vadd.f32 %v1580, %v1654
        %v1737 = vadd.f32 %v1581, %v1703
        %v1738 = vadd.f32 %v1582, %v1656
        %v1739 = vadd.f32 %v1583, %v1705
        %v1740 = vadd.f32 %v1584, %v1659
        %v1741 = vadd.f32 %v1585, %v1708
        %v1742 = vadd.f32 %v1586, %v1661
        %v1743 = vadd.f32 %v1587, %v1710
        %s1744 = scalar_lea.vmem %s4, 16
        %v1745 = vld [vmem:[%s1744] sm:$0xf]
        %1747 = vst [vmem:[#allocation1] ss:$4 sm:$0xff] %v1745
        %v1748 = vld.sshfl [vmem:[#allocation1] sm:$0xff pattern:$0x73625140]
        %v1749 = vld.sshfl [vmem:[#allocation1 + $0x8] sm:$0xff pattern:$0x73625140]
        %v1750 = vsel %vm778, %v1748, 0
        %v1752 = vsel %vm778, %v1749, 0
        %1754 = vmatpush.bf16.msra.mxu0 0
        %1755 = vmatpush.bf16.msra.mxu0 0
        %1756 = vmatpush.bf16.msra.mxu0 0
        %1757 = vmatpush.bf16.msra.mxu0 0
        %1758 = vmatpush.bf16.msra.mxu0 0
        %1759 = vmatpush.bf16.msra.mxu0 0
        %1760 = vmatpush.bf16.msra.mxu0 0
        %1761 = vmatpush.bf16.msra.mxu0 %v1750
        %1762 = vmatmul.bf16.gmra.mxu0 %v755
        %v1763 = vpop.f32.mrf.mxu0
        %v1764 = vadd.f32 0.0, %v1763
        %v1765 = vpop.f32.mrf.mxu0
        %v1766 = vadd.f32 0.0, %v1765
        %1767 = vmatmul.bf16.gmra.mxu0 %v758
        %v1768 = vpop.f32.mrf.mxu0
        %v1769 = vadd.f32 0.0, %v1768
        %v1770 = vpop.f32.mrf.mxu0
        %v1771 = vadd.f32 0.0, %v1770
        %1772 = vmatmul.bf16.gmra.mxu0 %v761
        %v1773 = vpop.f32.mrf.mxu0
        %v1774 = vadd.f32 0.0, %v1773
        %v1775 = vpop.f32.mrf.mxu0
        %v1776 = vadd.f32 0.0, %v1775
        %1777 = vmatmul.bf16.gmra.mxu0 %v764
        %v1778 = vpop.f32.mrf.mxu0
        %v1779 = vadd.f32 0.0, %v1778
        %v1780 = vpop.f32.mrf.mxu0
        %v1781 = vadd.f32 0.0, %v1780
        %1782 = vmatmul.bf16.gmra.mxu0 %v767
        %v1783 = vpop.f32.mrf.mxu0
        %v1784 = vadd.f32 0.0, %v1783
        %v1785 = vpop.f32.mrf.mxu0
        %v1786 = vadd.f32 0.0, %v1785
        %1787 = vmatmul.bf16.gmra.mxu0 %v770
        %v1788 = vpop.f32.mrf.mxu0
        %v1789 = vadd.f32 0.0, %v1788
        %v1790 = vpop.f32.mrf.mxu0
        %v1791 = vadd.f32 0.0, %v1790
        %1792 = vmatmul.bf16.gmra.mxu0 %v773
        %v1793 = vpop.f32.mrf.mxu0
        %v1794 = vadd.f32 0.0, %v1793
        %v1795 = vpop.f32.mrf.mxu0
        %v1796 = vadd.f32 0.0, %v1795
        %1797 = vmatmul.bf16.gmra.mxu0 %v776
        %v1798 = vpop.f32.mrf.mxu0
        %v1799 = vadd.f32 0.0, %v1798
        %v1800 = vpop.f32.mrf.mxu0
        %v1801 = vadd.f32 0.0, %v1800
        %1802 = vdwg.mxu0
        %1803 = vmatpush.bf16.msra.mxu0 0
        %1804 = vmatpush.bf16.msra.mxu0 0
        %1805 = vmatpush.bf16.msra.mxu0 0
        %1806 = vmatpush.bf16.msra.mxu0 0
        %1807 = vmatpush.bf16.msra.mxu0 0
        %1808 = vmatpush.bf16.msra.mxu0 0
        %1809 = vmatpush.bf16.msra.mxu0 0
        %1810 = vmatpush.bf16.msra.mxu0 %v1752
        %1811 = vmatmul.bf16.gmra.mxu0 %v755
        %v1812 = vpop.f32.mrf.mxu0
        %v1813 = vadd.f32 0.0, %v1812
        %v1814 = vpop.f32.mrf.mxu0
        %v1815 = vadd.f32 0.0, %v1814
        %1816 = vmatmul.bf16.gmra.mxu0 %v758
        %v1817 = vpop.f32.mrf.mxu0
        %v1818 = vadd.f32 0.0, %v1817
        %v1819 = vpop.f32.mrf.mxu0
        %v1820 = vadd.f32 0.0, %v1819
        %1821 = vmatmul.bf16.gmra.mxu0 %v761
        %v1822 = vpop.f32.mrf.mxu0
        %v1823 = vadd.f32 0.0, %v1822
        %v1824 = vpop.f32.mrf.mxu0
        %v1825 = vadd.f32 0.0, %v1824
        %1826 = vmatmul.bf16.gmra.mxu0 %v764
        %v1827 = vpop.f32.mrf.mxu0
        %v1828 = vadd.f32 0.0, %v1827
        %v1829 = vpop.f32.mrf.mxu0
        %v1830 = vadd.f32 0.0, %v1829
        %1831 = vmatmul.bf16.gmra.mxu0 %v767
        %v1832 = vpop.f32.mrf.mxu0
        %v1833 = vadd.f32 0.0, %v1832
        %v1834 = vpop.f32.mrf.mxu0
        %v1835 = vadd.f32 0.0, %v1834
        %1836 = vmatmul.bf16.gmra.mxu0 %v770
        %v1837 = vpop.f32.mrf.mxu0
        %v1838 = vadd.f32 0.0, %v1837
        %v1839 = vpop.f32.mrf.mxu0
        %v1840 = vadd.f32 0.0, %v1839
        %1841 = vmatmul.bf16.gmra.mxu0 %v773
        %v1842 = vpop.f32.mrf.mxu0
        %v1843 = vadd.f32 0.0, %v1842
        %v1844 = vpop.f32.mrf.mxu0
        %v1845 = vadd.f32 0.0, %v1844
        %1846 = vmatmul.bf16.gmra.mxu0 %v776
        %v1847 = vpop.f32.mrf.mxu0
        %v1848 = vadd.f32 0.0, %v1847
        %v1849 = vpop.f32.mrf.mxu0
        %v1850 = vadd.f32 0.0, %v1849
        %1851 = vdwg.mxu0
        %v1852 = vadd.f32 %v1712, %v1764
        %v1853 = vadd.f32 %v1713, %v1813
        %v1854 = vadd.f32 %v1714, %v1766
        %v1855 = vadd.f32 %v1715, %v1815
        %v1856 = vadd.f32 %v1716, %v1769
        %v1857 = vadd.f32 %v1717, %v1818
        %v1858 = vadd.f32 %v1718, %v1771
        %v1859 = vadd.f32 %v1719, %v1820
        %v1860 = vadd.f32 %v1720, %v1774
        %v1861 = vadd.f32 %v1721, %v1823
        %v1862 = vadd.f32 %v1722, %v1776
        %v1863 = vadd.f32 %v1723, %v1825
        %v1864 = vadd.f32 %v1724, %v1779
        %v1865 = vadd.f32 %v1725, %v1828
        %v1866 = vadd.f32 %v1726, %v1781
        %v1867 = vadd.f32 %v1727, %v1830
        %v1868 = vadd.f32 %v1728, %v1784
        %v1869 = vadd.f32 %v1729, %v1833
        %v1870 = vadd.f32 %v1730, %v1786
        %v1871 = vadd.f32 %v1731, %v1835
        %v1872 = vadd.f32 %v1732, %v1789
        %v1873 = vadd.f32 %v1733, %v1838
        %v1874 = vadd.f32 %v1734, %v1791
        %v1875 = vadd.f32 %v1735, %v1840
        %v1876 = vadd.f32 %v1736, %v1794
        %v1877 = vadd.f32 %v1737, %v1843
        %v1878 = vadd.f32 %v1738, %v1796
        %v1879 = vadd.f32 %v1739, %v1845
        %v1880 = vadd.f32 %v1740, %v1799
        %v1881 = vadd.f32 %v1741, %v1848
        %v1882 = vadd.f32 %v1742, %v1801
        %v1883 = vadd.f32 %v1743, %v1850
        %v1884 = vrot.slane %v479, 6
        %v1885 = vrot.slane %v1884, 4
        %v1886 = vrot.slane %v480, 6
        %v1887 = vsel %vm1343, %v1885, %v1886
        %v1888 = vrot.slane %v1886, 4
        %v1889 = vrot.slane %v481, 6
        %v1890 = vsel %vm1343, %v1888, %v1889
        %s1891 = scalar_lea.vmem %s4, 20
        %v1892 = vld [vmem:[%s1891] sm:$0xf]
        %v1893 = vunpack.c.l.b16 %v1887
        %v1894 = vunpack.c.l.b16 %v1890
        %v1895 = vpack.c.b16 %v1894, %v1893
        %1897 = vst [vmem:[#allocation1] ss:$4 sm:$0xff] %v1892
        %v1898 = vld.sshfl [vmem:[#allocation1] sm:$0xff pattern:$0x73625140]
        %v1899 = vld.sshfl [vmem:[#allocation1 + $0x8] sm:$0xff pattern:$0x73625140]
        %v1901 = vsel %vm753, %v1895, 0
        %v1903 = vsel %vm778, %v1898, 0
        %v1905 = vsel %vm778, %v1899, 0
        %1907 = vmatpush.bf16.msra.mxu0 0
        %1908 = vmatpush.bf16.msra.mxu0 0
        %1909 = vmatpush.bf16.msra.mxu0 0
        %1910 = vmatpush.bf16.msra.mxu0 0
        %1911 = vmatpush.bf16.msra.mxu0 0
        %1912 = vmatpush.bf16.msra.mxu0 0
        %1913 = vmatpush.bf16.msra.mxu0 0
        %1914 = vmatpush.bf16.msra.mxu0 %v1903
        %1915 = vmatmul.bf16.gmra.mxu0 %v1434
        %v1916 = vpop.f32.mrf.mxu0
        %v1917 = vadd.f32 0.0, %v1916
        %v1918 = vpop.f32.mrf.mxu0
        %v1919 = vadd.f32 0.0, %v1918
        %1920 = vmatmul.bf16.gmra.mxu0 %v1437
        %v1921 = vpop.f32.mrf.mxu0
        %v1922 = vadd.f32 0.0, %v1921
        %v1923 = vpop.f32.mrf.mxu0
        %v1924 = vadd.f32 0.0, %v1923
        %1925 = vmatmul.bf16.gmra.mxu0 %v1440
        %v1926 = vpop.f32.mrf.mxu0
        %v1927 = vadd.f32 0.0, %v1926
        %v1928 = vpop.f32.mrf.mxu0
        %v1929 = vadd.f32 0.0, %v1928
        %1930 = vmatmul.bf16.gmra.mxu0 %v1443
        %v1931 = vpop.f32.mrf.mxu0
        %v1932 = vadd.f32 0.0, %v1931
        %v1933 = vpop.f32.mrf.mxu0
        %v1934 = vadd.f32 0.0, %v1933
        %1935 = vmatmul.bf16.gmra.mxu0 %v1446
        %v1936 = vpop.f32.mrf.mxu0
        %v1937 = vadd.f32 0.0, %v1936
        %v1938 = vpop.f32.mrf.mxu0
        %v1939 = vadd.f32 0.0, %v1938
        %1940 = vmatmul.bf16.gmra.mxu0 %v1449
        %v1941 = vpop.f32.mrf.mxu0
        %v1942 = vadd.f32 0.0, %v1941
        %v1943 = vpop.f32.mrf.mxu0
        %v1944 = vadd.f32 0.0, %v1943
        %1945 = vmatmul.bf16.gmra.mxu0 %v1452
        %v1946 = vpop.f32.mrf.mxu0
        %v1947 = vadd.f32 0.0, %v1946
        %v1948 = vpop.f32.mrf.mxu0
        %v1949 = vadd.f32 0.0, %v1948
        %1950 = vmatmul.bf16.gmra.mxu0 %v1901
        %v1951 = vpop.f32.mrf.mxu0
        %v1952 = vadd.f32 0.0, %v1951
        %v1953 = vpop.f32.mrf.mxu0
        %v1954 = vadd.f32 0.0, %v1953
        %1955 = vdwg.mxu0
        %1956 = vmatpush.bf16.msra.mxu0 0
        %1957 = vmatpush.bf16.msra.mxu0 0
        %1958 = vmatpush.bf16.msra.mxu0 0
        %1959 = vmatpush.bf16.msra.mxu0 0
        %1960 = vmatpush.bf16.msra.mxu0 0
        %1961 = vmatpush.bf16.msra.mxu0 0
        %1962 = vmatpush.bf16.msra.mxu0 0
        %1963 = vmatpush.bf16.msra.mxu0 %v1905
        %1964 = vmatmul.bf16.gmra.mxu0 %v1434
        %v1965 = vpop.f32.mrf.mxu0
        %v1966 = vadd.f32 0.0, %v1965
        %v1967 = vpop.f32.mrf.mxu0
        %v1968 = vadd.f32 0.0, %v1967
        %1969 = vmatmul.bf16.gmra.mxu0 %v1437
        %v1970 = vpop.f32.mrf.mxu0
        %v1971 = vadd.f32 0.0, %v1970
        %v1972 = vpop.f32.mrf.mxu0
        %v1973 = vadd.f32 0.0, %v1972
        %1974 = vmatmul.bf16.gmra.mxu0 %v1440
        %v1975 = vpop.f32.mrf.mxu0
        %v1976 = vadd.f32 0.0, %v1975
        %v1977 = vpop.f32.mrf.mxu0
        %v1978 = vadd.f32 0.0, %v1977
        %1979 = vmatmul.bf16.gmra.mxu0 %v1443
        %v1980 = vpop.f32.mrf.mxu0
        %v1981 = vadd.f32 0.0, %v1980
        %v1982 = vpop.f32.mrf.mxu0
        %v1983 = vadd.f32 0.0, %v1982
        %1984 = vmatmul.bf16.gmra.mxu0 %v1446
        %v1985 = vpop.f32.mrf.mxu0
        %v1986 = vadd.f32 0.0, %v1985
        %v1987 = vpop.f32.mrf.mxu0
        %v1988 = vadd.f32 0.0, %v1987
        %1989 = vmatmul.bf16.gmra.mxu0 %v1449
        %v1990 = vpop.f32.mrf.mxu0
        %v1991 = vadd.f32 0.0, %v1990
        %v1992 = vpop.f32.mrf.mxu0
        %v1993 = vadd.f32 0.0, %v1992
        %1994 = vmatmul.bf16.gmra.mxu0 %v1452
        %v1995 = vpop.f32.mrf.mxu0
        %v1996 = vadd.f32 0.0, %v1995
        %v1997 = vpop.f32.mrf.mxu0
        %v1998 = vadd.f32 0.0, %v1997
        %1999 = vmatmul.bf16.gmra.mxu0 %v1901
        %v2000 = vpop.f32.mrf.mxu0
        %v2001 = vadd.f32 0.0, %v2000
        %v2002 = vpop.f32.mrf.mxu0
        %v2003 = vadd.f32 0.0, %v2002
        %2004 = vdwg.mxu0
        %v2005 = vadd.f32 %v1852, %v1917
        %v2006 = vadd.f32 %v1853, %v1966
        %v2007 = vadd.f32 %v1854, %v1919
        %v2008 = vadd.f32 %v1855, %v1968
        %v2009 = vadd.f32 %v1856, %v1922
        %v2010 = vadd.f32 %v1857, %v1971
        %v2011 = vadd.f32 %v1858, %v1924
        %v2012 = vadd.f32 %v1859, %v1973
        %v2013 = vadd.f32 %v1860, %v1927
        %v2014 = vadd.f32 %v1861, %v1976
        %v2015 = vadd.f32 %v1862, %v1929
        %v2016 = vadd.f32 %v1863, %v1978
        %v2017 = vadd.f32 %v1864, %v1932
        %v2018 = vadd.f32 %v1865, %v1981
        %v2019 = vadd.f32 %v1866, %v1934
        %v2020 = vadd.f32 %v1867, %v1983
        %v2021 = vadd.f32 %v1868, %v1937
        %v2022 = vadd.f32 %v1869, %v1986
        %v2023 = vadd.f32 %v1870, %v1939
        %v2024 = vadd.f32 %v1871, %v1988
        %v2025 = vadd.f32 %v1872, %v1942
        %v2026 = vadd.f32 %v1873, %v1991
        %v2027 = vadd.f32 %v1874, %v1944
        %v2028 = vadd.f32 %v1875, %v1993
        %v2029 = vadd.f32 %v1876, %v1947
        %v2030 = vadd.f32 %v1877, %v1996
        %v2031 = vadd.f32 %v1878, %v1949
        %v2032 = vadd.f32 %v1879, %v1998
        %v2033 = vadd.f32 %v1880, %v1952
        %v2034 = vadd.f32 %v1881, %v2001
        %v2035 = vadd.f32 %v1882, %v1954
        %v2036 = vadd.f32 %v1883, %v2003
        %v2040 = vrot.slane %v482, 5
        %v2041 = vrot.slane %v2040, 4
        %v2042 = vrot.slane %v483, 5
        %v2043 = vsel %vm987, %v2041, %v2042
        %v2044 = vrot.slane %v2042, 4
        %v2045 = vrot.slane %v484, 5
        %v2046 = vsel %vm987, %v2044, %v2045
        %s2047 = scalar_lea.vmem %s4, 24
        %v2048 = vld [vmem:[%s2047] sm:$0xf]
        %v2049 = vunpack.c.l.b16 %v2043
        %v2050 = vunpack.c.l.b16 %v2046
        %v2051 = vpack.c.b16 %v2050, %v2049
        %2053 = vst [vmem:[#allocation1] ss:$4 sm:$0xff] %v2048
        %v2054 = vld.sshfl [vmem:[#allocation1] sm:$0xff pattern:$0x73625140]
        %v2055 = vld.sshfl [vmem:[#allocation1 + $0x8] sm:$0xff pattern:$0x73625140]
        %v2057 = vsel %vm753, %v2051, 0
        %v2059 = vsel %vm778, %v2054, 0
        %v2061 = vsel %vm778, %v2055, 0
        %2063 = vmatpush.bf16.msra.mxu0 0
        %2064 = vmatpush.bf16.msra.mxu0 0
        %2065 = vmatpush.bf16.msra.mxu0 0
        %2066 = vmatpush.bf16.msra.mxu0 0
        %2067 = vmatpush.bf16.msra.mxu0 0
        %2068 = vmatpush.bf16.msra.mxu0 0
        %2069 = vmatpush.bf16.msra.mxu0 0
        %2070 = vmatpush.bf16.msra.mxu0 %v2059
        %2071 = vmatmul.bf16.gmra.mxu0 %v1222
        %v2072 = vpop.f32.mrf.mxu0
        %v2073 = vadd.f32 0.0, %v2072
        %v2074 = vpop.f32.mrf.mxu0
        %v2075 = vadd.f32 0.0, %v2074
        %2076 = vmatmul.bf16.gmra.mxu0 %v1225
        %v2077 = vpop.f32.mrf.mxu0
        %v2078 = vadd.f32 0.0, %v2077
        %v2079 = vpop.f32.mrf.mxu0
        %v2080 = vadd.f32 0.0, %v2079
        %2081 = vmatmul.bf16.gmra.mxu0 %v1228
        %v2082 = vpop.f32.mrf.mxu0
        %v2083 = vadd.f32 0.0, %v2082
        %v2084 = vpop.f32.mrf.mxu0
        %v2085 = vadd.f32 0.0, %v2084
        %2086 = vmatmul.bf16.gmra.mxu0 %v1231
        %v2087 = vpop.f32.mrf.mxu0
        %v2088 = vadd.f32 0.0, %v2087
        %v2089 = vpop.f32.mrf.mxu0
        %v2090 = vadd.f32 0.0, %v2089
        %2091 = vmatmul.bf16.gmra.mxu0 %v1234
        %v2092 = vpop.f32.mrf.mxu0
        %v2093 = vadd.f32 0.0, %v2092
        %v2094 = vpop.f32.mrf.mxu0
        %v2095 = vadd.f32 0.0, %v2094
        %2096 = vmatmul.bf16.gmra.mxu0 %v1237
        %v2097 = vpop.f32.mrf.mxu0
        %v2098 = vadd.f32 0.0, %v2097
        %v2099 = vpop.f32.mrf.mxu0
        %v2100 = vadd.f32 0.0, %v2099
        %2101 = vmatmul.bf16.gmra.mxu0 %v1608
        %v2102 = vpop.f32.mrf.mxu0
        %v2103 = vadd.f32 0.0, %v2102
        %v2104 = vpop.f32.mrf.mxu0
        %v2105 = vadd.f32 0.0, %v2104
        %2106 = vmatmul.bf16.gmra.mxu0 %v2057
        %v2107 = vpop.f32.mrf.mxu0
        %v2108 = vadd.f32 0.0, %v2107
        %v2109 = vpop.f32.mrf.mxu0
        %v2110 = vadd.f32 0.0, %v2109
        %2111 = vdwg.mxu0
        %2112 = vmatpush.bf16.msra.mxu0 0
        %2113 = vmatpush.bf16.msra.mxu0 0
        %2114 = vmatpush.bf16.msra.mxu0 0
        %2115 = vmatpush.bf16.msra.mxu0 0
        %2116 = vmatpush.bf16.msra.mxu0 0
        %2117 = vmatpush.bf16.msra.mxu0 0
        %2118 = vmatpush.bf16.msra.mxu0 0
        %2119 = vmatpush.bf16.msra.mxu0 %v2061
        %2120 = vmatmul.bf16.gmra.mxu0 %v1222
        %v2121 = vpop.f32.mrf.mxu0
        %v2122 = vadd.f32 0.0, %v2121
        %v2123 = vpop.f32.mrf.mxu0
        %v2124 = vadd.f32 0.0, %v2123
        %2125 = vmatmul.bf16.gmra.mxu0 %v1225
        %v2126 = vpop.f32.mrf.mxu0
        %v2127 = vadd.f32 0.0, %v2126
        %v2128 = vpop.f32.mrf.mxu0
        %v2129 = vadd.f32 0.0, %v2128
        %2130 = vmatmul.bf16.gmra.mxu0 %v1228
        %v2131 = vpop.f32.mrf.mxu0
        %v2132 = vadd.f32 0.0, %v2131
        %v2133 = vpop.f32.mrf.mxu0
        %v2134 = vadd.f32 0.0, %v2133
        %2135 = vmatmul.bf16.gmra.mxu0 %v1231
        %v2136 = vpop.f32.mrf.mxu0
        %v2137 = vadd.f32 0.0, %v2136
        %v2138 = vpop.f32.mrf.mxu0
        %v2139 = vadd.f32 0.0, %v2138
        %2140 = vmatmul.bf16.gmra.mxu0 %v1234
        %v2141 = vpop.f32.mrf.mxu0
        %v2142 = vadd.f32 0.0, %v2141
        %v2143 = vpop.f32.mrf.mxu0
        %v2144 = vadd.f32 0.0, %v2143
        %2145 = vmatmul.bf16.gmra.mxu0 %v1237
        %v2146 = vpop.f32.mrf.mxu0
        %v2147 = vadd.f32 0.0, %v2146
        %v2148 = vpop.f32.mrf.mxu0
        %v2149 = vadd.f32 0.0, %v2148
        %2150 = vmatmul.bf16.gmra.mxu0 %v1608
        %v2151 = vpop.f32.mrf.mxu0
        %v2152 = vadd.f32 0.0, %v2151
        %v2153 = vpop.f32.mrf.mxu0
        %v2154 = vadd.f32 0.0, %v2153
        %2155 = vmatmul.bf16.gmra.mxu0 %v2057
        %v2156 = vpop.f32.mrf.mxu0
        %v2157 = vadd.f32 0.0, %v2156
        %v2158 = vpop.f32.mrf.mxu0
        %v2159 = vadd.f32 0.0, %v2158
        %2160 = vdwg.mxu0
        %v2161 = vadd.f32 %v2005, %v2073
        %v2162 = vadd.f32 %v2006, %v2122
        %v2163 = vadd.f32 %v2007, %v2075
        %v2164 = vadd.f32 %v2008, %v2124
        %v2165 = vadd.f32 %v2009, %v2078
        %v2166 = vadd.f32 %v2010, %v2127
        %v2167 = vadd.f32 %v2011, %v2080
        %v2168 = vadd.f32 %v2012, %v2129
        %v2169 = vadd.f32 %v2013, %v2083
        %v2170 = vadd.f32 %v2014, %v2132
        %v2171 = vadd.f32 %v2015, %v2085
        %v2172 = vadd.f32 %v2016, %v2134
        %v2173 = vadd.f32 %v2017, %v2088
        %v2174 = vadd.f32 %v2018, %v2137
        %v2175 = vadd.f32 %v2019, %v2090
        %v2176 = vadd.f32 %v2020, %v2139
        %v2177 = vadd.f32 %v2021, %v2093
        %v2178 = vadd.f32 %v2022, %v2142
        %v2179 = vadd.f32 %v2023, %v2095
        %v2180 = vadd.f32 %v2024, %v2144
        %v2181 = vadd.f32 %v2025, %v2098
        %v2182 = vadd.f32 %v2026, %v2147
        %v2183 = vadd.f32 %v2027, %v2100
        %v2184 = vadd.f32 %v2028, %v2149
        %v2185 = vadd.f32 %v2029, %v2103
        %v2186 = vadd.f32 %v2030, %v2152
        %v2187 = vadd.f32 %v2031, %v2105
        %v2188 = vadd.f32 %v2032, %v2154
        %v2189 = vadd.f32 %v2033, %v2108
        %v2190 = vadd.f32 %v2034, %v2157
        %v2191 = vadd.f32 %v2035, %v2110
        %v2192 = vadd.f32 %v2036, %v2159
        %v2194 = vshrl.u32 %v482, 16
        %v2196 = vrot.slane %v2194, 5
        %v2197 = vshll.u32 %v482, 16
        %v2199 = vrot.slane %v2197, 6
        %v2200 = vor.u32 %v2196, %v2199
        %v2201 = vrot.slane %v2200, 4
        %v2203 = vshrl.u32 %v483, 16
        %v2205 = vrot.slane %v2203, 5
        %v2206 = vshll.u32 %v483, 16
        %v2208 = vrot.slane %v2206, 6
        %v2209 = vor.u32 %v2205, %v2208
        %v2210 = vsel %vm493, %v2201, %v2209
        %v2211 = vrot.slane %v2209, 4
        %v2213 = vshrl.u32 %v484, 16
        %v2215 = vrot.slane %v2213, 5
        %v2216 = vshll.u32 %v484, 16
        %v2218 = vrot.slane %v2216, 6
        %v2219 = vor.u32 %v2215, %v2218
        %v2220 = vsel %vm493, %v2211, %v2219
        %s2221 = scalar_lea.vmem %s4, 28
        %v2222 = vld [vmem:[%s2221] sm:$0xf]
        %v2223 = vunpack.c.l.b16 %v2210
        %v2224 = vunpack.c.l.b16 %v2220
        %v2225 = vpack.c.b16 %v2224, %v2223
        %2227 = vst [vmem:[#allocation1] ss:$4 sm:$0xff] %v2222
        %v2228 = vld.sshfl [vmem:[#allocation1] sm:$0xff pattern:$0x73625140]
        %v2229 = vld.sshfl [vmem:[#allocation1 + $0x8] sm:$0xff pattern:$0x73625140]
        %v2231 = vsel %vm753, %v2225, 0
        %v2233 = vsel %vm778, %v2228, 0
        %v2235 = vsel %vm778, %v2229, 0
        %2237 = vmatpush.bf16.msra.mxu0 0
        %2238 = vmatpush.bf16.msra.mxu0 0
        %2239 = vmatpush.bf16.msra.mxu0 0
        %2240 = vmatpush.bf16.msra.mxu0 0
        %2241 = vmatpush.bf16.msra.mxu0 0
        %2242 = vmatpush.bf16.msra.mxu0 0
        %2243 = vmatpush.bf16.msra.mxu0 0
        %2244 = vmatpush.bf16.msra.mxu0 %v2233
        %2245 = vmatmul.bf16.gmra.mxu0 %v758
        %v2246 = vpop.f32.mrf.mxu0
        %v2247 = vadd.f32 0.0, %v2246
        %v2248 = vpop.f32.mrf.mxu0
        %v2249 = vadd.f32 0.0, %v2248
        %2250 = vmatmul.bf16.gmra.mxu0 %v761
        %v2251 = vpop.f32.mrf.mxu0
        %v2252 = vadd.f32 0.0, %v2251
        %v2253 = vpop.f32.mrf.mxu0
        %v2254 = vadd.f32 0.0, %v2253
        %2255 = vmatmul.bf16.gmra.mxu0 %v764
        %v2256 = vpop.f32.mrf.mxu0
        %v2257 = vadd.f32 0.0, %v2256
        %v2258 = vpop.f32.mrf.mxu0
        %v2259 = vadd.f32 0.0, %v2258
        %2260 = vmatmul.bf16.gmra.mxu0 %v767
        %v2261 = vpop.f32.mrf.mxu0
        %v2262 = vadd.f32 0.0, %v2261
        %v2263 = vpop.f32.mrf.mxu0
        %v2264 = vadd.f32 0.0, %v2263
        %2265 = vmatmul.bf16.gmra.mxu0 %v770
        %v2266 = vpop.f32.mrf.mxu0
        %v2267 = vadd.f32 0.0, %v2266
        %v2268 = vpop.f32.mrf.mxu0
        %v2269 = vadd.f32 0.0, %v2268
        %2270 = vmatmul.bf16.gmra.mxu0 %v773
        %v2271 = vpop.f32.mrf.mxu0
        %v2272 = vadd.f32 0.0, %v2271
        %v2273 = vpop.f32.mrf.mxu0
        %v2274 = vadd.f32 0.0, %v2273
        %2275 = vmatmul.bf16.gmra.mxu0 %v776
        %v2276 = vpop.f32.mrf.mxu0
        %v2277 = vadd.f32 0.0, %v2276
        %v2278 = vpop.f32.mrf.mxu0
        %v2279 = vadd.f32 0.0, %v2278
        %2280 = vmatmul.bf16.gmra.mxu0 %v2231
        %v2281 = vpop.f32.mrf.mxu0
        %v2282 = vadd.f32 0.0, %v2281
        %v2283 = vpop.f32.mrf.mxu0
        %v2284 = vadd.f32 0.0, %v2283
        %2285 = vdwg.mxu0
        %2286 = vmatpush.bf16.msra.mxu0 0
        %2287 = vmatpush.bf16.msra.mxu0 0
        %2288 = vmatpush.bf16.msra.mxu0 0
        %2289 = vmatpush.bf16.msra.mxu0 0
        %2290 = vmatpush.bf16.msra.mxu0 0
        %2291 = vmatpush.bf16.msra.mxu0 0
        %2292 = vmatpush.bf16.msra.mxu0 0
        %2293 = vmatpush.bf16.msra.mxu0 %v2235
        %2294 = vmatmul.bf16.gmra.mxu0 %v758
        %v2295 = vpop.f32.mrf.mxu0
        %v2296 = vadd.f32 0.0, %v2295
        %v2297 = vpop.f32.mrf.mxu0
        %v2298 = vadd.f32 0.0, %v2297
        %2299 = vmatmul.bf16.gmra.mxu0 %v761
        %v2300 = vpop.f32.mrf.mxu0
        %v2301 = vadd.f32 0.0, %v2300
        %v2302 = vpop.f32.mrf.mxu0
        %v2303 = vadd.f32 0.0, %v2302
        %2304 = vmatmul.bf16.gmra.mxu0 %v764
        %v2305 = vpop.f32.mrf.mxu0
        %v2306 = vadd.f32 0.0, %v2305
        %v2307 = vpop.f32.mrf.mxu0
        %v2308 = vadd.f32 0.0, %v2307
        %2309 = vmatmul.bf16.gmra.mxu0 %v767
        %v2310 = vpop.f32.mrf.mxu0
        %v2311 = vadd.f32 0.0, %v2310
        %v2312 = vpop.f32.mrf.mxu0
        %v2313 = vadd.f32 0.0, %v2312
        %2314 = vmatmul.bf16.gmra.mxu0 %v770
        %v2315 = vpop.f32.mrf.mxu0
        %v2316 = vadd.f32 0.0, %v2315
        %v2317 = vpop.f32.mrf.mxu0
        %v2318 = vadd.f32 0.0, %v2317
        %2319 = vmatmul.bf16.gmra.mxu0 %v773
        %v2320 = vpop.f32.mrf.mxu0
        %v2321 = vadd.f32 0.0, %v2320
        %v2322 = vpop.f32.mrf.mxu0
        %v2323 = vadd.f32 0.0, %v2322
        %2324 = vmatmul.bf16.gmra.mxu0 %v776
        %v2325 = vpop.f32.mrf.mxu0
        %v2326 = vadd.f32 0.0, %v2325
        %v2327 = vpop.f32.mrf.mxu0
        %v2328 = vadd.f32 0.0, %v2327
        %2329 = vmatmul.bf16.gmra.mxu0 %v2231
        %v2330 = vpop.f32.mrf.mxu0
        %v2331 = vadd.f32 0.0, %v2330
        %v2332 = vpop.f32.mrf.mxu0
        %v2333 = vadd.f32 0.0, %v2332
        %2334 = vdwg.mxu0
        %v2335 = vadd.f32 %v2161, %v2247
        %v2336 = vadd.f32 %v2162, %v2296
        %v2337 = vadd.f32 %v2163, %v2249
        %v2338 = vadd.f32 %v2164, %v2298
        %v2339 = vadd.f32 %v2165, %v2252
        %v2340 = vadd.f32 %v2166, %v2301
        %v2341 = vadd.f32 %v2167, %v2254
        %v2342 = vadd.f32 %v2168, %v2303
        %v2343 = vadd.f32 %v2169, %v2257
        %v2344 = vadd.f32 %v2170, %v2306
        %v2345 = vadd.f32 %v2171, %v2259
        %v2346 = vadd.f32 %v2172, %v2308
        %v2347 = vadd.f32 %v2173, %v2262
        %v2348 = vadd.f32 %v2174, %v2311
        %v2349 = vadd.f32 %v2175, %v2264
        %v2350 = vadd.f32 %v2176, %v2313
        %v2351 = vadd.f32 %v2177, %v2267
        %v2352 = vadd.f32 %v2178, %v2316
        %v2353 = vadd.f32 %v2179, %v2269
        %v2354 = vadd.f32 %v2180, %v2318
        %v2355 = vadd.f32 %v2181, %v2272
        %v2356 = vadd.f32 %v2182, %v2321
        %v2357 = vadd.f32 %v2183, %v2274
        %v2358 = vadd.f32 %v2184, %v2323
        %v2359 = vadd.f32 %v2185, %v2277
        %v2360 = vadd.f32 %v2186, %v2326
        %v2361 = vadd.f32 %v2187, %v2279
        %v2362 = vadd.f32 %v2188, %v2328
        %v2363 = vadd.f32 %v2189, %v2282
        %v2364 = vadd.f32 %v2190, %v2331
        %v2365 = vadd.f32 %v2191, %v2284
        %v2366 = vadd.f32 %v2192, %v2333
        %v2367 = vrot.slane %v482, 6
        %v2368 = vrot.slane %v2367, 4
        %v2369 = vrot.slane %v483, 6
        %v2370 = vsel %vm1343, %v2368, %v2369
        %v2371 = vrot.slane %v2369, 4
        %v2372 = vrot.slane %v484, 6
        %v2373 = vsel %vm1343, %v2371, %v2372
        %s2374 = scalar_lea.vmem %s4, 32
        %v2375 = vld [vmem:[%s2374] sm:$0xf]
        %v2376 = vunpack.c.l.b16 %v2370
        %v2377 = vunpack.c.l.b16 %v2373
        %v2378 = vpack.c.b16 %v2377, %v2376
        %2380 = vst [vmem:[#allocation1] ss:$4 sm:$0xff] %v2375
        %v2381 = vld.sshfl [vmem:[#allocation1] sm:$0xff pattern:$0x73625140]
        %v2382 = vld.sshfl [vmem:[#allocation1 + $0x8] sm:$0xff pattern:$0x73625140]
        %v2384 = vsel %vm753, %v2378, 0
        %v2386 = vsel %vm778, %v2381, 0
        %v2388 = vsel %vm778, %v2382, 0
        %2390 = vmatpush.bf16.msra.mxu0 0
        %2391 = vmatpush.bf16.msra.mxu0 0
        %2392 = vmatpush.bf16.msra.mxu0 0
        %2393 = vmatpush.bf16.msra.mxu0 0
        %2394 = vmatpush.bf16.msra.mxu0 0
        %2395 = vmatpush.bf16.msra.mxu0 0
        %2396 = vmatpush.bf16.msra.mxu0 0
        %2397 = vmatpush.bf16.msra.mxu0 %v2386
        %2398 = vmatmul.bf16.gmra.mxu0 %v1437
        %v2399 = vpop.f32.mrf.mxu0
        %v2400 = vadd.f32 0.0, %v2399
        %v2401 = vpop.f32.mrf.mxu0
        %v2402 = vadd.f32 0.0, %v2401
        %2403 = vmatmul.bf16.gmra.mxu0 %v1440
        %v2404 = vpop.f32.mrf.mxu0
        %v2405 = vadd.f32 0.0, %v2404
        %v2406 = vpop.f32.mrf.mxu0
        %v2407 = vadd.f32 0.0, %v2406
        %2408 = vmatmul.bf16.gmra.mxu0 %v1443
        %v2409 = vpop.f32.mrf.mxu0
        %v2410 = vadd.f32 0.0, %v2409
        %v2411 = vpop.f32.mrf.mxu0
        %v2412 = vadd.f32 0.0, %v2411
        %2413 = vmatmul.bf16.gmra.mxu0 %v1446
        %v2414 = vpop.f32.mrf.mxu0
        %v2415 = vadd.f32 0.0, %v2414
        %v2416 = vpop.f32.mrf.mxu0
        %v2417 = vadd.f32 0.0, %v2416
        %2418 = vmatmul.bf16.gmra.mxu0 %v1449
        %v2419 = vpop.f32.mrf.mxu0
        %v2420 = vadd.f32 0.0, %v2419
        %v2421 = vpop.f32.mrf.mxu0
        %v2422 = vadd.f32 0.0, %v2421
        %2423 = vmatmul.bf16.gmra.mxu0 %v1452
        %v2424 = vpop.f32.mrf.mxu0
        %v2425 = vadd.f32 0.0, %v2424
        %v2426 = vpop.f32.mrf.mxu0
        %v2427 = vadd.f32 0.0, %v2426
        %2428 = vmatmul.bf16.gmra.mxu0 %v1901
        %v2429 = vpop.f32.mrf.mxu0
        %v2430 = vadd.f32 0.0, %v2429
        %v2431 = vpop.f32.mrf.mxu0
        %v2432 = vadd.f32 0.0, %v2431
        %2433 = vmatmul.bf16.gmra.mxu0 %v2384
        %v2434 = vpop.f32.mrf.mxu0
        %v2435 = vadd.f32 0.0, %v2434
        %v2436 = vpop.f32.mrf.mxu0
        %v2437 = vadd.f32 0.0, %v2436
        %2438 = vdwg.mxu0
        %2439 = vmatpush.bf16.msra.mxu0 0
        %2440 = vmatpush.bf16.msra.mxu0 0
        %2441 = vmatpush.bf16.msra.mxu0 0
        %2442 = vmatpush.bf16.msra.mxu0 0
        %2443 = vmatpush.bf16.msra.mxu0 0
        %2444 = vmatpush.bf16.msra.mxu0 0
        %2445 = vmatpush.bf16.msra.mxu0 0
        %2446 = vmatpush.bf16.msra.mxu0 %v2388
        %2447 = vmatmul.bf16.gmra.mxu0 %v1437
        %v2448 = vpop.f32.mrf.mxu0
        %v2449 = vadd.f32 0.0, %v2448
        %v2450 = vpop.f32.mrf.mxu0
        %v2451 = vadd.f32 0.0, %v2450
        %2452 = vmatmul.bf16.gmra.mxu0 %v1440
        %v2453 = vpop.f32.mrf.mxu0
        %v2454 = vadd.f32 0.0, %v2453
        %v2455 = vpop.f32.mrf.mxu0
        %v2456 = vadd.f32 0.0, %v2455
        %2457 = vmatmul.bf16.gmra.mxu0 %v1443
        %v2458 = vpop.f32.mrf.mxu0
        %v2459 = vadd.f32 0.0, %v2458
        %v2460 = vpop.f32.mrf.mxu0
        %v2461 = vadd.f32 0.0, %v2460
        %2462 = vmatmul.bf16.gmra.mxu0 %v1446
        %v2463 = vpop.f32.mrf.mxu0
        %v2464 = vadd.f32 0.0, %v2463
        %v2465 = vpop.f32.mrf.mxu0
        %v2466 = vadd.f32 0.0, %v2465
        %2467 = vmatmul.bf16.gmra.mxu0 %v1449
        %v2468 = vpop.f32.mrf.mxu0
        %v2469 = vadd.f32 0.0, %v2468
        %v2470 = vpop.f32.mrf.mxu0
        %v2471 = vadd.f32 0.0, %v2470
        %2472 = vmatmul.bf16.gmra.mxu0 %v1452
        %v2473 = vpop.f32.mrf.mxu0
        %v2474 = vadd.f32 0.0, %v2473
        %v2475 = vpop.f32.mrf.mxu0
        %v2476 = vadd.f32 0.0, %v2475
        %2477 = vmatmul.bf16.gmra.mxu0 %v1901
        %v2478 = vpop.f32.mrf.mxu0
        %v2479 = vadd.f32 0.0, %v2478
        %v2480 = vpop.f32.mrf.mxu0
        %v2481 = vadd.f32 0.0, %v2480
        %2482 = vmatmul.bf16.gmra.mxu0 %v2384
        %v2483 = vpop.f32.mrf.mxu0
        %v2484 = vadd.f32 0.0, %v2483
        %v2485 = vpop.f32.mrf.mxu0
        %v2486 = vadd.f32 0.0, %v2485
        %2487 = vdwg.mxu0
        %v2488 = vadd.f32 %v2335, %v2400
        %v2489 = vadd.f32 %v2336, %v2449
        %v2490 = vadd.f32 %v2337, %v2402
        %v2491 = vadd.f32 %v2338, %v2451
        %v2492 = vadd.f32 %v2339, %v2405
        %v2493 = vadd.f32 %v2340, %v2454
        %v2494 = vadd.f32 %v2341, %v2407
        %v2495 = vadd.f32 %v2342, %v2456
        %v2496 = vadd.f32 %v2343, %v2410
        %v2497 = vadd.f32 %v2344, %v2459
        %v2498 = vadd.f32 %v2345, %v2412
        %v2499 = vadd.f32 %v2346, %v2461
        %v2500 = vadd.f32 %v2347, %v2415
        %v2501 = vadd.f32 %v2348, %v2464
        %v2502 = vadd.f32 %v2349, %v2417
        %v2503 = vadd.f32 %v2350, %v2466
        %v2504 = vadd.f32 %v2351, %v2420
        %v2505 = vadd.f32 %v2352, %v2469
        %v2506 = vadd.f32 %v2353, %v2422
        %v2507 = vadd.f32 %v2354, %v2471
        %v2508 = vadd.f32 %v2355, %v2425
        %v2509 = vadd.f32 %v2356, %v2474
        %v2510 = vadd.f32 %v2357, %v2427
        %v2511 = vadd.f32 %v2358, %v2476
        %v2512 = vadd.f32 %v2359, %v2430
        %v2513 = vadd.f32 %v2360, %v2479
        %v2514 = vadd.f32 %v2361, %v2432
        %v2515 = vadd.f32 %v2362, %v2481
        %v2516 = vadd.f32 %v2363, %v2435
        %v2517 = vadd.f32 %v2364, %v2484
        %v2518 = vadd.f32 %v2365, %v2437
        %v2519 = vadd.f32 %v2366, %v2486
        %v2520 = vld [vmem:[%s5] sm:$0x3]
        %v2522 = vperm.slane %v2520, 0
        %v2523 = vperm.slane %v2520, 1
        %v2526 = vadd.f32 %v2488, %v2522
        %v2527 = vadd.f32 %v2489, %v2523
        %v2528 = vadd.f32 %v2490, %v2522
        %v2529 = vadd.f32 %v2491, %v2523
        %v2530 = vadd.f32 %v2492, %v2522
        %v2531 = vadd.f32 %v2493, %v2523
        %v2532 = vadd.f32 %v2494, %v2522
        %v2533 = vadd.f32 %v2495, %v2523
        %v2534 = vadd.f32 %v2496, %v2522
        %v2535 = vadd.f32 %v2497, %v2523
        %v2536 = vadd.f32 %v2498, %v2522
        %v2537 = vadd.f32 %v2499, %v2523
        %v2538 = vadd.f32 %v2500, %v2522
        %v2539 = vadd.f32 %v2501, %v2523
        %v2540 = vadd.f32 %v2502, %v2522
        %v2541 = vadd.f32 %v2503, %v2523
        %v2542 = vadd.f32 %v2504, %v2522
        %v2543 = vadd.f32 %v2505, %v2523
        %v2544 = vadd.f32 %v2506, %v2522
        %v2545 = vadd.f32 %v2507, %v2523
        %v2546 = vadd.f32 %v2508, %v2522
        %v2547 = vadd.f32 %v2509, %v2523
        %v2548 = vadd.f32 %v2510, %v2522
        %v2549 = vadd.f32 %v2511, %v2523
        %v2550 = vadd.f32 %v2512, %v2522
        %v2551 = vadd.f32 %v2513, %v2523
        %v2552 = vadd.f32 %v2514, %v2522
        %v2553 = vadd.f32 %v2515, %v2523
        %v2554 = vadd.f32 %v2516, %v2522
        %v2555 = vadd.f32 %v2517, %v2523
        %v2556 = vadd.f32 %v2518, %v2522
        %v2557 = vadd.f32 %v2519, %v2523
        %v2558 = vmax.f32 %v2526, 0.0
        %v2559 = vmax.f32 %v2527, 0.0
        %v2560 = vmax.f32 %v2528, 0.0
        %v2561 = vmax.f32 %v2529, 0.0
        %v2562 = vmax.f32 %v2530, 0.0
        %v2563 = vmax.f32 %v2531, 0.0
        %v2564 = vmax.f32 %v2532, 0.0
        %v2565 = vmax.f32 %v2533, 0.0
        %v2566 = vmax.f32 %v2534, 0.0
        %v2567 = vmax.f32 %v2535, 0.0
        %v2568 = vmax.f32 %v2536, 0.0
        %v2569 = vmax.f32 %v2537, 0.0
        %v2570 = vmax.f32 %v2538, 0.0
        %v2571 = vmax.f32 %v2539, 0.0
        %v2572 = vmax.f32 %v2540, 0.0
        %v2573 = vmax.f32 %v2541, 0.0
        %v2574 = vmax.f32 %v2542, 0.0
        %v2575 = vmax.f32 %v2543, 0.0
        %v2576 = vmax.f32 %v2544, 0.0
        %v2577 = vmax.f32 %v2545, 0.0
        %v2578 = vmax.f32 %v2546, 0.0
        %v2579 = vmax.f32 %v2547, 0.0
        %v2580 = vmax.f32 %v2548, 0.0
        %v2581 = vmax.f32 %v2549, 0.0
        %v2582 = vmax.f32 %v2550, 0.0
        %v2583 = vmax.f32 %v2551, 0.0
        %v2584 = vmax.f32 %v2552, 0.0
        %v2585 = vmax.f32 %v2553, 0.0
        %v2586 = vmax.f32 %v2554, 0.0
        %v2587 = vmax.f32 %v2555, 0.0
        %v2588 = vmax.f32 %v2556, 0.0
        %v2589 = vmax.f32 %v2557, 0.0
        %v2590 = vpack.c.bf16 %v2560, %v2558
        %v2591 = vpack.c.bf16 %v2561, %v2559
        %v2592 = vpack.c.bf16 %v2564, %v2562
        %v2593 = vpack.c.bf16 %v2565, %v2563
        %v2594 = vpack.c.bf16 %v2568, %v2566
        %v2595 = vpack.c.bf16 %v2569, %v2567
        %v2596 = vpack.c.bf16 %v2572, %v2570
        %v2597 = vpack.c.bf16 %v2573, %v2571
        %v2598 = vpack.c.bf16 %v2576, %v2574
        %v2599 = vpack.c.bf16 %v2577, %v2575
        %v2600 = vpack.c.bf16 %v2580, %v2578
        %v2601 = vpack.c.bf16 %v2581, %v2579
        %v2602 = vpack.c.bf16 %v2584, %v2582
        %v2603 = vpack.c.bf16 %v2585, %v2583
        %v2604 = vpack.c.bf16 %v2588, %v2586
        %v2605 = vpack.c.bf16 %v2589, %v2587
        %s2606 = scalar_lea.vmem %s10, 256
        %v2607 = vld [vmem:[%s2606] sm:$0xff]
        %v2608 = vld [vmem:[%s2606 + $0x8] sm:$0xff]
        %v2609 = vld [vmem:[%s2606 + $0x10] sm:$0xff]
        %v2610 = vld [vmem:[%s2606 + $0x18] sm:$0xff]
        %v2611 = vld [vmem:[%s2606 + $0x20] sm:$0xff]
        %v2612 = vld [vmem:[%s2606 + $0x28] sm:$0xff]
        %v2613 = vld [vmem:[%s2606 + $0x30] sm:$0xff]
        %v2614 = vld [vmem:[%s2606 + $0x38] sm:$0xff]
        %v2615 = vld [vmem:[%s2606 + $0x40] sm:$0xff]
        %v2616 = vld [vmem:[%s2606 + $0x48] sm:$0xff]
        %v2617 = vld [vmem:[%s2606 + $0x50] sm:$0xff]
        %v2618 = vld [vmem:[%s2606 + $0x58] sm:$0xff]
        %v2619 = vld [vmem:[%s2606 + $0x60] sm:$0xff]
        %v2620 = vld [vmem:[%s2606 + $0x68] sm:$0xff]
        %v2621 = vld [vmem:[%s2606 + $0x70] sm:$0xff]
        %v2622 = vld [vmem:[%s2606 + $0x78] sm:$0xff]
        %v2623 = vld [vmem:[%s2606 + $0x80] sm:$0xff]
        %v2624 = vld [vmem:[%s2606 + $0x88] sm:$0xff]
        %v2625 = vld [vmem:[%s2606 + $0x90] sm:$0xff]
        %v2626 = vld [vmem:[%s2606 + $0x98] sm:$0xff]
        %v2627 = vld [vmem:[%s2606 + $0xa0] sm:$0xff]
        %v2628 = vld [vmem:[%s2606 + $0xa8] sm:$0xff]
        %v2629 = vld [vmem:[%s2606 + $0xb0] sm:$0xff]
        %v2630 = vld [vmem:[%s2606 + $0xb8] sm:$0xff]
        %v2631 = vld [vmem:[%s2606 + $0xc0] sm:$0xff]
        %v2632 = vld [vmem:[%s2606 + $0xc8] sm:$0xff]
        %v2633 = vld [vmem:[%s2606 + $0xd0] sm:$0xff]
        %v2634 = vld [vmem:[%s2606 + $0xd8] sm:$0xff]
        %v2635 = vld [vmem:[%s2606 + $0xe0] sm:$0xff]
        %v2636 = vld [vmem:[%s2606 + $0xe8] sm:$0xff]
        %v2637 = vld [vmem:[%s2606 + $0xf0] sm:$0xff]
        %v2638 = vld [vmem:[%s2606 + $0xf8] sm:$0xff]
        %v2671 = vunpack.c.l.b16 %v2607
        %v2672 = vunpack.c.h.b16 %v2607
        %v2673 = vunpack.c.l.b16 %v2608
        %v2674 = vunpack.c.h.b16 %v2608
        %v2675 = vunpack.c.l.b16 %v2609
        %v2676 = vunpack.c.h.b16 %v2609
        %v2677 = vunpack.c.l.b16 %v2610
        %v2678 = vunpack.c.h.b16 %v2610
        %v2679 = vunpack.c.l.b16 %v2611
        %v2680 = vunpack.c.h.b16 %v2611
        %v2681 = vunpack.c.l.b16 %v2612
        %v2682 = vunpack.c.h.b16 %v2612
        %v2683 = vunpack.c.l.b16 %v2613
        %v2684 = vunpack.c.h.b16 %v2613
        %v2685 = vunpack.c.l.b16 %v2614
        %v2686 = vunpack.c.h.b16 %v2614
        %v2687 = vunpack.c.l.b16 %v2615
        %v2688 = vunpack.c.h.b16 %v2615
        %v2689 = vunpack.c.l.b16 %v2616
        %v2690 = vunpack.c.h.b16 %v2616
        %v2691 = vunpack.c.l.b16 %v2617
        %v2692 = vunpack.c.h.b16 %v2617
        %v2693 = vunpack.c.l.b16 %v2618
        %v2694 = vunpack.c.h.b16 %v2618
        %v2695 = vunpack.c.l.b16 %v2619
        %v2696 = vunpack.c.h.b16 %v2619
        %v2697 = vunpack.c.l.b16 %v2620
        %v2698 = vunpack.c.h.b16 %v2620
        %v2699 = vunpack.c.l.b16 %v2621
        %v2700 = vunpack.c.h.b16 %v2621
        %v2701 = vunpack.c.l.b16 %v2622
        %v2702 = vunpack.c.h.b16 %v2622
        %v2703 = vunpack.c.l.b16 %v2623
        %v2704 = vunpack.c.h.b16 %v2623
        %v2705 = vunpack.c.l.b16 %v2624
        %v2706 = vunpack.c.h.b16 %v2624
        %v2707 = vunpack.c.l.b16 %v2625
        %v2708 = vunpack.c.h.b16 %v2625
        %v2709 = vunpack.c.l.b16 %v2626
        %v2710 = vunpack.c.h.b16 %v2626
        %v2711 = vunpack.c.l.b16 %v2627
        %v2712 = vunpack.c.h.b16 %v2627
        %v2713 = vunpack.c.l.b16 %v2628
        %v2714 = vunpack.c.h.b16 %v2628
        %v2715 = vunpack.c.l.b16 %v2629
        %v2716 = vunpack.c.h.b16 %v2629
        %v2717 = vunpack.c.l.b16 %v2630
        %v2718 = vunpack.c.h.b16 %v2630
        %v2719 = vunpack.c.l.b16 %v2631
        %v2720 = vunpack.c.h.b16 %v2631
        %v2721 = vunpack.c.l.b16 %v2632
        %v2722 = vunpack.c.h.b16 %v2632
        %v2723 = vunpack.c.l.b16 %v2633
        %v2724 = vunpack.c.h.b16 %v2633
        %v2725 = vunpack.c.l.b16 %v2634
        %v2726 = vunpack.c.h.b16 %v2634
        %v2727 = vunpack.c.l.b16 %v2635
        %v2728 = vunpack.c.h.b16 %v2635
        %v2729 = vunpack.c.l.b16 %v2636
        %v2730 = vunpack.c.h.b16 %v2636
        %v2731 = vunpack.c.l.b16 %v2637
        %v2732 = vunpack.c.h.b16 %v2637
        %v2733 = vunpack.c.l.b16 %v2638
        %v2734 = vunpack.c.h.b16 %v2638
        %v2735 = vpack.c.b16 %v2673, %v2671
        %v2736 = vpack.c.b16 %v2674, %v2672
        %v2737 = vpack.c.b16 %v2677, %v2675
        %v2738 = vpack.c.b16 %v2678, %v2676
        %v2739 = vpack.c.b16 %v2681, %v2679
        %v2740 = vpack.c.b16 %v2682, %v2680
        %v2741 = vpack.c.b16 %v2685, %v2683
        %v2742 = vpack.c.b16 %v2686, %v2684
        %v2743 = vpack.c.b16 %v2689, %v2687
        %v2744 = vpack.c.b16 %v2690, %v2688
        %v2745 = vpack.c.b16 %v2693, %v2691
        %v2746 = vpack.c.b16 %v2694, %v2692
        %v2747 = vpack.c.b16 %v2697, %v2695
        %v2748 = vpack.c.b16 %v2698, %v2696
        %v2749 = vpack.c.b16 %v2701, %v2699
        %v2750 = vpack.c.b16 %v2702, %v2700
        %v2751 = vpack.c.b16 %v2705, %v2703
        %v2752 = vpack.c.b16 %v2706, %v2704
        %v2753 = vpack.c.b16 %v2709, %v2707
        %v2754 = vpack.c.b16 %v2710, %v2708
        %v2755 = vpack.c.b16 %v2713, %v2711
        %v2756 = vpack.c.b16 %v2714, %v2712
        %v2757 = vpack.c.b16 %v2717, %v2715
        %v2758 = vpack.c.b16 %v2718, %v2716
        %v2759 = vpack.c.b16 %v2721, %v2719
        %v2760 = vpack.c.b16 %v2722, %v2720
        %v2761 = vpack.c.b16 %v2725, %v2723
        %v2762 = vpack.c.b16 %v2726, %v2724
        %v2763 = vpack.c.b16 %v2729, %v2727
        %v2764 = vpack.c.b16 %v2730, %v2728
        %v2765 = vpack.c.b16 %v2733, %v2731
        %v2766 = vpack.c.b16 %v2734, %v2732
        %2799 = vmatpush.bf16.msra.mxu0 %v2749
        %2800 = vmatpush.bf16.msra.mxu0 %v2747
        %2801 = vmatpush.bf16.msra.mxu0 %v2745
        %2802 = vmatpush.bf16.msra.mxu0 %v2743
        %2803 = vmatpush.bf16.msra.mxu0 %v2741
        %2804 = vmatpush.bf16.msra.mxu0 %v2739
        %2805 = vmatpush.bf16.msra.mxu0 %v2737
        %2806 = vmatpush.bf16.msra.mxu0 %v2735
        %2807 = vmatmul.bf16.gmra.mxu0 %v2590
        %v2808 = vpop.f32.mrf.mxu0
        %v2809 = vadd.f32 0.0, %v2808
        %v2810 = vpop.f32.mrf.mxu0
        %v2811 = vadd.f32 0.0, %v2810
        %2812 = vmatmul.bf16.gmra.mxu0 %v2592
        %v2813 = vpop.f32.mrf.mxu0
        %v2814 = vadd.f32 0.0, %v2813
        %v2815 = vpop.f32.mrf.mxu0
        %v2816 = vadd.f32 0.0, %v2815
        %2817 = vmatmul.bf16.gmra.mxu0 %v2594
        %v2818 = vpop.f32.mrf.mxu0
        %v2819 = vadd.f32 0.0, %v2818
        %v2820 = vpop.f32.mrf.mxu0
        %v2821 = vadd.f32 0.0, %v2820
        %2822 = vmatmul.bf16.gmra.mxu0 %v2596
        %v2823 = vpop.f32.mrf.mxu0
        %v2824 = vadd.f32 0.0, %v2823
        %v2825 = vpop.f32.mrf.mxu0
        %v2826 = vadd.f32 0.0, %v2825
        %2827 = vmatmul.bf16.gmra.mxu0 %v2598
        %v2828 = vpop.f32.mrf.mxu0
        %v2829 = vadd.f32 0.0, %v2828
        %v2830 = vpop.f32.mrf.mxu0
        %v2831 = vadd.f32 0.0, %v2830
        %2832 = vmatmul.bf16.gmra.mxu0 %v2600
        %v2833 = vpop.f32.mrf.mxu0
        %v2834 = vadd.f32 0.0, %v2833
        %v2835 = vpop.f32.mrf.mxu0
        %v2836 = vadd.f32 0.0, %v2835
        %2837 = vmatmul.bf16.gmra.mxu0 %v2602
        %v2838 = vpop.f32.mrf.mxu0
        %v2839 = vadd.f32 0.0, %v2838
        %v2840 = vpop.f32.mrf.mxu0
        %v2841 = vadd.f32 0.0, %v2840
        %2842 = vmatmul.bf16.gmra.mxu0 %v2604
        %v2843 = vpop.f32.mrf.mxu0
        %v2844 = vadd.f32 0.0, %v2843
        %v2845 = vpop.f32.mrf.mxu0
        %v2846 = vadd.f32 0.0, %v2845
        %2847 = vdwg.mxu0
        %2848 = vmatpush.bf16.msra.mxu0 %v2765
        %2849 = vmatpush.bf16.msra.mxu0 %v2763
        %2850 = vmatpush.bf16.msra.mxu0 %v2761
        %2851 = vmatpush.bf16.msra.mxu0 %v2759
        %2852 = vmatpush.bf16.msra.mxu0 %v2757
        %2853 = vmatpush.bf16.msra.mxu0 %v2755
        %2854 = vmatpush.bf16.msra.mxu0 %v2753
        %2855 = vmatpush.bf16.msra.mxu0 %v2751
        %2856 = vmatmul.bf16.gmra.mxu0 %v2591
        %v2857 = vpop.f32.mrf.mxu0
        %v2858 = vadd.f32 %v2809, %v2857
        %v2859 = vpop.f32.mrf.mxu0
        %v2860 = vadd.f32 %v2811, %v2859
        %2861 = vmatmul.bf16.gmra.mxu0 %v2593
        %v2862 = vpop.f32.mrf.mxu0
        %v2863 = vadd.f32 %v2814, %v2862
        %v2864 = vpop.f32.mrf.mxu0
        %v2865 = vadd.f32 %v2816, %v2864
        %2866 = vmatmul.bf16.gmra.mxu0 %v2595
        %v2867 = vpop.f32.mrf.mxu0
        %v2868 = vadd.f32 %v2819, %v2867
        %v2869 = vpop.f32.mrf.mxu0
        %v2870 = vadd.f32 %v2821, %v2869
        %2871 = vmatmul.bf16.gmra.mxu0 %v2597
        %v2872 = vpop.f32.mrf.mxu0
        %v2873 = vadd.f32 %v2824, %v2872
        %v2874 = vpop.f32.mrf.mxu0
        %v2875 = vadd.f32 %v2826, %v2874
        %2876 = vmatmul.bf16.gmra.mxu0 %v2599
        %v2877 = vpop.f32.mrf.mxu0
        %v2878 = vadd.f32 %v2829, %v2877
        %v2879 = vpop.f32.mrf.mxu0
        %v2880 = vadd.f32 %v2831, %v2879
        %2881 = vmatmul.bf16.gmra.mxu0 %v2601
        %v2882 = vpop.f32.mrf.mxu0
        %v2883 = vadd.f32 %v2834, %v2882
        %v2884 = vpop.f32.mrf.mxu0
        %v2885 = vadd.f32 %v2836, %v2884
        %2886 = vmatmul.bf16.gmra.mxu0 %v2603
        %v2887 = vpop.f32.mrf.mxu0
        %v2888 = vadd.f32 %v2839, %v2887
        %v2889 = vpop.f32.mrf.mxu0
        %v2890 = vadd.f32 %v2841, %v2889
        %2891 = vmatmul.bf16.gmra.mxu0 %v2605
        %v2892 = vpop.f32.mrf.mxu0
        %v2893 = vadd.f32 %v2844, %v2892
        %v2894 = vpop.f32.mrf.mxu0
        %v2895 = vadd.f32 %v2846, %v2894
        %2896 = vdwg.mxu0
        %2897 = vmatpush.bf16.msra.mxu0 %v2750
        %2898 = vmatpush.bf16.msra.mxu0 %v2748
        %2899 = vmatpush.bf16.msra.mxu0 %v2746
        %2900 = vmatpush.bf16.msra.mxu0 %v2744
        %2901 = vmatpush.bf16.msra.mxu0 %v2742
        %2902 = vmatpush.bf16.msra.mxu0 %v2740
        %2903 = vmatpush.bf16.msra.mxu0 %v2738
        %2904 = vmatpush.bf16.msra.mxu0 %v2736
        %2905 = vmatmul.bf16.gmra.mxu0 %v2590
        %v2906 = vpop.f32.mrf.mxu0
        %v2907 = vadd.f32 0.0, %v2906
        %v2908 = vpop.f32.mrf.mxu0
        %v2909 = vadd.f32 0.0, %v2908
        %2910 = vmatmul.bf16.gmra.mxu0 %v2592
        %v2911 = vpop.f32.mrf.mxu0
        %v2912 = vadd.f32 0.0, %v2911
        %v2913 = vpop.f32.mrf.mxu0
        %v2914 = vadd.f32 0.0, %v2913
        %2915 = vmatmul.bf16.gmra.mxu0 %v2594
        %v2916 = vpop.f32.mrf.mxu0
        %v2917 = vadd.f32 0.0, %v2916
        %v2918 = vpop.f32.mrf.mxu0
        %v2919 = vadd.f32 0.0, %v2918
        %2920 = vmatmul.bf16.gmra.mxu0 %v2596
        %v2921 = vpop.f32.mrf.mxu0
        %v2922 = vadd.f32 0.0, %v2921
        %v2923 = vpop.f32.mrf.mxu0
        %v2924 = vadd.f32 0.0, %v2923
        %2925 = vmatmul.bf16.gmra.mxu0 %v2598
        %v2926 = vpop.f32.mrf.mxu0
        %v2927 = vadd.f32 0.0, %v2926
        %v2928 = vpop.f32.mrf.mxu0
        %v2929 = vadd.f32 0.0, %v2928
        %2930 = vmatmul.bf16.gmra.mxu0 %v2600
        %v2931 = vpop.f32.mrf.mxu0
        %v2932 = vadd.f32 0.0, %v2931
        %v2933 = vpop.f32.mrf.mxu0
        %v2934 = vadd.f32 0.0, %v2933
        %2935 = vmatmul.bf16.gmra.mxu0 %v2602
        %v2936 = vpop.f32.mrf.mxu0
        %v2937 = vadd.f32 0.0, %v2936
        %v2938 = vpop.f32.mrf.mxu0
        %v2939 = vadd.f32 0.0, %v2938
        %2940 = vmatmul.bf16.gmra.mxu0 %v2604
        %v2941 = vpop.f32.mrf.mxu0
        %v2942 = vadd.f32 0.0, %v2941
        %v2943 = vpop.f32.mrf.mxu0
        %v2944 = vadd.f32 0.0, %v2943
        %2945 = vdwg.mxu0
        %2946 = vmatpush.bf16.msra.mxu0 %v2766
        %2947 = vmatpush.bf16.msra.mxu0 %v2764
        %2948 = vmatpush.bf16.msra.mxu0 %v2762
        %2949 = vmatpush.bf16.msra.mxu0 %v2760
        %2950 = vmatpush.bf16.msra.mxu0 %v2758
        %2951 = vmatpush.bf16.msra.mxu0 %v2756
        %2952 = vmatpush.bf16.msra.mxu0 %v2754
        %2953 = vmatpush.bf16.msra.mxu0 %v2752
        %2954 = vmatmul.bf16.gmra.mxu0 %v2591
        %v2955 = vpop.f32.mrf.mxu0
        %v2956 = vadd.f32 %v2907, %v2955
        %v2957 = vpop.f32.mrf.mxu0
        %v2958 = vadd.f32 %v2909, %v2957
        %2959 = vmatmul.bf16.gmra.mxu0 %v2593
        %v2960 = vpop.f32.mrf.mxu0
        %v2961 = vadd.f32 %v2912, %v2960
        %v2962 = vpop.f32.mrf.mxu0
        %v2963 = vadd.f32 %v2914, %v2962
        %2964 = vmatmul.bf16.gmra.mxu0 %v2595
        %v2965 = vpop.f32.mrf.mxu0
        %v2966 = vadd.f32 %v2917, %v2965
        %v2967 = vpop.f32.mrf.mxu0
        %v2968 = vadd.f32 %v2919, %v2967
        %2969 = vmatmul.bf16.gmra.mxu0 %v2597
        %v2970 = vpop.f32.mrf.mxu0
        %v2971 = vadd.f32 %v2922, %v2970
        %v2972 = vpop.f32.mrf.mxu0
        %v2973 = vadd.f32 %v2924, %v2972
        %2974 = vmatmul.bf16.gmra.mxu0 %v2599
        %v2975 = vpop.f32.mrf.mxu0
        %v2976 = vadd.f32 %v2927, %v2975
        %v2977 = vpop.f32.mrf.mxu0
        %v2978 = vadd.f32 %v2929, %v2977
        %2979 = vmatmul.bf16.gmra.mxu0 %v2601
        %v2980 = vpop.f32.mrf.mxu0
        %v2981 = vadd.f32 %v2932, %v2980
        %v2982 = vpop.f32.mrf.mxu0
        %v2983 = vadd.f32 %v2934, %v2982
        %2984 = vmatmul.bf16.gmra.mxu0 %v2603
        %v2985 = vpop.f32.mrf.mxu0
        %v2986 = vadd.f32 %v2937, %v2985
        %v2987 = vpop.f32.mrf.mxu0
        %v2988 = vadd.f32 %v2939, %v2987
        %2989 = vmatmul.bf16.gmra.mxu0 %v2605
        %v2990 = vpop.f32.mrf.mxu0
        %v2991 = vadd.f32 %v2942, %v2990
        %v2992 = vpop.f32.mrf.mxu0
        %v2993 = vadd.f32 %v2944, %v2992
        %2994 = vdwg.mxu0
        %v3027 = vunpack.c.l.b16 %v929
        %v3028 = vunpack.c.h.b16 %v929
        %v3029 = vunpack.c.l.b16 %v930
        %v3030 = vunpack.c.h.b16 %v930
        %v3031 = vunpack.c.l.b16 %v931
        %v3032 = vunpack.c.h.b16 %v931
        %v3033 = vunpack.c.l.b16 %v932
        %v3034 = vunpack.c.h.b16 %v932
        %v3035 = vunpack.c.l.b16 %v933
        %v3036 = vunpack.c.h.b16 %v933
        %v3037 = vunpack.c.l.b16 %v934
        %v3038 = vunpack.c.h.b16 %v934
        %v3039 = vunpack.c.l.b16 %v935
        %v3040 = vunpack.c.h.b16 %v935
        %v3041 = vunpack.c.l.b16 %v936
        %v3042 = vunpack.c.h.b16 %v936
        %v3043 = vunpack.c.l.b16 %v937
        %v3044 = vunpack.c.h.b16 %v937
        %v3045 = vunpack.c.l.b16 %v938
        %v3046 = vunpack.c.h.b16 %v938
        %v3047 = vunpack.c.l.b16 %v939
        %v3048 = vunpack.c.h.b16 %v939
        %v3049 = vunpack.c.l.b16 %v940
        %v3050 = vunpack.c.h.b16 %v940
        %v3051 = vunpack.c.l.b16 %v941
        %v3052 = vunpack.c.h.b16 %v941
        %v3053 = vunpack.c.l.b16 %v942
        %v3054 = vunpack.c.h.b16 %v942
        %v3055 = vunpack.c.l.b16 %v943
        %v3056 = vunpack.c.h.b16 %v943
        %v3057 = vunpack.c.l.b16 %v944
        %v3058 = vunpack.c.h.b16 %v944
        %v3059 = vunpack.c.l.b16 %v945
        %v3060 = vunpack.c.h.b16 %v945
        %v3061 = vunpack.c.l.b16 %v946
        %v3062 = vunpack.c.h.b16 %v946
        %v3063 = vunpack.c.l.b16 %v947
        %v3064 = vunpack.c.h.b16 %v947
        %v3065 = vunpack.c.l.b16 %v948
        %v3066 = vunpack.c.h.b16 %v948
        %v3067 = vunpack.c.l.b16 %v949
        %v3068 = vunpack.c.h.b16 %v949
        %v3069 = vunpack.c.l.b16 %v950
        %v3070 = vunpack.c.h.b16 %v950
        %v3071 = vunpack.c.l.b16 %v951
        %v3072 = vunpack.c.h.b16 %v951
        %v3073 = vunpack.c.l.b16 %v952
        %v3074 = vunpack.c.h.b16 %v952
        %v3075 = vunpack.c.l.b16 %v953
        %v3076 = vunpack.c.h.b16 %v953
        %v3077 = vunpack.c.l.b16 %v954
        %v3078 = vunpack.c.h.b16 %v954
        %v3079 = vunpack.c.l.b16 %v955
        %v3080 = vunpack.c.h.b16 %v955
        %v3081 = vunpack.c.l.b16 %v956
        %v3082 = vunpack.c.h.b16 %v956
        %v3083 = vunpack.c.l.b16 %v957
        %v3084 = vunpack.c.h.b16 %v957
        %v3085 = vunpack.c.l.b16 %v958
        %v3086 = vunpack.c.h.b16 %v958
        %v3087 = vunpack.c.l.b16 %v959
        %v3088 = vunpack.c.h.b16 %v959
        %v3089 = vunpack.c.l.b16 %v960
        %v3090 = vunpack.c.h.b16 %v960
        %v3091 = vpack.c.b16 %v3029, %v3027
        %v3092 = vpack.c.b16 %v3030, %v3028
        %v3093 = vpack.c.b16 %v3033, %v3031
        %v3094 = vpack.c.b16 %v3034, %v3032
        %v3095 = vpack.c.b16 %v3037, %v3035
        %v3096 = vpack.c.b16 %v3038, %v3036
        %v3097 = vpack.c.b16 %v3041, %v3039
        %v3098 = vpack.c.b16 %v3042, %v3040
        %v3099 = vpack.c.b16 %v3045, %v3043
        %v3100 = vpack.c.b16 %v3046, %v3044
        %v3101 = vpack.c.b16 %v3049, %v3047
        %v3102 = vpack.c.b16 %v3050, %v3048
        %v3103 = vpack.c.b16 %v3053, %v3051
        %v3104 = vpack.c.b16 %v3054, %v3052
        %v3105 = vpack.c.b16 %v3057, %v3055
        %v3106 = vpack.c.b16 %v3058, %v3056
        %v3107 = vpack.c.b16 %v3061, %v3059
        %v3108 = vpack.c.b16 %v3062, %v3060
        %v3109 = vpack.c.b16 %v3065, %v3063
        %v3110 = vpack.c.b16 %v3066, %v3064
        %v3111 = vpack.c.b16 %v3069, %v3067
        %v3112 = vpack.c.b16 %v3070, %v3068
        %v3113 = vpack.c.b16 %v3073, %v3071
        %v3114 = vpack.c.b16 %v3074, %v3072
        %v3115 = vpack.c.b16 %v3077, %v3075
        %v3116 = vpack.c.b16 %v3078, %v3076
        %v3117 = vpack.c.b16 %v3081, %v3079
        %v3118 = vpack.c.b16 %v3082, %v3080
        %v3119 = vpack.c.b16 %v3085, %v3083
        %v3120 = vpack.c.b16 %v3086, %v3084
        %v3121 = vpack.c.b16 %v3089, %v3087
        %v3122 = vpack.c.b16 %v3090, %v3088
        %3155 = vmatpush.bf16.msra.mxu0 %v3105
        %3156 = vmatpush.bf16.msra.mxu0 %v3103
        %3157 = vmatpush.bf16.msra.mxu0 %v3101
        %3158 = vmatpush.bf16.msra.mxu0 %v3099
        %3159 = vmatpush.bf16.msra.mxu0 %v3097
        %3160 = vmatpush.bf16.msra.mxu0 %v3095
        %3161 = vmatpush.bf16.msra.mxu0 %v3093
        %3162 = vmatpush.bf16.msra.mxu0 %v3091
        %3163 = vmatmul.bf16.gmra.mxu0 %v913
        %v3164 = vpop.f32.mrf.mxu0
        %v3165 = vadd.f32 %v2858, %v3164
        %v3166 = vpop.f32.mrf.mxu0
        %v3167 = vadd.f32 %v2860, %v3166
        %3168 = vmatmul.bf16.gmra.mxu0 %v915
        %v3169 = vpop.f32.mrf.mxu0
        %v3170 = vadd.f32 %v2863, %v3169
        %v3171 = vpop.f32.mrf.mxu0
        %v3172 = vadd.f32 %v2865, %v3171
        %3173 = vmatmul.bf16.gmra.mxu0 %v917
        %v3174 = vpop.f32.mrf.mxu0
        %v3175 = vadd.f32 %v2868, %v3174
        %v3176 = vpop.f32.mrf.mxu0
        %v3177 = vadd.f32 %v2870, %v3176
        %3178 = vmatmul.bf16.gmra.mxu0 %v919
        %v3179 = vpop.f32.mrf.mxu0
        %v3180 = vadd.f32 %v2873, %v3179
        %v3181 = vpop.f32.mrf.mxu0
        %v3182 = vadd.f32 %v2875, %v3181
        %3183 = vmatmul.bf16.gmra.mxu0 %v921
        %v3184 = vpop.f32.mrf.mxu0
        %v3185 = vadd.f32 %v2878, %v3184
        %v3186 = vpop.f32.mrf.mxu0
        %v3187 = vadd.f32 %v2880, %v3186
        %3188 = vmatmul.bf16.gmra.mxu0 %v923
        %v3189 = vpop.f32.mrf.mxu0
        %v3190 = vadd.f32 %v2883, %v3189
        %v3191 = vpop.f32.mrf.mxu0
        %v3192 = vadd.f32 %v2885, %v3191
        %3193 = vmatmul.bf16.gmra.mxu0 %v925
        %v3194 = vpop.f32.mrf.mxu0
        %v3195 = vadd.f32 %v2888, %v3194
        %v3196 = vpop.f32.mrf.mxu0
        %v3197 = vadd.f32 %v2890, %v3196
        %3198 = vmatmul.bf16.gmra.mxu0 %v927
        %v3199 = vpop.f32.mrf.mxu0
        %v3200 = vadd.f32 %v2893, %v3199
        %v3201 = vpop.f32.mrf.mxu0
        %v3202 = vadd.f32 %v2895, %v3201
        %3203 = vdwg.mxu0
        %3204 = vmatpush.bf16.msra.mxu0 %v3121
        %3205 = vmatpush.bf16.msra.mxu0 %v3119
        %3206 = vmatpush.bf16.msra.mxu0 %v3117
        %3207 = vmatpush.bf16.msra.mxu0 %v3115
        %3208 = vmatpush.bf16.msra.mxu0 %v3113
        %3209 = vmatpush.bf16.msra.mxu0 %v3111
        %3210 = vmatpush.bf16.msra.mxu0 %v3109
        %3211 = vmatpush.bf16.msra.mxu0 %v3107
        %3212 = vmatmul.bf16.gmra.mxu0 %v914
        %v3213 = vpop.f32.mrf.mxu0
        %v3214 = vadd.f32 %v3165, %v3213
        %v3215 = vpop.f32.mrf.mxu0
        %v3216 = vadd.f32 %v3167, %v3215
        %3217 = vmatmul.bf16.gmra.mxu0 %v916
        %v3218 = vpop.f32.mrf.mxu0
        %v3219 = vadd.f32 %v3170, %v3218
        %v3220 = vpop.f32.mrf.mxu0
        %v3221 = vadd.f32 %v3172, %v3220
        %3222 = vmatmul.bf16.gmra.mxu0 %v918
        %v3223 = vpop.f32.mrf.mxu0
        %v3224 = vadd.f32 %v3175, %v3223
        %v3225 = vpop.f32.mrf.mxu0
        %v3226 = vadd.f32 %v3177, %v3225
        %3227 = vmatmul.bf16.gmra.mxu0 %v920
        %v3228 = vpop.f32.mrf.mxu0
        %v3229 = vadd.f32 %v3180, %v3228
        %v3230 = vpop.f32.mrf.mxu0
        %v3231 = vadd.f32 %v3182, %v3230
        %3232 = vmatmul.bf16.gmra.mxu0 %v922
        %v3233 = vpop.f32.mrf.mxu0
        %v3234 = vadd.f32 %v3185, %v3233
        %v3235 = vpop.f32.mrf.mxu0
        %v3236 = vadd.f32 %v3187, %v3235
        %3237 = vmatmul.bf16.gmra.mxu0 %v924
        %v3238 = vpop.f32.mrf.mxu0
        %v3239 = vadd.f32 %v3190, %v3238
        %v3240 = vpop.f32.mrf.mxu0
        %v3241 = vadd.f32 %v3192, %v3240
        %3242 = vmatmul.bf16.gmra.mxu0 %v926
        %v3243 = vpop.f32.mrf.mxu0
        %v3244 = vadd.f32 %v3195, %v3243
        %v3245 = vpop.f32.mrf.mxu0
        %v3246 = vadd.f32 %v3197, %v3245
        %3247 = vmatmul.bf16.gmra.mxu0 %v928
        %v3248 = vpop.f32.mrf.mxu0
        %v3249 = vadd.f32 %v3200, %v3248
        %v3250 = vpop.f32.mrf.mxu0
        %v3251 = vadd.f32 %v3202, %v3250
        %3252 = vdwg.mxu0
        %3253 = vmatpush.bf16.msra.mxu0 %v3106
        %3254 = vmatpush.bf16.msra.mxu0 %v3104
        %3255 = vmatpush.bf16.msra.mxu0 %v3102
        %3256 = vmatpush.bf16.msra.mxu0 %v3100
        %3257 = vmatpush.bf16.msra.mxu0 %v3098
        %3258 = vmatpush.bf16.msra.mxu0 %v3096
        %3259 = vmatpush.bf16.msra.mxu0 %v3094
        %3260 = vmatpush.bf16.msra.mxu0 %v3092
        %3261 = vmatmul.bf16.gmra.mxu0 %v913
        %v3262 = vpop.f32.mrf.mxu0
        %v3263 = vadd.f32 %v2956, %v3262
        %v3264 = vpop.f32.mrf.mxu0
        %v3265 = vadd.f32 %v2958, %v3264
        %3266 = vmatmul.bf16.gmra.mxu0 %v915
        %v3267 = vpop.f32.mrf.mxu0
        %v3268 = vadd.f32 %v2961, %v3267
        %v3269 = vpop.f32.mrf.mxu0
        %v3270 = vadd.f32 %v2963, %v3269
        %3271 = vmatmul.bf16.gmra.mxu0 %v917
        %v3272 = vpop.f32.mrf.mxu0
        %v3273 = vadd.f32 %v2966, %v3272
        %v3274 = vpop.f32.mrf.mxu0
        %v3275 = vadd.f32 %v2968, %v3274
        %3276 = vmatmul.bf16.gmra.mxu0 %v919
        %v3277 = vpop.f32.mrf.mxu0
        %v3278 = vadd.f32 %v2971, %v3277
        %v3279 = vpop.f32.mrf.mxu0
        %v3280 = vadd.f32 %v2973, %v3279
        %3281 = vmatmul.bf16.gmra.mxu0 %v921
        %v3282 = vpop.f32.mrf.mxu0
        %v3283 = vadd.f32 %v2976, %v3282
        %v3284 = vpop.f32.mrf.mxu0
        %v3285 = vadd.f32 %v2978, %v3284
        %3286 = vmatmul.bf16.gmra.mxu0 %v923
        %v3287 = vpop.f32.mrf.mxu0
        %v3288 = vadd.f32 %v2981, %v3287
        %v3289 = vpop.f32.mrf.mxu0
        %v3290 = vadd.f32 %v2983, %v3289
        %3291 = vmatmul.bf16.gmra.mxu0 %v925
        %v3292 = vpop.f32.mrf.mxu0
        %v3293 = vadd.f32 %v2986, %v3292
        %v3294 = vpop.f32.mrf.mxu0
        %v3295 = vadd.f32 %v2988, %v3294
        %3296 = vmatmul.bf16.gmra.mxu0 %v927
        %v3297 = vpop.f32.mrf.mxu0
        %v3298 = vadd.f32 %v2991, %v3297
        %v3299 = vpop.f32.mrf.mxu0
        %v3300 = vadd.f32 %v2993, %v3299
        %3301 = vdwg.mxu0
        %3302 = vmatpush.bf16.msra.mxu0 %v3122
        %3303 = vmatpush.bf16.msra.mxu0 %v3120
        %3304 = vmatpush.bf16.msra.mxu0 %v3118
        %3305 = vmatpush.bf16.msra.mxu0 %v3116
        %3306 = vmatpush.bf16.msra.mxu0 %v3114
        %3307 = vmatpush.bf16.msra.mxu0 %v3112
        %3308 = vmatpush.bf16.msra.mxu0 %v3110
        %3309 = vmatpush.bf16.msra.mxu0 %v3108
        %3310 = vmatmul.bf16.gmra.mxu0 %v914
        %v3311 = vpop.f32.mrf.mxu0
        %v3312 = vadd.f32 %v3263, %v3311
        %v3313 = vpop.f32.mrf.mxu0
        %v3314 = vadd.f32 %v3265, %v3313
        %3315 = vmatmul.bf16.gmra.mxu0 %v916
        %v3316 = vpop.f32.mrf.mxu0
        %v3317 = vadd.f32 %v3268, %v3316
        %v3318 = vpop.f32.mrf.mxu0
        %v3319 = vadd.f32 %v3270, %v3318
        %3320 = vmatmul.bf16.gmra.mxu0 %v918
        %v3321 = vpop.f32.mrf.mxu0
        %v3322 = vadd.f32 %v3273, %v3321
        %v3323 = vpop.f32.mrf.mxu0
        %v3324 = vadd.f32 %v3275, %v3323
        %3325 = vmatmul.bf16.gmra.mxu0 %v920
        %v3326 = vpop.f32.mrf.mxu0
        %v3327 = vadd.f32 %v3278, %v3326
        %v3328 = vpop.f32.mrf.mxu0
        %v3329 = vadd.f32 %v3280, %v3328
        %3330 = vmatmul.bf16.gmra.mxu0 %v922
        %v3331 = vpop.f32.mrf.mxu0
        %v3332 = vadd.f32 %v3283, %v3331
        %v3333 = vpop.f32.mrf.mxu0
        %v3334 = vadd.f32 %v3285, %v3333
        %3335 = vmatmul.bf16.gmra.mxu0 %v924
        %v3336 = vpop.f32.mrf.mxu0
        %v3337 = vadd.f32 %v3288, %v3336
        %v3338 = vpop.f32.mrf.mxu0
        %v3339 = vadd.f32 %v3290, %v3338
        %3340 = vmatmul.bf16.gmra.mxu0 %v926
        %v3341 = vpop.f32.mrf.mxu0
        %v3342 = vadd.f32 %v3293, %v3341
        %v3343 = vpop.f32.mrf.mxu0
        %v3344 = vadd.f32 %v3295, %v3343
        %3345 = vmatmul.bf16.gmra.mxu0 %v928
        %v3346 = vpop.f32.mrf.mxu0
        %v3347 = vadd.f32 %v3298, %v3346
        %v3348 = vpop.f32.mrf.mxu0
        %v3349 = vadd.f32 %v3300, %v3348
        %3350 = vdwg.mxu0
        %vm3351 = vsmask.f32 3328
        %vm3352 = vsmask.f32 7440
        %vm3353 = vmor %vm3351, %vm3352
        %v3355 = vshrl.u32 %v452, 16
        %v3357 = vrot.slane %v3355, 4
        %v3358 = vshll.u32 %v452, 16
        %v3360 = vrot.slane %v3358, 5
        %v3361 = vor.u32 %v3357, %v3360
        %v3362 = vrot.slane %v3361, 4
        %v3364 = vshll.u32 %v453, 16
        %v3366 = vrot.slane %v3364, 5
        %v3367 = vsel %vm3353, %v3362, %v3366
        %v3368 = vshrl.u32 %v453, 16
        %v3370 = vrot.slane %v3368, 4
        %v3371 = vor.u32 %v3370, %v3366
        %v3372 = vrot.slane %v3371, 4
        %v3374 = vshll.u32 %v454, 16
        %v3376 = vrot.slane %v3374, 5
        %v3377 = vsel %vm3353, %v3372, %v3376
        %v3378 = vrot.slane %v1046, 4
        %v3379 = vrot.slane %v1049, 5
        %v3380 = vor.u32 %v3378, %v3379
        %v3381 = vrot.slane %v3380, 4
        %v3382 = vrot.slane %v1058, 5
        %v3383 = vsel %vm3353, %v3381, %v3382
        %v3384 = vrot.slane %v1055, 4
        %v3385 = vor.u32 %v3384, %v3382
        %v3386 = vrot.slane %v3385, 4
        %v3387 = vrot.slane %v1068, 5
        %v3388 = vsel %vm3353, %v3386, %v3387
        %v3389 = vrot.slane %v495, 4
        %v3390 = vrot.slane %v498, 5
        %v3391 = vor.u32 %v3389, %v3390
        %v3392 = vrot.slane %v3391, 4
        %v3393 = vrot.slane %v507, 5
        %v3394 = vsel %vm3353, %v3392, %v3393
        %v3395 = vrot.slane %v504, 4
        %v3396 = vor.u32 %v3395, %v3393
        %v3397 = vrot.slane %v3396, 4
        %v3398 = vrot.slane %v517, 5
        %v3399 = vsel %vm3353, %v3397, %v3398
        %v3400 = vrot.slane %v523, 4
        %v3401 = vrot.slane %v526, 5
        %v3402 = vor.u32 %v3400, %v3401
        %v3403 = vrot.slane %v3402, 4
        %v3404 = vrot.slane %v535, 5
        %v3405 = vsel %vm3353, %v3403, %v3404
        %v3406 = vrot.slane %v532, 4
        %v3407 = vor.u32 %v3406, %v3404
        %v3408 = vrot.slane %v3407, 4
        %v3409 = vrot.slane %v545, 5
        %v3410 = vsel %vm3353, %v3408, %v3409
        %v3411 = vrot.slane %v551, 4
        %v3412 = vrot.slane %v554, 5
        %v3413 = vor.u32 %v3411, %v3412
        %v3414 = vrot.slane %v3413, 4
        %v3415 = vrot.slane %v563, 5
        %v3416 = vsel %vm3353, %v3414, %v3415
        %v3417 = vrot.slane %v560, 4
        %v3418 = vor.u32 %v3417, %v3415
        %v3419 = vrot.slane %v3418, 4
        %v3420 = vrot.slane %v573, 5
        %v3421 = vsel %vm3353, %v3419, %v3420
        %v3422 = vrot.slane %v579, 4
        %v3423 = vrot.slane %v582, 5
        %v3424 = vor.u32 %v3422, %v3423
        %v3425 = vrot.slane %v3424, 4
        %v3426 = vrot.slane %v591, 5
        %v3427 = vsel %vm3353, %v3425, %v3426
        %v3428 = vrot.slane %v588, 4
        %v3429 = vor.u32 %v3428, %v3426
        %v3430 = vrot.slane %v3429, 4
        %v3431 = vrot.slane %v601, 5
        %v3432 = vsel %vm3353, %v3430, %v3431
        %v3433 = vrot.slane %v607, 4
        %v3434 = vrot.slane %v610, 5
        %v3435 = vor.u32 %v3433, %v3434
        %v3436 = vrot.slane %v3435, 4
        %v3437 = vrot.slane %v619, 5
        %v3438 = vsel %vm3353, %v3436, %v3437
        %v3439 = vrot.slane %v616, 4
        %v3440 = vor.u32 %v3439, %v3437
        %v3441 = vrot.slane %v3440, 4
        %v3442 = vrot.slane %v629, 5
        %v3443 = vsel %vm3353, %v3441, %v3442
        %v3444 = vrot.slane %v635, 4
        %v3445 = vrot.slane %v638, 5
        %v3446 = vor.u32 %v3444, %v3445
        %v3447 = vrot.slane %v3446, 4
        %v3448 = vrot.slane %v647, 5
        %v3449 = vsel %vm3353, %v3447, %v3448
        %v3450 = vrot.slane %v644, 4
        %v3451 = vor.u32 %v3450, %v3448
        %v3452 = vrot.slane %v3451, 4
        %v3453 = vrot.slane %v657, 5
        %v3454 = vsel %vm3353, %v3452, %v3453
        %v3455 = vld [vmem:[%s6] sm:$0xf]
        %v3456 = vrot.slane %v3355, 5
        %v3457 = vrot.slane %v3358, 6
        %v3458 = vor.u32 %v3456, %v3457
        %v3459 = vrot.slane %v3458, 4
        %v3460 = vrot.slane %v3368, 5
        %v3461 = vrot.slane %v3364, 6
        %v3462 = vor.u32 %v3460, %v3461
        %v3463 = vsel %vm493, %v3459, %v3462
        %v3464 = vrot.slane %v3462, 4
        %v3465 = vshrl.u32 %v454, 16
        %v3467 = vrot.slane %v3465, 5
        %v3468 = vrot.slane %v3374, 6
        %v3469 = vor.u32 %v3467, %v3468
        %v3470 = vsel %vm493, %v3464, %v3469
        %s3471 = scalar_lea.vmem %s6, 4
        %v3472 = vld [vmem:[%s3471] sm:$0xf]
        %v3473 = vunpack.c.l.b16 %v3463
        %v3474 = vunpack.c.l.b16 %v3470
        %v3475 = vpack.c.b16 %v3474, %v3473
        %3477 = vst [vmem:[#allocation1] ss:$4 sm:$0xff] %v3472
        %v3478 = vld.sshfl [vmem:[#allocation1] sm:$0xff pattern:$0x73625140]
        %v3479 = vld.sshfl [vmem:[#allocation1 + $0x8] sm:$0xff pattern:$0x73625140]
        %v3481 = vsel %vm753, %v3475, 0
        %v3483 = vsel %vm778, %v3478, 0
        %v3485 = vsel %vm778, %v3479, 0
        %3487 = vmatpush.bf16.msra.mxu0 0
        %3488 = vmatpush.bf16.msra.mxu0 0
        %3489 = vmatpush.bf16.msra.mxu0 0
        %3490 = vmatpush.bf16.msra.mxu0 0
        %3491 = vmatpush.bf16.msra.mxu0 0
        %3492 = vmatpush.bf16.msra.mxu0 0
        %3493 = vmatpush.bf16.msra.mxu0 0
        %3494 = vmatpush.bf16.msra.mxu0 %v3483
        %3495 = vmatmul.bf16.gmra.mxu0 %v3481
        %v3496 = vpop.f32.mrf.mxu0
        %v3497 = vadd.f32 0.0, %v3496
        %v3498 = vpop.f32.mrf.mxu0
        %v3499 = vadd.f32 0.0, %v3498
        %3500 = vmatmul.bf16.gmra.mxu0 %v1083
        %v3501 = vpop.f32.mrf.mxu0
        %v3502 = vadd.f32 0.0, %v3501
        %v3503 = vpop.f32.mrf.mxu0
        %v3504 = vadd.f32 0.0, %v3503
        %3505 = vmatmul.bf16.gmra.mxu0 %v755
        %v3506 = vpop.f32.mrf.mxu0
        %v3507 = vadd.f32 0.0, %v3506
        %v3508 = vpop.f32.mrf.mxu0
        %v3509 = vadd.f32 0.0, %v3508
        %3510 = vmatmul.bf16.gmra.mxu0 %v758
        %v3511 = vpop.f32.mrf.mxu0
        %v3512 = vadd.f32 0.0, %v3511
        %v3513 = vpop.f32.mrf.mxu0
        %v3514 = vadd.f32 0.0, %v3513
        %3515 = vmatmul.bf16.gmra.mxu0 %v761
        %v3516 = vpop.f32.mrf.mxu0
        %v3517 = vadd.f32 0.0, %v3516
        %v3518 = vpop.f32.mrf.mxu0
        %v3519 = vadd.f32 0.0, %v3518
        %3520 = vmatmul.bf16.gmra.mxu0 %v764
        %v3521 = vpop.f32.mrf.mxu0
        %v3522 = vadd.f32 0.0, %v3521
        %v3523 = vpop.f32.mrf.mxu0
        %v3524 = vadd.f32 0.0, %v3523
        %3525 = vmatmul.bf16.gmra.mxu0 %v767
        %v3526 = vpop.f32.mrf.mxu0
        %v3527 = vadd.f32 0.0, %v3526
        %v3528 = vpop.f32.mrf.mxu0
        %v3529 = vadd.f32 0.0, %v3528
        %3530 = vmatmul.bf16.gmra.mxu0 %v770
        %v3531 = vpop.f32.mrf.mxu0
        %v3532 = vadd.f32 0.0, %v3531
        %v3533 = vpop.f32.mrf.mxu0
        %v3534 = vadd.f32 0.0, %v3533
        %3535 = vdwg.mxu0
        %3536 = vmatpush.bf16.msra.mxu0 0
        %3537 = vmatpush.bf16.msra.mxu0 0
        %3538 = vmatpush.bf16.msra.mxu0 0
        %3539 = vmatpush.bf16.msra.mxu0 0
        %3540 = vmatpush.bf16.msra.mxu0 0
        %3541 = vmatpush.bf16.msra.mxu0 0
        %3542 = vmatpush.bf16.msra.mxu0 0
        %3543 = vmatpush.bf16.msra.mxu0 %v3485
        %3544 = vmatmul.bf16.gmra.mxu0 %v3481
        %v3545 = vpop.f32.mrf.mxu0
        %v3546 = vadd.f32 0.0, %v3545
        %v3547 = vpop.f32.mrf.mxu0
        %v3548 = vadd.f32 0.0, %v3547
        %3549 = vmatmul.bf16.gmra.mxu0 %v1083
        %v3550 = vpop.f32.mrf.mxu0
        %v3551 = vadd.f32 0.0, %v3550
        %v3552 = vpop.f32.mrf.mxu0
        %v3553 = vadd.f32 0.0, %v3552
        %3554 = vmatmul.bf16.gmra.mxu0 %v755
        %v3555 = vpop.f32.mrf.mxu0
        %v3556 = vadd.f32 0.0, %v3555
        %v3557 = vpop.f32.mrf.mxu0
        %v3558 = vadd.f32 0.0, %v3557
        %3559 = vmatmul.bf16.gmra.mxu0 %v758
        %v3560 = vpop.f32.mrf.mxu0
        %v3561 = vadd.f32 0.0, %v3560
        %v3562 = vpop.f32.mrf.mxu0
        %v3563 = vadd.f32 0.0, %v3562
        %3564 = vmatmul.bf16.gmra.mxu0 %v761
        %v3565 = vpop.f32.mrf.mxu0
        %v3566 = vadd.f32 0.0, %v3565
        %v3567 = vpop.f32.mrf.mxu0
        %v3568 = vadd.f32 0.0, %v3567
        %3569 = vmatmul.bf16.gmra.mxu0 %v764
        %v3570 = vpop.f32.mrf.mxu0
        %v3571 = vadd.f32 0.0, %v3570
        %v3572 = vpop.f32.mrf.mxu0
        %v3573 = vadd.f32 0.0, %v3572
        %3574 = vmatmul.bf16.gmra.mxu0 %v767
        %v3575 = vpop.f32.mrf.mxu0
        %v3576 = vadd.f32 0.0, %v3575
        %v3577 = vpop.f32.mrf.mxu0
        %v3578 = vadd.f32 0.0, %v3577
        %3579 = vmatmul.bf16.gmra.mxu0 %v770
        %v3580 = vpop.f32.mrf.mxu0
        %v3581 = vadd.f32 0.0, %v3580
        %v3582 = vpop.f32.mrf.mxu0
        %v3583 = vadd.f32 0.0, %v3582
        %3584 = vdwg.mxu0
        %v3585 = vunpack.c.l.b16 %v3367
        %v3586 = vunpack.c.l.b16 %v3377
        %v3587 = vunpack.c.l.b16 %v3383
        %v3588 = vunpack.c.l.b16 %v3388
        %v3589 = vunpack.c.l.b16 %v3394
        %v3590 = vunpack.c.l.b16 %v3399
        %v3591 = vunpack.c.l.b16 %v3405
        %v3592 = vunpack.c.l.b16 %v3410
        %v3593 = vunpack.c.l.b16 %v3416
        %v3594 = vunpack.c.l.b16 %v3421
        %v3595 = vunpack.c.l.b16 %v3427
        %v3596 = vunpack.c.l.b16 %v3432
        %v3597 = vunpack.c.l.b16 %v3438
        %v3598 = vunpack.c.l.b16 %v3443
        %v3599 = vunpack.c.l.b16 %v3449
        %v3600 = vunpack.c.l.b16 %v3454
        %v3601 = vpack.c.b16 %v3586, %v3585
        %v3602 = vpack.c.b16 %v3588, %v3587
        %v3603 = vpack.c.b16 %v3590, %v3589
        %v3604 = vpack.c.b16 %v3592, %v3591
        %v3605 = vpack.c.b16 %v3594, %v3593
        %v3606 = vpack.c.b16 %v3596, %v3595
        %v3607 = vpack.c.b16 %v3598, %v3597
        %v3608 = vpack.c.b16 %v3600, %v3599
        %3610 = vst [vmem:[#allocation1] ss:$4 sm:$0xff] %v3455
        %v3611 = vld.sshfl [vmem:[#allocation1] sm:$0xff pattern:$0x73625140]
        %v3612 = vld.sshfl [vmem:[#allocation1 + $0x8] sm:$0xff pattern:$0x73625140]
        %v3614 = vsel %vm753, %v3601, 0
        %v3617 = vsel %vm753, %v3602, 0
        %v3620 = vsel %vm753, %v3603, 0
        %v3623 = vsel %vm753, %v3604, 0
        %v3626 = vsel %vm753, %v3605, 0
        %v3629 = vsel %vm753, %v3606, 0
        %v3632 = vsel %vm753, %v3607, 0
        %v3635 = vsel %vm753, %v3608, 0
        %v3637 = vsel %vm778, %v3611, 0
        %v3639 = vsel %vm778, %v3612, 0
        %3641 = vmatpush.bf16.msra.mxu0 0
        %3642 = vmatpush.bf16.msra.mxu0 0
        %3643 = vmatpush.bf16.msra.mxu0 0
        %3644 = vmatpush.bf16.msra.mxu0 0
        %3645 = vmatpush.bf16.msra.mxu0 0
        %3646 = vmatpush.bf16.msra.mxu0 0
        %3647 = vmatpush.bf16.msra.mxu0 0
        %3648 = vmatpush.bf16.msra.mxu0 %v3637
        %3649 = vmatmul.bf16.gmra.mxu0 %v3614
        %v3650 = vpop.f32.mrf.mxu0
        %v3651 = vadd.f32 %v3497, %v3650
        %v3652 = vpop.f32.mrf.mxu0
        %v3653 = vadd.f32 %v3499, %v3652
        %3654 = vmatmul.bf16.gmra.mxu0 %v3617
        %v3655 = vpop.f32.mrf.mxu0
        %v3656 = vadd.f32 %v3502, %v3655
        %v3657 = vpop.f32.mrf.mxu0
        %v3658 = vadd.f32 %v3504, %v3657
        %3659 = vmatmul.bf16.gmra.mxu0 %v3620
        %v3660 = vpop.f32.mrf.mxu0
        %v3661 = vadd.f32 %v3507, %v3660
        %v3662 = vpop.f32.mrf.mxu0
        %v3663 = vadd.f32 %v3509, %v3662
        %3664 = vmatmul.bf16.gmra.mxu0 %v3623
        %v3665 = vpop.f32.mrf.mxu0
        %v3666 = vadd.f32 %v3512, %v3665
        %v3667 = vpop.f32.mrf.mxu0
        %v3668 = vadd.f32 %v3514, %v3667
        %3669 = vmatmul.bf16.gmra.mxu0 %v3626
        %v3670 = vpop.f32.mrf.mxu0
        %v3671 = vadd.f32 %v3517, %v3670
        %v3672 = vpop.f32.mrf.mxu0
        %v3673 = vadd.f32 %v3519, %v3672
        %3674 = vmatmul.bf16.gmra.mxu0 %v3629
        %v3675 = vpop.f32.mrf.mxu0
        %v3676 = vadd.f32 %v3522, %v3675
        %v3677 = vpop.f32.mrf.mxu0
        %v3678 = vadd.f32 %v3524, %v3677
        %3679 = vmatmul.bf16.gmra.mxu0 %v3632
        %v3680 = vpop.f32.mrf.mxu0
        %v3681 = vadd.f32 %v3527, %v3680
        %v3682 = vpop.f32.mrf.mxu0
        %v3683 = vadd.f32 %v3529, %v3682
        %3684 = vmatmul.bf16.gmra.mxu0 %v3635
        %v3685 = vpop.f32.mrf.mxu0
        %v3686 = vadd.f32 %v3532, %v3685
        %v3687 = vpop.f32.mrf.mxu0
        %v3688 = vadd.f32 %v3534, %v3687
        %3689 = vdwg.mxu0
        %3690 = vmatpush.bf16.msra.mxu0 0
        %3691 = vmatpush.bf16.msra.mxu0 0
        %3692 = vmatpush.bf16.msra.mxu0 0
        %3693 = vmatpush.bf16.msra.mxu0 0
        %3694 = vmatpush.bf16.msra.mxu0 0
        %3695 = vmatpush.bf16.msra.mxu0 0
        %3696 = vmatpush.bf16.msra.mxu0 0
        %3697 = vmatpush.bf16.msra.mxu0 %v3639
        %3698 = vmatmul.bf16.gmra.mxu0 %v3614
        %v3699 = vpop.f32.mrf.mxu0
        %v3700 = vadd.f32 %v3546, %v3699
        %v3701 = vpop.f32.mrf.mxu0
        %v3702 = vadd.f32 %v3548, %v3701
        %3703 = vmatmul.bf16.gmra.mxu0 %v3617
        %v3704 = vpop.f32.mrf.mxu0
        %v3705 = vadd.f32 %v3551, %v3704
        %v3706 = vpop.f32.mrf.mxu0
        %v3707 = vadd.f32 %v3553, %v3706
        %3708 = vmatmul.bf16.gmra.mxu0 %v3620
        %v3709 = vpop.f32.mrf.mxu0
        %v3710 = vadd.f32 %v3556, %v3709
        %v3711 = vpop.f32.mrf.mxu0
        %v3712 = vadd.f32 %v3558, %v3711
        %3713 = vmatmul.bf16.gmra.mxu0 %v3623
        %v3714 = vpop.f32.mrf.mxu0
        %v3715 = vadd.f32 %v3561, %v3714
        %v3716 = vpop.f32.mrf.mxu0
        %v3717 = vadd.f32 %v3563, %v3716
        %3718 = vmatmul.bf16.gmra.mxu0 %v3626
        %v3719 = vpop.f32.mrf.mxu0
        %v3720 = vadd.f32 %v3566, %v3719
        %v3721 = vpop.f32.mrf.mxu0
        %v3722 = vadd.f32 %v3568, %v3721
        %3723 = vmatmul.bf16.gmra.mxu0 %v3629
        %v3724 = vpop.f32.mrf.mxu0
        %v3725 = vadd.f32 %v3571, %v3724
        %v3726 = vpop.f32.mrf.mxu0
        %v3727 = vadd.f32 %v3573, %v3726
        %3728 = vmatmul.bf16.gmra.mxu0 %v3632
        %v3729 = vpop.f32.mrf.mxu0
        %v3730 = vadd.f32 %v3576, %v3729
        %v3731 = vpop.f32.mrf.mxu0
        %v3732 = vadd.f32 %v3578, %v3731
        %3733 = vmatmul.bf16.gmra.mxu0 %v3635
        %v3734 = vpop.f32.mrf.mxu0
        %v3735 = vadd.f32 %v3581, %v3734
        %v3736 = vpop.f32.mrf.mxu0
        %v3737 = vadd.f32 %v3583, %v3736
        %3738 = vdwg.mxu0
        %vm3739 = vsmask.f32 1280
        %vm3740 = vsmask.f32 5392
        %vm3741 = vmor %vm3739, %vm3740
        %v3742 = vrot.slane %v3355, 6
        %v3743 = vrot.slane %v3358, 7
        %v3744 = vor.u32 %v3742, %v3743
        %v3745 = vrot.slane %v3744, 4
        %v3746 = vrot.slane %v3368, 6
        %v3747 = vrot.slane %v3364, 7
        %v3748 = vor.u32 %v3746, %v3747
        %v3749 = vsel %vm3741, %v3745, %v3748
        %v3750 = vrot.slane %v3748, 4
        %v3751 = vrot.slane %v3465, 6
        %v3752 = vrot.slane %v3374, 7
        %v3753 = vor.u32 %v3751, %v3752
        %v3754 = vsel %vm3741, %v3750, %v3753
        %v3755 = vrot.slane %v1046, 6
        %v3756 = vrot.slane %v1049, 7
        %v3757 = vor.u32 %v3755, %v3756
        %v3758 = vrot.slane %v3757, 4
        %v3759 = vrot.slane %v1055, 6
        %v3760 = vrot.slane %v1058, 7
        %v3761 = vor.u32 %v3759, %v3760
        %v3762 = vsel %vm3741, %v3758, %v3761
        %v3763 = vrot.slane %v3761, 4
        %v3764 = vrot.slane %v1065, 6
        %v3765 = vrot.slane %v1068, 7
        %v3766 = vor.u32 %v3764, %v3765
        %v3767 = vsel %vm3741, %v3763, %v3766
        %v3768 = vrot.slane %v495, 6
        %v3769 = vrot.slane %v498, 7
        %v3770 = vor.u32 %v3768, %v3769
        %v3771 = vrot.slane %v3770, 4
        %v3772 = vrot.slane %v504, 6
        %v3773 = vrot.slane %v507, 7
        %v3774 = vor.u32 %v3772, %v3773
        %v3775 = vsel %vm3741, %v3771, %v3774
        %v3776 = vrot.slane %v3774, 4
        %v3777 = vrot.slane %v514, 6
        %v3778 = vrot.slane %v517, 7
        %v3779 = vor.u32 %v3777, %v3778
        %v3780 = vsel %vm3741, %v3776, %v3779
        %v3781 = vrot.slane %v523, 6
        %v3782 = vrot.slane %v526, 7
        %v3783 = vor.u32 %v3781, %v3782
        %v3784 = vrot.slane %v3783, 4
        %v3785 = vrot.slane %v532, 6
        %v3786 = vrot.slane %v535, 7
        %v3787 = vor.u32 %v3785, %v3786
        %v3788 = vsel %vm3741, %v3784, %v3787
        %v3789 = vrot.slane %v3787, 4
        %v3790 = vrot.slane %v542, 6
        %v3791 = vrot.slane %v545, 7
        %v3792 = vor.u32 %v3790, %v3791
        %v3793 = vsel %vm3741, %v3789, %v3792
        %v3794 = vrot.slane %v551, 6
        %v3795 = vrot.slane %v554, 7
        %v3796 = vor.u32 %v3794, %v3795
        %v3797 = vrot.slane %v3796, 4
        %v3798 = vrot.slane %v560, 6
        %v3799 = vrot.slane %v563, 7
        %v3800 = vor.u32 %v3798, %v3799
        %v3801 = vsel %vm3741, %v3797, %v3800
        %v3802 = vrot.slane %v3800, 4
        %v3803 = vrot.slane %v570, 6
        %v3804 = vrot.slane %v573, 7
        %v3805 = vor.u32 %v3803, %v3804
        %v3806 = vsel %vm3741, %v3802, %v3805
        %v3807 = vrot.slane %v579, 6
        %v3808 = vrot.slane %v582, 7
        %v3809 = vor.u32 %v3807, %v3808
        %v3810 = vrot.slane %v3809, 4
        %v3811 = vrot.slane %v588, 6
        %v3812 = vrot.slane %v591, 7
        %v3813 = vor.u32 %v3811, %v3812
        %v3814 = vsel %vm3741, %v3810, %v3813
        %v3815 = vrot.slane %v3813, 4
        %v3816 = vrot.slane %v598, 6
        %v3817 = vrot.slane %v601, 7
        %v3818 = vor.u32 %v3816, %v3817
        %v3819 = vsel %vm3741, %v3815, %v3818
        %v3820 = vrot.slane %v607, 6
        %v3821 = vrot.slane %v610, 7
        %v3822 = vor.u32 %v3820, %v3821
        %v3823 = vrot.slane %v3822, 4
        %v3824 = vrot.slane %v616, 6
        %v3825 = vrot.slane %v619, 7
        %v3826 = vor.u32 %v3824, %v3825
        %v3827 = vsel %vm3741, %v3823, %v3826
        %v3828 = vrot.slane %v3826, 4
        %v3829 = vrot.slane %v626, 6
        %v3830 = vrot.slane %v629, 7
        %v3831 = vor.u32 %v3829, %v3830
        %v3832 = vsel %vm3741, %v3828, %v3831
        %v3833 = vrot.slane %v635, 6
        %v3834 = vrot.slane %v638, 7
        %v3835 = vor.u32 %v3833, %v3834
        %v3836 = vrot.slane %v3835, 4
        %v3837 = vrot.slane %v644, 6
        %v3838 = vrot.slane %v647, 7
        %v3839 = vor.u32 %v3837, %v3838
        %v3840 = vsel %vm3741, %v3836, %v3839
        %v3841 = vrot.slane %v3839, 4
        %v3842 = vrot.slane %v654, 6
        %v3843 = vrot.slane %v657, 7
        %v3844 = vor.u32 %v3842, %v3843
        %v3845 = vsel %vm3741, %v3841, %v3844
        %s3846 = scalar_lea.vmem %s6, 8
        %v3847 = vld [vmem:[%s3846] sm:$0xf]
        %v3848 = vunpack.c.l.b16 %v3749
        %v3849 = vunpack.c.l.b16 %v3754
        %v3850 = vunpack.c.l.b16 %v3762
        %v3851 = vunpack.c.l.b16 %v3767
        %v3852 = vunpack.c.l.b16 %v3775
        %v3853 = vunpack.c.l.b16 %v3780
        %v3854 = vunpack.c.l.b16 %v3788
        %v3855 = vunpack.c.l.b16 %v3793
        %v3856 = vunpack.c.l.b16 %v3801
        %v3857 = vunpack.c.l.b16 %v3806
        %v3858 = vunpack.c.l.b16 %v3814
        %v3859 = vunpack.c.l.b16 %v3819
        %v3860 = vunpack.c.l.b16 %v3827
        %v3861 = vunpack.c.l.b16 %v3832
        %v3862 = vunpack.c.l.b16 %v3840
        %v3863 = vunpack.c.l.b16 %v3845
        %v3864 = vpack.c.b16 %v3849, %v3848
        %v3865 = vpack.c.b16 %v3851, %v3850
        %v3866 = vpack.c.b16 %v3853, %v3852
        %v3867 = vpack.c.b16 %v3855, %v3854
        %v3868 = vpack.c.b16 %v3857, %v3856
        %v3869 = vpack.c.b16 %v3859, %v3858
        %v3870 = vpack.c.b16 %v3861, %v3860
        %v3871 = vpack.c.b16 %v3863, %v3862
        %3873 = vst [vmem:[#allocation1] ss:$4 sm:$0xff] %v3847
        %v3874 = vld.sshfl [vmem:[#allocation1] sm:$0xff pattern:$0x73625140]
        %v3875 = vld.sshfl [vmem:[#allocation1 + $0x8] sm:$0xff pattern:$0x73625140]
        %v3877 = vsel %vm753, %v3864, 0
        %v3880 = vsel %vm753, %v3865, 0
        %v3883 = vsel %vm753, %v3866, 0
        %v3886 = vsel %vm753, %v3867, 0
        %v3889 = vsel %vm753, %v3868, 0
        %v3892 = vsel %vm753, %v3869, 0
        %v3895 = vsel %vm753, %v3870, 0
        %v3898 = vsel %vm753, %v3871, 0
        %v3900 = vsel %vm778, %v3874, 0
        %v3902 = vsel %vm778, %v3875, 0
        %3904 = vmatpush.bf16.msra.mxu0 0
        %3905 = vmatpush.bf16.msra.mxu0 0
        %3906 = vmatpush.bf16.msra.mxu0 0
        %3907 = vmatpush.bf16.msra.mxu0 0
        %3908 = vmatpush.bf16.msra.mxu0 0
        %3909 = vmatpush.bf16.msra.mxu0 0
        %3910 = vmatpush.bf16.msra.mxu0 0
        %3911 = vmatpush.bf16.msra.mxu0 %v3900
        %3912 = vmatmul.bf16.gmra.mxu0 %v3877
        %v3913 = vpop.f32.mrf.mxu0
        %v3914 = vadd.f32 0.0, %v3913
        %v3915 = vpop.f32.mrf.mxu0
        %v3916 = vadd.f32 0.0, %v3915
        %3917 = vmatmul.bf16.gmra.mxu0 %v3880
        %v3918 = vpop.f32.mrf.mxu0
        %v3919 = vadd.f32 0.0, %v3918
        %v3920 = vpop.f32.mrf.mxu0
        %v3921 = vadd.f32 0.0, %v3920
        %3922 = vmatmul.bf16.gmra.mxu0 %v3883
        %v3923 = vpop.f32.mrf.mxu0
        %v3924 = vadd.f32 0.0, %v3923
        %v3925 = vpop.f32.mrf.mxu0
        %v3926 = vadd.f32 0.0, %v3925
        %3927 = vmatmul.bf16.gmra.mxu0 %v3886
        %v3928 = vpop.f32.mrf.mxu0
        %v3929 = vadd.f32 0.0, %v3928
        %v3930 = vpop.f32.mrf.mxu0
        %v3931 = vadd.f32 0.0, %v3930
        %3932 = vmatmul.bf16.gmra.mxu0 %v3889
        %v3933 = vpop.f32.mrf.mxu0
        %v3934 = vadd.f32 0.0, %v3933
        %v3935 = vpop.f32.mrf.mxu0
        %v3936 = vadd.f32 0.0, %v3935
        %3937 = vmatmul.bf16.gmra.mxu0 %v3892
        %v3938 = vpop.f32.mrf.mxu0
        %v3939 = vadd.f32 0.0, %v3938
        %v3940 = vpop.f32.mrf.mxu0
        %v3941 = vadd.f32 0.0, %v3940
        %3942 = vmatmul.bf16.gmra.mxu0 %v3895
        %v3943 = vpop.f32.mrf.mxu0
        %v3944 = vadd.f32 0.0, %v3943
        %v3945 = vpop.f32.mrf.mxu0
        %v3946 = vadd.f32 0.0, %v3945
        %3947 = vmatmul.bf16.gmra.mxu0 %v3898
        %v3948 = vpop.f32.mrf.mxu0
        %v3949 = vadd.f32 0.0, %v3948
        %v3950 = vpop.f32.mrf.mxu0
        %v3951 = vadd.f32 0.0, %v3950
        %3952 = vdwg.mxu0
        %3953 = vmatpush.bf16.msra.mxu0 0
        %3954 = vmatpush.bf16.msra.mxu0 0
        %3955 = vmatpush.bf16.msra.mxu0 0
        %3956 = vmatpush.bf16.msra.mxu0 0
        %3957 = vmatpush.bf16.msra.mxu0 0
        %3958 = vmatpush.bf16.msra.mxu0 0
        %3959 = vmatpush.bf16.msra.mxu0 0
        %3960 = vmatpush.bf16.msra.mxu0 %v3902
        %3961 = vmatmul.bf16.gmra.mxu0 %v3877
        %v3962 = vpop.f32.mrf.mxu0
        %v3963 = vadd.f32 0.0, %v3962
        %v3964 = vpop.f32.mrf.mxu0
        %v3965 = vadd.f32 0.0, %v3964
        %3966 = vmatmul.bf16.gmra.mxu0 %v3880
        %v3967 = vpop.f32.mrf.mxu0
        %v3968 = vadd.f32 0.0, %v3967
        %v3969 = vpop.f32.mrf.mxu0
        %v3970 = vadd.f32 0.0, %v3969
        %3971 = vmatmul.bf16.gmra.mxu0 %v3883
        %v3972 = vpop.f32.mrf.mxu0
        %v3973 = vadd.f32 0.0, %v3972
        %v3974 = vpop.f32.mrf.mxu0
        %v3975 = vadd.f32 0.0, %v3974
        %3976 = vmatmul.bf16.gmra.mxu0 %v3886
        %v3977 = vpop.f32.mrf.mxu0
        %v3978 = vadd.f32 0.0, %v3977
        %v3979 = vpop.f32.mrf.mxu0
        %v3980 = vadd.f32 0.0, %v3979
        %3981 = vmatmul.bf16.gmra.mxu0 %v3889
        %v3982 = vpop.f32.mrf.mxu0
        %v3983 = vadd.f32 0.0, %v3982
        %v3984 = vpop.f32.mrf.mxu0
        %v3985 = vadd.f32 0.0, %v3984
        %3986 = vmatmul.bf16.gmra.mxu0 %v3892
        %v3987 = vpop.f32.mrf.mxu0
        %v3988 = vadd.f32 0.0, %v3987
        %v3989 = vpop.f32.mrf.mxu0
        %v3990 = vadd.f32 0.0, %v3989
        %3991 = vmatmul.bf16.gmra.mxu0 %v3895
        %v3992 = vpop.f32.mrf.mxu0
        %v3993 = vadd.f32 0.0, %v3992
        %v3994 = vpop.f32.mrf.mxu0
        %v3995 = vadd.f32 0.0, %v3994
        %3996 = vmatmul.bf16.gmra.mxu0 %v3898
        %v3997 = vpop.f32.mrf.mxu0
        %v3998 = vadd.f32 0.0, %v3997
        %v3999 = vpop.f32.mrf.mxu0
        %v4000 = vadd.f32 0.0, %v3999
        %4001 = vdwg.mxu0
        %v4002 = vadd.f32 %v3651, %v3914
        %v4003 = vadd.f32 %v3700, %v3963
        %v4004 = vadd.f32 %v3653, %v3916
        %v4005 = vadd.f32 %v3702, %v3965
        %v4006 = vadd.f32 %v3656, %v3919
        %v4007 = vadd.f32 %v3705, %v3968
        %v4008 = vadd.f32 %v3658, %v3921
        %v4009 = vadd.f32 %v3707, %v3970
        %v4010 = vadd.f32 %v3661, %v3924
        %v4011 = vadd.f32 %v3710, %v3973
        %v4012 = vadd.f32 %v3663, %v3926
        %v4013 = vadd.f32 %v3712, %v3975
        %v4014 = vadd.f32 %v3666, %v3929
        %v4015 = vadd.f32 %v3715, %v3978
        %v4016 = vadd.f32 %v3668, %v3931
        %v4017 = vadd.f32 %v3717, %v3980
        %v4018 = vadd.f32 %v3671, %v3934
        %v4019 = vadd.f32 %v3720, %v3983
        %v4020 = vadd.f32 %v3673, %v3936
        %v4021 = vadd.f32 %v3722, %v3985
        %v4022 = vadd.f32 %v3676, %v3939
        %v4023 = vadd.f32 %v3725, %v3988
        %v4024 = vadd.f32 %v3678, %v3941
        %v4025 = vadd.f32 %v3727, %v3990
        %v4026 = vadd.f32 %v3681, %v3944
        %v4027 = vadd.f32 %v3730, %v3993
        %v4028 = vadd.f32 %v3683, %v3946
        %v4029 = vadd.f32 %v3732, %v3995
        %v4030 = vadd.f32 %v3686, %v3949
        %v4031 = vadd.f32 %v3735, %v3998
        %v4032 = vadd.f32 %v3688, %v3951
        %v4033 = vadd.f32 %v3737, %v4000
        %v4034 = vrot.slane %v663, 4
        %v4035 = vrot.slane %v666, 5
        %v4036 = vor.u32 %v4034, %v4035
        %v4037 = vrot.slane %v4036, 4
        %v4038 = vrot.slane %v675, 5
        %v4039 = vsel %vm3353, %v4037, %v4038
        %v4040 = vrot.slane %v672, 4
        %v4041 = vor.u32 %v4040, %v4038
        %v4042 = vrot.slane %v4041, 4
        %v4043 = vrot.slane %v685, 5
        %v4044 = vsel %vm3353, %v4042, %v4043
        %v4045 = vrot.slane %v691, 4
        %v4046 = vrot.slane %v694, 5
        %v4047 = vor.u32 %v4045, %v4046
        %v4048 = vrot.slane %v4047, 4
        %v4049 = vrot.slane %v703, 5
        %v4050 = vsel %vm3353, %v4048, %v4049
        %v4051 = vrot.slane %v700, 4
        %v4052 = vor.u32 %v4051, %v4049
        %v4053 = vrot.slane %v4052, 4
        %v4054 = vrot.slane %v713, 5
        %v4055 = vsel %vm3353, %v4053, %v4054
        %s4056 = scalar_lea.vmem %s6, 12
        %v4057 = vld [vmem:[%s4056] sm:$0xf]
        %v4058 = vunpack.c.l.b16 %v4039
        %v4059 = vunpack.c.l.b16 %v4044
        %v4060 = vunpack.c.l.b16 %v4050
        %v4061 = vunpack.c.l.b16 %v4055
        %v4062 = vpack.c.b16 %v4059, %v4058
        %v4063 = vpack.c.b16 %v4061, %v4060
        %4065 = vst [vmem:[#allocation1] ss:$4 sm:$0xff] %v4057
        %v4066 = vld.sshfl [vmem:[#allocation1] sm:$0xff pattern:$0x73625140]
        %v4067 = vld.sshfl [vmem:[#allocation1 + $0x8] sm:$0xff pattern:$0x73625140]
        %v4069 = vsel %vm753, %v4062, 0
        %v4072 = vsel %vm753, %v4063, 0
        %v4074 = vsel %vm778, %v4066, 0
        %v4076 = vsel %vm778, %v4067, 0
        %4078 = vmatpush.bf16.msra.mxu0 0
        %4079 = vmatpush.bf16.msra.mxu0 0
        %4080 = vmatpush.bf16.msra.mxu0 0
        %4081 = vmatpush.bf16.msra.mxu0 0
        %4082 = vmatpush.bf16.msra.mxu0 0
        %4083 = vmatpush.bf16.msra.mxu0 0
        %4084 = vmatpush.bf16.msra.mxu0 0
        %4085 = vmatpush.bf16.msra.mxu0 %v4074
        %4086 = vmatmul.bf16.gmra.mxu0 %v3620
        %v4087 = vpop.f32.mrf.mxu0
        %v4088 = vadd.f32 0.0, %v4087
        %v4089 = vpop.f32.mrf.mxu0
        %v4090 = vadd.f32 0.0, %v4089
        %4091 = vmatmul.bf16.gmra.mxu0 %v3623
        %v4092 = vpop.f32.mrf.mxu0
        %v4093 = vadd.f32 0.0, %v4092
        %v4094 = vpop.f32.mrf.mxu0
        %v4095 = vadd.f32 0.0, %v4094
        %4096 = vmatmul.bf16.gmra.mxu0 %v3626
        %v4097 = vpop.f32.mrf.mxu0
        %v4098 = vadd.f32 0.0, %v4097
        %v4099 = vpop.f32.mrf.mxu0
        %v4100 = vadd.f32 0.0, %v4099
        %4101 = vmatmul.bf16.gmra.mxu0 %v3629
        %v4102 = vpop.f32.mrf.mxu0
        %v4103 = vadd.f32 0.0, %v4102
        %v4104 = vpop.f32.mrf.mxu0
        %v4105 = vadd.f32 0.0, %v4104
        %4106 = vmatmul.bf16.gmra.mxu0 %v3632
        %v4107 = vpop.f32.mrf.mxu0
        %v4108 = vadd.f32 0.0, %v4107
        %v4109 = vpop.f32.mrf.mxu0
        %v4110 = vadd.f32 0.0, %v4109
        %4111 = vmatmul.bf16.gmra.mxu0 %v3635
        %v4112 = vpop.f32.mrf.mxu0
        %v4113 = vadd.f32 0.0, %v4112
        %v4114 = vpop.f32.mrf.mxu0
        %v4115 = vadd.f32 0.0, %v4114
        %4116 = vmatmul.bf16.gmra.mxu0 %v4069
        %v4117 = vpop.f32.mrf.mxu0
        %v4118 = vadd.f32 0.0, %v4117
        %v4119 = vpop.f32.mrf.mxu0
        %v4120 = vadd.f32 0.0, %v4119
        %4121 = vmatmul.bf16.gmra.mxu0 %v4072
        %v4122 = vpop.f32.mrf.mxu0
        %v4123 = vadd.f32 0.0, %v4122
        %v4124 = vpop.f32.mrf.mxu0
        %v4125 = vadd.f32 0.0, %v4124
        %4126 = vdwg.mxu0
        %4127 = vmatpush.bf16.msra.mxu0 0
        %4128 = vmatpush.bf16.msra.mxu0 0
        %4129 = vmatpush.bf16.msra.mxu0 0
        %4130 = vmatpush.bf16.msra.mxu0 0
        %4131 = vmatpush.bf16.msra.mxu0 0
        %4132 = vmatpush.bf16.msra.mxu0 0
        %4133 = vmatpush.bf16.msra.mxu0 0
        %4134 = vmatpush.bf16.msra.mxu0 %v4076
        %4135 = vmatmul.bf16.gmra.mxu0 %v3620
        %v4136 = vpop.f32.mrf.mxu0
        %v4137 = vadd.f32 0.0, %v4136
        %v4138 = vpop.f32.mrf.mxu0
        %v4139 = vadd.f32 0.0, %v4138
        %4140 = vmatmul.bf16.gmra.mxu0 %v3623
        %v4141 = vpop.f32.mrf.mxu0
        %v4142 = vadd.f32 0.0, %v4141
        %v4143 = vpop.f32.mrf.mxu0
        %v4144 = vadd.f32 0.0, %v4143
        %4145 = vmatmul.bf16.gmra.mxu0 %v3626
        %v4146 = vpop.f32.mrf.mxu0
        %v4147 = vadd.f32 0.0, %v4146
        %v4148 = vpop.f32.mrf.mxu0
        %v4149 = vadd.f32 0.0, %v4148
        %4150 = vmatmul.bf16.gmra.mxu0 %v3629
        %v4151 = vpop.f32.mrf.mxu0
        %v4152 = vadd.f32 0.0, %v4151
        %v4153 = vpop.f32.mrf.mxu0
        %v4154 = vadd.f32 0.0, %v4153
        %4155 = vmatmul.bf16.gmra.mxu0 %v3632
        %v4156 = vpop.f32.mrf.mxu0
        %v4157 = vadd.f32 0.0, %v4156
        %v4158 = vpop.f32.mrf.mxu0
        %v4159 = vadd.f32 0.0, %v4158
        %4160 = vmatmul.bf16.gmra.mxu0 %v3635
        %v4161 = vpop.f32.mrf.mxu0
        %v4162 = vadd.f32 0.0, %v4161
        %v4163 = vpop.f32.mrf.mxu0
        %v4164 = vadd.f32 0.0, %v4163
        %4165 = vmatmul.bf16.gmra.mxu0 %v4069
        %v4166 = vpop.f32.mrf.mxu0
        %v4167 = vadd.f32 0.0, %v4166
        %v4168 = vpop.f32.mrf.mxu0
        %v4169 = vadd.f32 0.0, %v4168
        %4170 = vmatmul.bf16.gmra.mxu0 %v4072
        %v4171 = vpop.f32.mrf.mxu0
        %v4172 = vadd.f32 0.0, %v4171
        %v4173 = vpop.f32.mrf.mxu0
        %v4174 = vadd.f32 0.0, %v4173
        %4175 = vdwg.mxu0
        %v4176 = vadd.f32 %v4002, %v4088
        %v4177 = vadd.f32 %v4003, %v4137
        %v4178 = vadd.f32 %v4004, %v4090
        %v4179 = vadd.f32 %v4005, %v4139
        %v4180 = vadd.f32 %v4006, %v4093
        %v4181 = vadd.f32 %v4007, %v4142
        %v4182 = vadd.f32 %v4008, %v4095
        %v4183 = vadd.f32 %v4009, %v4144
        %v4184 = vadd.f32 %v4010, %v4098
        %v4185 = vadd.f32 %v4011, %v4147
        %v4186 = vadd.f32 %v4012, %v4100
        %v4187 = vadd.f32 %v4013, %v4149
        %v4188 = vadd.f32 %v4014, %v4103
        %v4189 = vadd.f32 %v4015, %v4152
        %v4190 = vadd.f32 %v4016, %v4105
        %v4191 = vadd.f32 %v4017, %v4154
        %v4192 = vadd.f32 %v4018, %v4108
        %v4193 = vadd.f32 %v4019, %v4157
        %v4194 = vadd.f32 %v4020, %v4110
        %v4195 = vadd.f32 %v4021, %v4159
        %v4196 = vadd.f32 %v4022, %v4113
        %v4197 = vadd.f32 %v4023, %v4162
        %v4198 = vadd.f32 %v4024, %v4115
        %v4199 = vadd.f32 %v4025, %v4164
        %v4200 = vadd.f32 %v4026, %v4118
        %v4201 = vadd.f32 %v4027, %v4167
        %v4202 = vadd.f32 %v4028, %v4120
        %v4203 = vadd.f32 %v4029, %v4169
        %v4204 = vadd.f32 %v4030, %v4123
        %v4205 = vadd.f32 %v4031, %v4172
        %v4206 = vadd.f32 %v4032, %v4125
        %v4207 = vadd.f32 %v4033, %v4174
        %s4208 = scalar_lea.vmem %s6, 16
        %v4209 = vld [vmem:[%s4208] sm:$0xf]
        %4211 = vst [vmem:[#allocation1] ss:$4 sm:$0xff] %v4209
        %v4212 = vld.sshfl [vmem:[#allocation1] sm:$0xff pattern:$0x73625140]
        %v4213 = vld.sshfl [vmem:[#allocation1 + $0x8] sm:$0xff pattern:$0x73625140]
        %v4214 = vsel %vm778, %v4212, 0
        %v4216 = vsel %vm778, %v4213, 0
        %4218 = vmatpush.bf16.msra.mxu0 0
        %4219 = vmatpush.bf16.msra.mxu0 0
        %4220 = vmatpush.bf16.msra.mxu0 0
        %4221 = vmatpush.bf16.msra.mxu0 0
        %4222 = vmatpush.bf16.msra.mxu0 0
        %4223 = vmatpush.bf16.msra.mxu0 0
        %4224 = vmatpush.bf16.msra.mxu0 0
        %4225 = vmatpush.bf16.msra.mxu0 %v4214
        %4226 = vmatmul.bf16.gmra.mxu0 %v755
        %v4227 = vpop.f32.mrf.mxu0
        %v4228 = vadd.f32 0.0, %v4227
        %v4229 = vpop.f32.mrf.mxu0
        %v4230 = vadd.f32 0.0, %v4229
        %4231 = vmatmul.bf16.gmra.mxu0 %v758
        %v4232 = vpop.f32.mrf.mxu0
        %v4233 = vadd.f32 0.0, %v4232
        %v4234 = vpop.f32.mrf.mxu0
        %v4235 = vadd.f32 0.0, %v4234
        %4236 = vmatmul.bf16.gmra.mxu0 %v761
        %v4237 = vpop.f32.mrf.mxu0
        %v4238 = vadd.f32 0.0, %v4237
        %v4239 = vpop.f32.mrf.mxu0
        %v4240 = vadd.f32 0.0, %v4239
        %4241 = vmatmul.bf16.gmra.mxu0 %v764
        %v4242 = vpop.f32.mrf.mxu0
        %v4243 = vadd.f32 0.0, %v4242
        %v4244 = vpop.f32.mrf.mxu0
        %v4245 = vadd.f32 0.0, %v4244
        %4246 = vmatmul.bf16.gmra.mxu0 %v767
        %v4247 = vpop.f32.mrf.mxu0
        %v4248 = vadd.f32 0.0, %v4247
        %v4249 = vpop.f32.mrf.mxu0
        %v4250 = vadd.f32 0.0, %v4249
        %4251 = vmatmul.bf16.gmra.mxu0 %v770
        %v4252 = vpop.f32.mrf.mxu0
        %v4253 = vadd.f32 0.0, %v4252
        %v4254 = vpop.f32.mrf.mxu0
        %v4255 = vadd.f32 0.0, %v4254
        %4256 = vmatmul.bf16.gmra.mxu0 %v773
        %v4257 = vpop.f32.mrf.mxu0
        %v4258 = vadd.f32 0.0, %v4257
        %v4259 = vpop.f32.mrf.mxu0
        %v4260 = vadd.f32 0.0, %v4259
        %4261 = vmatmul.bf16.gmra.mxu0 %v776
        %v4262 = vpop.f32.mrf.mxu0
        %v4263 = vadd.f32 0.0, %v4262
        %v4264 = vpop.f32.mrf.mxu0
        %v4265 = vadd.f32 0.0, %v4264
        %4266 = vdwg.mxu0
        %4267 = vmatpush.bf16.msra.mxu0 0
        %4268 = vmatpush.bf16.msra.mxu0 0
        %4269 = vmatpush.bf16.msra.mxu0 0
        %4270 = vmatpush.bf16.msra.mxu0 0
        %4271 = vmatpush.bf16.msra.mxu0 0
        %4272 = vmatpush.bf16.msra.mxu0 0
        %4273 = vmatpush.bf16.msra.mxu0 0
        %4274 = vmatpush.bf16.msra.mxu0 %v4216
        %4275 = vmatmul.bf16.gmra.mxu0 %v755
        %v4276 = vpop.f32.mrf.mxu0
        %v4277 = vadd.f32 0.0, %v4276
        %v4278 = vpop.f32.mrf.mxu0
        %v4279 = vadd.f32 0.0, %v4278
        %4280 = vmatmul.bf16.gmra.mxu0 %v758
        %v4281 = vpop.f32.mrf.mxu0
        %v4282 = vadd.f32 0.0, %v4281
        %v4283 = vpop.f32.mrf.mxu0
        %v4284 = vadd.f32 0.0, %v4283
        %4285 = vmatmul.bf16.gmra.mxu0 %v761
        %v4286 = vpop.f32.mrf.mxu0
        %v4287 = vadd.f32 0.0, %v4286
        %v4288 = vpop.f32.mrf.mxu0
        %v4289 = vadd.f32 0.0, %v4288
        %4290 = vmatmul.bf16.gmra.mxu0 %v764
        %v4291 = vpop.f32.mrf.mxu0
        %v4292 = vadd.f32 0.0, %v4291
        %v4293 = vpop.f32.mrf.mxu0
        %v4294 = vadd.f32 0.0, %v4293
        %4295 = vmatmul.bf16.gmra.mxu0 %v767
        %v4296 = vpop.f32.mrf.mxu0
        %v4297 = vadd.f32 0.0, %v4296
        %v4298 = vpop.f32.mrf.mxu0
        %v4299 = vadd.f32 0.0, %v4298
        %4300 = vmatmul.bf16.gmra.mxu0 %v770
        %v4301 = vpop.f32.mrf.mxu0
        %v4302 = vadd.f32 0.0, %v4301
        %v4303 = vpop.f32.mrf.mxu0
        %v4304 = vadd.f32 0.0, %v4303
        %4305 = vmatmul.bf16.gmra.mxu0 %v773
        %v4306 = vpop.f32.mrf.mxu0
        %v4307 = vadd.f32 0.0, %v4306
        %v4308 = vpop.f32.mrf.mxu0
        %v4309 = vadd.f32 0.0, %v4308
        %4310 = vmatmul.bf16.gmra.mxu0 %v776
        %v4311 = vpop.f32.mrf.mxu0
        %v4312 = vadd.f32 0.0, %v4311
        %v4313 = vpop.f32.mrf.mxu0
        %v4314 = vadd.f32 0.0, %v4313
        %4315 = vdwg.mxu0
        %v4316 = vadd.f32 %v4176, %v4228
        %v4317 = vadd.f32 %v4177, %v4277
        %v4318 = vadd.f32 %v4178, %v4230
        %v4319 = vadd.f32 %v4179, %v4279
        %v4320 = vadd.f32 %v4180, %v4233
        %v4321 = vadd.f32 %v4181, %v4282
        %v4322 = vadd.f32 %v4182, %v4235
        %v4323 = vadd.f32 %v4183, %v4284
        %v4324 = vadd.f32 %v4184, %v4238
        %v4325 = vadd.f32 %v4185, %v4287
        %v4326 = vadd.f32 %v4186, %v4240
        %v4327 = vadd.f32 %v4187, %v4289
        %v4328 = vadd.f32 %v4188, %v4243
        %v4329 = vadd.f32 %v4189, %v4292
        %v4330 = vadd.f32 %v4190, %v4245
        %v4331 = vadd.f32 %v4191, %v4294
        %v4332 = vadd.f32 %v4192, %v4248
        %v4333 = vadd.f32 %v4193, %v4297
        %v4334 = vadd.f32 %v4194, %v4250
        %v4335 = vadd.f32 %v4195, %v4299
        %v4336 = vadd.f32 %v4196, %v4253
        %v4337 = vadd.f32 %v4197, %v4302
        %v4338 = vadd.f32 %v4198, %v4255
        %v4339 = vadd.f32 %v4199, %v4304
        %v4340 = vadd.f32 %v4200, %v4258
        %v4341 = vadd.f32 %v4201, %v4307
        %v4342 = vadd.f32 %v4202, %v4260
        %v4343 = vadd.f32 %v4203, %v4309
        %v4344 = vadd.f32 %v4204, %v4263
        %v4345 = vadd.f32 %v4205, %v4312
        %v4346 = vadd.f32 %v4206, %v4265
        %v4347 = vadd.f32 %v4207, %v4314
        %v4348 = vrot.slane %v663, 6
        %v4349 = vrot.slane %v666, 7
        %v4350 = vor.u32 %v4348, %v4349
        %v4351 = vrot.slane %v4350, 4
        %v4352 = vrot.slane %v672, 6
        %v4353 = vrot.slane %v675, 7
        %v4354 = vor.u32 %v4352, %v4353
        %v4355 = vsel %vm3741, %v4351, %v4354
        %v4356 = vrot.slane %v4354, 4
        %v4357 = vrot.slane %v682, 6
        %v4358 = vrot.slane %v685, 7
        %v4359 = vor.u32 %v4357, %v4358
        %v4360 = vsel %vm3741, %v4356, %v4359
        %v4361 = vrot.slane %v691, 6
        %v4362 = vrot.slane %v694, 7
        %v4363 = vor.u32 %v4361, %v4362
        %v4364 = vrot.slane %v4363, 4
        %v4365 = vrot.slane %v700, 6
        %v4366 = vrot.slane %v703, 7
        %v4367 = vor.u32 %v4365, %v4366
        %v4368 = vsel %vm3741, %v4364, %v4367
        %v4369 = vrot.slane %v4367, 4
        %v4370 = vrot.slane %v710, 6
        %v4371 = vrot.slane %v713, 7
        %v4372 = vor.u32 %v4370, %v4371
        %v4373 = vsel %vm3741, %v4369, %v4372
        %s4374 = scalar_lea.vmem %s6, 20
        %v4375 = vld [vmem:[%s4374] sm:$0xf]
        %v4376 = vunpack.c.l.b16 %v4355
        %v4377 = vunpack.c.l.b16 %v4360
        %v4378 = vunpack.c.l.b16 %v4368
        %v4379 = vunpack.c.l.b16 %v4373
        %v4380 = vpack.c.b16 %v4377, %v4376
        %v4381 = vpack.c.b16 %v4379, %v4378
        %4383 = vst [vmem:[#allocation1] ss:$4 sm:$0xff] %v4375
        %v4384 = vld.sshfl [vmem:[#allocation1] sm:$0xff pattern:$0x73625140]
        %v4385 = vld.sshfl [vmem:[#allocation1 + $0x8] sm:$0xff pattern:$0x73625140]
        %v4387 = vsel %vm753, %v4380, 0
        %v4390 = vsel %vm753, %v4381, 0
        %v4392 = vsel %vm778, %v4384, 0
        %v4394 = vsel %vm778, %v4385, 0
        %4396 = vmatpush.bf16.msra.mxu0 0
        %4397 = vmatpush.bf16.msra.mxu0 0
        %4398 = vmatpush.bf16.msra.mxu0 0
        %4399 = vmatpush.bf16.msra.mxu0 0
        %4400 = vmatpush.bf16.msra.mxu0 0
        %4401 = vmatpush.bf16.msra.mxu0 0
        %4402 = vmatpush.bf16.msra.mxu0 0
        %4403 = vmatpush.bf16.msra.mxu0 %v4392
        %4404 = vmatmul.bf16.gmra.mxu0 %v3883
        %v4405 = vpop.f32.mrf.mxu0
        %v4406 = vadd.f32 0.0, %v4405
        %v4407 = vpop.f32.mrf.mxu0
        %v4408 = vadd.f32 0.0, %v4407
        %4409 = vmatmul.bf16.gmra.mxu0 %v3886
        %v4410 = vpop.f32.mrf.mxu0
        %v4411 = vadd.f32 0.0, %v4410
        %v4412 = vpop.f32.mrf.mxu0
        %v4413 = vadd.f32 0.0, %v4412
        %4414 = vmatmul.bf16.gmra.mxu0 %v3889
        %v4415 = vpop.f32.mrf.mxu0
        %v4416 = vadd.f32 0.0, %v4415
        %v4417 = vpop.f32.mrf.mxu0
        %v4418 = vadd.f32 0.0, %v4417
        %4419 = vmatmul.bf16.gmra.mxu0 %v3892
        %v4420 = vpop.f32.mrf.mxu0
        %v4421 = vadd.f32 0.0, %v4420
        %v4422 = vpop.f32.mrf.mxu0
        %v4423 = vadd.f32 0.0, %v4422
        %4424 = vmatmul.bf16.gmra.mxu0 %v3895
        %v4425 = vpop.f32.mrf.mxu0
        %v4426 = vadd.f32 0.0, %v4425
        %v4427 = vpop.f32.mrf.mxu0
        %v4428 = vadd.f32 0.0, %v4427
        %4429 = vmatmul.bf16.gmra.mxu0 %v3898
        %v4430 = vpop.f32.mrf.mxu0
        %v4431 = vadd.f32 0.0, %v4430
        %v4432 = vpop.f32.mrf.mxu0
        %v4433 = vadd.f32 0.0, %v4432
        %4434 = vmatmul.bf16.gmra.mxu0 %v4387
        %v4435 = vpop.f32.mrf.mxu0
        %v4436 = vadd.f32 0.0, %v4435
        %v4437 = vpop.f32.mrf.mxu0
        %v4438 = vadd.f32 0.0, %v4437
        %4439 = vmatmul.bf16.gmra.mxu0 %v4390
        %v4440 = vpop.f32.mrf.mxu0
        %v4441 = vadd.f32 0.0, %v4440
        %v4442 = vpop.f32.mrf.mxu0
        %v4443 = vadd.f32 0.0, %v4442
        %4444 = vdwg.mxu0
        %4445 = vmatpush.bf16.msra.mxu0 0
        %4446 = vmatpush.bf16.msra.mxu0 0
        %4447 = vmatpush.bf16.msra.mxu0 0
        %4448 = vmatpush.bf16.msra.mxu0 0
        %4449 = vmatpush.bf16.msra.mxu0 0
        %4450 = vmatpush.bf16.msra.mxu0 0
        %4451 = vmatpush.bf16.msra.mxu0 0
        %4452 = vmatpush.bf16.msra.mxu0 %v4394
        %4453 = vmatmul.bf16.gmra.mxu0 %v3883
        %v4454 = vpop.f32.mrf.mxu0
        %v4455 = vadd.f32 0.0, %v4454
        %v4456 = vpop.f32.mrf.mxu0
        %v4457 = vadd.f32 0.0, %v4456
        %4458 = vmatmul.bf16.gmra.mxu0 %v3886
        %v4459 = vpop.f32.mrf.mxu0
        %v4460 = vadd.f32 0.0, %v4459
        %v4461 = vpop.f32.mrf.mxu0
        %v4462 = vadd.f32 0.0, %v4461
        %4463 = vmatmul.bf16.gmra.mxu0 %v3889
        %v4464 = vpop.f32.mrf.mxu0
        %v4465 = vadd.f32 0.0, %v4464
        %v4466 = vpop.f32.mrf.mxu0
        %v4467 = vadd.f32 0.0, %v4466
        %4468 = vmatmul.bf16.gmra.mxu0 %v3892
        %v4469 = vpop.f32.mrf.mxu0
        %v4470 = vadd.f32 0.0, %v4469
        %v4471 = vpop.f32.mrf.mxu0
        %v4472 = vadd.f32 0.0, %v4471
        %4473 = vmatmul.bf16.gmra.mxu0 %v3895
        %v4474 = vpop.f32.mrf.mxu0
        %v4475 = vadd.f32 0.0, %v4474
        %v4476 = vpop.f32.mrf.mxu0
        %v4477 = vadd.f32 0.0, %v4476
        %4478 = vmatmul.bf16.gmra.mxu0 %v3898
        %v4479 = vpop.f32.mrf.mxu0
        %v4480 = vadd.f32 0.0, %v4479
        %v4481 = vpop.f32.mrf.mxu0
        %v4482 = vadd.f32 0.0, %v4481
        %4483 = vmatmul.bf16.gmra.mxu0 %v4387
        %v4484 = vpop.f32.mrf.mxu0
        %v4485 = vadd.f32 0.0, %v4484
        %v4486 = vpop.f32.mrf.mxu0
        %v4487 = vadd.f32 0.0, %v4486
        %4488 = vmatmul.bf16.gmra.mxu0 %v4390
        %v4489 = vpop.f32.mrf.mxu0
        %v4490 = vadd.f32 0.0, %v4489
        %v4491 = vpop.f32.mrf.mxu0
        %v4492 = vadd.f32 0.0, %v4491
        %4493 = vdwg.mxu0
        %v4494 = vadd.f32 %v4316, %v4406
        %v4495 = vadd.f32 %v4317, %v4455
        %v4496 = vadd.f32 %v4318, %v4408
        %v4497 = vadd.f32 %v4319, %v4457
        %v4498 = vadd.f32 %v4320, %v4411
        %v4499 = vadd.f32 %v4321, %v4460
        %v4500 = vadd.f32 %v4322, %v4413
        %v4501 = vadd.f32 %v4323, %v4462
        %v4502 = vadd.f32 %v4324, %v4416
        %v4503 = vadd.f32 %v4325, %v4465
        %v4504 = vadd.f32 %v4326, %v4418
        %v4505 = vadd.f32 %v4327, %v4467
        %v4506 = vadd.f32 %v4328, %v4421
        %v4507 = vadd.f32 %v4329, %v4470
        %v4508 = vadd.f32 %v4330, %v4423
        %v4509 = vadd.f32 %v4331, %v4472
        %v4510 = vadd.f32 %v4332, %v4426
        %v4511 = vadd.f32 %v4333, %v4475
        %v4512 = vadd.f32 %v4334, %v4428
        %v4513 = vadd.f32 %v4335, %v4477
        %v4514 = vadd.f32 %v4336, %v4431
        %v4515 = vadd.f32 %v4337, %v4480
        %v4516 = vadd.f32 %v4338, %v4433
        %v4517 = vadd.f32 %v4339, %v4482
        %v4518 = vadd.f32 %v4340, %v4436
        %v4519 = vadd.f32 %v4341, %v4485
        %v4520 = vadd.f32 %v4342, %v4438
        %v4521 = vadd.f32 %v4343, %v4487
        %v4522 = vadd.f32 %v4344, %v4441
        %v4523 = vadd.f32 %v4345, %v4490
        %v4524 = vadd.f32 %v4346, %v4443
        %v4525 = vadd.f32 %v4347, %v4492
        %v4526 = vrot.slane %v2194, 4
        %v4527 = vrot.slane %v2197, 5
        %v4528 = vor.u32 %v4526, %v4527
        %v4529 = vrot.slane %v4528, 4
        %v4530 = vrot.slane %v2206, 5
        %v4531 = vsel %vm3353, %v4529, %v4530
        %v4532 = vrot.slane %v2203, 4
        %v4533 = vor.u32 %v4532, %v4530
        %v4534 = vrot.slane %v4533, 4
        %v4535 = vrot.slane %v2216, 5
        %v4536 = vsel %vm3353, %v4534, %v4535
        %v4538 = vshrl.u32 %v485, 16
        %v4540 = vrot.slane %v4538, 4
        %v4541 = vshll.u32 %v485, 16
        %v4543 = vrot.slane %v4541, 5
        %v4544 = vor.u32 %v4540, %v4543
        %v4545 = vrot.slane %v4544, 4
        %v4547 = vshll.u32 %v486, 16
        %v4549 = vrot.slane %v4547, 5
        %v4550 = vsel %vm3353, %v4545, %v4549
        %v4551 = vshrl.u32 %v486, 16
        %v4553 = vrot.slane %v4551, 4
        %v4554 = vor.u32 %v4553, %v4549
        %v4555 = vrot.slane %v4554, 4
        %v4557 = vshll.u32 %v487, 16
        %v4559 = vrot.slane %v4557, 5
        %v4560 = vsel %vm3353, %v4555, %v4559
        %s4561 = scalar_lea.vmem %s6, 24
        %v4562 = vld [vmem:[%s4561] sm:$0xf]
        %v4563 = vunpack.c.l.b16 %v4531
        %v4564 = vunpack.c.l.b16 %v4536
        %v4565 = vunpack.c.l.b16 %v4550
        %v4566 = vunpack.c.l.b16 %v4560
        %v4567 = vpack.c.b16 %v4564, %v4563
        %v4568 = vpack.c.b16 %v4566, %v4565
        %4570 = vst [vmem:[#allocation1] ss:$4 sm:$0xff] %v4562
        %v4571 = vld.sshfl [vmem:[#allocation1] sm:$0xff pattern:$0x73625140]
        %v4572 = vld.sshfl [vmem:[#allocation1 + $0x8] sm:$0xff pattern:$0x73625140]
        %v4574 = vsel %vm753, %v4567, 0
        %v4577 = vsel %vm753, %v4568, 0
        %v4579 = vsel %vm778, %v4571, 0
        %v4581 = vsel %vm778, %v4572, 0
        %4583 = vmatpush.bf16.msra.mxu0 0
        %4584 = vmatpush.bf16.msra.mxu0 0
        %4585 = vmatpush.bf16.msra.mxu0 0
        %4586 = vmatpush.bf16.msra.mxu0 0
        %4587 = vmatpush.bf16.msra.mxu0 0
        %4588 = vmatpush.bf16.msra.mxu0 0
        %4589 = vmatpush.bf16.msra.mxu0 0
        %4590 = vmatpush.bf16.msra.mxu0 %v4579
        %4591 = vmatmul.bf16.gmra.mxu0 %v3626
        %v4592 = vpop.f32.mrf.mxu0
        %v4593 = vadd.f32 0.0, %v4592
        %v4594 = vpop.f32.mrf.mxu0
        %v4595 = vadd.f32 0.0, %v4594
        %4596 = vmatmul.bf16.gmra.mxu0 %v3629
        %v4597 = vpop.f32.mrf.mxu0
        %v4598 = vadd.f32 0.0, %v4597
        %v4599 = vpop.f32.mrf.mxu0
        %v4600 = vadd.f32 0.0, %v4599
        %4601 = vmatmul.bf16.gmra.mxu0 %v3632
        %v4602 = vpop.f32.mrf.mxu0
        %v4603 = vadd.f32 0.0, %v4602
        %v4604 = vpop.f32.mrf.mxu0
        %v4605 = vadd.f32 0.0, %v4604
        %4606 = vmatmul.bf16.gmra.mxu0 %v3635
        %v4607 = vpop.f32.mrf.mxu0
        %v4608 = vadd.f32 0.0, %v4607
        %v4609 = vpop.f32.mrf.mxu0
        %v4610 = vadd.f32 0.0, %v4609
        %4611 = vmatmul.bf16.gmra.mxu0 %v4069
        %v4612 = vpop.f32.mrf.mxu0
        %v4613 = vadd.f32 0.0, %v4612
        %v4614 = vpop.f32.mrf.mxu0
        %v4615 = vadd.f32 0.0, %v4614
        %4616 = vmatmul.bf16.gmra.mxu0 %v4072
        %v4617 = vpop.f32.mrf.mxu0
        %v4618 = vadd.f32 0.0, %v4617
        %v4619 = vpop.f32.mrf.mxu0
        %v4620 = vadd.f32 0.0, %v4619
        %4621 = vmatmul.bf16.gmra.mxu0 %v4574
        %v4622 = vpop.f32.mrf.mxu0
        %v4623 = vadd.f32 0.0, %v4622
        %v4624 = vpop.f32.mrf.mxu0
        %v4625 = vadd.f32 0.0, %v4624
        %4626 = vmatmul.bf16.gmra.mxu0 %v4577
        %v4627 = vpop.f32.mrf.mxu0
        %v4628 = vadd.f32 0.0, %v4627
        %v4629 = vpop.f32.mrf.mxu0
        %v4630 = vadd.f32 0.0, %v4629
        %4631 = vdwg.mxu0
        %4632 = vmatpush.bf16.msra.mxu0 0
        %4633 = vmatpush.bf16.msra.mxu0 0
        %4634 = vmatpush.bf16.msra.mxu0 0
        %4635 = vmatpush.bf16.msra.mxu0 0
        %4636 = vmatpush.bf16.msra.mxu0 0
        %4637 = vmatpush.bf16.msra.mxu0 0
        %4638 = vmatpush.bf16.msra.mxu0 0
        %4639 = vmatpush.bf16.msra.mxu0 %v4581
        %4640 = vmatmul.bf16.gmra.mxu0 %v3626
        %v4641 = vpop.f32.mrf.mxu0
        %v4642 = vadd.f32 0.0, %v4641
        %v4643 = vpop.f32.mrf.mxu0
        %v4644 = vadd.f32 0.0, %v4643
        %4645 = vmatmul.bf16.gmra.mxu0 %v3629
        %v4646 = vpop.f32.mrf.mxu0
        %v4647 = vadd.f32 0.0, %v4646
        %v4648 = vpop.f32.mrf.mxu0
        %v4649 = vadd.f32 0.0, %v4648
        %4650 = vmatmul.bf16.gmra.mxu0 %v3632
        %v4651 = vpop.f32.mrf.mxu0
        %v4652 = vadd.f32 0.0, %v4651
        %v4653 = vpop.f32.mrf.mxu0
        %v4654 = vadd.f32 0.0, %v4653
        %4655 = vmatmul.bf16.gmra.mxu0 %v3635
        %v4656 = vpop.f32.mrf.mxu0
        %v4657 = vadd.f32 0.0, %v4656
        %v4658 = vpop.f32.mrf.mxu0
        %v4659 = vadd.f32 0.0, %v4658
        %4660 = vmatmul.bf16.gmra.mxu0 %v4069
        %v4661 = vpop.f32.mrf.mxu0
        %v4662 = vadd.f32 0.0, %v4661
        %v4663 = vpop.f32.mrf.mxu0
        %v4664 = vadd.f32 0.0, %v4663
        %4665 = vmatmul.bf16.gmra.mxu0 %v4072
        %v4666 = vpop.f32.mrf.mxu0
        %v4667 = vadd.f32 0.0, %v4666
        %v4668 = vpop.f32.mrf.mxu0
        %v4669 = vadd.f32 0.0, %v4668
        %4670 = vmatmul.bf16.gmra.mxu0 %v4574
        %v4671 = vpop.f32.mrf.mxu0
        %v4672 = vadd.f32 0.0, %v4671
        %v4673 = vpop.f32.mrf.mxu0
        %v4674 = vadd.f32 0.0, %v4673
        %4675 = vmatmul.bf16.gmra.mxu0 %v4577
        %v4676 = vpop.f32.mrf.mxu0
        %v4677 = vadd.f32 0.0, %v4676
        %v4678 = vpop.f32.mrf.mxu0
        %v4679 = vadd.f32 0.0, %v4678
        %4680 = vdwg.mxu0
        %v4681 = vadd.f32 %v4494, %v4593
        %v4682 = vadd.f32 %v4495, %v4642
        %v4683 = vadd.f32 %v4496, %v4595
        %v4684 = vadd.f32 %v4497, %v4644
        %v4685 = vadd.f32 %v4498, %v4598
        %v4686 = vadd.f32 %v4499, %v4647
        %v4687 = vadd.f32 %v4500, %v4600
        %v4688 = vadd.f32 %v4501, %v4649
        %v4689 = vadd.f32 %v4502, %v4603
        %v4690 = vadd.f32 %v4503, %v4652
        %v4691 = vadd.f32 %v4504, %v4605
        %v4692 = vadd.f32 %v4505, %v4654
        %v4693 = vadd.f32 %v4506, %v4608
        %v4694 = vadd.f32 %v4507, %v4657
        %v4695 = vadd.f32 %v4508, %v4610
        %v4696 = vadd.f32 %v4509, %v4659
        %v4697 = vadd.f32 %v4510, %v4613
        %v4698 = vadd.f32 %v4511, %v4662
        %v4699 = vadd.f32 %v4512, %v4615
        %v4700 = vadd.f32 %v4513, %v4664
        %v4701 = vadd.f32 %v4514, %v4618
        %v4702 = vadd.f32 %v4515, %v4667
        %v4703 = vadd.f32 %v4516, %v4620
        %v4704 = vadd.f32 %v4517, %v4669
        %v4705 = vadd.f32 %v4518, %v4623
        %v4706 = vadd.f32 %v4519, %v4672
        %v4707 = vadd.f32 %v4520, %v4625
        %v4708 = vadd.f32 %v4521, %v4674
        %v4709 = vadd.f32 %v4522, %v4628
        %v4710 = vadd.f32 %v4523, %v4677
        %v4711 = vadd.f32 %v4524, %v4630
        %v4712 = vadd.f32 %v4525, %v4679
        %v4713 = vrot.slane %v4538, 5
        %v4714 = vrot.slane %v4541, 6
        %v4715 = vor.u32 %v4713, %v4714
        %v4716 = vrot.slane %v4715, 4
        %v4717 = vrot.slane %v4551, 5
        %v4718 = vrot.slane %v4547, 6
        %v4719 = vor.u32 %v4717, %v4718
        %v4720 = vsel %vm493, %v4716, %v4719
        %v4721 = vrot.slane %v4719, 4
        %v4722 = vshrl.u32 %v487, 16
        %v4724 = vrot.slane %v4722, 5
        %v4725 = vrot.slane %v4557, 6
        %v4726 = vor.u32 %v4724, %v4725
        %v4727 = vsel %vm493, %v4721, %v4726
        %s4728 = scalar_lea.vmem %s6, 28
        %v4729 = vld [vmem:[%s4728] sm:$0xf]
        %v4730 = vunpack.c.l.b16 %v4720
        %v4731 = vunpack.c.l.b16 %v4727
        %v4732 = vpack.c.b16 %v4731, %v4730
        %4734 = vst [vmem:[#allocation1] ss:$4 sm:$0xff] %v4729
        %v4735 = vld.sshfl [vmem:[#allocation1] sm:$0xff pattern:$0x73625140]
        %v4736 = vld.sshfl [vmem:[#allocation1 + $0x8] sm:$0xff pattern:$0x73625140]
        %v4738 = vsel %vm753, %v4732, 0
        %v4740 = vsel %vm778, %v4735, 0
        %v4742 = vsel %vm778, %v4736, 0
        %4744 = vmatpush.bf16.msra.mxu0 0
        %4745 = vmatpush.bf16.msra.mxu0 0
        %4746 = vmatpush.bf16.msra.mxu0 0
        %4747 = vmatpush.bf16.msra.mxu0 0
        %4748 = vmatpush.bf16.msra.mxu0 0
        %4749 = vmatpush.bf16.msra.mxu0 0
        %4750 = vmatpush.bf16.msra.mxu0 0
        %4751 = vmatpush.bf16.msra.mxu0 %v4740
        %4752 = vmatmul.bf16.gmra.mxu0 %v761
        %v4753 = vpop.f32.mrf.mxu0
        %v4754 = vadd.f32 0.0, %v4753
        %v4755 = vpop.f32.mrf.mxu0
        %v4756 = vadd.f32 0.0, %v4755
        %4757 = vmatmul.bf16.gmra.mxu0 %v764
        %v4758 = vpop.f32.mrf.mxu0
        %v4759 = vadd.f32 0.0, %v4758
        %v4760 = vpop.f32.mrf.mxu0
        %v4761 = vadd.f32 0.0, %v4760
        %4762 = vmatmul.bf16.gmra.mxu0 %v767
        %v4763 = vpop.f32.mrf.mxu0
        %v4764 = vadd.f32 0.0, %v4763
        %v4765 = vpop.f32.mrf.mxu0
        %v4766 = vadd.f32 0.0, %v4765
        %4767 = vmatmul.bf16.gmra.mxu0 %v770
        %v4768 = vpop.f32.mrf.mxu0
        %v4769 = vadd.f32 0.0, %v4768
        %v4770 = vpop.f32.mrf.mxu0
        %v4771 = vadd.f32 0.0, %v4770
        %4772 = vmatmul.bf16.gmra.mxu0 %v773
        %v4773 = vpop.f32.mrf.mxu0
        %v4774 = vadd.f32 0.0, %v4773
        %v4775 = vpop.f32.mrf.mxu0
        %v4776 = vadd.f32 0.0, %v4775
        %4777 = vmatmul.bf16.gmra.mxu0 %v776
        %v4778 = vpop.f32.mrf.mxu0
        %v4779 = vadd.f32 0.0, %v4778
        %v4780 = vpop.f32.mrf.mxu0
        %v4781 = vadd.f32 0.0, %v4780
        %4782 = vmatmul.bf16.gmra.mxu0 %v2231
        %v4783 = vpop.f32.mrf.mxu0
        %v4784 = vadd.f32 0.0, %v4783
        %v4785 = vpop.f32.mrf.mxu0
        %v4786 = vadd.f32 0.0, %v4785
        %4787 = vmatmul.bf16.gmra.mxu0 %v4738
        %v4788 = vpop.f32.mrf.mxu0
        %v4789 = vadd.f32 0.0, %v4788
        %v4790 = vpop.f32.mrf.mxu0
        %v4791 = vadd.f32 0.0, %v4790
        %4792 = vdwg.mxu0
        %4793 = vmatpush.bf16.msra.mxu0 0
        %4794 = vmatpush.bf16.msra.mxu0 0
        %4795 = vmatpush.bf16.msra.mxu0 0
        %4796 = vmatpush.bf16.msra.mxu0 0
        %4797 = vmatpush.bf16.msra.mxu0 0
        %4798 = vmatpush.bf16.msra.mxu0 0
        %4799 = vmatpush.bf16.msra.mxu0 0
        %4800 = vmatpush.bf16.msra.mxu0 %v4742
        %4801 = vmatmul.bf16.gmra.mxu0 %v761
        %v4802 = vpop.f32.mrf.mxu0
        %v4803 = vadd.f32 0.0, %v4802
        %v4804 = vpop.f32.mrf.mxu0
        %v4805 = vadd.f32 0.0, %v4804
        %4806 = vmatmul.bf16.gmra.mxu0 %v764
        %v4807 = vpop.f32.mrf.mxu0
        %v4808 = vadd.f32 0.0, %v4807
        %v4809 = vpop.f32.mrf.mxu0
        %v4810 = vadd.f32 0.0, %v4809
        %4811 = vmatmul.bf16.gmra.mxu0 %v767
        %v4812 = vpop.f32.mrf.mxu0
        %v4813 = vadd.f32 0.0, %v4812
        %v4814 = vpop.f32.mrf.mxu0
        %v4815 = vadd.f32 0.0, %v4814
        %4816 = vmatmul.bf16.gmra.mxu0 %v770
        %v4817 = vpop.f32.mrf.mxu0
        %v4818 = vadd.f32 0.0, %v4817
        %v4819 = vpop.f32.mrf.mxu0
        %v4820 = vadd.f32 0.0, %v4819
        %4821 = vmatmul.bf16.gmra.mxu0 %v773
        %v4822 = vpop.f32.mrf.mxu0
        %v4823 = vadd.f32 0.0, %v4822
        %v4824 = vpop.f32.mrf.mxu0
        %v4825 = vadd.f32 0.0, %v4824
        %4826 = vmatmul.bf16.gmra.mxu0 %v776
        %v4827 = vpop.f32.mrf.mxu0
        %v4828 = vadd.f32 0.0, %v4827
        %v4829 = vpop.f32.mrf.mxu0
        %v4830 = vadd.f32 0.0, %v4829
        %4831 = vmatmul.bf16.gmra.mxu0 %v2231
        %v4832 = vpop.f32.mrf.mxu0
        %v4833 = vadd.f32 0.0, %v4832
        %v4834 = vpop.f32.mrf.mxu0
        %v4835 = vadd.f32 0.0, %v4834
        %4836 = vmatmul.bf16.gmra.mxu0 %v4738
        %v4837 = vpop.f32.mrf.mxu0
        %v4838 = vadd.f32 0.0, %v4837
        %v4839 = vpop.f32.mrf.mxu0
        %v4840 = vadd.f32 0.0, %v4839
        %4841 = vdwg.mxu0
        %v4842 = vadd.f32 %v4681, %v4754
        %v4843 = vadd.f32 %v4682, %v4803
        %v4844 = vadd.f32 %v4683, %v4756
        %v4845 = vadd.f32 %v4684, %v4805
        %v4846 = vadd.f32 %v4685, %v4759
        %v4847 = vadd.f32 %v4686, %v4808
        %v4848 = vadd.f32 %v4687, %v4761
        %v4849 = vadd.f32 %v4688, %v4810
        %v4850 = vadd.f32 %v4689, %v4764
        %v4851 = vadd.f32 %v4690, %v4813
        %v4852 = vadd.f32 %v4691, %v4766
        %v4853 = vadd.f32 %v4692, %v4815
        %v4854 = vadd.f32 %v4693, %v4769
        %v4855 = vadd.f32 %v4694, %v4818
        %v4856 = vadd.f32 %v4695, %v4771
        %v4857 = vadd.f32 %v4696, %v4820
        %v4858 = vadd.f32 %v4697, %v4774
        %v4859 = vadd.f32 %v4698, %v4823
        %v4860 = vadd.f32 %v4699, %v4776
        %v4861 = vadd.f32 %v4700, %v4825
        %v4862 = vadd.f32 %v4701, %v4779
        %v4863 = vadd.f32 %v4702, %v4828
        %v4864 = vadd.f32 %v4703, %v4781
        %v4865 = vadd.f32 %v4704, %v4830
        %v4866 = vadd.f32 %v4705, %v4784
        %v4867 = vadd.f32 %v4706, %v4833
        %v4868 = vadd.f32 %v4707, %v4786
        %v4869 = vadd.f32 %v4708, %v4835
        %v4870 = vadd.f32 %v4709, %v4789
        %v4871 = vadd.f32 %v4710, %v4838
        %v4872 = vadd.f32 %v4711, %v4791
        %v4873 = vadd.f32 %v4712, %v4840
        %v4874 = vrot.slane %v2194, 6
        %v4875 = vrot.slane %v2197, 7
        %v4876 = vor.u32 %v4874, %v4875
        %v4877 = vrot.slane %v4876, 4
        %v4878 = vrot.slane %v2203, 6
        %v4879 = vrot.slane %v2206, 7
        %v4880 = vor.u32 %v4878, %v4879
        %v4881 = vsel %vm3741, %v4877, %v4880
        %v4882 = vrot.slane %v4880, 4
        %v4883 = vrot.slane %v2213, 6
        %v4884 = vrot.slane %v2216, 7
        %v4885 = vor.u32 %v4883, %v4884
        %v4886 = vsel %vm3741, %v4882, %v4885
        %v4887 = vrot.slane %v4538, 6
        %v4888 = vrot.slane %v4541, 7
        %v4889 = vor.u32 %v4887, %v4888
        %v4890 = vrot.slane %v4889, 4
        %v4891 = vrot.slane %v4551, 6
        %v4892 = vrot.slane %v4547, 7
        %v4893 = vor.u32 %v4891, %v4892
        %v4894 = vsel %vm3741, %v4890, %v4893
        %v4895 = vrot.slane %v4893, 4
        %v4896 = vrot.slane %v4722, 6
        %v4897 = vrot.slane %v4557, 7
        %v4898 = vor.u32 %v4896, %v4897
        %v4899 = vsel %vm3741, %v4895, %v4898
        %s4900 = scalar_lea.vmem %s6, 32
        %v4901 = vld [vmem:[%s4900] sm:$0xf]
        %v4902 = vunpack.c.l.b16 %v4881
        %v4903 = vunpack.c.l.b16 %v4886
        %v4904 = vunpack.c.l.b16 %v4894
        %v4905 = vunpack.c.l.b16 %v4899
        %v4906 = vpack.c.b16 %v4903, %v4902
        %v4907 = vpack.c.b16 %v4905, %v4904
        %4909 = vst [vmem:[#allocation1] ss:$4 sm:$0xff] %v4901
        %v4910 = vld.sshfl [vmem:[#allocation1] sm:$0xff pattern:$0x73625140]
        %v4911 = vld.sshfl [vmem:[#allocation1 + $0x8] sm:$0xff pattern:$0x73625140]
        %v4913 = vsel %vm753, %v4906, 0
        %v4916 = vsel %vm753, %v4907, 0
        %v4918 = vsel %vm778, %v4910, 0
        %v4920 = vsel %vm778, %v4911, 0
        %4922 = vmatpush.bf16.msra.mxu0 0
        %4923 = vmatpush.bf16.msra.mxu0 0
        %4924 = vmatpush.bf16.msra.mxu0 0
        %4925 = vmatpush.bf16.msra.mxu0 0
        %4926 = vmatpush.bf16.msra.mxu0 0
        %4927 = vmatpush.bf16.msra.mxu0 0
        %4928 = vmatpush.bf16.msra.mxu0 0
        %4929 = vmatpush.bf16.msra.mxu0 %v4918
        %4930 = vmatmul.bf16.gmra.mxu0 %v3889
        %v4931 = vpop.f32.mrf.mxu0
        %v4932 = vadd.f32 0.0, %v4931
        %v4933 = vpop.f32.mrf.mxu0
        %v4934 = vadd.f32 0.0, %v4933
        %4935 = vmatmul.bf16.gmra.mxu0 %v3892
        %v4936 = vpop.f32.mrf.mxu0
        %v4937 = vadd.f32 0.0, %v4936
        %v4938 = vpop.f32.mrf.mxu0
        %v4939 = vadd.f32 0.0, %v4938
        %4940 = vmatmul.bf16.gmra.mxu0 %v3895
        %v4941 = vpop.f32.mrf.mxu0
        %v4942 = vadd.f32 0.0, %v4941
        %v4943 = vpop.f32.mrf.mxu0
        %v4944 = vadd.f32 0.0, %v4943
        %4945 = vmatmul.bf16.gmra.mxu0 %v3898
        %v4946 = vpop.f32.mrf.mxu0
        %v4947 = vadd.f32 0.0, %v4946
        %v4948 = vpop.f32.mrf.mxu0
        %v4949 = vadd.f32 0.0, %v4948
        %4950 = vmatmul.bf16.gmra.mxu0 %v4387
        %v4951 = vpop.f32.mrf.mxu0
        %v4952 = vadd.f32 0.0, %v4951
        %v4953 = vpop.f32.mrf.mxu0
        %v4954 = vadd.f32 0.0, %v4953
        %4955 = vmatmul.bf16.gmra.mxu0 %v4390
        %v4956 = vpop.f32.mrf.mxu0
        %v4957 = vadd.f32 0.0, %v4956
        %v4958 = vpop.f32.mrf.mxu0
        %v4959 = vadd.f32 0.0, %v4958
        %4960 = vmatmul.bf16.gmra.mxu0 %v4913
        %v4961 = vpop.f32.mrf.mxu0
        %v4962 = vadd.f32 0.0, %v4961
        %v4963 = vpop.f32.mrf.mxu0
        %v4964 = vadd.f32 0.0, %v4963
        %4965 = vmatmul.bf16.gmra.mxu0 %v4916
        %v4966 = vpop.f32.mrf.mxu0
        %v4967 = vadd.f32 0.0, %v4966
        %v4968 = vpop.f32.mrf.mxu0
        %v4969 = vadd.f32 0.0, %v4968
        %4970 = vdwg.mxu0
        %4971 = vmatpush.bf16.msra.mxu0 0
        %4972 = vmatpush.bf16.msra.mxu0 0
        %4973 = vmatpush.bf16.msra.mxu0 0
        %4974 = vmatpush.bf16.msra.mxu0 0
        %4975 = vmatpush.bf16.msra.mxu0 0
        %4976 = vmatpush.bf16.msra.mxu0 0
        %4977 = vmatpush.bf16.msra.mxu0 0
        %4978 = vmatpush.bf16.msra.mxu0 %v4920
        %4979 = vmatmul.bf16.gmra.mxu0 %v3889
        %v4980 = vpop.f32.mrf.mxu0
        %v4981 = vadd.f32 0.0, %v4980
        %v4982 = vpop.f32.mrf.mxu0
        %v4983 = vadd.f32 0.0, %v4982
        %4984 = vmatmul.bf16.gmra.mxu0 %v3892
        %v4985 = vpop.f32.mrf.mxu0
        %v4986 = vadd.f32 0.0, %v4985
        %v4987 = vpop.f32.mrf.mxu0
        %v4988 = vadd.f32 0.0, %v4987
        %4989 = vmatmul.bf16.gmra.mxu0 %v3895
        %v4990 = vpop.f32.mrf.mxu0
        %v4991 = vadd.f32 0.0, %v4990
        %v4992 = vpop.f32.mrf.mxu0
        %v4993 = vadd.f32 0.0, %v4992
        %4994 = vmatmul.bf16.gmra.mxu0 %v3898
        %v4995 = vpop.f32.mrf.mxu0
        %v4996 = vadd.f32 0.0, %v4995
        %v4997 = vpop.f32.mrf.mxu0
        %v4998 = vadd.f32 0.0, %v4997
        %4999 = vmatmul.bf16.gmra.mxu0 %v4387
        %v5000 = vpop.f32.mrf.mxu0
        %v5001 = vadd.f32 0.0, %v5000
        %v5002 = vpop.f32.mrf.mxu0
        %v5003 = vadd.f32 0.0, %v5002
        %5004 = vmatmul.bf16.gmra.mxu0 %v4390
        %v5005 = vpop.f32.mrf.mxu0
        %v5006 = vadd.f32 0.0, %v5005
        %v5007 = vpop.f32.mrf.mxu0
        %v5008 = vadd.f32 0.0, %v5007
        %5009 = vmatmul.bf16.gmra.mxu0 %v4913
        %v5010 = vpop.f32.mrf.mxu0
        %v5011 = vadd.f32 0.0, %v5010
        %v5012 = vpop.f32.mrf.mxu0
        %v5013 = vadd.f32 0.0, %v5012
        %5014 = vmatmul.bf16.gmra.mxu0 %v4916
        %v5015 = vpop.f32.mrf.mxu0
        %v5016 = vadd.f32 0.0, %v5015
        %v5017 = vpop.f32.mrf.mxu0
        %v5018 = vadd.f32 0.0, %v5017
        %5019 = vdwg.mxu0
        %v5020 = vadd.f32 %v4842, %v4932
        %v5021 = vadd.f32 %v4843, %v4981
        %v5022 = vadd.f32 %v4844, %v4934
        %v5023 = vadd.f32 %v4845, %v4983
        %v5024 = vadd.f32 %v4846, %v4937
        %v5025 = vadd.f32 %v4847, %v4986
        %v5026 = vadd.f32 %v4848, %v4939
        %v5027 = vadd.f32 %v4849, %v4988
        %v5028 = vadd.f32 %v4850, %v4942
        %v5029 = vadd.f32 %v4851, %v4991
        %v5030 = vadd.f32 %v4852, %v4944
        %v5031 = vadd.f32 %v4853, %v4993
        %v5032 = vadd.f32 %v4854, %v4947
        %v5033 = vadd.f32 %v4855, %v4996
        %v5034 = vadd.f32 %v4856, %v4949
        %v5035 = vadd.f32 %v4857, %v4998
        %v5036 = vadd.f32 %v4858, %v4952
        %v5037 = vadd.f32 %v4859, %v5001
        %v5038 = vadd.f32 %v4860, %v4954
        %v5039 = vadd.f32 %v4861, %v5003
        %v5040 = vadd.f32 %v4862, %v4957
        %v5041 = vadd.f32 %v4863, %v5006
        %v5042 = vadd.f32 %v4864, %v4959
        %v5043 = vadd.f32 %v4865, %v5008
        %v5044 = vadd.f32 %v4866, %v4962
        %v5045 = vadd.f32 %v4867, %v5011
        %v5046 = vadd.f32 %v4868, %v4964
        %v5047 = vadd.f32 %v4869, %v5013
        %v5048 = vadd.f32 %v4870, %v4967
        %v5049 = vadd.f32 %v4871, %v5016
        %v5050 = vadd.f32 %v4872, %v4969
        %v5051 = vadd.f32 %v4873, %v5018
        %v5052 = vld [vmem:[%s7] sm:$0x3]
        %v5054 = vperm.slane %v5052, 0
        %v5055 = vperm.slane %v5052, 1
        %v5058 = vadd.f32 %v5020, %v5054
        %v5059 = vadd.f32 %v5021, %v5055
        %v5060 = vadd.f32 %v5022, %v5054
        %v5061 = vadd.f32 %v5023, %v5055
        %v5062 = vadd.f32 %v5024, %v5054
        %v5063 = vadd.f32 %v5025, %v5055
        %v5064 = vadd.f32 %v5026, %v5054
        %v5065 = vadd.f32 %v5027, %v5055
        %v5066 = vadd.f32 %v5028, %v5054
        %v5067 = vadd.f32 %v5029, %v5055
        %v5068 = vadd.f32 %v5030, %v5054
        %v5069 = vadd.f32 %v5031, %v5055
        %v5070 = vadd.f32 %v5032, %v5054
        %v5071 = vadd.f32 %v5033, %v5055
        %v5072 = vadd.f32 %v5034, %v5054
        %v5073 = vadd.f32 %v5035, %v5055
        %v5074 = vadd.f32 %v5036, %v5054
        %v5075 = vadd.f32 %v5037, %v5055
        %v5076 = vadd.f32 %v5038, %v5054
        %v5077 = vadd.f32 %v5039, %v5055
        %v5078 = vadd.f32 %v5040, %v5054
        %v5079 = vadd.f32 %v5041, %v5055
        %v5080 = vadd.f32 %v5042, %v5054
        %v5081 = vadd.f32 %v5043, %v5055
        %v5082 = vadd.f32 %v5044, %v5054
        %v5083 = vadd.f32 %v5045, %v5055
        %v5084 = vadd.f32 %v5046, %v5054
        %v5085 = vadd.f32 %v5047, %v5055
        %v5086 = vadd.f32 %v5048, %v5054
        %v5087 = vadd.f32 %v5049, %v5055
        %v5088 = vadd.f32 %v5050, %v5054
        %v5089 = vadd.f32 %v5051, %v5055
        %v5090 = vmax.f32 %v5058, 0.0
        %v5091 = vmax.f32 %v5059, 0.0
        %v5092 = vmax.f32 %v5060, 0.0
        %v5093 = vmax.f32 %v5061, 0.0
        %v5094 = vmax.f32 %v5062, 0.0
        %v5095 = vmax.f32 %v5063, 0.0
        %v5096 = vmax.f32 %v5064, 0.0
        %v5097 = vmax.f32 %v5065, 0.0
        %v5098 = vmax.f32 %v5066, 0.0
        %v5099 = vmax.f32 %v5067, 0.0
        %v5100 = vmax.f32 %v5068, 0.0
        %v5101 = vmax.f32 %v5069, 0.0
        %v5102 = vmax.f32 %v5070, 0.0
        %v5103 = vmax.f32 %v5071, 0.0
        %v5104 = vmax.f32 %v5072, 0.0
        %v5105 = vmax.f32 %v5073, 0.0
        %v5106 = vmax.f32 %v5074, 0.0
        %v5107 = vmax.f32 %v5075, 0.0
        %v5108 = vmax.f32 %v5076, 0.0
        %v5109 = vmax.f32 %v5077, 0.0
        %v5110 = vmax.f32 %v5078, 0.0
        %v5111 = vmax.f32 %v5079, 0.0
        %v5112 = vmax.f32 %v5080, 0.0
        %v5113 = vmax.f32 %v5081, 0.0
        %v5114 = vmax.f32 %v5082, 0.0
        %v5115 = vmax.f32 %v5083, 0.0
        %v5116 = vmax.f32 %v5084, 0.0
        %v5117 = vmax.f32 %v5085, 0.0
        %v5118 = vmax.f32 %v5086, 0.0
        %v5119 = vmax.f32 %v5087, 0.0
        %v5120 = vmax.f32 %v5088, 0.0
        %v5121 = vmax.f32 %v5089, 0.0
        %v5122 = vpack.c.bf16 %v5092, %v5090
        %v5123 = vpack.c.bf16 %v5093, %v5091
        %v5124 = vpack.c.bf16 %v5096, %v5094
        %v5125 = vpack.c.bf16 %v5097, %v5095
        %v5126 = vpack.c.bf16 %v5100, %v5098
        %v5127 = vpack.c.bf16 %v5101, %v5099
        %v5128 = vpack.c.bf16 %v5104, %v5102
        %v5129 = vpack.c.bf16 %v5105, %v5103
        %v5130 = vpack.c.bf16 %v5108, %v5106
        %v5131 = vpack.c.bf16 %v5109, %v5107
        %v5132 = vpack.c.bf16 %v5112, %v5110
        %v5133 = vpack.c.bf16 %v5113, %v5111
        %v5134 = vpack.c.bf16 %v5116, %v5114
        %v5135 = vpack.c.bf16 %v5117, %v5115
        %v5136 = vpack.c.bf16 %v5120, %v5118
        %v5137 = vpack.c.bf16 %v5121, %v5119
        %s5138 = scalar_lea.vmem %s10, 512
        %v5139 = vld [vmem:[%s5138] sm:$0xff]
        %v5140 = vld [vmem:[%s5138 + $0x8] sm:$0xff]
        %v5141 = vld [vmem:[%s5138 + $0x10] sm:$0xff]
        %v5142 = vld [vmem:[%s5138 + $0x18] sm:$0xff]
        %v5143 = vld [vmem:[%s5138 + $0x20] sm:$0xff]
        %v5144 = vld [vmem:[%s5138 + $0x28] sm:$0xff]
        %v5145 = vld [vmem:[%s5138 + $0x30] sm:$0xff]
        %v5146 = vld [vmem:[%s5138 + $0x38] sm:$0xff]
        %v5147 = vld [vmem:[%s5138 + $0x40] sm:$0xff]
        %v5148 = vld [vmem:[%s5138 + $0x48] sm:$0xff]
        %v5149 = vld [vmem:[%s5138 + $0x50] sm:$0xff]
        %v5150 = vld [vmem:[%s5138 + $0x58] sm:$0xff]
        %v5151 = vld [vmem:[%s5138 + $0x60] sm:$0xff]
        %v5152 = vld [vmem:[%s5138 + $0x68] sm:$0xff]
        %v5153 = vld [vmem:[%s5138 + $0x70] sm:$0xff]
        %v5154 = vld [vmem:[%s5138 + $0x78] sm:$0xff]
        %v5155 = vld [vmem:[%s5138 + $0x80] sm:$0xff]
        %v5156 = vld [vmem:[%s5138 + $0x88] sm:$0xff]
        %v5157 = vld [vmem:[%s5138 + $0x90] sm:$0xff]
        %v5158 = vld [vmem:[%s5138 + $0x98] sm:$0xff]
        %v5159 = vld [vmem:[%s5138 + $0xa0] sm:$0xff]
        %v5160 = vld [vmem:[%s5138 + $0xa8] sm:$0xff]
        %v5161 = vld [vmem:[%s5138 + $0xb0] sm:$0xff]
        %v5162 = vld [vmem:[%s5138 + $0xb8] sm:$0xff]
        %v5163 = vld [vmem:[%s5138 + $0xc0] sm:$0xff]
        %v5164 = vld [vmem:[%s5138 + $0xc8] sm:$0xff]
        %v5165 = vld [vmem:[%s5138 + $0xd0] sm:$0xff]
        %v5166 = vld [vmem:[%s5138 + $0xd8] sm:$0xff]
        %v5167 = vld [vmem:[%s5138 + $0xe0] sm:$0xff]
        %v5168 = vld [vmem:[%s5138 + $0xe8] sm:$0xff]
        %v5169 = vld [vmem:[%s5138 + $0xf0] sm:$0xff]
        %v5170 = vld [vmem:[%s5138 + $0xf8] sm:$0xff]
        %v5203 = vunpack.c.l.b16 %v5139
        %v5204 = vunpack.c.h.b16 %v5139
        %v5205 = vunpack.c.l.b16 %v5140
        %v5206 = vunpack.c.h.b16 %v5140
        %v5207 = vunpack.c.l.b16 %v5141
        %v5208 = vunpack.c.h.b16 %v5141
        %v5209 = vunpack.c.l.b16 %v5142
        %v5210 = vunpack.c.h.b16 %v5142
        %v5211 = vunpack.c.l.b16 %v5143
        %v5212 = vunpack.c.h.b16 %v5143
        %v5213 = vunpack.c.l.b16 %v5144
        %v5214 = vunpack.c.h.b16 %v5144
        %v5215 = vunpack.c.l.b16 %v5145
        %v5216 = vunpack.c.h.b16 %v5145
        %v5217 = vunpack.c.l.b16 %v5146
        %v5218 = vunpack.c.h.b16 %v5146
        %v5219 = vunpack.c.l.b16 %v5147
        %v5220 = vunpack.c.h.b16 %v5147
        %v5221 = vunpack.c.l.b16 %v5148
        %v5222 = vunpack.c.h.b16 %v5148
        %v5223 = vunpack.c.l.b16 %v5149
        %v5224 = vunpack.c.h.b16 %v5149
        %v5225 = vunpack.c.l.b16 %v5150
        %v5226 = vunpack.c.h.b16 %v5150
        %v5227 = vunpack.c.l.b16 %v5151
        %v5228 = vunpack.c.h.b16 %v5151
        %v5229 = vunpack.c.l.b16 %v5152
        %v5230 = vunpack.c.h.b16 %v5152
        %v5231 = vunpack.c.l.b16 %v5153
        %v5232 = vunpack.c.h.b16 %v5153
        %v5233 = vunpack.c.l.b16 %v5154
        %v5234 = vunpack.c.h.b16 %v5154
        %v5235 = vunpack.c.l.b16 %v5155
        %v5236 = vunpack.c.h.b16 %v5155
        %v5237 = vunpack.c.l.b16 %v5156
        %v5238 = vunpack.c.h.b16 %v5156
        %v5239 = vunpack.c.l.b16 %v5157
        %v5240 = vunpack.c.h.b16 %v5157
        %v5241 = vunpack.c.l.b16 %v5158
        %v5242 = vunpack.c.h.b16 %v5158
        %v5243 = vunpack.c.l.b16 %v5159
        %v5244 = vunpack.c.h.b16 %v5159
        %v5245 = vunpack.c.l.b16 %v5160
        %v5246 = vunpack.c.h.b16 %v5160
        %v5247 = vunpack.c.l.b16 %v5161
        %v5248 = vunpack.c.h.b16 %v5161
        %v5249 = vunpack.c.l.b16 %v5162
        %v5250 = vunpack.c.h.b16 %v5162
        %v5251 = vunpack.c.l.b16 %v5163
        %v5252 = vunpack.c.h.b16 %v5163
        %v5253 = vunpack.c.l.b16 %v5164
        %v5254 = vunpack.c.h.b16 %v5164
        %v5255 = vunpack.c.l.b16 %v5165
        %v5256 = vunpack.c.h.b16 %v5165
        %v5257 = vunpack.c.l.b16 %v5166
        %v5258 = vunpack.c.h.b16 %v5166
        %v5259 = vunpack.c.l.b16 %v5167
        %v5260 = vunpack.c.h.b16 %v5167
        %v5261 = vunpack.c.l.b16 %v5168
        %v5262 = vunpack.c.h.b16 %v5168
        %v5263 = vunpack.c.l.b16 %v5169
        %v5264 = vunpack.c.h.b16 %v5169
        %v5265 = vunpack.c.l.b16 %v5170
        %v5266 = vunpack.c.h.b16 %v5170
        %v5267 = vpack.c.b16 %v5205, %v5203
        %v5268 = vpack.c.b16 %v5206, %v5204
        %v5269 = vpack.c.b16 %v5209, %v5207
        %v5270 = vpack.c.b16 %v5210, %v5208
        %v5271 = vpack.c.b16 %v5213, %v5211
        %v5272 = vpack.c.b16 %v5214, %v5212
        %v5273 = vpack.c.b16 %v5217, %v5215
        %v5274 = vpack.c.b16 %v5218, %v5216
        %v5275 = vpack.c.b16 %v5221, %v5219
        %v5276 = vpack.c.b16 %v5222, %v5220
        %v5277 = vpack.c.b16 %v5225, %v5223
        %v5278 = vpack.c.b16 %v5226, %v5224
        %v5279 = vpack.c.b16 %v5229, %v5227
        %v5280 = vpack.c.b16 %v5230, %v5228
        %v5281 = vpack.c.b16 %v5233, %v5231
        %v5282 = vpack.c.b16 %v5234, %v5232
        %v5283 = vpack.c.b16 %v5237, %v5235
        %v5284 = vpack.c.b16 %v5238, %v5236
        %v5285 = vpack.c.b16 %v5241, %v5239
        %v5286 = vpack.c.b16 %v5242, %v5240
        %v5287 = vpack.c.b16 %v5245, %v5243
        %v5288 = vpack.c.b16 %v5246, %v5244
        %v5289 = vpack.c.b16 %v5249, %v5247
        %v5290 = vpack.c.b16 %v5250, %v5248
        %v5291 = vpack.c.b16 %v5253, %v5251
        %v5292 = vpack.c.b16 %v5254, %v5252
        %v5293 = vpack.c.b16 %v5257, %v5255
        %v5294 = vpack.c.b16 %v5258, %v5256
        %v5295 = vpack.c.b16 %v5261, %v5259
        %v5296 = vpack.c.b16 %v5262, %v5260
        %v5297 = vpack.c.b16 %v5265, %v5263
        %v5298 = vpack.c.b16 %v5266, %v5264
        %5331 = vmatpush.bf16.msra.mxu0 %v5281
        %5332 = vmatpush.bf16.msra.mxu0 %v5279
        %5333 = vmatpush.bf16.msra.mxu0 %v5277
        %5334 = vmatpush.bf16.msra.mxu0 %v5275
        %5335 = vmatpush.bf16.msra.mxu0 %v5273
        %5336 = vmatpush.bf16.msra.mxu0 %v5271
        %5337 = vmatpush.bf16.msra.mxu0 %v5269
        %5338 = vmatpush.bf16.msra.mxu0 %v5267
        %5339 = vmatmul.bf16.gmra.mxu0 %v5122
        %v5340 = vpop.f32.mrf.mxu0
        %v5341 = vadd.f32 0.0, %v5340
        %v5342 = vpop.f32.mrf.mxu0
        %v5343 = vadd.f32 0.0, %v5342
        %5344 = vmatmul.bf16.gmra.mxu0 %v5124
        %v5345 = vpop.f32.mrf.mxu0
        %v5346 = vadd.f32 0.0, %v5345
        %v5347 = vpop.f32.mrf.mxu0
        %v5348 = vadd.f32 0.0, %v5347
        %5349 = vmatmul.bf16.gmra.mxu0 %v5126
        %v5350 = vpop.f32.mrf.mxu0
        %v5351 = vadd.f32 0.0, %v5350
        %v5352 = vpop.f32.mrf.mxu0
        %v5353 = vadd.f32 0.0, %v5352
        %5354 = vmatmul.bf16.gmra.mxu0 %v5128
        %v5355 = vpop.f32.mrf.mxu0
        %v5356 = vadd.f32 0.0, %v5355
        %v5357 = vpop.f32.mrf.mxu0
        %v5358 = vadd.f32 0.0, %v5357
        %5359 = vmatmul.bf16.gmra.mxu0 %v5130
        %v5360 = vpop.f32.mrf.mxu0
        %v5361 = vadd.f32 0.0, %v5360
        %v5362 = vpop.f32.mrf.mxu0
        %v5363 = vadd.f32 0.0, %v5362
        %5364 = vmatmul.bf16.gmra.mxu0 %v5132
        %v5365 = vpop.f32.mrf.mxu0
        %v5366 = vadd.f32 0.0, %v5365
        %v5367 = vpop.f32.mrf.mxu0
        %v5368 = vadd.f32 0.0, %v5367
        %5369 = vmatmul.bf16.gmra.mxu0 %v5134
        %v5370 = vpop.f32.mrf.mxu0
        %v5371 = vadd.f32 0.0, %v5370
        %v5372 = vpop.f32.mrf.mxu0
        %v5373 = vadd.f32 0.0, %v5372
        %5374 = vmatmul.bf16.gmra.mxu0 %v5136
        %v5375 = vpop.f32.mrf.mxu0
        %v5376 = vadd.f32 0.0, %v5375
        %v5377 = vpop.f32.mrf.mxu0
        %v5378 = vadd.f32 0.0, %v5377
        %5379 = vdwg.mxu0
        %5380 = vmatpush.bf16.msra.mxu0 %v5297
        %5381 = vmatpush.bf16.msra.mxu0 %v5295
        %5382 = vmatpush.bf16.msra.mxu0 %v5293
        %5383 = vmatpush.bf16.msra.mxu0 %v5291
        %5384 = vmatpush.bf16.msra.mxu0 %v5289
        %5385 = vmatpush.bf16.msra.mxu0 %v5287
        %5386 = vmatpush.bf16.msra.mxu0 %v5285
        %5387 = vmatpush.bf16.msra.mxu0 %v5283
        %5388 = vmatmul.bf16.gmra.mxu0 %v5123
        %v5389 = vpop.f32.mrf.mxu0
        %v5390 = vadd.f32 %v5341, %v5389
        %v5391 = vpop.f32.mrf.mxu0
        %v5392 = vadd.f32 %v5343, %v5391
        %5393 = vmatmul.bf16.gmra.mxu0 %v5125
        %v5394 = vpop.f32.mrf.mxu0
        %v5395 = vadd.f32 %v5346, %v5394
        %v5396 = vpop.f32.mrf.mxu0
        %v5397 = vadd.f32 %v5348, %v5396
        %5398 = vmatmul.bf16.gmra.mxu0 %v5127
        %v5399 = vpop.f32.mrf.mxu0
        %v5400 = vadd.f32 %v5351, %v5399
        %v5401 = vpop.f32.mrf.mxu0
        %v5402 = vadd.f32 %v5353, %v5401
        %5403 = vmatmul.bf16.gmra.mxu0 %v5129
        %v5404 = vpop.f32.mrf.mxu0
        %v5405 = vadd.f32 %v5356, %v5404
        %v5406 = vpop.f32.mrf.mxu0
        %v5407 = vadd.f32 %v5358, %v5406
        %5408 = vmatmul.bf16.gmra.mxu0 %v5131
        %v5409 = vpop.f32.mrf.mxu0
        %v5410 = vadd.f32 %v5361, %v5409
        %v5411 = vpop.f32.mrf.mxu0
        %v5412 = vadd.f32 %v5363, %v5411
        %5413 = vmatmul.bf16.gmra.mxu0 %v5133
        %v5414 = vpop.f32.mrf.mxu0
        %v5415 = vadd.f32 %v5366, %v5414
        %v5416 = vpop.f32.mrf.mxu0
        %v5417 = vadd.f32 %v5368, %v5416
        %5418 = vmatmul.bf16.gmra.mxu0 %v5135
        %v5419 = vpop.f32.mrf.mxu0
        %v5420 = vadd.f32 %v5371, %v5419
        %v5421 = vpop.f32.mrf.mxu0
        %v5422 = vadd.f32 %v5373, %v5421
        %5423 = vmatmul.bf16.gmra.mxu0 %v5137
        %v5424 = vpop.f32.mrf.mxu0
        %v5425 = vadd.f32 %v5376, %v5424
        %v5426 = vpop.f32.mrf.mxu0
        %v5427 = vadd.f32 %v5378, %v5426
        %5428 = vdwg.mxu0
        %5429 = vmatpush.bf16.msra.mxu0 %v5282
        %5430 = vmatpush.bf16.msra.mxu0 %v5280
        %5431 = vmatpush.bf16.msra.mxu0 %v5278
        %5432 = vmatpush.bf16.msra.mxu0 %v5276
        %5433 = vmatpush.bf16.msra.mxu0 %v5274
        %5434 = vmatpush.bf16.msra.mxu0 %v5272
        %5435 = vmatpush.bf16.msra.mxu0 %v5270
        %5436 = vmatpush.bf16.msra.mxu0 %v5268
        %5437 = vmatmul.bf16.gmra.mxu0 %v5122
        %v5438 = vpop.f32.mrf.mxu0
        %v5439 = vadd.f32 0.0, %v5438
        %v5440 = vpop.f32.mrf.mxu0
        %v5441 = vadd.f32 0.0, %v5440
        %5442 = vmatmul.bf16.gmra.mxu0 %v5124
        %v5443 = vpop.f32.mrf.mxu0
        %v5444 = vadd.f32 0.0, %v5443
        %v5445 = vpop.f32.mrf.mxu0
        %v5446 = vadd.f32 0.0, %v5445
        %5447 = vmatmul.bf16.gmra.mxu0 %v5126
        %v5448 = vpop.f32.mrf.mxu0
        %v5449 = vadd.f32 0.0, %v5448
        %v5450 = vpop.f32.mrf.mxu0
        %v5451 = vadd.f32 0.0, %v5450
        %5452 = vmatmul.bf16.gmra.mxu0 %v5128
        %v5453 = vpop.f32.mrf.mxu0
        %v5454 = vadd.f32 0.0, %v5453
        %v5455 = vpop.f32.mrf.mxu0
        %v5456 = vadd.f32 0.0, %v5455
        %5457 = vmatmul.bf16.gmra.mxu0 %v5130
        %v5458 = vpop.f32.mrf.mxu0
        %v5459 = vadd.f32 0.0, %v5458
        %v5460 = vpop.f32.mrf.mxu0
        %v5461 = vadd.f32 0.0, %v5460
        %5462 = vmatmul.bf16.gmra.mxu0 %v5132
        %v5463 = vpop.f32.mrf.mxu0
        %v5464 = vadd.f32 0.0, %v5463
        %v5465 = vpop.f32.mrf.mxu0
        %v5466 = vadd.f32 0.0, %v5465
        %5467 = vmatmul.bf16.gmra.mxu0 %v5134
        %v5468 = vpop.f32.mrf.mxu0
        %v5469 = vadd.f32 0.0, %v5468
        %v5470 = vpop.f32.mrf.mxu0
        %v5471 = vadd.f32 0.0, %v5470
        %5472 = vmatmul.bf16.gmra.mxu0 %v5136
        %v5473 = vpop.f32.mrf.mxu0
        %v5474 = vadd.f32 0.0, %v5473
        %v5475 = vpop.f32.mrf.mxu0
        %v5476 = vadd.f32 0.0, %v5475
        %5477 = vdwg.mxu0
        %5478 = vmatpush.bf16.msra.mxu0 %v5298
        %5479 = vmatpush.bf16.msra.mxu0 %v5296
        %5480 = vmatpush.bf16.msra.mxu0 %v5294
        %5481 = vmatpush.bf16.msra.mxu0 %v5292
        %5482 = vmatpush.bf16.msra.mxu0 %v5290
        %5483 = vmatpush.bf16.msra.mxu0 %v5288
        %5484 = vmatpush.bf16.msra.mxu0 %v5286
        %5485 = vmatpush.bf16.msra.mxu0 %v5284
        %5486 = vmatmul.bf16.gmra.mxu0 %v5123
        %v5487 = vpop.f32.mrf.mxu0
        %v5488 = vadd.f32 %v5439, %v5487
        %v5489 = vpop.f32.mrf.mxu0
        %v5490 = vadd.f32 %v5441, %v5489
        %5491 = vmatmul.bf16.gmra.mxu0 %v5125
        %v5492 = vpop.f32.mrf.mxu0
        %v5493 = vadd.f32 %v5444, %v5492
        %v5494 = vpop.f32.mrf.mxu0
        %v5495 = vadd.f32 %v5446, %v5494
        %5496 = vmatmul.bf16.gmra.mxu0 %v5127
        %v5497 = vpop.f32.mrf.mxu0
        %v5498 = vadd.f32 %v5449, %v5497
        %v5499 = vpop.f32.mrf.mxu0
        %v5500 = vadd.f32 %v5451, %v5499
        %5501 = vmatmul.bf16.gmra.mxu0 %v5129
        %v5502 = vpop.f32.mrf.mxu0
        %v5503 = vadd.f32 %v5454, %v5502
        %v5504 = vpop.f32.mrf.mxu0
        %v5505 = vadd.f32 %v5456, %v5504
        %5506 = vmatmul.bf16.gmra.mxu0 %v5131
        %v5507 = vpop.f32.mrf.mxu0
        %v5508 = vadd.f32 %v5459, %v5507
        %v5509 = vpop.f32.mrf.mxu0
        %v5510 = vadd.f32 %v5461, %v5509
        %5511 = vmatmul.bf16.gmra.mxu0 %v5133
        %v5512 = vpop.f32.mrf.mxu0
        %v5513 = vadd.f32 %v5464, %v5512
        %v5514 = vpop.f32.mrf.mxu0
        %v5515 = vadd.f32 %v5466, %v5514
        %5516 = vmatmul.bf16.gmra.mxu0 %v5135
        %v5517 = vpop.f32.mrf.mxu0
        %v5518 = vadd.f32 %v5469, %v5517
        %v5519 = vpop.f32.mrf.mxu0
        %v5520 = vadd.f32 %v5471, %v5519
        %5521 = vmatmul.bf16.gmra.mxu0 %v5137
        %v5522 = vpop.f32.mrf.mxu0
        %v5523 = vadd.f32 %v5474, %v5522
        %v5524 = vpop.f32.mrf.mxu0
        %v5525 = vadd.f32 %v5476, %v5524
        %5526 = vdwg.mxu0
        %v5527 = vadd.f32 %v3214, %v5390
        %v5528 = vadd.f32 %v3312, %v5488
        %v5529 = vadd.f32 %v3216, %v5392
        %v5530 = vadd.f32 %v3314, %v5490
        %v5531 = vadd.f32 %v3219, %v5395
        %v5532 = vadd.f32 %v3317, %v5493
        %v5533 = vadd.f32 %v3221, %v5397
        %v5534 = vadd.f32 %v3319, %v5495
        %v5535 = vadd.f32 %v3224, %v5400
        %v5536 = vadd.f32 %v3322, %v5498
        %v5537 = vadd.f32 %v3226, %v5402
        %v5538 = vadd.f32 %v3324, %v5500
        %v5539 = vadd.f32 %v3229, %v5405
        %v5540 = vadd.f32 %v3327, %v5503
        %v5541 = vadd.f32 %v3231, %v5407
        %v5542 = vadd.f32 %v3329, %v5505
        %v5543 = vadd.f32 %v3234, %v5410
        %v5544 = vadd.f32 %v3332, %v5508
        %v5545 = vadd.f32 %v3236, %v5412
        %v5546 = vadd.f32 %v3334, %v5510
        %v5547 = vadd.f32 %v3239, %v5415
        %v5548 = vadd.f32 %v3337, %v5513
        %v5549 = vadd.f32 %v3241, %v5417
        %v5550 = vadd.f32 %v3339, %v5515
        %v5551 = vadd.f32 %v3244, %v5420
        %v5552 = vadd.f32 %v3342, %v5518
        %v5553 = vadd.f32 %v3246, %v5422
        %v5554 = vadd.f32 %v3344, %v5520
        %v5555 = vadd.f32 %v3249, %v5425
        %v5556 = vadd.f32 %v3347, %v5523
        %v5557 = vadd.f32 %v3251, %v5427
        %v5558 = vadd.f32 %v3349, %v5525
        %v5559 = vld [vmem:[%s8] sm:$0xf]
        %v5561 = vshrl.u32 %v449, 16
        %v5563 = vrot.slane %v5561, 5
        %v5564 = vshll.u32 %v449, 16
        %v5566 = vrot.slane %v5564, 6
        %v5567 = vor.u32 %v5563, %v5566
        %v5568 = vrot.slane %v5567, 4
        %v5570 = vshrl.u32 %v450, 16
        %v5572 = vrot.slane %v5570, 5
        %v5573 = vshll.u32 %v450, 16
        %v5575 = vrot.slane %v5573, 6
        %v5576 = vor.u32 %v5572, %v5575
        %v5577 = vsel %vm493, %v5568, %v5576
        %v5578 = vrot.slane %v5576, 4
        %v5580 = vshrl.u32 %v451, 16
        %v5582 = vrot.slane %v5580, 5
        %v5583 = vshll.u32 %v451, 16
        %v5585 = vrot.slane %v5583, 6
        %v5586 = vor.u32 %v5582, %v5585
        %v5587 = vsel %vm493, %v5578, %v5586
        %s5588 = scalar_lea.vmem %s8, 4
        %v5589 = vld [vmem:[%s5588] sm:$0xf]
        %v5590 = vunpack.c.l.b16 %v5577
        %v5591 = vunpack.c.l.b16 %v5587
        %v5592 = vpack.c.b16 %v5591, %v5590
        %5594 = vst [vmem:[#allocation1] ss:$4 sm:$0xff] %v5589
        %v5595 = vld.sshfl [vmem:[#allocation1] sm:$0xff pattern:$0x73625140]
        %v5596 = vld.sshfl [vmem:[#allocation1 + $0x8] sm:$0xff pattern:$0x73625140]
        %v5598 = vsel %vm753, %v5592, 0
        %v5600 = vsel %vm778, %v5595, 0
        %v5602 = vsel %vm778, %v5596, 0
        %5604 = vmatpush.bf16.msra.mxu0 0
        %5605 = vmatpush.bf16.msra.mxu0 0
        %5606 = vmatpush.bf16.msra.mxu0 0
        %5607 = vmatpush.bf16.msra.mxu0 0
        %5608 = vmatpush.bf16.msra.mxu0 0
        %5609 = vmatpush.bf16.msra.mxu0 0
        %5610 = vmatpush.bf16.msra.mxu0 0
        %5611 = vmatpush.bf16.msra.mxu0 %v5600
        %5612 = vmatmul.bf16.gmra.mxu0 %v5598
        %v5613 = vpop.f32.mrf.mxu0
        %v5614 = vadd.f32 0.0, %v5613
        %v5615 = vpop.f32.mrf.mxu0
        %v5616 = vadd.f32 0.0, %v5615
        %5617 = vmatmul.bf16.gmra.mxu0 %v3481
        %v5618 = vpop.f32.mrf.mxu0
        %v5619 = vadd.f32 0.0, %v5618
        %v5620 = vpop.f32.mrf.mxu0
        %v5621 = vadd.f32 0.0, %v5620
        %5622 = vmatmul.bf16.gmra.mxu0 %v1083
        %v5623 = vpop.f32.mrf.mxu0
        %v5624 = vadd.f32 0.0, %v5623
        %v5625 = vpop.f32.mrf.mxu0
        %v5626 = vadd.f32 0.0, %v5625
        %5627 = vmatmul.bf16.gmra.mxu0 %v755
        %v5628 = vpop.f32.mrf.mxu0
        %v5629 = vadd.f32 0.0, %v5628
        %v5630 = vpop.f32.mrf.mxu0
        %v5631 = vadd.f32 0.0, %v5630
        %5632 = vmatmul.bf16.gmra.mxu0 %v758
        %v5633 = vpop.f32.mrf.mxu0
        %v5634 = vadd.f32 0.0, %v5633
        %v5635 = vpop.f32.mrf.mxu0
        %v5636 = vadd.f32 0.0, %v5635
        %5637 = vmatmul.bf16.gmra.mxu0 %v761
        %v5638 = vpop.f32.mrf.mxu0
        %v5639 = vadd.f32 0.0, %v5638
        %v5640 = vpop.f32.mrf.mxu0
        %v5641 = vadd.f32 0.0, %v5640
        %5642 = vmatmul.bf16.gmra.mxu0 %v764
        %v5643 = vpop.f32.mrf.mxu0
        %v5644 = vadd.f32 0.0, %v5643
        %v5645 = vpop.f32.mrf.mxu0
        %v5646 = vadd.f32 0.0, %v5645
        %5647 = vmatmul.bf16.gmra.mxu0 %v767
        %v5648 = vpop.f32.mrf.mxu0
        %v5649 = vadd.f32 0.0, %v5648
        %v5650 = vpop.f32.mrf.mxu0
        %v5651 = vadd.f32 0.0, %v5650
        %5652 = vdwg.mxu0
        %5653 = vmatpush.bf16.msra.mxu0 0
        %5654 = vmatpush.bf16.msra.mxu0 0
        %5655 = vmatpush.bf16.msra.mxu0 0
        %5656 = vmatpush.bf16.msra.mxu0 0
        %5657 = vmatpush.bf16.msra.mxu0 0
        %5658 = vmatpush.bf16.msra.mxu0 0
        %5659 = vmatpush.bf16.msra.mxu0 0
        %5660 = vmatpush.bf16.msra.mxu0 %v5602
        %5661 = vmatmul.bf16.gmra.mxu0 %v5598
        %v5662 = vpop.f32.mrf.mxu0
        %v5663 = vadd.f32 0.0, %v5662
        %v5664 = vpop.f32.mrf.mxu0
        %v5665 = vadd.f32 0.0, %v5664
        %5666 = vmatmul.bf16.gmra.mxu0 %v3481
        %v5667 = vpop.f32.mrf.mxu0
        %v5668 = vadd.f32 0.0, %v5667
        %v5669 = vpop.f32.mrf.mxu0
        %v5670 = vadd.f32 0.0, %v5669
        %5671 = vmatmul.bf16.gmra.mxu0 %v1083
        %v5672 = vpop.f32.mrf.mxu0
        %v5673 = vadd.f32 0.0, %v5672
        %v5674 = vpop.f32.mrf.mxu0
        %v5675 = vadd.f32 0.0, %v5674
        %5676 = vmatmul.bf16.gmra.mxu0 %v755
        %v5677 = vpop.f32.mrf.mxu0
        %v5678 = vadd.f32 0.0, %v5677
        %v5679 = vpop.f32.mrf.mxu0
        %v5680 = vadd.f32 0.0, %v5679
        %5681 = vmatmul.bf16.gmra.mxu0 %v758
        %v5682 = vpop.f32.mrf.mxu0
        %v5683 = vadd.f32 0.0, %v5682
        %v5684 = vpop.f32.mrf.mxu0
        %v5685 = vadd.f32 0.0, %v5684
        %5686 = vmatmul.bf16.gmra.mxu0 %v761
        %v5687 = vpop.f32.mrf.mxu0
        %v5688 = vadd.f32 0.0, %v5687
        %v5689 = vpop.f32.mrf.mxu0
        %v5690 = vadd.f32 0.0, %v5689
        %5691 = vmatmul.bf16.gmra.mxu0 %v764
        %v5692 = vpop.f32.mrf.mxu0
        %v5693 = vadd.f32 0.0, %v5692
        %v5694 = vpop.f32.mrf.mxu0
        %v5695 = vadd.f32 0.0, %v5694
        %5696 = vmatmul.bf16.gmra.mxu0 %v767
        %v5697 = vpop.f32.mrf.mxu0
        %v5698 = vadd.f32 0.0, %v5697
        %v5699 = vpop.f32.mrf.mxu0
        %v5700 = vadd.f32 0.0, %v5699
        %5701 = vdwg.mxu0
        %v5706 = vunpack.c.l.b16 %v449
        %v5707 = vunpack.c.l.b16 %v450
        %v5708 = vunpack.c.l.b16 %v452
        %v5709 = vunpack.c.l.b16 %v453
        %v5710 = vunpack.c.l.b16 %v455
        %v5711 = vunpack.c.l.b16 %v456
        %v5712 = vunpack.c.l.b16 %v458
        %v5713 = vunpack.c.l.b16 %v459
        %v5714 = vunpack.c.l.b16 %v461
        %v5715 = vunpack.c.l.b16 %v462
        %v5716 = vunpack.c.l.b16 %v464
        %v5717 = vunpack.c.l.b16 %v465
        %v5718 = vunpack.c.l.b16 %v467
        %v5719 = vunpack.c.l.b16 %v468
        %v5720 = vunpack.c.l.b16 %v470
        %v5721 = vunpack.c.l.b16 %v471
        %v5722 = vpack.c.b16 %v5707, %v5706
        %v5723 = vpack.c.b16 %v5709, %v5708
        %v5724 = vpack.c.b16 %v5711, %v5710
        %v5725 = vpack.c.b16 %v5713, %v5712
        %v5726 = vpack.c.b16 %v5715, %v5714
        %v5727 = vpack.c.b16 %v5717, %v5716
        %v5728 = vpack.c.b16 %v5719, %v5718
        %v5729 = vpack.c.b16 %v5721, %v5720
        %5731 = vst [vmem:[#allocation1] ss:$4 sm:$0xff] %v5559
        %v5732 = vld.sshfl [vmem:[#allocation1] sm:$0xff pattern:$0x73625140]
        %v5733 = vld.sshfl [vmem:[#allocation1 + $0x8] sm:$0xff pattern:$0x73625140]
        %v5735 = vsel %vm753, %v5722, 0
        %v5738 = vsel %vm753, %v5723, 0
        %v5741 = vsel %vm753, %v5724, 0
        %v5744 = vsel %vm753, %v5725, 0
        %v5747 = vsel %vm753, %v5726, 0
        %v5750 = vsel %vm753, %v5727, 0
        %v5753 = vsel %vm753, %v5728, 0
        %v5756 = vsel %vm753, %v5729, 0
        %v5758 = vsel %vm778, %v5732, 0
        %v5760 = vsel %vm778, %v5733, 0
        %5762 = vmatpush.bf16.msra.mxu0 0
        %5763 = vmatpush.bf16.msra.mxu0 0
        %5764 = vmatpush.bf16.msra.mxu0 0
        %5765 = vmatpush.bf16.msra.mxu0 0
        %5766 = vmatpush.bf16.msra.mxu0 0
        %5767 = vmatpush.bf16.msra.mxu0 0
        %5768 = vmatpush.bf16.msra.mxu0 0
        %5769 = vmatpush.bf16.msra.mxu0 %v5758
        %5770 = vmatmul.bf16.gmra.mxu0 %v5735
        %v5771 = vpop.f32.mrf.mxu0
        %v5772 = vadd.f32 %v5614, %v5771
        %v5773 = vpop.f32.mrf.mxu0
        %v5774 = vadd.f32 %v5616, %v5773
        %5775 = vmatmul.bf16.gmra.mxu0 %v5738
        %v5776 = vpop.f32.mrf.mxu0
        %v5777 = vadd.f32 %v5619, %v5776
        %v5778 = vpop.f32.mrf.mxu0
        %v5779 = vadd.f32 %v5621, %v5778
        %5780 = vmatmul.bf16.gmra.mxu0 %v5741
        %v5781 = vpop.f32.mrf.mxu0
        %v5782 = vadd.f32 %v5624, %v5781
        %v5783 = vpop.f32.mrf.mxu0
        %v5784 = vadd.f32 %v5626, %v5783
        %5785 = vmatmul.bf16.gmra.mxu0 %v5744
        %v5786 = vpop.f32.mrf.mxu0
        %v5787 = vadd.f32 %v5629, %v5786
        %v5788 = vpop.f32.mrf.mxu0
        %v5789 = vadd.f32 %v5631, %v5788
        %5790 = vmatmul.bf16.gmra.mxu0 %v5747
        %v5791 = vpop.f32.mrf.mxu0
        %v5792 = vadd.f32 %v5634, %v5791
        %v5793 = vpop.f32.mrf.mxu0
        %v5794 = vadd.f32 %v5636, %v5793
        %5795 = vmatmul.bf16.gmra.mxu0 %v5750
        %v5796 = vpop.f32.mrf.mxu0
        %v5797 = vadd.f32 %v5639, %v5796
        %v5798 = vpop.f32.mrf.mxu0
        %v5799 = vadd.f32 %v5641, %v5798
        %5800 = vmatmul.bf16.gmra.mxu0 %v5753
        %v5801 = vpop.f32.mrf.mxu0
        %v5802 = vadd.f32 %v5644, %v5801
        %v5803 = vpop.f32.mrf.mxu0
        %v5804 = vadd.f32 %v5646, %v5803
        %5805 = vmatmul.bf16.gmra.mxu0 %v5756
        %v5806 = vpop.f32.mrf.mxu0
        %v5807 = vadd.f32 %v5649, %v5806
        %v5808 = vpop.f32.mrf.mxu0
        %v5809 = vadd.f32 %v5651, %v5808
        %5810 = vdwg.mxu0
        %5811 = vmatpush.bf16.msra.mxu0 0
        %5812 = vmatpush.bf16.msra.mxu0 0
        %5813 = vmatpush.bf16.msra.mxu0 0
        %5814 = vmatpush.bf16.msra.mxu0 0
        %5815 = vmatpush.bf16.msra.mxu0 0
        %5816 = vmatpush.bf16.msra.mxu0 0
        %5817 = vmatpush.bf16.msra.mxu0 0
        %5818 = vmatpush.bf16.msra.mxu0 %v5760
        %5819 = vmatmul.bf16.gmra.mxu0 %v5735
        %v5820 = vpop.f32.mrf.mxu0
        %v5821 = vadd.f32 %v5663, %v5820
        %v5822 = vpop.f32.mrf.mxu0
        %v5823 = vadd.f32 %v5665, %v5822
        %5824 = vmatmul.bf16.gmra.mxu0 %v5738
        %v5825 = vpop.f32.mrf.mxu0
        %v5826 = vadd.f32 %v5668, %v5825
        %v5827 = vpop.f32.mrf.mxu0
        %v5828 = vadd.f32 %v5670, %v5827
        %5829 = vmatmul.bf16.gmra.mxu0 %v5741
        %v5830 = vpop.f32.mrf.mxu0
        %v5831 = vadd.f32 %v5673, %v5830
        %v5832 = vpop.f32.mrf.mxu0
        %v5833 = vadd.f32 %v5675, %v5832
        %5834 = vmatmul.bf16.gmra.mxu0 %v5744
        %v5835 = vpop.f32.mrf.mxu0
        %v5836 = vadd.f32 %v5678, %v5835
        %v5837 = vpop.f32.mrf.mxu0
        %v5838 = vadd.f32 %v5680, %v5837
        %5839 = vmatmul.bf16.gmra.mxu0 %v5747
        %v5840 = vpop.f32.mrf.mxu0
        %v5841 = vadd.f32 %v5683, %v5840
        %v5842 = vpop.f32.mrf.mxu0
        %v5843 = vadd.f32 %v5685, %v5842
        %5844 = vmatmul.bf16.gmra.mxu0 %v5750
        %v5845 = vpop.f32.mrf.mxu0
        %v5846 = vadd.f32 %v5688, %v5845
        %v5847 = vpop.f32.mrf.mxu0
        %v5848 = vadd.f32 %v5690, %v5847
        %5849 = vmatmul.bf16.gmra.mxu0 %v5753
        %v5850 = vpop.f32.mrf.mxu0
        %v5851 = vadd.f32 %v5693, %v5850
        %v5852 = vpop.f32.mrf.mxu0
        %v5853 = vadd.f32 %v5695, %v5852
        %5854 = vmatmul.bf16.gmra.mxu0 %v5756
        %v5855 = vpop.f32.mrf.mxu0
        %v5856 = vadd.f32 %v5698, %v5855
        %v5857 = vpop.f32.mrf.mxu0
        %v5858 = vadd.f32 %v5700, %v5857
        %5859 = vdwg.mxu0
        %vm5862 = vcmask 1040384
        %vm5863 = vcmask 1044484
        %vm5864 = vmor %vm5862, %vm5863
        %v5865 = vrot.slane %v449, 7
        %v5866 = vrot.slane %v5865, 4
        %v5867 = vrot.slane %v450, 7
        %v5868 = vsel %vm5864, %v5866, %v5867
        %v5869 = vrot.slane %v5867, 4
        %v5870 = vrot.slane %v451, 7
        %v5871 = vsel %vm5864, %v5869, %v5870
        %v5872 = vrot.slane %v452, 7
        %v5873 = vrot.slane %v5872, 4
        %v5874 = vrot.slane %v453, 7
        %v5875 = vsel %vm5864, %v5873, %v5874
        %v5876 = vrot.slane %v5874, 4
        %v5877 = vrot.slane %v454, 7
        %v5878 = vsel %vm5864, %v5876, %v5877
        %v5879 = vrot.slane %v455, 7
        %v5880 = vrot.slane %v5879, 4
        %v5881 = vrot.slane %v456, 7
        %v5882 = vsel %vm5864, %v5880, %v5881
        %v5883 = vrot.slane %v5881, 4
        %v5884 = vrot.slane %v457, 7
        %v5885 = vsel %vm5864, %v5883, %v5884
        %v5886 = vrot.slane %v458, 7
        %v5887 = vrot.slane %v5886, 4
        %v5888 = vrot.slane %v459, 7
        %v5889 = vsel %vm5864, %v5887, %v5888
        %v5890 = vrot.slane %v5888, 4
        %v5891 = vrot.slane %v460, 7
        %v5892 = vsel %vm5864, %v5890, %v5891
        %v5893 = vrot.slane %v461, 7
        %v5894 = vrot.slane %v5893, 4
        %v5895 = vrot.slane %v462, 7
        %v5896 = vsel %vm5864, %v5894, %v5895
        %v5897 = vrot.slane %v5895, 4
        %v5898 = vrot.slane %v463, 7
        %v5899 = vsel %vm5864, %v5897, %v5898
        %v5900 = vrot.slane %v464, 7
        %v5901 = vrot.slane %v5900, 4
        %v5902 = vrot.slane %v465, 7
        %v5903 = vsel %vm5864, %v5901, %v5902
        %v5904 = vrot.slane %v5902, 4
        %v5905 = vrot.slane %v466, 7
        %v5906 = vsel %vm5864, %v5904, %v5905
        %v5907 = vrot.slane %v467, 7
        %v5908 = vrot.slane %v5907, 4
        %v5909 = vrot.slane %v468, 7
        %v5910 = vsel %vm5864, %v5908, %v5909
        %v5911 = vrot.slane %v5909, 4
        %v5912 = vrot.slane %v469, 7
        %v5913 = vsel %vm5864, %v5911, %v5912
        %v5914 = vrot.slane %v470, 7
        %v5915 = vrot.slane %v5914, 4
        %v5916 = vrot.slane %v471, 7
        %v5917 = vsel %vm5864, %v5915, %v5916
        %v5918 = vrot.slane %v5916, 4
        %v5919 = vrot.slane %v472, 7
        %v5920 = vsel %vm5864, %v5918, %v5919
        %s5921 = scalar_lea.vmem %s8, 8
        %v5922 = vld [vmem:[%s5921] sm:$0xf]
        %v5923 = vunpack.c.l.b16 %v5868
        %v5924 = vunpack.c.l.b16 %v5871
        %v5925 = vunpack.c.l.b16 %v5875
        %v5926 = vunpack.c.l.b16 %v5878
        %v5927 = vunpack.c.l.b16 %v5882
        %v5928 = vunpack.c.l.b16 %v5885
        %v5929 = vunpack.c.l.b16 %v5889
        %v5930 = vunpack.c.l.b16 %v5892
        %v5931 = vunpack.c.l.b16 %v5896
        %v5932 = vunpack.c.l.b16 %v5899
        %v5933 = vunpack.c.l.b16 %v5903
        %v5934 = vunpack.c.l.b16 %v5906
        %v5935 = vunpack.c.l.b16 %v5910
        %v5936 = vunpack.c.l.b16 %v5913
        %v5937 = vunpack.c.l.b16 %v5917
        %v5938 = vunpack.c.l.b16 %v5920
        %v5939 = vpack.c.b16 %v5924, %v5923
        %v5940 = vpack.c.b16 %v5926, %v5925
        %v5941 = vpack.c.b16 %v5928, %v5927
        %v5942 = vpack.c.b16 %v5930, %v5929
        %v5943 = vpack.c.b16 %v5932, %v5931
        %v5944 = vpack.c.b16 %v5934, %v5933
        %v5945 = vpack.c.b16 %v5936, %v5935
        %v5946 = vpack.c.b16 %v5938, %v5937
        %5948 = vst [vmem:[#allocation1] ss:$4 sm:$0xff] %v5922
        %v5949 = vld.sshfl [vmem:[#allocation1] sm:$0xff pattern:$0x73625140]
        %v5950 = vld.sshfl [vmem:[#allocation1 + $0x8] sm:$0xff pattern:$0x73625140]
        %v5952 = vsel %vm753, %v5939, 0
        %v5955 = vsel %vm753, %v5940, 0
        %v5958 = vsel %vm753, %v5941, 0
        %v5961 = vsel %vm753, %v5942, 0
        %v5964 = vsel %vm753, %v5943, 0
        %v5967 = vsel %vm753, %v5944, 0
        %v5970 = vsel %vm753, %v5945, 0
        %v5973 = vsel %vm753, %v5946, 0
        %v5975 = vsel %vm778, %v5949, 0
        %v5977 = vsel %vm778, %v5950, 0
        %5979 = vmatpush.bf16.msra.mxu0 0
        %5980 = vmatpush.bf16.msra.mxu0 0
        %5981 = vmatpush.bf16.msra.mxu0 0
        %5982 = vmatpush.bf16.msra.mxu0 0
        %5983 = vmatpush.bf16.msra.mxu0 0
        %5984 = vmatpush.bf16.msra.mxu0 0
        %5985 = vmatpush.bf16.msra.mxu0 0
        %5986 = vmatpush.bf16.msra.mxu0 %v5975
        %5987 = vmatmul.bf16.gmra.mxu0 %v5952
        %v5988 = vpop.f32.mrf.mxu0
        %v5989 = vadd.f32 0.0, %v5988
        %v5990 = vpop.f32.mrf.mxu0
        %v5991 = vadd.f32 0.0, %v5990
        %5992 = vmatmul.bf16.gmra.mxu0 %v5955
        %v5993 = vpop.f32.mrf.mxu0
        %v5994 = vadd.f32 0.0, %v5993
        %v5995 = vpop.f32.mrf.mxu0
        %v5996 = vadd.f32 0.0, %v5995
        %5997 = vmatmul.bf16.gmra.mxu0 %v5958
        %v5998 = vpop.f32.mrf.mxu0
        %v5999 = vadd.f32 0.0, %v5998
        %v6000 = vpop.f32.mrf.mxu0
        %v6001 = vadd.f32 0.0, %v6000
        %6002 = vmatmul.bf16.gmra.mxu0 %v5961
        %v6003 = vpop.f32.mrf.mxu0
        %v6004 = vadd.f32 0.0, %v6003
        %v6005 = vpop.f32.mrf.mxu0
        %v6006 = vadd.f32 0.0, %v6005
        %6007 = vmatmul.bf16.gmra.mxu0 %v5964
        %v6008 = vpop.f32.mrf.mxu0
        %v6009 = vadd.f32 0.0, %v6008
        %v6010 = vpop.f32.mrf.mxu0
        %v6011 = vadd.f32 0.0, %v6010
        %6012 = vmatmul.bf16.gmra.mxu0 %v5967
        %v6013 = vpop.f32.mrf.mxu0
        %v6014 = vadd.f32 0.0, %v6013
        %v6015 = vpop.f32.mrf.mxu0
        %v6016 = vadd.f32 0.0, %v6015
        %6017 = vmatmul.bf16.gmra.mxu0 %v5970
        %v6018 = vpop.f32.mrf.mxu0
        %v6019 = vadd.f32 0.0, %v6018
        %v6020 = vpop.f32.mrf.mxu0
        %v6021 = vadd.f32 0.0, %v6020
        %6022 = vmatmul.bf16.gmra.mxu0 %v5973
        %v6023 = vpop.f32.mrf.mxu0
        %v6024 = vadd.f32 0.0, %v6023
        %v6025 = vpop.f32.mrf.mxu0
        %v6026 = vadd.f32 0.0, %v6025
        %6027 = vdwg.mxu0
        %6028 = vmatpush.bf16.msra.mxu0 0
        %6029 = vmatpush.bf16.msra.mxu0 0
        %6030 = vmatpush.bf16.msra.mxu0 0
        %6031 = vmatpush.bf16.msra.mxu0 0
        %6032 = vmatpush.bf16.msra.mxu0 0
        %6033 = vmatpush.bf16.msra.mxu0 0
        %6034 = vmatpush.bf16.msra.mxu0 0
        %6035 = vmatpush.bf16.msra.mxu0 %v5977
        %6036 = vmatmul.bf16.gmra.mxu0 %v5952
        %v6037 = vpop.f32.mrf.mxu0
        %v6038 = vadd.f32 0.0, %v6037
        %v6039 = vpop.f32.mrf.mxu0
        %v6040 = vadd.f32 0.0, %v6039
        %6041 = vmatmul.bf16.gmra.mxu0 %v5955
        %v6042 = vpop.f32.mrf.mxu0
        %v6043 = vadd.f32 0.0, %v6042
        %v6044 = vpop.f32.mrf.mxu0
        %v6045 = vadd.f32 0.0, %v6044
        %6046 = vmatmul.bf16.gmra.mxu0 %v5958
        %v6047 = vpop.f32.mrf.mxu0
        %v6048 = vadd.f32 0.0, %v6047
        %v6049 = vpop.f32.mrf.mxu0
        %v6050 = vadd.f32 0.0, %v6049
        %6051 = vmatmul.bf16.gmra.mxu0 %v5961
        %v6052 = vpop.f32.mrf.mxu0
        %v6053 = vadd.f32 0.0, %v6052
        %v6054 = vpop.f32.mrf.mxu0
        %v6055 = vadd.f32 0.0, %v6054
        %6056 = vmatmul.bf16.gmra.mxu0 %v5964
        %v6057 = vpop.f32.mrf.mxu0
        %v6058 = vadd.f32 0.0, %v6057
        %v6059 = vpop.f32.mrf.mxu0
        %v6060 = vadd.f32 0.0, %v6059
        %6061 = vmatmul.bf16.gmra.mxu0 %v5967
        %v6062 = vpop.f32.mrf.mxu0
        %v6063 = vadd.f32 0.0, %v6062
        %v6064 = vpop.f32.mrf.mxu0
        %v6065 = vadd.f32 0.0, %v6064
        %6066 = vmatmul.bf16.gmra.mxu0 %v5970
        %v6067 = vpop.f32.mrf.mxu0
        %v6068 = vadd.f32 0.0, %v6067
        %v6069 = vpop.f32.mrf.mxu0
        %v6070 = vadd.f32 0.0, %v6069
        %6071 = vmatmul.bf16.gmra.mxu0 %v5973
        %v6072 = vpop.f32.mrf.mxu0
        %v6073 = vadd.f32 0.0, %v6072
        %v6074 = vpop.f32.mrf.mxu0
        %v6075 = vadd.f32 0.0, %v6074
        %6076 = vdwg.mxu0
        %v6077 = vadd.f32 %v5772, %v5989
        %v6078 = vadd.f32 %v5821, %v6038
        %v6079 = vadd.f32 %v5774, %v5991
        %v6080 = vadd.f32 %v5823, %v6040
        %v6081 = vadd.f32 %v5777, %v5994
        %v6082 = vadd.f32 %v5826, %v6043
        %v6083 = vadd.f32 %v5779, %v5996
        %v6084 = vadd.f32 %v5828, %v6045
        %v6085 = vadd.f32 %v5782, %v5999
        %v6086 = vadd.f32 %v5831, %v6048
        %v6087 = vadd.f32 %v5784, %v6001
        %v6088 = vadd.f32 %v5833, %v6050
        %v6089 = vadd.f32 %v5787, %v6004
        %v6090 = vadd.f32 %v5836, %v6053
        %v6091 = vadd.f32 %v5789, %v6006
        %v6092 = vadd.f32 %v5838, %v6055
        %v6093 = vadd.f32 %v5792, %v6009
        %v6094 = vadd.f32 %v5841, %v6058
        %v6095 = vadd.f32 %v5794, %v6011
        %v6096 = vadd.f32 %v5843, %v6060
        %v6097 = vadd.f32 %v5797, %v6014
        %v6098 = vadd.f32 %v5846, %v6063
        %v6099 = vadd.f32 %v5799, %v6016
        %v6100 = vadd.f32 %v5848, %v6065
        %v6101 = vadd.f32 %v5802, %v6019
        %v6102 = vadd.f32 %v5851, %v6068
        %v6103 = vadd.f32 %v5804, %v6021
        %v6104 = vadd.f32 %v5853, %v6070
        %v6105 = vadd.f32 %v5807, %v6024
        %v6106 = vadd.f32 %v5856, %v6073
        %v6107 = vadd.f32 %v5809, %v6026
        %v6108 = vadd.f32 %v5858, %v6075
        %s6109 = scalar_lea.vmem %s8, 12
        %v6110 = vld [vmem:[%s6109] sm:$0xf]
        %v6111 = vunpack.c.l.b16 %v473
        %v6112 = vunpack.c.l.b16 %v474
        %v6113 = vunpack.c.l.b16 %v476
        %v6114 = vunpack.c.l.b16 %v477
        %v6115 = vunpack.c.l.b16 %v479
        %v6116 = vunpack.c.l.b16 %v480
        %v6117 = vpack.c.b16 %v6112, %v6111
        %v6118 = vpack.c.b16 %v6114, %v6113
        %v6119 = vpack.c.b16 %v6116, %v6115
        %6121 = vst [vmem:[#allocation1] ss:$4 sm:$0xff] %v6110
        %v6122 = vld.sshfl [vmem:[#allocation1] sm:$0xff pattern:$0x73625140]
        %v6123 = vld.sshfl [vmem:[#allocation1 + $0x8] sm:$0xff pattern:$0x73625140]
        %v6125 = vsel %vm753, %v6117, 0
        %v6128 = vsel %vm753, %v6118, 0
        %v6131 = vsel %vm753, %v6119, 0
        %v6133 = vsel %vm778, %v6122, 0
        %v6135 = vsel %vm778, %v6123, 0
        %6137 = vmatpush.bf16.msra.mxu0 0
        %6138 = vmatpush.bf16.msra.mxu0 0
        %6139 = vmatpush.bf16.msra.mxu0 0
        %6140 = vmatpush.bf16.msra.mxu0 0
        %6141 = vmatpush.bf16.msra.mxu0 0
        %6142 = vmatpush.bf16.msra.mxu0 0
        %6143 = vmatpush.bf16.msra.mxu0 0
        %6144 = vmatpush.bf16.msra.mxu0 %v6133
        %6145 = vmatmul.bf16.gmra.mxu0 %v5744
        %v6146 = vpop.f32.mrf.mxu0
        %v6147 = vadd.f32 0.0, %v6146
        %v6148 = vpop.f32.mrf.mxu0
        %v6149 = vadd.f32 0.0, %v6148
        %6150 = vmatmul.bf16.gmra.mxu0 %v5747
        %v6151 = vpop.f32.mrf.mxu0
        %v6152 = vadd.f32 0.0, %v6151
        %v6153 = vpop.f32.mrf.mxu0
        %v6154 = vadd.f32 0.0, %v6153
        %6155 = vmatmul.bf16.gmra.mxu0 %v5750
        %v6156 = vpop.f32.mrf.mxu0
        %v6157 = vadd.f32 0.0, %v6156
        %v6158 = vpop.f32.mrf.mxu0
        %v6159 = vadd.f32 0.0, %v6158
        %6160 = vmatmul.bf16.gmra.mxu0 %v5753
        %v6161 = vpop.f32.mrf.mxu0
        %v6162 = vadd.f32 0.0, %v6161
        %v6163 = vpop.f32.mrf.mxu0
        %v6164 = vadd.f32 0.0, %v6163
        %6165 = vmatmul.bf16.gmra.mxu0 %v5756
        %v6166 = vpop.f32.mrf.mxu0
        %v6167 = vadd.f32 0.0, %v6166
        %v6168 = vpop.f32.mrf.mxu0
        %v6169 = vadd.f32 0.0, %v6168
        %6170 = vmatmul.bf16.gmra.mxu0 %v6125
        %v6171 = vpop.f32.mrf.mxu0
        %v6172 = vadd.f32 0.0, %v6171
        %v6173 = vpop.f32.mrf.mxu0
        %v6174 = vadd.f32 0.0, %v6173
        %6175 = vmatmul.bf16.gmra.mxu0 %v6128
        %v6176 = vpop.f32.mrf.mxu0
        %v6177 = vadd.f32 0.0, %v6176
        %v6178 = vpop.f32.mrf.mxu0
        %v6179 = vadd.f32 0.0, %v6178
        %6180 = vmatmul.bf16.gmra.mxu0 %v6131
        %v6181 = vpop.f32.mrf.mxu0
        %v6182 = vadd.f32 0.0, %v6181
        %v6183 = vpop.f32.mrf.mxu0
        %v6184 = vadd.f32 0.0, %v6183
        %6185 = vdwg.mxu0
        %6186 = vmatpush.bf16.msra.mxu0 0
        %6187 = vmatpush.bf16.msra.mxu0 0
        %6188 = vmatpush.bf16.msra.mxu0 0
        %6189 = vmatpush.bf16.msra.mxu0 0
        %6190 = vmatpush.bf16.msra.mxu0 0
        %6191 = vmatpush.bf16.msra.mxu0 0
        %6192 = vmatpush.bf16.msra.mxu0 0
        %6193 = vmatpush.bf16.msra.mxu0 %v6135
        %6194 = vmatmul.bf16.gmra.mxu0 %v5744
        %v6195 = vpop.f32.mrf.mxu0
        %v6196 = vadd.f32 0.0, %v6195
        %v6197 = vpop.f32.mrf.mxu0
        %v6198 = vadd.f32 0.0, %v6197
        %6199 = vmatmul.bf16.gmra.mxu0 %v5747
        %v6200 = vpop.f32.mrf.mxu0
        %v6201 = vadd.f32 0.0, %v6200
        %v6202 = vpop.f32.mrf.mxu0
        %v6203 = vadd.f32 0.0, %v6202
        %6204 = vmatmul.bf16.gmra.mxu0 %v5750
        %v6205 = vpop.f32.mrf.mxu0
        %v6206 = vadd.f32 0.0, %v6205
        %v6207 = vpop.f32.mrf.mxu0
        %v6208 = vadd.f32 0.0, %v6207
        %6209 = vmatmul.bf16.gmra.mxu0 %v5753
        %v6210 = vpop.f32.mrf.mxu0
        %v6211 = vadd.f32 0.0, %v6210
        %v6212 = vpop.f32.mrf.mxu0
        %v6213 = vadd.f32 0.0, %v6212
        %6214 = vmatmul.bf16.gmra.mxu0 %v5756
        %v6215 = vpop.f32.mrf.mxu0
        %v6216 = vadd.f32 0.0, %v6215
        %v6217 = vpop.f32.mrf.mxu0
        %v6218 = vadd.f32 0.0, %v6217
        %6219 = vmatmul.bf16.gmra.mxu0 %v6125
        %v6220 = vpop.f32.mrf.mxu0
        %v6221 = vadd.f32 0.0, %v6220
        %v6222 = vpop.f32.mrf.mxu0
        %v6223 = vadd.f32 0.0, %v6222
        %6224 = vmatmul.bf16.gmra.mxu0 %v6128
        %v6225 = vpop.f32.mrf.mxu0
        %v6226 = vadd.f32 0.0, %v6225
        %v6227 = vpop.f32.mrf.mxu0
        %v6228 = vadd.f32 0.0, %v6227
        %6229 = vmatmul.bf16.gmra.mxu0 %v6131
        %v6230 = vpop.f32.mrf.mxu0
        %v6231 = vadd.f32 0.0, %v6230
        %v6232 = vpop.f32.mrf.mxu0
        %v6233 = vadd.f32 0.0, %v6232
        %6234 = vdwg.mxu0
        %v6235 = vadd.f32 %v6077, %v6147
        %v6236 = vadd.f32 %v6078, %v6196
        %v6237 = vadd.f32 %v6079, %v6149
        %v6238 = vadd.f32 %v6080, %v6198
        %v6239 = vadd.f32 %v6081, %v6152
        %v6240 = vadd.f32 %v6082, %v6201
        %v6241 = vadd.f32 %v6083, %v6154
        %v6242 = vadd.f32 %v6084, %v6203
        %v6243 = vadd.f32 %v6085, %v6157
        %v6244 = vadd.f32 %v6086, %v6206
        %v6245 = vadd.f32 %v6087, %v6159
        %v6246 = vadd.f32 %v6088, %v6208
        %v6247 = vadd.f32 %v6089, %v6162
        %v6248 = vadd.f32 %v6090, %v6211
        %v6249 = vadd.f32 %v6091, %v6164
        %v6250 = vadd.f32 %v6092, %v6213
        %v6251 = vadd.f32 %v6093, %v6167
        %v6252 = vadd.f32 %v6094, %v6216
        %v6253 = vadd.f32 %v6095, %v6169
        %v6254 = vadd.f32 %v6096, %v6218
        %v6255 = vadd.f32 %v6097, %v6172
        %v6256 = vadd.f32 %v6098, %v6221
        %v6257 = vadd.f32 %v6099, %v6174
        %v6258 = vadd.f32 %v6100, %v6223
        %v6259 = vadd.f32 %v6101, %v6177
        %v6260 = vadd.f32 %v6102, %v6226
        %v6261 = vadd.f32 %v6103, %v6179
        %v6262 = vadd.f32 %v6104, %v6228
        %v6263 = vadd.f32 %v6105, %v6182
        %v6264 = vadd.f32 %v6106, %v6231
        %v6265 = vadd.f32 %v6107, %v6184
        %v6266 = vadd.f32 %v6108, %v6233
        %s6267 = scalar_lea.vmem %s8, 16
        %v6268 = vld [vmem:[%s6267] sm:$0xf]
        %6270 = vst [vmem:[#allocation1] ss:$4 sm:$0xff] %v6268
        %v6271 = vld.sshfl [vmem:[#allocation1] sm:$0xff pattern:$0x73625140]
        %v6272 = vld.sshfl [vmem:[#allocation1 + $0x8] sm:$0xff pattern:$0x73625140]
        %v6273 = vsel %vm778, %v6271, 0
        %v6275 = vsel %vm778, %v6272, 0
        %6277 = vmatpush.bf16.msra.mxu0 0
        %6278 = vmatpush.bf16.msra.mxu0 0
        %6279 = vmatpush.bf16.msra.mxu0 0
        %6280 = vmatpush.bf16.msra.mxu0 0
        %6281 = vmatpush.bf16.msra.mxu0 0
        %6282 = vmatpush.bf16.msra.mxu0 0
        %6283 = vmatpush.bf16.msra.mxu0 0
        %6284 = vmatpush.bf16.msra.mxu0 %v6273
        %6285 = vmatmul.bf16.gmra.mxu0 %v755
        %v6286 = vpop.f32.mrf.mxu0
        %v6287 = vadd.f32 0.0, %v6286
        %v6288 = vpop.f32.mrf.mxu0
        %v6289 = vadd.f32 0.0, %v6288
        %6290 = vmatmul.bf16.gmra.mxu0 %v758
        %v6291 = vpop.f32.mrf.mxu0
        %v6292 = vadd.f32 0.0, %v6291
        %v6293 = vpop.f32.mrf.mxu0
        %v6294 = vadd.f32 0.0, %v6293
        %6295 = vmatmul.bf16.gmra.mxu0 %v761
        %v6296 = vpop.f32.mrf.mxu0
        %v6297 = vadd.f32 0.0, %v6296
        %v6298 = vpop.f32.mrf.mxu0
        %v6299 = vadd.f32 0.0, %v6298
        %6300 = vmatmul.bf16.gmra.mxu0 %v764
        %v6301 = vpop.f32.mrf.mxu0
        %v6302 = vadd.f32 0.0, %v6301
        %v6303 = vpop.f32.mrf.mxu0
        %v6304 = vadd.f32 0.0, %v6303
        %6305 = vmatmul.bf16.gmra.mxu0 %v767
        %v6306 = vpop.f32.mrf.mxu0
        %v6307 = vadd.f32 0.0, %v6306
        %v6308 = vpop.f32.mrf.mxu0
        %v6309 = vadd.f32 0.0, %v6308
        %6310 = vmatmul.bf16.gmra.mxu0 %v770
        %v6311 = vpop.f32.mrf.mxu0
        %v6312 = vadd.f32 0.0, %v6311
        %v6313 = vpop.f32.mrf.mxu0
        %v6314 = vadd.f32 0.0, %v6313
        %6315 = vmatmul.bf16.gmra.mxu0 %v773
        %v6316 = vpop.f32.mrf.mxu0
        %v6317 = vadd.f32 0.0, %v6316
        %v6318 = vpop.f32.mrf.mxu0
        %v6319 = vadd.f32 0.0, %v6318
        %6320 = vmatmul.bf16.gmra.mxu0 %v776
        %v6321 = vpop.f32.mrf.mxu0
        %v6322 = vadd.f32 0.0, %v6321
        %v6323 = vpop.f32.mrf.mxu0
        %v6324 = vadd.f32 0.0, %v6323
        %6325 = vdwg.mxu0
        %6326 = vmatpush.bf16.msra.mxu0 0
        %6327 = vmatpush.bf16.msra.mxu0 0
        %6328 = vmatpush.bf16.msra.mxu0 0
        %6329 = vmatpush.bf16.msra.mxu0 0
        %6330 = vmatpush.bf16.msra.mxu0 0
        %6331 = vmatpush.bf16.msra.mxu0 0
        %6332 = vmatpush.bf16.msra.mxu0 0
        %6333 = vmatpush.bf16.msra.mxu0 %v6275
        %6334 = vmatmul.bf16.gmra.mxu0 %v755
        %v6335 = vpop.f32.mrf.mxu0
        %v6336 = vadd.f32 0.0, %v6335
        %v6337 = vpop.f32.mrf.mxu0
        %v6338 = vadd.f32 0.0, %v6337
        %6339 = vmatmul.bf16.gmra.mxu0 %v758
        %v6340 = vpop.f32.mrf.mxu0
        %v6341 = vadd.f32 0.0, %v6340
        %v6342 = vpop.f32.mrf.mxu0
        %v6343 = vadd.f32 0.0, %v6342
        %6344 = vmatmul.bf16.gmra.mxu0 %v761
        %v6345 = vpop.f32.mrf.mxu0
        %v6346 = vadd.f32 0.0, %v6345
        %v6347 = vpop.f32.mrf.mxu0
        %v6348 = vadd.f32 0.0, %v6347
        %6349 = vmatmul.bf16.gmra.mxu0 %v764
        %v6350 = vpop.f32.mrf.mxu0
        %v6351 = vadd.f32 0.0, %v6350
        %v6352 = vpop.f32.mrf.mxu0
        %v6353 = vadd.f32 0.0, %v6352
        %6354 = vmatmul.bf16.gmra.mxu0 %v767
        %v6355 = vpop.f32.mrf.mxu0
        %v6356 = vadd.f32 0.0, %v6355
        %v6357 = vpop.f32.mrf.mxu0
        %v6358 = vadd.f32 0.0, %v6357
        %6359 = vmatmul.bf16.gmra.mxu0 %v770
        %v6360 = vpop.f32.mrf.mxu0
        %v6361 = vadd.f32 0.0, %v6360
        %v6362 = vpop.f32.mrf.mxu0
        %v6363 = vadd.f32 0.0, %v6362
        %6364 = vmatmul.bf16.gmra.mxu0 %v773
        %v6365 = vpop.f32.mrf.mxu0
        %v6366 = vadd.f32 0.0, %v6365
        %v6367 = vpop.f32.mrf.mxu0
        %v6368 = vadd.f32 0.0, %v6367
        %6369 = vmatmul.bf16.gmra.mxu0 %v776
        %v6370 = vpop.f32.mrf.mxu0
        %v6371 = vadd.f32 0.0, %v6370
        %v6372 = vpop.f32.mrf.mxu0
        %v6373 = vadd.f32 0.0, %v6372
        %6374 = vdwg.mxu0
        %v6375 = vadd.f32 %v6235, %v6287
        %v6376 = vadd.f32 %v6236, %v6336
        %v6377 = vadd.f32 %v6237, %v6289
        %v6378 = vadd.f32 %v6238, %v6338
        %v6379 = vadd.f32 %v6239, %v6292
        %v6380 = vadd.f32 %v6240, %v6341
        %v6381 = vadd.f32 %v6241, %v6294
        %v6382 = vadd.f32 %v6242, %v6343
        %v6383 = vadd.f32 %v6243, %v6297
        %v6384 = vadd.f32 %v6244, %v6346
        %v6385 = vadd.f32 %v6245, %v6299
        %v6386 = vadd.f32 %v6246, %v6348
        %v6387 = vadd.f32 %v6247, %v6302
        %v6388 = vadd.f32 %v6248, %v6351
        %v6389 = vadd.f32 %v6249, %v6304
        %v6390 = vadd.f32 %v6250, %v6353
        %v6391 = vadd.f32 %v6251, %v6307
        %v6392 = vadd.f32 %v6252, %v6356
        %v6393 = vadd.f32 %v6253, %v6309
        %v6394 = vadd.f32 %v6254, %v6358
        %v6395 = vadd.f32 %v6255, %v6312
        %v6396 = vadd.f32 %v6256, %v6361
        %v6397 = vadd.f32 %v6257, %v6314
        %v6398 = vadd.f32 %v6258, %v6363
        %v6399 = vadd.f32 %v6259, %v6317
        %v6400 = vadd.f32 %v6260, %v6366
        %v6401 = vadd.f32 %v6261, %v6319
        %v6402 = vadd.f32 %v6262, %v6368
        %v6403 = vadd.f32 %v6263, %v6322
        %v6404 = vadd.f32 %v6264, %v6371
        %v6405 = vadd.f32 %v6265, %v6324
        %v6406 = vadd.f32 %v6266, %v6373
        %v6407 = vrot.slane %v473, 7
        %v6408 = vrot.slane %v6407, 4
        %v6409 = vrot.slane %v474, 7
        %v6410 = vsel %vm5864, %v6408, %v6409
        %v6411 = vrot.slane %v6409, 4
        %v6412 = vrot.slane %v475, 7
        %v6413 = vsel %vm5864, %v6411, %v6412
        %v6414 = vrot.slane %v476, 7
        %v6415 = vrot.slane %v6414, 4
        %v6416 = vrot.slane %v477, 7
        %v6417 = vsel %vm5864, %v6415, %v6416
        %v6418 = vrot.slane %v6416, 4
        %v6419 = vrot.slane %v478, 7
        %v6420 = vsel %vm5864, %v6418, %v6419
        %v6421 = vrot.slane %v479, 7
        %v6422 = vrot.slane %v6421, 4
        %v6423 = vrot.slane %v480, 7
        %v6424 = vsel %vm5864, %v6422, %v6423
        %v6425 = vrot.slane %v6423, 4
        %v6426 = vrot.slane %v481, 7
        %v6427 = vsel %vm5864, %v6425, %v6426
        %s6428 = scalar_lea.vmem %s8, 20
        %v6429 = vld [vmem:[%s6428] sm:$0xf]
        %v6430 = vunpack.c.l.b16 %v6410
        %v6431 = vunpack.c.l.b16 %v6413
        %v6432 = vunpack.c.l.b16 %v6417
        %v6433 = vunpack.c.l.b16 %v6420
        %v6434 = vunpack.c.l.b16 %v6424
        %v6435 = vunpack.c.l.b16 %v6427
        %v6436 = vpack.c.b16 %v6431, %v6430
        %v6437 = vpack.c.b16 %v6433, %v6432
        %v6438 = vpack.c.b16 %v6435, %v6434
        %6440 = vst [vmem:[#allocation1] ss:$4 sm:$0xff] %v6429
        %v6441 = vld.sshfl [vmem:[#allocation1] sm:$0xff pattern:$0x73625140]
        %v6442 = vld.sshfl [vmem:[#allocation1 + $0x8] sm:$0xff pattern:$0x73625140]
        %v6444 = vsel %vm753, %v6436, 0
        %v6447 = vsel %vm753, %v6437, 0
        %v6450 = vsel %vm753, %v6438, 0
        %v6452 = vsel %vm778, %v6441, 0
        %v6454 = vsel %vm778, %v6442, 0
        %6456 = vmatpush.bf16.msra.mxu0 0
        %6457 = vmatpush.bf16.msra.mxu0 0
        %6458 = vmatpush.bf16.msra.mxu0 0
        %6459 = vmatpush.bf16.msra.mxu0 0
        %6460 = vmatpush.bf16.msra.mxu0 0
        %6461 = vmatpush.bf16.msra.mxu0 0
        %6462 = vmatpush.bf16.msra.mxu0 0
        %6463 = vmatpush.bf16.msra.mxu0 %v6452
        %6464 = vmatmul.bf16.gmra.mxu0 %v5961
        %v6465 = vpop.f32.mrf.mxu0
        %v6466 = vadd.f32 0.0, %v6465
        %v6467 = vpop.f32.mrf.mxu0
        %v6468 = vadd.f32 0.0, %v6467
        %6469 = vmatmul.bf16.gmra.mxu0 %v5964
        %v6470 = vpop.f32.mrf.mxu0
        %v6471 = vadd.f32 0.0, %v6470
        %v6472 = vpop.f32.mrf.mxu0
        %v6473 = vadd.f32 0.0, %v6472
        %6474 = vmatmul.bf16.gmra.mxu0 %v5967
        %v6475 = vpop.f32.mrf.mxu0
        %v6476 = vadd.f32 0.0, %v6475
        %v6477 = vpop.f32.mrf.mxu0
        %v6478 = vadd.f32 0.0, %v6477
        %6479 = vmatmul.bf16.gmra.mxu0 %v5970
        %v6480 = vpop.f32.mrf.mxu0
        %v6481 = vadd.f32 0.0, %v6480
        %v6482 = vpop.f32.mrf.mxu0
        %v6483 = vadd.f32 0.0, %v6482
        %6484 = vmatmul.bf16.gmra.mxu0 %v5973
        %v6485 = vpop.f32.mrf.mxu0
        %v6486 = vadd.f32 0.0, %v6485
        %v6487 = vpop.f32.mrf.mxu0
        %v6488 = vadd.f32 0.0, %v6487
        %6489 = vmatmul.bf16.gmra.mxu0 %v6444
        %v6490 = vpop.f32.mrf.mxu0
        %v6491 = vadd.f32 0.0, %v6490
        %v6492 = vpop.f32.mrf.mxu0
        %v6493 = vadd.f32 0.0, %v6492
        %6494 = vmatmul.bf16.gmra.mxu0 %v6447
        %v6495 = vpop.f32.mrf.mxu0
        %v6496 = vadd.f32 0.0, %v6495
        %v6497 = vpop.f32.mrf.mxu0
        %v6498 = vadd.f32 0.0, %v6497
        %6499 = vmatmul.bf16.gmra.mxu0 %v6450
        %v6500 = vpop.f32.mrf.mxu0
        %v6501 = vadd.f32 0.0, %v6500
        %v6502 = vpop.f32.mrf.mxu0
        %v6503 = vadd.f32 0.0, %v6502
        %6504 = vdwg.mxu0
        %6505 = vmatpush.bf16.msra.mxu0 0
        %6506 = vmatpush.bf16.msra.mxu0 0
        %6507 = vmatpush.bf16.msra.mxu0 0
        %6508 = vmatpush.bf16.msra.mxu0 0
        %6509 = vmatpush.bf16.msra.mxu0 0
        %6510 = vmatpush.bf16.msra.mxu0 0
        %6511 = vmatpush.bf16.msra.mxu0 0
        %6512 = vmatpush.bf16.msra.mxu0 %v6454
        %6513 = vmatmul.bf16.gmra.mxu0 %v5961
        %v6514 = vpop.f32.mrf.mxu0
        %v6515 = vadd.f32 0.0, %v6514
        %v6516 = vpop.f32.mrf.mxu0
        %v6517 = vadd.f32 0.0, %v6516
        %6518 = vmatmul.bf16.gmra.mxu0 %v5964
        %v6519 = vpop.f32.mrf.mxu0
        %v6520 = vadd.f32 0.0, %v6519
        %v6521 = vpop.f32.mrf.mxu0
        %v6522 = vadd.f32 0.0, %v6521
        %6523 = vmatmul.bf16.gmra.mxu0 %v5967
        %v6524 = vpop.f32.mrf.mxu0
        %v6525 = vadd.f32 0.0, %v6524
        %v6526 = vpop.f32.mrf.mxu0
        %v6527 = vadd.f32 0.0, %v6526
        %6528 = vmatmul.bf16.gmra.mxu0 %v5970
        %v6529 = vpop.f32.mrf.mxu0
        %v6530 = vadd.f32 0.0, %v6529
        %v6531 = vpop.f32.mrf.mxu0
        %v6532 = vadd.f32 0.0, %v6531
        %6533 = vmatmul.bf16.gmra.mxu0 %v5973
        %v6534 = vpop.f32.mrf.mxu0
        %v6535 = vadd.f32 0.0, %v6534
        %v6536 = vpop.f32.mrf.mxu0
        %v6537 = vadd.f32 0.0, %v6536
        %6538 = vmatmul.bf16.gmra.mxu0 %v6444
        %v6539 = vpop.f32.mrf.mxu0
        %v6540 = vadd.f32 0.0, %v6539
        %v6541 = vpop.f32.mrf.mxu0
        %v6542 = vadd.f32 0.0, %v6541
        %6543 = vmatmul.bf16.gmra.mxu0 %v6447
        %v6544 = vpop.f32.mrf.mxu0
        %v6545 = vadd.f32 0.0, %v6544
        %v6546 = vpop.f32.mrf.mxu0
        %v6547 = vadd.f32 0.0, %v6546
        %6548 = vmatmul.bf16.gmra.mxu0 %v6450
        %v6549 = vpop.f32.mrf.mxu0
        %v6550 = vadd.f32 0.0, %v6549
        %v6551 = vpop.f32.mrf.mxu0
        %v6552 = vadd.f32 0.0, %v6551
        %6553 = vdwg.mxu0
        %v6554 = vadd.f32 %v6375, %v6466
        %v6555 = vadd.f32 %v6376, %v6515
        %v6556 = vadd.f32 %v6377, %v6468
        %v6557 = vadd.f32 %v6378, %v6517
        %v6558 = vadd.f32 %v6379, %v6471
        %v6559 = vadd.f32 %v6380, %v6520
        %v6560 = vadd.f32 %v6381, %v6473
        %v6561 = vadd.f32 %v6382, %v6522
        %v6562 = vadd.f32 %v6383, %v6476
        %v6563 = vadd.f32 %v6384, %v6525
        %v6564 = vadd.f32 %v6385, %v6478
        %v6565 = vadd.f32 %v6386, %v6527
        %v6566 = vadd.f32 %v6387, %v6481
        %v6567 = vadd.f32 %v6388, %v6530
        %v6568 = vadd.f32 %v6389, %v6483
        %v6569 = vadd.f32 %v6390, %v6532
        %v6570 = vadd.f32 %v6391, %v6486
        %v6571 = vadd.f32 %v6392, %v6535
        %v6572 = vadd.f32 %v6393, %v6488
        %v6573 = vadd.f32 %v6394, %v6537
        %v6574 = vadd.f32 %v6395, %v6491
        %v6575 = vadd.f32 %v6396, %v6540
        %v6576 = vadd.f32 %v6397, %v6493
        %v6577 = vadd.f32 %v6398, %v6542
        %v6578 = vadd.f32 %v6399, %v6496
        %v6579 = vadd.f32 %v6400, %v6545
        %v6580 = vadd.f32 %v6401, %v6498
        %v6581 = vadd.f32 %v6402, %v6547
        %v6582 = vadd.f32 %v6403, %v6501
        %v6583 = vadd.f32 %v6404, %v6550
        %v6584 = vadd.f32 %v6405, %v6503
        %v6585 = vadd.f32 %v6406, %v6552
        %s6586 = scalar_lea.vmem %s8, 24
        %v6587 = vld [vmem:[%s6586] sm:$0xf]
        %v6592 = vunpack.c.l.b16 %v482
        %v6593 = vunpack.c.l.b16 %v483
        %v6594 = vunpack.c.l.b16 %v485
        %v6595 = vunpack.c.l.b16 %v486
        %v6596 = vunpack.c.l.b16 %v488
        %v6597 = vunpack.c.l.b16 %v489
        %v6598 = vpack.c.b16 %v6593, %v6592
        %v6599 = vpack.c.b16 %v6595, %v6594
        %v6600 = vpack.c.b16 %v6597, %v6596
        %6602 = vst [vmem:[#allocation1] ss:$4 sm:$0xff] %v6587
        %v6603 = vld.sshfl [vmem:[#allocation1] sm:$0xff pattern:$0x73625140]
        %v6604 = vld.sshfl [vmem:[#allocation1 + $0x8] sm:$0xff pattern:$0x73625140]
        %v6606 = vsel %vm753, %v6598, 0
        %v6609 = vsel %vm753, %v6599, 0
        %v6612 = vsel %vm753, %v6600, 0
        %v6614 = vsel %vm778, %v6603, 0
        %v6616 = vsel %vm778, %v6604, 0
        %6618 = vmatpush.bf16.msra.mxu0 0
        %6619 = vmatpush.bf16.msra.mxu0 0
        %6620 = vmatpush.bf16.msra.mxu0 0
        %6621 = vmatpush.bf16.msra.mxu0 0
        %6622 = vmatpush.bf16.msra.mxu0 0
        %6623 = vmatpush.bf16.msra.mxu0 0
        %6624 = vmatpush.bf16.msra.mxu0 0
        %6625 = vmatpush.bf16.msra.mxu0 %v6614
        %6626 = vmatmul.bf16.gmra.mxu0 %v5753
        %v6627 = vpop.f32.mrf.mxu0
        %v6628 = vadd.f32 0.0, %v6627
        %v6629 = vpop.f32.mrf.mxu0
        %v6630 = vadd.f32 0.0, %v6629
        %6631 = vmatmul.bf16.gmra.mxu0 %v5756
        %v6632 = vpop.f32.mrf.mxu0
        %v6633 = vadd.f32 0.0, %v6632
        %v6634 = vpop.f32.mrf.mxu0
        %v6635 = vadd.f32 0.0, %v6634
        %6636 = vmatmul.bf16.gmra.mxu0 %v6125
        %v6637 = vpop.f32.mrf.mxu0
        %v6638 = vadd.f32 0.0, %v6637
        %v6639 = vpop.f32.mrf.mxu0
        %v6640 = vadd.f32 0.0, %v6639
        %6641 = vmatmul.bf16.gmra.mxu0 %v6128
        %v6642 = vpop.f32.mrf.mxu0
        %v6643 = vadd.f32 0.0, %v6642
        %v6644 = vpop.f32.mrf.mxu0
        %v6645 = vadd.f32 0.0, %v6644
        %6646 = vmatmul.bf16.gmra.mxu0 %v6131
        %v6647 = vpop.f32.mrf.mxu0
        %v6648 = vadd.f32 0.0, %v6647
        %v6649 = vpop.f32.mrf.mxu0
        %v6650 = vadd.f32 0.0, %v6649
        %6651 = vmatmul.bf16.gmra.mxu0 %v6606
        %v6652 = vpop.f32.mrf.mxu0
        %v6653 = vadd.f32 0.0, %v6652
        %v6654 = vpop.f32.mrf.mxu0
        %v6655 = vadd.f32 0.0, %v6654
        %6656 = vmatmul.bf16.gmra.mxu0 %v6609
        %v6657 = vpop.f32.mrf.mxu0
        %v6658 = vadd.f32 0.0, %v6657
        %v6659 = vpop.f32.mrf.mxu0
        %v6660 = vadd.f32 0.0, %v6659
        %6661 = vmatmul.bf16.gmra.mxu0 %v6612
        %v6662 = vpop.f32.mrf.mxu0
        %v6663 = vadd.f32 0.0, %v6662
        %v6664 = vpop.f32.mrf.mxu0
        %v6665 = vadd.f32 0.0, %v6664
        %6666 = vdwg.mxu0
        %6667 = vmatpush.bf16.msra.mxu0 0
        %6668 = vmatpush.bf16.msra.mxu0 0
        %6669 = vmatpush.bf16.msra.mxu0 0
        %6670 = vmatpush.bf16.msra.mxu0 0
        %6671 = vmatpush.bf16.msra.mxu0 0
        %6672 = vmatpush.bf16.msra.mxu0 0
        %6673 = vmatpush.bf16.msra.mxu0 0
        %6674 = vmatpush.bf16.msra.mxu0 %v6616
        %6675 = vmatmul.bf16.gmra.mxu0 %v5753
        %v6676 = vpop.f32.mrf.mxu0
        %v6677 = vadd.f32 0.0, %v6676
        %v6678 = vpop.f32.mrf.mxu0
        %v6679 = vadd.f32 0.0, %v6678
        %6680 = vmatmul.bf16.gmra.mxu0 %v5756
        %v6681 = vpop.f32.mrf.mxu0
        %v6682 = vadd.f32 0.0, %v6681
        %v6683 = vpop.f32.mrf.mxu0
        %v6684 = vadd.f32 0.0, %v6683
        %6685 = vmatmul.bf16.gmra.mxu0 %v6125
        %v6686 = vpop.f32.mrf.mxu0
        %v6687 = vadd.f32 0.0, %v6686
        %v6688 = vpop.f32.mrf.mxu0
        %v6689 = vadd.f32 0.0, %v6688
        %6690 = vmatmul.bf16.gmra.mxu0 %v6128
        %v6691 = vpop.f32.mrf.mxu0
        %v6692 = vadd.f32 0.0, %v6691
        %v6693 = vpop.f32.mrf.mxu0
        %v6694 = vadd.f32 0.0, %v6693
        %6695 = vmatmul.bf16.gmra.mxu0 %v6131
        %v6696 = vpop.f32.mrf.mxu0
        %v6697 = vadd.f32 0.0, %v6696
        %v6698 = vpop.f32.mrf.mxu0
        %v6699 = vadd.f32 0.0, %v6698
        %6700 = vmatmul.bf16.gmra.mxu0 %v6606
        %v6701 = vpop.f32.mrf.mxu0
        %v6702 = vadd.f32 0.0, %v6701
        %v6703 = vpop.f32.mrf.mxu0
        %v6704 = vadd.f32 0.0, %v6703
        %6705 = vmatmul.bf16.gmra.mxu0 %v6609
        %v6706 = vpop.f32.mrf.mxu0
        %v6707 = vadd.f32 0.0, %v6706
        %v6708 = vpop.f32.mrf.mxu0
        %v6709 = vadd.f32 0.0, %v6708
        %6710 = vmatmul.bf16.gmra.mxu0 %v6612
        %v6711 = vpop.f32.mrf.mxu0
        %v6712 = vadd.f32 0.0, %v6711
        %v6713 = vpop.f32.mrf.mxu0
        %v6714 = vadd.f32 0.0, %v6713
        %6715 = vdwg.mxu0
        %v6716 = vadd.f32 %v6554, %v6628
        %v6717 = vadd.f32 %v6555, %v6677
        %v6718 = vadd.f32 %v6556, %v6630
        %v6719 = vadd.f32 %v6557, %v6679
        %v6720 = vadd.f32 %v6558, %v6633
        %v6721 = vadd.f32 %v6559, %v6682
        %v6722 = vadd.f32 %v6560, %v6635
        %v6723 = vadd.f32 %v6561, %v6684
        %v6724 = vadd.f32 %v6562, %v6638
        %v6725 = vadd.f32 %v6563, %v6687
        %v6726 = vadd.f32 %v6564, %v6640
        %v6727 = vadd.f32 %v6565, %v6689
        %v6728 = vadd.f32 %v6566, %v6643
        %v6729 = vadd.f32 %v6567, %v6692
        %v6730 = vadd.f32 %v6568, %v6645
        %v6731 = vadd.f32 %v6569, %v6694
        %v6732 = vadd.f32 %v6570, %v6648
        %v6733 = vadd.f32 %v6571, %v6697
        %v6734 = vadd.f32 %v6572, %v6650
        %v6735 = vadd.f32 %v6573, %v6699
        %v6736 = vadd.f32 %v6574, %v6653
        %v6737 = vadd.f32 %v6575, %v6702
        %v6738 = vadd.f32 %v6576, %v6655
        %v6739 = vadd.f32 %v6577, %v6704
        %v6740 = vadd.f32 %v6578, %v6658
        %v6741 = vadd.f32 %v6579, %v6707
        %v6742 = vadd.f32 %v6580, %v6660
        %v6743 = vadd.f32 %v6581, %v6709
        %v6744 = vadd.f32 %v6582, %v6663
        %v6745 = vadd.f32 %v6583, %v6712
        %v6746 = vadd.f32 %v6584, %v6665
        %v6747 = vadd.f32 %v6585, %v6714
        %v6749 = vshrl.u32 %v488, 16
        %v6751 = vrot.slane %v6749, 5
        %v6752 = vshll.u32 %v488, 16
        %v6754 = vrot.slane %v6752, 6
        %v6755 = vor.u32 %v6751, %v6754
        %v6756 = vrot.slane %v6755, 4
        %v6758 = vshrl.u32 %v489, 16
        %v6760 = vrot.slane %v6758, 5
        %v6761 = vshll.u32 %v489, 16
        %v6763 = vrot.slane %v6761, 6
        %v6764 = vor.u32 %v6760, %v6763
        %v6765 = vsel %vm493, %v6756, %v6764
        %v6766 = vrot.slane %v6764, 4
        %v6768 = vshrl.u32 %v490, 16
        %v6770 = vrot.slane %v6768, 5
        %v6771 = vshll.u32 %v490, 16
        %v6773 = vrot.slane %v6771, 6
        %v6774 = vor.u32 %v6770, %v6773
        %v6775 = vsel %vm493, %v6766, %v6774
        %s6776 = scalar_lea.vmem %s8, 28
        %v6777 = vld [vmem:[%s6776] sm:$0xf]
        %v6778 = vunpack.c.l.b16 %v6765
        %v6779 = vunpack.c.l.b16 %v6775
        %v6780 = vpack.c.b16 %v6779, %v6778
        %6782 = vst [vmem:[#allocation1] ss:$4 sm:$0xff] %v6777
        %v6783 = vld.sshfl [vmem:[#allocation1] sm:$0xff pattern:$0x73625140]
        %v6784 = vld.sshfl [vmem:[#allocation1 + $0x8] sm:$0xff pattern:$0x73625140]
        %v6786 = vsel %vm753, %v6780, 0
        %v6788 = vsel %vm778, %v6783, 0
        %v6790 = vsel %vm778, %v6784, 0
        %6792 = vmatpush.bf16.msra.mxu0 0
        %6793 = vmatpush.bf16.msra.mxu0 0
        %6794 = vmatpush.bf16.msra.mxu0 0
        %6795 = vmatpush.bf16.msra.mxu0 0
        %6796 = vmatpush.bf16.msra.mxu0 0
        %6797 = vmatpush.bf16.msra.mxu0 0
        %6798 = vmatpush.bf16.msra.mxu0 0
        %6799 = vmatpush.bf16.msra.mxu0 %v6788
        %6800 = vmatmul.bf16.gmra.mxu0 %v764
        %v6801 = vpop.f32.mrf.mxu0
        %v6802 = vadd.f32 0.0, %v6801
        %v6803 = vpop.f32.mrf.mxu0
        %v6804 = vadd.f32 0.0, %v6803
        %6805 = vmatmul.bf16.gmra.mxu0 %v767
        %v6806 = vpop.f32.mrf.mxu0
        %v6807 = vadd.f32 0.0, %v6806
        %v6808 = vpop.f32.mrf.mxu0
        %v6809 = vadd.f32 0.0, %v6808
        %6810 = vmatmul.bf16.gmra.mxu0 %v770
        %v6811 = vpop.f32.mrf.mxu0
        %v6812 = vadd.f32 0.0, %v6811
        %v6813 = vpop.f32.mrf.mxu0
        %v6814 = vadd.f32 0.0, %v6813
        %6815 = vmatmul.bf16.gmra.mxu0 %v773
        %v6816 = vpop.f32.mrf.mxu0
        %v6817 = vadd.f32 0.0, %v6816
        %v6818 = vpop.f32.mrf.mxu0
        %v6819 = vadd.f32 0.0, %v6818
        %6820 = vmatmul.bf16.gmra.mxu0 %v776
        %v6821 = vpop.f32.mrf.mxu0
        %v6822 = vadd.f32 0.0, %v6821
        %v6823 = vpop.f32.mrf.mxu0
        %v6824 = vadd.f32 0.0, %v6823
        %6825 = vmatmul.bf16.gmra.mxu0 %v2231
        %v6826 = vpop.f32.mrf.mxu0
        %v6827 = vadd.f32 0.0, %v6826
        %v6828 = vpop.f32.mrf.mxu0
        %v6829 = vadd.f32 0.0, %v6828
        %6830 = vmatmul.bf16.gmra.mxu0 %v4738
        %v6831 = vpop.f32.mrf.mxu0
        %v6832 = vadd.f32 0.0, %v6831
        %v6833 = vpop.f32.mrf.mxu0
        %v6834 = vadd.f32 0.0, %v6833
        %6835 = vmatmul.bf16.gmra.mxu0 %v6786
        %v6836 = vpop.f32.mrf.mxu0
        %v6837 = vadd.f32 0.0, %v6836
        %v6838 = vpop.f32.mrf.mxu0
        %v6839 = vadd.f32 0.0, %v6838
        %6840 = vdwg.mxu0
        %6841 = vmatpush.bf16.msra.mxu0 0
        %6842 = vmatpush.bf16.msra.mxu0 0
        %6843 = vmatpush.bf16.msra.mxu0 0
        %6844 = vmatpush.bf16.msra.mxu0 0
        %6845 = vmatpush.bf16.msra.mxu0 0
        %6846 = vmatpush.bf16.msra.mxu0 0
        %6847 = vmatpush.bf16.msra.mxu0 0
        %6848 = vmatpush.bf16.msra.mxu0 %v6790
        %6849 = vmatmul.bf16.gmra.mxu0 %v764
        %v6850 = vpop.f32.mrf.mxu0
        %v6851 = vadd.f32 0.0, %v6850
        %v6852 = vpop.f32.mrf.mxu0
        %v6853 = vadd.f32 0.0, %v6852
        %6854 = vmatmul.bf16.gmra.mxu0 %v767
        %v6855 = vpop.f32.mrf.mxu0
        %v6856 = vadd.f32 0.0, %v6855
        %v6857 = vpop.f32.mrf.mxu0
        %v6858 = vadd.f32 0.0, %v6857
        %6859 = vmatmul.bf16.gmra.mxu0 %v770
        %v6860 = vpop.f32.mrf.mxu0
        %v6861 = vadd.f32 0.0, %v6860
        %v6862 = vpop.f32.mrf.mxu0
        %v6863 = vadd.f32 0.0, %v6862
        %6864 = vmatmul.bf16.gmra.mxu0 %v773
        %v6865 = vpop.f32.mrf.mxu0
        %v6866 = vadd.f32 0.0, %v6865
        %v6867 = vpop.f32.mrf.mxu0
        %v6868 = vadd.f32 0.0, %v6867
        %6869 = vmatmul.bf16.gmra.mxu0 %v776
        %v6870 = vpop.f32.mrf.mxu0
        %v6871 = vadd.f32 0.0, %v6870
        %v6872 = vpop.f32.mrf.mxu0
        %v6873 = vadd.f32 0.0, %v6872
        %6874 = vmatmul.bf16.gmra.mxu0 %v2231
        %v6875 = vpop.f32.mrf.mxu0
        %v6876 = vadd.f32 0.0, %v6875
        %v6877 = vpop.f32.mrf.mxu0
        %v6878 = vadd.f32 0.0, %v6877
        %6879 = vmatmul.bf16.gmra.mxu0 %v4738
        %v6880 = vpop.f32.mrf.mxu0
        %v6881 = vadd.f32 0.0, %v6880
        %v6882 = vpop.f32.mrf.mxu0
        %v6883 = vadd.f32 0.0, %v6882
        %6884 = vmatmul.bf16.gmra.mxu0 %v6786
        %v6885 = vpop.f32.mrf.mxu0
        %v6886 = vadd.f32 0.0, %v6885
        %v6887 = vpop.f32.mrf.mxu0
        %v6888 = vadd.f32 0.0, %v6887
        %6889 = vdwg.mxu0
        %v6890 = vadd.f32 %v6716, %v6802
        %v6891 = vadd.f32 %v6717, %v6851
        %v6892 = vadd.f32 %v6718, %v6804
        %v6893 = vadd.f32 %v6719, %v6853
        %v6894 = vadd.f32 %v6720, %v6807
        %v6895 = vadd.f32 %v6721, %v6856
        %v6896 = vadd.f32 %v6722, %v6809
        %v6897 = vadd.f32 %v6723, %v6858
        %v6898 = vadd.f32 %v6724, %v6812
        %v6899 = vadd.f32 %v6725, %v6861
        %v6900 = vadd.f32 %v6726, %v6814
        %v6901 = vadd.f32 %v6727, %v6863
        %v6902 = vadd.f32 %v6728, %v6817
        %v6903 = vadd.f32 %v6729, %v6866
        %v6904 = vadd.f32 %v6730, %v6819
        %v6905 = vadd.f32 %v6731, %v6868
        %v6906 = vadd.f32 %v6732, %v6822
        %v6907 = vadd.f32 %v6733, %v6871
        %v6908 = vadd.f32 %v6734, %v6824
        %v6909 = vadd.f32 %v6735, %v6873
        %v6910 = vadd.f32 %v6736, %v6827
        %v6911 = vadd.f32 %v6737, %v6876
        %v6912 = vadd.f32 %v6738, %v6829
        %v6913 = vadd.f32 %v6739, %v6878
        %v6914 = vadd.f32 %v6740, %v6832
        %v6915 = vadd.f32 %v6741, %v6881
        %v6916 = vadd.f32 %v6742, %v6834
        %v6917 = vadd.f32 %v6743, %v6883
        %v6918 = vadd.f32 %v6744, %v6837
        %v6919 = vadd.f32 %v6745, %v6886
        %v6920 = vadd.f32 %v6746, %v6839
        %v6921 = vadd.f32 %v6747, %v6888
        %v6924 = vrot.slane %v482, 7
        %v6925 = vrot.slane %v6924, 4
        %v6926 = vrot.slane %v483, 7
        %v6927 = vsel %vm5864, %v6925, %v6926
        %v6928 = vrot.slane %v6926, 4
        %v6929 = vrot.slane %v484, 7
        %v6930 = vsel %vm5864, %v6928, %v6929
        %v6931 = vrot.slane %v485, 7
        %v6932 = vrot.slane %v6931, 4
        %v6933 = vrot.slane %v486, 7
        %v6934 = vsel %vm5864, %v6932, %v6933
        %v6935 = vrot.slane %v6933, 4
        %v6936 = vrot.slane %v487, 7
        %v6937 = vsel %vm5864, %v6935, %v6936
        %v6938 = vrot.slane %v488, 7
        %v6939 = vrot.slane %v6938, 4
        %v6940 = vrot.slane %v489, 7
        %v6941 = vsel %vm5864, %v6939, %v6940
        %v6942 = vrot.slane %v6940, 4
        %v6943 = vrot.slane %v490, 7
        %v6944 = vsel %vm5864, %v6942, %v6943
        %s6945 = scalar_lea.vmem %s8, 32
        %v6946 = vld [vmem:[%s6945] sm:$0xf]
        %v6947 = vunpack.c.l.b16 %v6927
        %v6948 = vunpack.c.l.b16 %v6930
        %v6949 = vunpack.c.l.b16 %v6934
        %v6950 = vunpack.c.l.b16 %v6937
        %v6951 = vunpack.c.l.b16 %v6941
        %v6952 = vunpack.c.l.b16 %v6944
        %v6953 = vpack.c.b16 %v6948, %v6947
        %v6954 = vpack.c.b16 %v6950, %v6949
        %v6955 = vpack.c.b16 %v6952, %v6951
        %6957 = vst [vmem:[#allocation1] ss:$4 sm:$0xff] %v6946
        %v6958 = vld.sshfl [vmem:[#allocation1] sm:$0xff pattern:$0x73625140]
        %v6959 = vld.sshfl [vmem:[#allocation1 + $0x8] sm:$0xff pattern:$0x73625140]
        %v6961 = vsel %vm753, %v6953, 0
        %v6964 = vsel %vm753, %v6954, 0
        %v6967 = vsel %vm753, %v6955, 0
        %v6969 = vsel %vm778, %v6958, 0
        %v6971 = vsel %vm778, %v6959, 0
        %6973 = vmatpush.bf16.msra.mxu0 0
        %6974 = vmatpush.bf16.msra.mxu0 0
        %6975 = vmatpush.bf16.msra.mxu0 0
        %6976 = vmatpush.bf16.msra.mxu0 0
        %6977 = vmatpush.bf16.msra.mxu0 0
        %6978 = vmatpush.bf16.msra.mxu0 0
        %6979 = vmatpush.bf16.msra.mxu0 0
        %6980 = vmatpush.bf16.msra.mxu0 %v6969
        %6981 = vmatmul.bf16.gmra.mxu0 %v5970
        %v6982 = vpop.f32.mrf.mxu0
        %v6983 = vadd.f32 0.0, %v6982
        %v6984 = vpop.f32.mrf.mxu0
        %v6985 = vadd.f32 0.0, %v6984
        %6986 = vmatmul.bf16.gmra.mxu0 %v5973
        %v6987 = vpop.f32.mrf.mxu0
        %v6988 = vadd.f32 0.0, %v6987
        %v6989 = vpop.f32.mrf.mxu0
        %v6990 = vadd.f32 0.0, %v6989
        %6991 = vmatmul.bf16.gmra.mxu0 %v6444
        %v6992 = vpop.f32.mrf.mxu0
        %v6993 = vadd.f32 0.0, %v6992
        %v6994 = vpop.f32.mrf.mxu0
        %v6995 = vadd.f32 0.0, %v6994
        %6996 = vmatmul.bf16.gmra.mxu0 %v6447
        %v6997 = vpop.f32.mrf.mxu0
        %v6998 = vadd.f32 0.0, %v6997
        %v6999 = vpop.f32.mrf.mxu0
        %v7000 = vadd.f32 0.0, %v6999
        %7001 = vmatmul.bf16.gmra.mxu0 %v6450
        %v7002 = vpop.f32.mrf.mxu0
        %v7003 = vadd.f32 0.0, %v7002
        %v7004 = vpop.f32.mrf.mxu0
        %v7005 = vadd.f32 0.0, %v7004
        %7006 = vmatmul.bf16.gmra.mxu0 %v6961
        %v7007 = vpop.f32.mrf.mxu0
        %v7008 = vadd.f32 0.0, %v7007
        %v7009 = vpop.f32.mrf.mxu0
        %v7010 = vadd.f32 0.0, %v7009
        %7011 = vmatmul.bf16.gmra.mxu0 %v6964
        %v7012 = vpop.f32.mrf.mxu0
        %v7013 = vadd.f32 0.0, %v7012
        %v7014 = vpop.f32.mrf.mxu0
        %v7015 = vadd.f32 0.0, %v7014
        %7016 = vmatmul.bf16.gmra.mxu0 %v6967
        %v7017 = vpop.f32.mrf.mxu0
        %v7018 = vadd.f32 0.0, %v7017
        %v7019 = vpop.f32.mrf.mxu0
        %v7020 = vadd.f32 0.0, %v7019
        %7021 = vdwg.mxu0
        %7022 = vmatpush.bf16.msra.mxu0 0
        %7023 = vmatpush.bf16.msra.mxu0 0
        %7024 = vmatpush.bf16.msra.mxu0 0
        %7025 = vmatpush.bf16.msra.mxu0 0
        %7026 = vmatpush.bf16.msra.mxu0 0
        %7027 = vmatpush.bf16.msra.mxu0 0
        %7028 = vmatpush.bf16.msra.mxu0 0
        %7029 = vmatpush.bf16.msra.mxu0 %v6971
        %7030 = vmatmul.bf16.gmra.mxu0 %v5970
        %v7031 = vpop.f32.mrf.mxu0
        %v7032 = vadd.f32 0.0, %v7031
        %v7033 = vpop.f32.mrf.mxu0
        %v7034 = vadd.f32 0.0, %v7033
        %7035 = vmatmul.bf16.gmra.mxu0 %v5973
        %v7036 = vpop.f32.mrf.mxu0
        %v7037 = vadd.f32 0.0, %v7036
        %v7038 = vpop.f32.mrf.mxu0
        %v7039 = vadd.f32 0.0, %v7038
        %7040 = vmatmul.bf16.gmra.mxu0 %v6444
        %v7041 = vpop.f32.mrf.mxu0
        %v7042 = vadd.f32 0.0, %v7041
        %v7043 = vpop.f32.mrf.mxu0
        %v7044 = vadd.f32 0.0, %v7043
        %7045 = vmatmul.bf16.gmra.mxu0 %v6447
        %v7046 = vpop.f32.mrf.mxu0
        %v7047 = vadd.f32 0.0, %v7046
        %v7048 = vpop.f32.mrf.mxu0
        %v7049 = vadd.f32 0.0, %v7048
        %7050 = vmatmul.bf16.gmra.mxu0 %v6450
        %v7051 = vpop.f32.mrf.mxu0
        %v7052 = vadd.f32 0.0, %v7051
        %v7053 = vpop.f32.mrf.mxu0
        %v7054 = vadd.f32 0.0, %v7053
        %7055 = vmatmul.bf16.gmra.mxu0 %v6961
        %v7056 = vpop.f32.mrf.mxu0
        %v7057 = vadd.f32 0.0, %v7056
        %v7058 = vpop.f32.mrf.mxu0
        %v7059 = vadd.f32 0.0, %v7058
        %7060 = vmatmul.bf16.gmra.mxu0 %v6964
        %v7061 = vpop.f32.mrf.mxu0
        %v7062 = vadd.f32 0.0, %v7061
        %v7063 = vpop.f32.mrf.mxu0
        %v7064 = vadd.f32 0.0, %v7063
        %7065 = vmatmul.bf16.gmra.mxu0 %v6967
        %v7066 = vpop.f32.mrf.mxu0
        %v7067 = vadd.f32 0.0, %v7066
        %v7068 = vpop.f32.mrf.mxu0
        %v7069 = vadd.f32 0.0, %v7068
        %7070 = vdwg.mxu0
        %v7071 = vadd.f32 %v6890, %v6983
        %v7072 = vadd.f32 %v6891, %v7032
        %v7073 = vadd.f32 %v6892, %v6985
        %v7074 = vadd.f32 %v6893, %v7034
        %v7075 = vadd.f32 %v6894, %v6988
        %v7076 = vadd.f32 %v6895, %v7037
        %v7077 = vadd.f32 %v6896, %v6990
        %v7078 = vadd.f32 %v6897, %v7039
        %v7079 = vadd.f32 %v6898, %v6993
        %v7080 = vadd.f32 %v6899, %v7042
        %v7081 = vadd.f32 %v6900, %v6995
        %v7082 = vadd.f32 %v6901, %v7044
        %v7083 = vadd.f32 %v6902, %v6998
        %v7084 = vadd.f32 %v6903, %v7047
        %v7085 = vadd.f32 %v6904, %v7000
        %v7086 = vadd.f32 %v6905, %v7049
        %v7087 = vadd.f32 %v6906, %v7003
        %v7088 = vadd.f32 %v6907, %v7052
        %v7089 = vadd.f32 %v6908, %v7005
        %v7090 = vadd.f32 %v6909, %v7054
        %v7091 = vadd.f32 %v6910, %v7008
        %v7092 = vadd.f32 %v6911, %v7057
        %v7093 = vadd.f32 %v6912, %v7010
        %v7094 = vadd.f32 %v6913, %v7059
        %v7095 = vadd.f32 %v6914, %v7013
        %v7096 = vadd.f32 %v6915, %v7062
        %v7097 = vadd.f32 %v6916, %v7015
        %v7098 = vadd.f32 %v6917, %v7064
        %v7099 = vadd.f32 %v6918, %v7018
        %v7100 = vadd.f32 %v6919, %v7067
        %v7101 = vadd.f32 %v6920, %v7020
        %v7102 = vadd.f32 %v6921, %v7069
        %v7103 = vld [vmem:[%s9] sm:$0x3]
        %v7105 = vperm.slane %v7103, 0
        %v7106 = vperm.slane %v7103, 1
        %v7109 = vadd.f32 %v7071, %v7105
        %v7110 = vadd.f32 %v7072, %v7106
        %v7111 = vadd.f32 %v7073, %v7105
        %v7112 = vadd.f32 %v7074, %v7106
        %v7113 = vadd.f32 %v7075, %v7105
        %v7114 = vadd.f32 %v7076, %v7106
        %v7115 = vadd.f32 %v7077, %v7105
        %v7116 = vadd.f32 %v7078, %v7106
        %v7117 = vadd.f32 %v7079, %v7105
        %v7118 = vadd.f32 %v7080, %v7106
        %v7119 = vadd.f32 %v7081, %v7105
        %v7120 = vadd.f32 %v7082, %v7106
        %v7121 = vadd.f32 %v7083, %v7105
        %v7122 = vadd.f32 %v7084, %v7106
        %v7123 = vadd.f32 %v7085, %v7105
        %v7124 = vadd.f32 %v7086, %v7106
        %v7125 = vadd.f32 %v7087, %v7105
        %v7126 = vadd.f32 %v7088, %v7106
        %v7127 = vadd.f32 %v7089, %v7105
        %v7128 = vadd.f32 %v7090, %v7106
        %v7129 = vadd.f32 %v7091, %v7105
        %v7130 = vadd.f32 %v7092, %v7106
        %v7131 = vadd.f32 %v7093, %v7105
        %v7132 = vadd.f32 %v7094, %v7106
        %v7133 = vadd.f32 %v7095, %v7105
        %v7134 = vadd.f32 %v7096, %v7106
        %v7135 = vadd.f32 %v7097, %v7105
        %v7136 = vadd.f32 %v7098, %v7106
        %v7137 = vadd.f32 %v7099, %v7105
        %v7138 = vadd.f32 %v7100, %v7106
        %v7139 = vadd.f32 %v7101, %v7105
        %v7140 = vadd.f32 %v7102, %v7106
        %v7141 = vmax.f32 %v7109, 0.0
        %v7142 = vmax.f32 %v7110, 0.0
        %v7143 = vmax.f32 %v7111, 0.0
        %v7144 = vmax.f32 %v7112, 0.0
        %v7145 = vmax.f32 %v7113, 0.0
        %v7146 = vmax.f32 %v7114, 0.0
        %v7147 = vmax.f32 %v7115, 0.0
        %v7148 = vmax.f32 %v7116, 0.0
        %v7149 = vmax.f32 %v7117, 0.0
        %v7150 = vmax.f32 %v7118, 0.0
        %v7151 = vmax.f32 %v7119, 0.0
        %v7152 = vmax.f32 %v7120, 0.0
        %v7153 = vmax.f32 %v7121, 0.0
        %v7154 = vmax.f32 %v7122, 0.0
        %v7155 = vmax.f32 %v7123, 0.0
        %v7156 = vmax.f32 %v7124, 0.0
        %v7157 = vmax.f32 %v7125, 0.0
        %v7158 = vmax.f32 %v7126, 0.0
        %v7159 = vmax.f32 %v7127, 0.0
        %v7160 = vmax.f32 %v7128, 0.0
        %v7161 = vmax.f32 %v7129, 0.0
        %v7162 = vmax.f32 %v7130, 0.0
        %v7163 = vmax.f32 %v7131, 0.0
        %v7164 = vmax.f32 %v7132, 0.0
        %v7165 = vmax.f32 %v7133, 0.0
        %v7166 = vmax.f32 %v7134, 0.0
        %v7167 = vmax.f32 %v7135, 0.0
        %v7168 = vmax.f32 %v7136, 0.0
        %v7169 = vmax.f32 %v7137, 0.0
        %v7170 = vmax.f32 %v7138, 0.0
        %v7171 = vmax.f32 %v7139, 0.0
        %v7172 = vmax.f32 %v7140, 0.0
        %v7173 = vpack.c.bf16 %v7143, %v7141
        %v7174 = vpack.c.bf16 %v7144, %v7142
        %v7175 = vpack.c.bf16 %v7147, %v7145
        %v7176 = vpack.c.bf16 %v7148, %v7146
        %v7177 = vpack.c.bf16 %v7151, %v7149
        %v7178 = vpack.c.bf16 %v7152, %v7150
        %v7179 = vpack.c.bf16 %v7155, %v7153
        %v7180 = vpack.c.bf16 %v7156, %v7154
        %v7181 = vpack.c.bf16 %v7159, %v7157
        %v7182 = vpack.c.bf16 %v7160, %v7158
        %v7183 = vpack.c.bf16 %v7163, %v7161
        %v7184 = vpack.c.bf16 %v7164, %v7162
        %v7185 = vpack.c.bf16 %v7167, %v7165
        %v7186 = vpack.c.bf16 %v7168, %v7166
        %v7187 = vpack.c.bf16 %v7171, %v7169
        %v7188 = vpack.c.bf16 %v7172, %v7170
        %s7189 = scalar_lea.vmem %s10, 768
        %v7190 = vld [vmem:[%s7189] sm:$0xff]
        %v7191 = vld [vmem:[%s7189 + $0x8] sm:$0xff]
        %v7192 = vld [vmem:[%s7189 + $0x10] sm:$0xff]
        %v7193 = vld [vmem:[%s7189 + $0x18] sm:$0xff]
        %v7194 = vld [vmem:[%s7189 + $0x20] sm:$0xff]
        %v7195 = vld [vmem:[%s7189 + $0x28] sm:$0xff]
        %v7196 = vld [vmem:[%s7189 + $0x30] sm:$0xff]
        %v7197 = vld [vmem:[%s7189 + $0x38] sm:$0xff]
        %v7198 = vld [vmem:[%s7189 + $0x40] sm:$0xff]
        %v7199 = vld [vmem:[%s7189 + $0x48] sm:$0xff]
        %v7200 = vld [vmem:[%s7189 + $0x50] sm:$0xff]
        %v7201 = vld [vmem:[%s7189 + $0x58] sm:$0xff]
        %v7202 = vld [vmem:[%s7189 + $0x60] sm:$0xff]
        %v7203 = vld [vmem:[%s7189 + $0x68] sm:$0xff]
        %v7204 = vld [vmem:[%s7189 + $0x70] sm:$0xff]
        %v7205 = vld [vmem:[%s7189 + $0x78] sm:$0xff]
        %v7206 = vld [vmem:[%s7189 + $0x80] sm:$0xff]
        %v7207 = vld [vmem:[%s7189 + $0x88] sm:$0xff]
        %v7208 = vld [vmem:[%s7189 + $0x90] sm:$0xff]
        %v7209 = vld [vmem:[%s7189 + $0x98] sm:$0xff]
        %v7210 = vld [vmem:[%s7189 + $0xa0] sm:$0xff]
        %v7211 = vld [vmem:[%s7189 + $0xa8] sm:$0xff]
        %v7212 = vld [vmem:[%s7189 + $0xb0] sm:$0xff]
        %v7213 = vld [vmem:[%s7189 + $0xb8] sm:$0xff]
        %v7214 = vld [vmem:[%s7189 + $0xc0] sm:$0xff]
        %v7215 = vld [vmem:[%s7189 + $0xc8] sm:$0xff]
        %v7216 = vld [vmem:[%s7189 + $0xd0] sm:$0xff]
        %v7217 = vld [vmem:[%s7189 + $0xd8] sm:$0xff]
        %v7218 = vld [vmem:[%s7189 + $0xe0] sm:$0xff]
        %v7219 = vld [vmem:[%s7189 + $0xe8] sm:$0xff]
        %v7220 = vld [vmem:[%s7189 + $0xf0] sm:$0xff]
        %v7221 = vld [vmem:[%s7189 + $0xf8] sm:$0xff]
        %v7254 = vunpack.c.l.b16 %v7190
        %v7255 = vunpack.c.h.b16 %v7190
        %v7256 = vunpack.c.l.b16 %v7191
        %v7257 = vunpack.c.h.b16 %v7191
        %v7258 = vunpack.c.l.b16 %v7192
        %v7259 = vunpack.c.h.b16 %v7192
        %v7260 = vunpack.c.l.b16 %v7193
        %v7261 = vunpack.c.h.b16 %v7193
        %v7262 = vunpack.c.l.b16 %v7194
        %v7263 = vunpack.c.h.b16 %v7194
        %v7264 = vunpack.c.l.b16 %v7195
        %v7265 = vunpack.c.h.b16 %v7195
        %v7266 = vunpack.c.l.b16 %v7196
        %v7267 = vunpack.c.h.b16 %v7196
        %v7268 = vunpack.c.l.b16 %v7197
        %v7269 = vunpack.c.h.b16 %v7197
        %v7270 = vunpack.c.l.b16 %v7198
        %v7271 = vunpack.c.h.b16 %v7198
        %v7272 = vunpack.c.l.b16 %v7199
        %v7273 = vunpack.c.h.b16 %v7199
        %v7274 = vunpack.c.l.b16 %v7200
        %v7275 = vunpack.c.h.b16 %v7200
        %v7276 = vunpack.c.l.b16 %v7201
        %v7277 = vunpack.c.h.b16 %v7201
        %v7278 = vunpack.c.l.b16 %v7202
        %v7279 = vunpack.c.h.b16 %v7202
        %v7280 = vunpack.c.l.b16 %v7203
        %v7281 = vunpack.c.h.b16 %v7203
        %v7282 = vunpack.c.l.b16 %v7204
        %v7283 = vunpack.c.h.b16 %v7204
        %v7284 = vunpack.c.l.b16 %v7205
        %v7285 = vunpack.c.h.b16 %v7205
        %v7286 = vunpack.c.l.b16 %v7206
        %v7287 = vunpack.c.h.b16 %v7206
        %v7288 = vunpack.c.l.b16 %v7207
        %v7289 = vunpack.c.h.b16 %v7207
        %v7290 = vunpack.c.l.b16 %v7208
        %v7291 = vunpack.c.h.b16 %v7208
        %v7292 = vunpack.c.l.b16 %v7209
        %v7293 = vunpack.c.h.b16 %v7209
        %v7294 = vunpack.c.l.b16 %v7210
        %v7295 = vunpack.c.h.b16 %v7210
        %v7296 = vunpack.c.l.b16 %v7211
        %v7297 = vunpack.c.h.b16 %v7211
        %v7298 = vunpack.c.l.b16 %v7212
        %v7299 = vunpack.c.h.b16 %v7212
        %v7300 = vunpack.c.l.b16 %v7213
        %v7301 = vunpack.c.h.b16 %v7213
        %v7302 = vunpack.c.l.b16 %v7214
        %v7303 = vunpack.c.h.b16 %v7214
        %v7304 = vunpack.c.l.b16 %v7215
        %v7305 = vunpack.c.h.b16 %v7215
        %v7306 = vunpack.c.l.b16 %v7216
        %v7307 = vunpack.c.h.b16 %v7216
        %v7308 = vunpack.c.l.b16 %v7217
        %v7309 = vunpack.c.h.b16 %v7217
        %v7310 = vunpack.c.l.b16 %v7218
        %v7311 = vunpack.c.h.b16 %v7218
        %v7312 = vunpack.c.l.b16 %v7219
        %v7313 = vunpack.c.h.b16 %v7219
        %v7314 = vunpack.c.l.b16 %v7220
        %v7315 = vunpack.c.h.b16 %v7220
        %v7316 = vunpack.c.l.b16 %v7221
        %v7317 = vunpack.c.h.b16 %v7221
        %v7318 = vpack.c.b16 %v7256, %v7254
        %v7319 = vpack.c.b16 %v7257, %v7255
        %v7320 = vpack.c.b16 %v7260, %v7258
        %v7321 = vpack.c.b16 %v7261, %v7259
        %v7322 = vpack.c.b16 %v7264, %v7262
        %v7323 = vpack.c.b16 %v7265, %v7263
        %v7324 = vpack.c.b16 %v7268, %v7266
        %v7325 = vpack.c.b16 %v7269, %v7267
        %v7326 = vpack.c.b16 %v7272, %v7270
        %v7327 = vpack.c.b16 %v7273, %v7271
        %v7328 = vpack.c.b16 %v7276, %v7274
        %v7329 = vpack.c.b16 %v7277, %v7275
        %v7330 = vpack.c.b16 %v7280, %v7278
        %v7331 = vpack.c.b16 %v7281, %v7279
        %v7332 = vpack.c.b16 %v7284, %v7282
        %v7333 = vpack.c.b16 %v7285, %v7283
        %v7334 = vpack.c.b16 %v7288, %v7286
        %v7335 = vpack.c.b16 %v7289, %v7287
        %v7336 = vpack.c.b16 %v7292, %v7290
        %v7337 = vpack.c.b16 %v7293, %v7291
        %v7338 = vpack.c.b16 %v7296, %v7294
        %v7339 = vpack.c.b16 %v7297, %v7295
        %v7340 = vpack.c.b16 %v7300, %v7298
        %v7341 = vpack.c.b16 %v7301, %v7299
        %v7342 = vpack.c.b16 %v7304, %v7302
        %v7343 = vpack.c.b16 %v7305, %v7303
        %v7344 = vpack.c.b16 %v7308, %v7306
        %v7345 = vpack.c.b16 %v7309, %v7307
        %v7346 = vpack.c.b16 %v7312, %v7310
        %v7347 = vpack.c.b16 %v7313, %v7311
        %v7348 = vpack.c.b16 %v7316, %v7314
        %v7349 = vpack.c.b16 %v7317, %v7315
        %7382 = vmatpush.bf16.msra.mxu0 %v7332
        %7383 = vmatpush.bf16.msra.mxu0 %v7330
        %7384 = vmatpush.bf16.msra.mxu0 %v7328
        %7385 = vmatpush.bf16.msra.mxu0 %v7326
        %7386 = vmatpush.bf16.msra.mxu0 %v7324
        %7387 = vmatpush.bf16.msra.mxu0 %v7322
        %7388 = vmatpush.bf16.msra.mxu0 %v7320
        %7389 = vmatpush.bf16.msra.mxu0 %v7318
        %7390 = vmatmul.bf16.gmra.mxu0 %v7173
        %v7391 = vpop.f32.mrf.mxu0
        %v7392 = vadd.f32 0.0, %v7391
        %v7393 = vpop.f32.mrf.mxu0
        %v7394 = vadd.f32 0.0, %v7393
        %7395 = vmatmul.bf16.gmra.mxu0 %v7175
        %v7396 = vpop.f32.mrf.mxu0
        %v7397 = vadd.f32 0.0, %v7396
        %v7398 = vpop.f32.mrf.mxu0
        %v7399 = vadd.f32 0.0, %v7398
        %7400 = vmatmul.bf16.gmra.mxu0 %v7177
        %v7401 = vpop.f32.mrf.mxu0
        %v7402 = vadd.f32 0.0, %v7401
        %v7403 = vpop.f32.mrf.mxu0
        %v7404 = vadd.f32 0.0, %v7403
        %7405 = vmatmul.bf16.gmra.mxu0 %v7179
        %v7406 = vpop.f32.mrf.mxu0
        %v7407 = vadd.f32 0.0, %v7406
        %v7408 = vpop.f32.mrf.mxu0
        %v7409 = vadd.f32 0.0, %v7408
        %7410 = vmatmul.bf16.gmra.mxu0 %v7181
        %v7411 = vpop.f32.mrf.mxu0
        %v7412 = vadd.f32 0.0, %v7411
        %v7413 = vpop.f32.mrf.mxu0
        %v7414 = vadd.f32 0.0, %v7413
        %7415 = vmatmul.bf16.gmra.mxu0 %v7183
        %v7416 = vpop.f32.mrf.mxu0
        %v7417 = vadd.f32 0.0, %v7416
        %v7418 = vpop.f32.mrf.mxu0
        %v7419 = vadd.f32 0.0, %v7418
        %7420 = vmatmul.bf16.gmra.mxu0 %v7185
        %v7421 = vpop.f32.mrf.mxu0
        %v7422 = vadd.f32 0.0, %v7421
        %v7423 = vpop.f32.mrf.mxu0
        %v7424 = vadd.f32 0.0, %v7423
        %7425 = vmatmul.bf16.gmra.mxu0 %v7187
        %v7426 = vpop.f32.mrf.mxu0
        %v7427 = vadd.f32 0.0, %v7426
        %v7428 = vpop.f32.mrf.mxu0
        %v7429 = vadd.f32 0.0, %v7428
        %7430 = vdwg.mxu0
        %7431 = vmatpush.bf16.msra.mxu0 %v7348
        %7432 = vmatpush.bf16.msra.mxu0 %v7346
        %7433 = vmatpush.bf16.msra.mxu0 %v7344
        %7434 = vmatpush.bf16.msra.mxu0 %v7342
        %7435 = vmatpush.bf16.msra.mxu0 %v7340
        %7436 = vmatpush.bf16.msra.mxu0 %v7338
        %7437 = vmatpush.bf16.msra.mxu0 %v7336
        %7438 = vmatpush.bf16.msra.mxu0 %v7334
        %7439 = vmatmul.bf16.gmra.mxu0 %v7174
        %v7440 = vpop.f32.mrf.mxu0
        %v7441 = vadd.f32 %v7392, %v7440
        %v7442 = vpop.f32.mrf.mxu0
        %v7443 = vadd.f32 %v7394, %v7442
        %7444 = vmatmul.bf16.gmra.mxu0 %v7176
        %v7445 = vpop.f32.mrf.mxu0
        %v7446 = vadd.f32 %v7397, %v7445
        %v7447 = vpop.f32.mrf.mxu0
        %v7448 = vadd.f32 %v7399, %v7447
        %7449 = vmatmul.bf16.gmra.mxu0 %v7178
        %v7450 = vpop.f32.mrf.mxu0
        %v7451 = vadd.f32 %v7402, %v7450
        %v7452 = vpop.f32.mrf.mxu0
        %v7453 = vadd.f32 %v7404, %v7452
        %7454 = vmatmul.bf16.gmra.mxu0 %v7180
        %v7455 = vpop.f32.mrf.mxu0
        %v7456 = vadd.f32 %v7407, %v7455
        %v7457 = vpop.f32.mrf.mxu0
        %v7458 = vadd.f32 %v7409, %v7457
        %7459 = vmatmul.bf16.gmra.mxu0 %v7182
        %v7460 = vpop.f32.mrf.mxu0
        %v7461 = vadd.f32 %v7412, %v7460
        %v7462 = vpop.f32.mrf.mxu0
        %v7463 = vadd.f32 %v7414, %v7462
        %7464 = vmatmul.bf16.gmra.mxu0 %v7184
        %v7465 = vpop.f32.mrf.mxu0
        %v7466 = vadd.f32 %v7417, %v7465
        %v7467 = vpop.f32.mrf.mxu0
        %v7468 = vadd.f32 %v7419, %v7467
        %7469 = vmatmul.bf16.gmra.mxu0 %v7186
        %v7470 = vpop.f32.mrf.mxu0
        %v7471 = vadd.f32 %v7422, %v7470
        %v7472 = vpop.f32.mrf.mxu0
        %v7473 = vadd.f32 %v7424, %v7472
        %7474 = vmatmul.bf16.gmra.mxu0 %v7188
        %v7475 = vpop.f32.mrf.mxu0
        %v7476 = vadd.f32 %v7427, %v7475
        %v7477 = vpop.f32.mrf.mxu0
        %v7478 = vadd.f32 %v7429, %v7477
        %7479 = vdwg.mxu0
        %7480 = vmatpush.bf16.msra.mxu0 %v7333
        %7481 = vmatpush.bf16.msra.mxu0 %v7331
        %7482 = vmatpush.bf16.msra.mxu0 %v7329
        %7483 = vmatpush.bf16.msra.mxu0 %v7327
        %7484 = vmatpush.bf16.msra.mxu0 %v7325
        %7485 = vmatpush.bf16.msra.mxu0 %v7323
        %7486 = vmatpush.bf16.msra.mxu0 %v7321
        %7487 = vmatpush.bf16.msra.mxu0 %v7319
        %7488 = vmatmul.bf16.gmra.mxu0 %v7173
        %v7489 = vpop.f32.mrf.mxu0
        %v7490 = vadd.f32 0.0, %v7489
        %v7491 = vpop.f32.mrf.mxu0
        %v7492 = vadd.f32 0.0, %v7491
        %7493 = vmatmul.bf16.gmra.mxu0 %v7175
        %v7494 = vpop.f32.mrf.mxu0
        %v7495 = vadd.f32 0.0, %v7494
        %v7496 = vpop.f32.mrf.mxu0
        %v7497 = vadd.f32 0.0, %v7496
        %7498 = vmatmul.bf16.gmra.mxu0 %v7177
        %v7499 = vpop.f32.mrf.mxu0
        %v7500 = vadd.f32 0.0, %v7499
        %v7501 = vpop.f32.mrf.mxu0
        %v7502 = vadd.f32 0.0, %v7501
        %7503 = vmatmul.bf16.gmra.mxu0 %v7179
        %v7504 = vpop.f32.mrf.mxu0
        %v7505 = vadd.f32 0.0, %v7504
        %v7506 = vpop.f32.mrf.mxu0
        %v7507 = vadd.f32 0.0, %v7506
        %7508 = vmatmul.bf16.gmra.mxu0 %v7181
        %v7509 = vpop.f32.mrf.mxu0
        %v7510 = vadd.f32 0.0, %v7509
        %v7511 = vpop.f32.mrf.mxu0
        %v7512 = vadd.f32 0.0, %v7511
        %7513 = vmatmul.bf16.gmra.mxu0 %v7183
        %v7514 = vpop.f32.mrf.mxu0
        %v7515 = vadd.f32 0.0, %v7514
        %v7516 = vpop.f32.mrf.mxu0
        %v7517 = vadd.f32 0.0, %v7516
        %7518 = vmatmul.bf16.gmra.mxu0 %v7185
        %v7519 = vpop.f32.mrf.mxu0
        %v7520 = vadd.f32 0.0, %v7519
        %v7521 = vpop.f32.mrf.mxu0
        %v7522 = vadd.f32 0.0, %v7521
        %7523 = vmatmul.bf16.gmra.mxu0 %v7187
        %v7524 = vpop.f32.mrf.mxu0
        %v7525 = vadd.f32 0.0, %v7524
        %v7526 = vpop.f32.mrf.mxu0
        %v7527 = vadd.f32 0.0, %v7526
        %7528 = vdwg.mxu0
        %7529 = vmatpush.bf16.msra.mxu0 %v7349
        %7530 = vmatpush.bf16.msra.mxu0 %v7347
        %7531 = vmatpush.bf16.msra.mxu0 %v7345
        %7532 = vmatpush.bf16.msra.mxu0 %v7343
        %7533 = vmatpush.bf16.msra.mxu0 %v7341
        %7534 = vmatpush.bf16.msra.mxu0 %v7339
        %7535 = vmatpush.bf16.msra.mxu0 %v7337
        %7536 = vmatpush.bf16.msra.mxu0 %v7335
        %7537 = vmatmul.bf16.gmra.mxu0 %v7174
        %v7538 = vpop.f32.mrf.mxu0
        %v7539 = vadd.f32 %v7490, %v7538
        %v7540 = vpop.f32.mrf.mxu0
        %v7541 = vadd.f32 %v7492, %v7540
        %7542 = vmatmul.bf16.gmra.mxu0 %v7176
        %v7543 = vpop.f32.mrf.mxu0
        %v7544 = vadd.f32 %v7495, %v7543
        %v7545 = vpop.f32.mrf.mxu0
        %v7546 = vadd.f32 %v7497, %v7545
        %7547 = vmatmul.bf16.gmra.mxu0 %v7178
        %v7548 = vpop.f32.mrf.mxu0
        %v7549 = vadd.f32 %v7500, %v7548
        %v7550 = vpop.f32.mrf.mxu0
        %v7551 = vadd.f32 %v7502, %v7550
        %7552 = vmatmul.bf16.gmra.mxu0 %v7180
        %v7553 = vpop.f32.mrf.mxu0
        %v7554 = vadd.f32 %v7505, %v7553
        %v7555 = vpop.f32.mrf.mxu0
        %v7556 = vadd.f32 %v7507, %v7555
        %7557 = vmatmul.bf16.gmra.mxu0 %v7182
        %v7558 = vpop.f32.mrf.mxu0
        %v7559 = vadd.f32 %v7510, %v7558
        %v7560 = vpop.f32.mrf.mxu0
        %v7561 = vadd.f32 %v7512, %v7560
        %7562 = vmatmul.bf16.gmra.mxu0 %v7184
        %v7563 = vpop.f32.mrf.mxu0
        %v7564 = vadd.f32 %v7515, %v7563
        %v7565 = vpop.f32.mrf.mxu0
        %v7566 = vadd.f32 %v7517, %v7565
        %7567 = vmatmul.bf16.gmra.mxu0 %v7186
        %v7568 = vpop.f32.mrf.mxu0
        %v7569 = vadd.f32 %v7520, %v7568
        %v7570 = vpop.f32.mrf.mxu0
        %v7571 = vadd.f32 %v7522, %v7570
        %7572 = vmatmul.bf16.gmra.mxu0 %v7188
        %v7573 = vpop.f32.mrf.mxu0
        %v7574 = vadd.f32 %v7525, %v7573
        %v7575 = vpop.f32.mrf.mxu0
        %v7576 = vadd.f32 %v7527, %v7575
        %7577 = vdwg.mxu0
        %v7578 = vadd.f32 %v5527, %v7441
        %v7579 = vadd.f32 %v5528, %v7539
        %v7580 = vadd.f32 %v5529, %v7443
        %v7581 = vadd.f32 %v5530, %v7541
        %v7582 = vadd.f32 %v5531, %v7446
        %v7583 = vadd.f32 %v5532, %v7544
        %v7584 = vadd.f32 %v5533, %v7448
        %v7585 = vadd.f32 %v5534, %v7546
        %v7586 = vadd.f32 %v5535, %v7451
        %v7587 = vadd.f32 %v5536, %v7549
        %v7588 = vadd.f32 %v5537, %v7453
        %v7589 = vadd.f32 %v5538, %v7551
        %v7590 = vadd.f32 %v5539, %v7456
        %v7591 = vadd.f32 %v5540, %v7554
        %v7592 = vadd.f32 %v5541, %v7458
        %v7593 = vadd.f32 %v5542, %v7556
        %v7594 = vadd.f32 %v5543, %v7461
        %v7595 = vadd.f32 %v5544, %v7559
        %v7596 = vadd.f32 %v5545, %v7463
        %v7597 = vadd.f32 %v5546, %v7561
        %v7598 = vadd.f32 %v5547, %v7466
        %v7599 = vadd.f32 %v5548, %v7564
        %v7600 = vadd.f32 %v5549, %v7468
        %v7601 = vadd.f32 %v5550, %v7566
        %v7602 = vadd.f32 %v5551, %v7471
        %v7603 = vadd.f32 %v5552, %v7569
        %v7604 = vadd.f32 %v5553, %v7473
        %v7605 = vadd.f32 %v5554, %v7571
        %v7606 = vadd.f32 %v5555, %v7476
        %v7607 = vadd.f32 %v5556, %v7574
        %v7608 = vadd.f32 %v5557, %v7478
        %v7609 = vadd.f32 %v5558, %v7576
        %v7610 = vld [vmem:[%s442] sm:$0x3]
        %v7612 = vperm.slane %v7610, 0
        %v7613 = vperm.slane %v7610, 1
        %v7616 = vadd.f32 %v7578, %v7612
        %v7617 = vadd.f32 %v7579, %v7613
        %v7618 = vadd.f32 %v7580, %v7612
        %v7619 = vadd.f32 %v7581, %v7613
        %v7620 = vadd.f32 %v7582, %v7612
        %v7621 = vadd.f32 %v7583, %v7613
        %v7622 = vadd.f32 %v7584, %v7612
        %v7623 = vadd.f32 %v7585, %v7613
        %v7624 = vadd.f32 %v7586, %v7612
        %v7625 = vadd.f32 %v7587, %v7613
        %v7626 = vadd.f32 %v7588, %v7612
        %v7627 = vadd.f32 %v7589, %v7613
        %v7628 = vadd.f32 %v7590, %v7612
        %v7629 = vadd.f32 %v7591, %v7613
        %v7630 = vadd.f32 %v7592, %v7612
        %v7631 = vadd.f32 %v7593, %v7613
        %v7632 = vadd.f32 %v7594, %v7612
        %v7633 = vadd.f32 %v7595, %v7613
        %v7634 = vadd.f32 %v7596, %v7612
        %v7635 = vadd.f32 %v7597, %v7613
        %v7636 = vadd.f32 %v7598, %v7612
        %v7637 = vadd.f32 %v7599, %v7613
        %v7638 = vadd.f32 %v7600, %v7612
        %v7639 = vadd.f32 %v7601, %v7613
        %v7640 = vadd.f32 %v7602, %v7612
        %v7641 = vadd.f32 %v7603, %v7613
        %v7642 = vadd.f32 %v7604, %v7612
        %v7643 = vadd.f32 %v7605, %v7613
        %v7644 = vadd.f32 %v7606, %v7612
        %v7645 = vadd.f32 %v7607, %v7613
        %v7646 = vadd.f32 %v7608, %v7612
        %v7647 = vadd.f32 %v7609, %v7613
        %v7648 = vld [vmem:[%s11] sm:$0x3]
        %v7650 = vperm.slane %v7648, 0
        %v7651 = vperm.slane %v7648, 1
        %v7654 = vadd.f32 %v7616, %v7650
        %v7655 = vadd.f32 %v7617, %v7651
        %v7656 = vadd.f32 %v7618, %v7650
        %v7657 = vadd.f32 %v7619, %v7651
        %v7658 = vadd.f32 %v7620, %v7650
        %v7659 = vadd.f32 %v7621, %v7651
        %v7660 = vadd.f32 %v7622, %v7650
        %v7661 = vadd.f32 %v7623, %v7651
        %v7662 = vadd.f32 %v7624, %v7650
        %v7663 = vadd.f32 %v7625, %v7651
        %v7664 = vadd.f32 %v7626, %v7650
        %v7665 = vadd.f32 %v7627, %v7651
        %v7666 = vadd.f32 %v7628, %v7650
        %v7667 = vadd.f32 %v7629, %v7651
        %v7668 = vadd.f32 %v7630, %v7650
        %v7669 = vadd.f32 %v7631, %v7651
        %v7670 = vadd.f32 %v7632, %v7650
        %v7671 = vadd.f32 %v7633, %v7651
        %v7672 = vadd.f32 %v7634, %v7650
        %v7673 = vadd.f32 %v7635, %v7651
        %v7674 = vadd.f32 %v7636, %v7650
        %v7675 = vadd.f32 %v7637, %v7651
        %v7676 = vadd.f32 %v7638, %v7650
        %v7677 = vadd.f32 %v7639, %v7651
        %v7678 = vadd.f32 %v7640, %v7650
        %v7679 = vadd.f32 %v7641, %v7651
        %v7680 = vadd.f32 %v7642, %v7650
        %v7681 = vadd.f32 %v7643, %v7651
        %v7682 = vadd.f32 %v7644, %v7650
        %v7683 = vadd.f32 %v7645, %v7651
        %v7684 = vadd.f32 %v7646, %v7650
        %v7685 = vadd.f32 %v7647, %v7651
        %v7686 = vmax.f32 %v7654, 0.0
        %v7687 = vmax.f32 %v7655, 0.0
        %v7688 = vmax.f32 %v7656, 0.0
        %v7689 = vmax.f32 %v7657, 0.0
        %v7690 = vmax.f32 %v7658, 0.0
        %v7691 = vmax.f32 %v7659, 0.0
        %v7692 = vmax.f32 %v7660, 0.0
        %v7693 = vmax.f32 %v7661, 0.0
        %v7694 = vmax.f32 %v7662, 0.0
        %v7695 = vmax.f32 %v7663, 0.0
        %v7696 = vmax.f32 %v7664, 0.0
        %v7697 = vmax.f32 %v7665, 0.0
        %v7698 = vmax.f32 %v7666, 0.0
        %v7699 = vmax.f32 %v7667, 0.0
        %v7700 = vmax.f32 %v7668, 0.0
        %v7701 = vmax.f32 %v7669, 0.0
        %v7702 = vmax.f32 %v7670, 0.0
        %v7703 = vmax.f32 %v7671, 0.0
        %v7704 = vmax.f32 %v7672, 0.0
        %v7705 = vmax.f32 %v7673, 0.0
        %v7706 = vmax.f32 %v7674, 0.0
        %v7707 = vmax.f32 %v7675, 0.0
        %v7708 = vmax.f32 %v7676, 0.0
        %v7709 = vmax.f32 %v7677, 0.0
        %v7710 = vmax.f32 %v7678, 0.0
        %v7711 = vmax.f32 %v7679, 0.0
        %v7712 = vmax.f32 %v7680, 0.0
        %v7713 = vmax.f32 %v7681, 0.0
        %v7714 = vmax.f32 %v7682, 0.0
        %v7715 = vmax.f32 %v7683, 0.0
        %v7716 = vmax.f32 %v7684, 0.0
        %v7717 = vmax.f32 %v7685, 0.0
        %7718 = vst [vmem:[%s433] sm:$0xff] %v7686
        %7719 = vst [vmem:[%s433 + $0x8] sm:$0xff] %v7687
        %7720 = vst [vmem:[%s433 + $0x10] sm:$0xff] %v7688
        %7721 = vst [vmem:[%s433 + $0x18] sm:$0xff] %v7689
        %7722 = vst [vmem:[%s433 + $0x20] sm:$0xff] %v7690
        %7723 = vst [vmem:[%s433 + $0x28] sm:$0xff] %v7691
        %7724 = vst [vmem:[%s433 + $0x30] sm:$0xff] %v7692
        %7725 = vst [vmem:[%s433 + $0x38] sm:$0xff] %v7693
        %7726 = vst [vmem:[%s433 + $0x40] sm:$0xff] %v7694
        %7727 = vst [vmem:[%s433 + $0x48] sm:$0xff] %v7695
        %7728 = vst [vmem:[%s433 + $0x50] sm:$0xff] %v7696
        %7729 = vst [vmem:[%s433 + $0x58] sm:$0xff] %v7697
        %7730 = vst [vmem:[%s433 + $0x60] sm:$0xff] %v7698
        %7731 = vst [vmem:[%s433 + $0x68] sm:$0xff] %v7699
        %7732 = vst [vmem:[%s433 + $0x70] sm:$0xff] %v7700
        %7733 = vst [vmem:[%s433 + $0x78] sm:$0xff] %v7701
        %7734 = vst [vmem:[%s433 + $0x80] sm:$0xff] %v7702
        %7735 = vst [vmem:[%s433 + $0x88] sm:$0xff] %v7703
        %7736 = vst [vmem:[%s433 + $0x90] sm:$0xff] %v7704
        %7737 = vst [vmem:[%s433 + $0x98] sm:$0xff] %v7705
        %7738 = vst [vmem:[%s433 + $0xa0] sm:$0xff] %v7706
        %7739 = vst [vmem:[%s433 + $0xa8] sm:$0xff] %v7707
        %7740 = vst [vmem:[%s433 + $0xb0] sm:$0xff] %v7708
        %7741 = vst [vmem:[%s433 + $0xb8] sm:$0xff] %v7709
        %7742 = vst [vmem:[%s433 + $0xc0] sm:$0xff] %v7710
        %7743 = vst [vmem:[%s433 + $0xc8] sm:$0xff] %v7711
        %7744 = vst [vmem:[%s433 + $0xd0] sm:$0xff] %v7712
        %7745 = vst [vmem:[%s433 + $0xd8] sm:$0xff] %v7713
        %7746 = vst [vmem:[%s433 + $0xe0] sm:$0xff] %v7714
        %7747 = vst [vmem:[%s433 + $0xe8] sm:$0xff] %v7715
        %7748 = vst [vmem:[%s433 + $0xf0] sm:$0xff] %v7716
        %7749 = vst [vmem:[%s433 + $0xf8] sm:$0xff] %v7717
        %s7750 = sand.u32 %s310, 1
        %s7751 = scalar_lea.sflag [#allocation3], %s7750
        %s7752 = sand.u32 %s310, 1
        %s7753 = smul.addr %s7752, 256
        %s7754 = scalar_lea.vmem [#allocation2], %s7753
        // Predicated region
        $region69: #{aspp_forward.1} parent=67 // pred_check
          %p7755 = pneg %p320
        $region70: #{aspp_forward.1} parent=67 // pred_check_branch
          %7757 = sbr.rel (%p7755) target = $region72
        $region71: #{aspp_forward.1} parent=67 // pred_region
          %s7758 = smul.u32 8, %s31
          %7760 = vsyncadd %s7751, 0
          %s7761 = smul.addr %s7758, 4
          %s7762 = smul.addr %s30, 64
          %s7763 = sadd.s32 %s7761, %s7762
          %s7764 = smul.addr %s7763, 8
          %s7765 = scalar_lea.hbm %s12, %s7764
          %s7766 = sshll.u32 %s7754, 4
          %s7767 = int_to_ptr.vmem [resolvable:$true] %s7766
          %s7768 = sshll.u32 %s7765, 4
          %s7769 = int_to_ptr.hbm [resolvable:$true] %s7768
          %7774 = dma.vmem_to_hbm [thread:$0]  %s7767, 4096, %s7769, %s7751, 256, 256, 16
        $region72: #{aspp_forward.1} parent=67 // pred_fallthru
          _
      $region68: #{aspp_forward.1} parent=5 // pred_fallthru
        _
      %p7775 = scmp.le.s32.totalorder 2, %s21
      // Predicated region
      $region73: #{aspp_forward.1} parent=5 // pred_check
        %p7776 = pneg %p7775
      $region74: #{aspp_forward.1} parent=5 // pred_check_branch
        %7778 = sbr.rel (%p7776) target = $region76
      $region75: #{aspp_forward.1} parent=5 // pred_region
        %s7779 = ssub.s32 %s21, 2
        // Predicated region
        $region77: #{aspp_forward.1} parent=75 // pred_check
          %p7780 = pneg %p326
        $region78: #{aspp_forward.1} parent=75 // pred_check_branch
          %7782 = sbr.rel (%p7780) target = $region80
        $region79: #{aspp_forward.1} parent=75 // pred_region
          %s7783 = sand.u32 %s311, 1
          %s7784 = scalar_lea.sflag [#allocation3], %s7783
          %s7785 = sand.u32 %s311, 1
          %s7786 = smul.addr %s7785, 256
          %s7787 = scalar_lea.vmem [#allocation2], %s7786
          %7789 = dma.done %s7784, 4096
        $region80: #{aspp_forward.1} parent=75 // pred_fallthru
          _
      $region76: #{aspp_forward.1} parent=5 // pred_fallthru
        _
    $region6: #{aspp_forward.1} parent=1 // loop_footer
      %s25 = sadd.s32 1, %s21
    $region7: #{aspp_forward.1} parent=1 // loop_footer_branch
      %20 = sbr.rel target = $region3
    $region8: #{aspp_forward.1} parent=1 // loop_exit
      _
    %7790 = vsyncpa [#allocation3], 1
    %s7791 = scalar_lea.sflag [#allocation3], 1
    %7792 = vsyncpa %s7791, 1

</llo_original>
